<compile_context>
chip_gen: v7x
topology: tpu7x:2x2x1
jax: 0.10.0
libtpu: 0.0.40
codegen_flags: <defaults>
</compile_context>

<pallas_src>
import numpy as np
import jax
import jax.numpy as jnp
from jax.experimental import pallas as pl
from jax.experimental.pallas import tpu as pltpu

# --- toy config (d_hidn = n_head * d_head) ---
B = 2            # batch
S = 8            # decoder sequence length (n_dec_seq)
S_ENC = 8        # encoder sequence length
D = 32           # d_hidn / d_model
H = 4            # n_head
DH = D // H      # d_head
DFF = 4 * D      # FFN hidden (d_hidn * 4) = 128 (lane-dense)
NL = 2           # n_layer
V_DEC = 32       # n_dec_vocab
POS_ROWS = 16    # sinusoid table rows padded 9 -> 16
PAD = 0          # i_pad
EPS = 1e-6       # layer_norm_epsilon
SCALE = 1.0 / (DH ** 0.5)
BS = B * S
BSE = B * S_ENC
NPARAMS = 20     # stacked per-layer parameter arrays
NEG = -1e9


def _layernorm(x, gamma, beta):
    mu = jnp.mean(x, axis=-1, keepdims=True)
    var = jnp.mean((x - mu) ** 2, axis=-1, keepdims=True)
    return (x - mu) * jax.lax.rsqrt(var + EPS) * gamma + beta


def _gelu(x):
    # TODO(synk): PyTorch F.gelu default is erf-exact; tanh approximation used because
    # erf is not reliably lowerable inside Mosaic kernels (the in-file reference matches).
    c = 0.7978845608028654  # sqrt(2/pi)
    return 0.5 * x * (1.0 + jnp.tanh(c * (x + 0.044715 * x * x * x)))


def get_sinusoid_encoding_table(n_seq, d_model):
    pos = np.arange(n_seq)[:, None].astype(np.float64)
    i = np.arange(d_model)[None, :]
    angle = pos / np.power(10000, 2 * (i // 2) / d_model)
    table = np.zeros((n_seq, d_model))
    table[:, 0::2] = np.sin(angle[:, 0::2])
    table[:, 1::2] = np.cos(angle[:, 1::2])
    return jnp.asarray(table, dtype=jnp.float32)


# --------------------------------------------------------------------------------------
# Pallas kernel: the whole decoder forward in one invocation (no grid).
# --------------------------------------------------------------------------------------
def decoder_kernel(dec_ids_ref, pos_ids_ref, self_mask_ref, enc_mask_ref,
                   enc_out_ref, emb_ref, *rest):
    param_refs = rest[:NPARAMS]
    out_ref, self_prob_ref, cross_prob_ref = rest[NPARAMS:]

    # ---- token + position embedding as ONE two-hot MXU matmul over a fused table ----
    ids = dec_ids_ref[...]                                           # (BS, 1) i32
    pos = pos_ids_ref[...]                                           # (BS, 1) i32, +V_DEC
    iota = jax.lax.broadcasted_iota(jnp.int32, (BS, V_DEC + POS_ROWS), 1)
    two_hot = jnp.logical_or(ids == iota, pos == iota).astype(jnp.float32)
    x = jnp.dot(two_hot, emb_ref[...], preferred_element_type=jnp.float32)   # (BS, D)

    # Hoisted, layer-invariant inputs (additive masks already carry the -1e9
    # block-diagonal that keeps the two batches from attending to each other).
    self_add = self_mask_ref[...]                                    # (BS, BS)  float
    enc_add = enc_mask_ref[...]                                      # (BS, BSE) float
    enc = enc_out_ref[...]                                           # (BSE, D)

    def attention(q_flat, k_flat, v_flat, addmask, prob_ref, layer, wo, bo):
        # q_flat:(nq,D), k_flat/v_flat:(nk,D) — heads packed along lanes.
        qh = jnp.stack([q_flat[:, h * DH:(h + 1) * DH] for h in range(H)], axis=0)
        kh = jnp.stack([k_flat[:, h * DH:(h + 1) * DH] for h in range(H)], axis=0)
        vh = jnp.stack([v_flat[:, h * DH:(h + 1) * DH] for h in range(H)], axis=0)
        scores = jnp.einsum('hqd,hkd->hqk', qh, kh,
                            preferred_element_type=jnp.float32) * SCALE       # (H,nq,nk)
        scores = scores + addmask[None, :, :]
        m = jnp.max(scores, axis=-1, keepdims=True)
        e = jnp.exp(scores - m)
        den = jnp.sum(e, axis=-1, keepdims=True)
        r = pl.reciprocal(den, approx=True)          # EUP slot
        r = r * (2.0 - den * r)                      # one Newton step -> ~f32 exact
        probs = e * r                                # (H, nq, nk)
        prob_ref[layer] = probs                      # single dense store per layer
        ctx_h = jnp.einsum('hqk,hkd->hqd', probs, vh,
                           preferred_element_type=jnp.float32)                # (H,nq,DH)
        # pack heads back to lanes, then ONE full-width output projection:
        ctx = jnp.concatenate([ctx_h[h] for h in range(H)], axis=-1)          # (nq, D)
        return jnp.dot(ctx, wo, preferred_element_type=jnp.float32) + bo      # (nq, D)

    for l in range(NL):
        (sa_wqkv, sa_bqkv, sa_wo, sa_bo, ln1_g, ln1_b,
         ca_wq, ca_bq, ca_wkv, ca_bkv, ca_wo, ca_bo, ln2_g, ln2_b,
         fw1, fb1, fw2, fb2, ln3_g, ln3_b) = [r[l] for r in param_refs]

        # masked self-attention: fused QKV projection (one (BS,D)x(D,3D) MXU pass)
        qkv = jnp.dot(x, sa_wqkv, preferred_element_type=jnp.float32) + sa_bqkv  # (BS,3D)
        sa = attention(qkv[:, :D], qkv[:, D:2 * D], qkv[:, 2 * D:],
                       self_add, self_prob_ref, l, sa_wo, sa_bo)
        x = _layernorm(x + sa, ln1_g, ln1_b)

        # encoder-decoder attention: Q from x, fused KV projection from encoder slab
        q = jnp.dot(x, ca_wq, preferred_element_type=jnp.float32) + ca_bq        # (BS,D)
        kv = jnp.dot(enc, ca_wkv, preferred_element_type=jnp.float32) + ca_bkv   # (BSE,2D)
        ca = attention(q, kv[:, :D], kv[:, D:],
                       enc_add, cross_prob_ref, l, ca_wo, ca_bo)
        x = _layernorm(x + ca, ln2_g, ln2_b)

        # position-wise FFN (Conv1d k=1 == per-position Linear) + residual + LayerNorm3
        hid = _gelu(jnp.dot(x, fw1, preferred_element_type=jnp.float32) + fb1)   # (BS,DFF)
        ffn = jnp.dot(hid, fw2, preferred_element_type=jnp.float32) + fb2
        x = _layernorm(x + ffn, ln3_g, ln3_b)

    out_ref[...] = x        # (BS, D)


# --------------------------------------------------------------------------------------
# Wrapper: integer / mask prep in plain JAX, one pallas_call for everything else.
# --------------------------------------------------------------------------------------
def decoder_forward(dec_ids, enc_ids, enc_outputs, tok_emb, pos_table_pad, stacked):
    pad_dec = dec_ids == PAD
    positions = jnp.where(pad_dec, 0,
                          jnp.broadcast_to(jnp.arange(1, S + 1, dtype=jnp.int32), (B, S)))
    causal = jnp.triu(jnp.ones((S, S), jnp.bool_), k=1)
    self_masked = pad_dec[:, None, :] | causal[None, :, :]                 # (B,S,S)
    enc_masked = jnp.broadcast_to((enc_ids == PAD)[:, None, :], (B, S, S_ENC))

    # Additive block-diagonal masks: cross-batch = -1e9, masked in-batch = -1e9, else 0.
    def block_diag_add(mask_b, n_kv):
        add = jnp.full((BS, B * n_kv), NEG, jnp.float32)
        for b in range(B):
            blk = jnp.where(mask_b[b], jnp.float32(NEG), jnp.float32(0.0))
            add = add.at[b * S:(b + 1) * S, b * n_kv:(b + 1) * n_kv].set(blk)
        return add

    self_add = block_diag_add(self_masked, S)        # (BS, BS)
    enc_add = block_diag_add(enc_masked, S_ENC)      # (BS, BSE)

    emb_table = jnp.concatenate([tok_emb, pos_table_pad], axis=0)   # (V_DEC+POS_ROWS, D)

    out, sp_raw, cp_raw = pl.pallas_call(
        decoder_kernel,
        out_shape=(jax.ShapeDtypeStruct((BS, D), jnp.float32),
                   jax.ShapeDtypeStruct((NL, H, BS, BS), jnp.float32),
                   jax.ShapeDtypeStruct((NL, H, BS, BSE), jnp.float32)),
        compiler_params=pltpu.CompilerParams(vmem_limit_bytes=32 * 1024 * 1024),
    )(dec_ids.reshape(BS, 1).astype(jnp.int32),
      (positions.reshape(BS, 1) + V_DEC).astype(jnp.int32),
      self_add, enc_add,
      enc_outputs.reshape(BSE, D),
      emb_table,
      *stacked)

    # Host-side (free) extraction of the per-batch blocks from the folded prob slabs.
    self_probs = jnp.stack(
        [sp_raw[:, :, b * S:(b + 1) * S, b * S:(b + 1) * S] for b in range(B)], axis=1)
    cross_probs = jnp.stack(
        [cp_raw[:, :, b * S:(b + 1) * S, b * S_ENC:(b + 1) * S_ENC] for b in range(B)],
        axis=1)
    return out.reshape(B, S, D), self_probs, cross_probs


# --------------------------------------------------------------------------------------
# Host-side parameter packing: fuse QKV / KV, stack over layers.
# --------------------------------------------------------------------------------------
def make_stacked(layers):
    def row(b):
        return b.reshape(1, -1)

    per_layer = []
    for lp in layers:
        p = [
            jnp.concatenate([lp["sa_wq"], lp["sa_wk"], lp["sa_wv"]], axis=1),      # (D,3D)
            jnp.concatenate([lp["sa_bq"], lp["sa_bk"], lp["sa_bv"]], axis=0).reshape(1, -1),
            lp["sa_wo"], row(lp["sa_bo"]),
            row(lp["ln1_g"]), row(lp["ln1_b"]),
            lp["ca_wq"], row(lp["ca_bq"]),
            jnp.concatenate([lp["ca_wk"], lp["ca_wv"]], axis=1),                   # (D,2D)
            jnp.concatenate([lp["ca_bk"], lp["ca_bv"]], axis=0).reshape(1, -1),
            lp["ca_wo"], row(lp["ca_bo"]),
            row(lp["ln2_g"]), row(lp["ln2_b"]),
            lp["w1"], row(lp["b1"]),
            lp["w2"], row(lp["b2"]),
            row(lp["ln3_g"]), row(lp["ln3_b"]),
        ]
        assert len(p) == NPARAMS
        per_layer.append(p)
    return [jnp.stack([per_layer[l][i] for l in range(NL)], axis=0)
            for i in range(NPARAMS)]


# --------------------------------------------------------------------------------------
# Pure-JAX reference (mirrors the PyTorch Decoder.forward)
# --------------------------------------------------------------------------------------
def mha_ref(xq, xkv, mask, wq, bq, wk, bk, wv, bv, wo, bo):
    nb, sq, _ = xq.shape
    sk = xkv.shape[1]
    q = (xq @ wq + bq).reshape(nb, sq, H, DH).transpose(0, 2, 1, 3)
    k = (xkv @ wk + bk).reshape(nb, sk, H, DH).transpose(0, 2, 1, 3)
    v = (xkv @ wv + bv).reshape(nb, sk, H, DH).transpose(0, 2, 1, 3)
    scores = jnp.einsum('bhqd,bhkd->bhqk', q, k) * SCALE
    scores = jnp.where(mask[:, None, :, :], NEG, scores)
    prob = jax.nn.softmax(scores, axis=-1)
    ctx = jnp.einsum('bhqk,bhkd->bhqd', prob, v).transpose(0, 2, 1, 3).reshape(nb, sq, D)
    return ctx @ wo + bo, prob


def reference(dec_ids, enc_ids, enc_outputs, tok_emb, pos_table, layers):
    pad_dec = dec_ids == PAD
    positions = jnp.where(pad_dec, 0,
                          jnp.broadcast_to(jnp.arange(1, S + 1, dtype=jnp.int32), (B, S)))
    x = tok_emb[dec_ids] + pos_table[positions]
    causal = jnp.triu(jnp.ones((S, S), jnp.bool_), k=1)
    self_mask = jnp.broadcast_to(pad_dec[:, None, :], (B, S, S)) | causal[None, :, :]
    enc_mask = jnp.broadcast_to((enc_ids == PAD)[:, None, :], (B, S, S_ENC))
    sps, cps = [], []
    for lp in layers:
        sa, sp = mha_ref(x, x, self_mask,
                         lp["sa_wq"], lp["sa_bq"], lp["sa_wk"], lp["sa_bk"],
                         lp["sa_wv"], lp["sa_bv"], lp["sa_wo"], lp["sa_bo"])
        x = _layernorm(x + sa, lp["ln1_g"], lp["ln1_b"])
        ca, cp = mha_ref(x, enc_outputs, enc_mask,
                         lp["ca_wq"], lp["ca_bq"], lp["ca_wk"], lp["ca_bk"],
                         lp["ca_wv"], lp["ca_bv"], lp["ca_wo"], lp["ca_bo"])
        x = _layernorm(x + ca, lp["ln2_g"], lp["ln2_b"])
        hid = _gelu(x @ lp["w1"] + lp["b1"])
        ffn = hid @ lp["w2"] + lp["b2"]
        x = _layernorm(x + ffn, lp["ln3_g"], lp["ln3_b"])
        sps.append(sp)
        cps.append(cp)
    return x, jnp.stack(sps, axis=0), jnp.stack(cps, axis=0)


if __name__ == "__main__":
    root = jax.random.PRNGKey(0)
    kiter = iter(jax.random.split(root, 256))

    def rnd(shape, scale=0.05):
        return jax.random.normal(next(kiter), shape, jnp.float32) * scale

    # Embedding tables
    tok_emb = rnd((V_DEC, D), 0.1)
    pos_table = get_sinusoid_encoding_table(S + 1, D)                      # (9, D)
    pos_table_pad = jnp.zeros((POS_ROWS, D), jnp.float32).at[:S + 1].set(pos_table)

    # "Encoder outputs" and token ids (id 0 == pad)
    enc_outputs = rnd((B, S_ENC, D), 1.0)
    dec_ids = jnp.array([[5, 9, 3, 7, 2, 0, 0, 0],
                         [4, 8, 6, 1, 3, 9, 2, 0]], jnp.int32)
    enc_ids = jnp.array([[11, 3, 7, 9, 12, 0, 0, 0],
                         [6, 2, 8, 4, 5, 1, 13, 0]], jnp.int32)

    # Per-layer parameters in natural nn.Linear / Conv1d(k=1) (in, out) layout.
    layers = []
    for _ in range(NL):
        lp = {}
        for pre in ("sa", "ca"):
            for nm in ("q", "k", "v", "o"):
                lp[f"{pre}_w{nm}"] = rnd((D, D))
                lp[f"{pre}_b{nm}"] = rnd((D,))
        for i in (1, 2, 3):
            lp[f"ln{i}_g"] = 1.0 + rnd((D,))
            lp[f"ln{i}_b"] = rnd((D,))
        lp["w1"] = rnd((D, DFF)); lp["b1"] = rnd((DFF,))
        lp["w2"] = rnd((DFF, D)); lp["b2"] = rnd((D,))
        layers.append(lp)

    stacked = make_stacked(layers)

    out, self_probs, cross_probs = decoder_forward(
        dec_ids, enc_ids, enc_outputs, tok_emb, pos_table_pad, stacked)
    out = jax.block_until_ready(out)
    self_probs = jax.block_until_ready(self_probs)
    cross_probs = jax.block_until_ready(cross_probs)

    ref_out, ref_sp, ref_cp = reference(dec_ids, enc_ids, enc_outputs,
                                        tok_emb, pos_table, layers)
    assert jnp.allclose(out, ref_out, rtol=1e-4, atol=1e-4)
    assert jnp.allclose(self_probs, ref_sp, rtol=1e-4, atol=1e-4)
    assert jnp.allclose(cross_probs, ref_cp, rtol=1e-4, atol=1e-4)

    print("KERNEL_OK")
</pallas_src>

<mosaic_0001>
module attributes {stable_mosaic.version = 11 : i64} {
  func.func @decoder_kernel(%arg0: memref<16x1xi32, #tpu.memory_space<vmem>>, %arg1: memref<16x1xi32, #tpu.memory_space<vmem>>, %arg2: memref<16x16xf32, #tpu.memory_space<vmem>>, %arg3: memref<16x16xf32, #tpu.memory_space<vmem>>, %arg4: memref<16x32xf32, #tpu.memory_space<vmem>>, %arg5: memref<48x32xf32, #tpu.memory_space<vmem>>, %arg6: memref<2x32x96xf32, #tpu.memory_space<vmem>>, %arg7: memref<2x1x96xf32, #tpu.memory_space<vmem>>, %arg8: memref<2x32x32xf32, #tpu.memory_space<vmem>>, %arg9: memref<2x1x32xf32, #tpu.memory_space<vmem>>, %arg10: memref<2x1x32xf32, #tpu.memory_space<vmem>>, %arg11: memref<2x1x32xf32, #tpu.memory_space<vmem>>, %arg12: memref<2x32x32xf32, #tpu.memory_space<vmem>>, %arg13: memref<2x1x32xf32, #tpu.memory_space<vmem>>, %arg14: memref<2x32x64xf32, #tpu.memory_space<vmem>>, %arg15: memref<2x1x64xf32, #tpu.memory_space<vmem>>, %arg16: memref<2x32x32xf32, #tpu.memory_space<vmem>>, %arg17: memref<2x1x32xf32, #tpu.memory_space<vmem>>, %arg18: memref<2x1x32xf32, #tpu.memory_space<vmem>>, %arg19: memref<2x1x32xf32, #tpu.memory_space<vmem>>, %arg20: memref<2x32x128xf32, #tpu.memory_space<vmem>>, %arg21: memref<2x1x128xf32, #tpu.memory_space<vmem>>, %arg22: memref<2x128x32xf32, #tpu.memory_space<vmem>>, %arg23: memref<2x1x32xf32, #tpu.memory_space<vmem>>, %arg24: memref<2x1x32xf32, #tpu.memory_space<vmem>>, %arg25: memref<2x1x32xf32, #tpu.memory_space<vmem>>, %arg26: memref<16x32xf32, #tpu.memory_space<vmem>>, %arg27: memref<2x4x16x16xf32, #tpu.memory_space<vmem>>, %arg28: memref<2x4x16x16xf32, #tpu.memory_space<vmem>>) attributes {dimension_semantics = [], scalar_prefetch = 0 : i64, scratch_operands = 0 : i64, tpu.core_type = #tpu.core_type<tc>} {
    %c0 = arith.constant 0 : index
    %c0_0 = arith.constant 0 : index
    %0 = vector.load %arg0[%c0, %c0_0] : memref<16x1xi32, #tpu.memory_space<vmem>>, vector<16x1xi32>
    %c0_1 = arith.constant 0 : index
    %c0_2 = arith.constant 0 : index
    %1 = vector.load %arg1[%c0_1, %c0_2] : memref<16x1xi32, #tpu.memory_space<vmem>>, vector<16x1xi32>
    %2 = tpu.iota {dimensions = array<i32: 1>} : vector<16x48xi32>
    %3 = vector.broadcast %0 : vector<16x1xi32> to vector<16x48xi32>
    %4 = arith.cmpi eq, %3, %2 : vector<16x48xi32>
    %5 = vector.broadcast %1 : vector<16x1xi32> to vector<16x48xi32>
    %6 = arith.cmpi eq, %5, %2 : vector<16x48xi32>
    %7 = arith.ori %4, %6 : vector<16x48xi1>
    %8 = arith.extui %7 : vector<16x48xi1> to vector<16x48xi32>
    %9 = arith.sitofp %8 : vector<16x48xi32> to vector<16x48xf32>
    %c0_3 = arith.constant 0 : index
    %c0_4 = arith.constant 0 : index
    %10 = vector.load %arg5[%c0_3, %c0_4] : memref<48x32xf32, #tpu.memory_space<vmem>>, vector<48x32xf32>
    %cst = arith.constant dense<0.000000e+00> : vector<16x32xf32>
    %11 = tpu.matmul %9, %10, %cst {dimension_numbers = #tpu.dot_dimension_numbers<[1], [0], [0], [1], [0, 0, 1, 1], [], []>} : vector<16x48xf32>, vector<48x32xf32>, vector<16x32xf32> -> vector<16x32xf32>
    %c0_5 = arith.constant 0 : index
    %c0_6 = arith.constant 0 : index
    %12 = vector.load %arg2[%c0_5, %c0_6] : memref<16x16xf32, #tpu.memory_space<vmem>>, vector<16x16xf32>
    %c0_7 = arith.constant 0 : index
    %c0_8 = arith.constant 0 : index
    %13 = vector.load %arg3[%c0_7, %c0_8] : memref<16x16xf32, #tpu.memory_space<vmem>>, vector<16x16xf32>
    %c0_9 = arith.constant 0 : index
    %c0_10 = arith.constant 0 : index
    %14 = vector.load %arg4[%c0_9, %c0_10] : memref<16x32xf32, #tpu.memory_space<vmem>>, vector<16x32xf32>
    %c0_11 = arith.constant 0 : index
    %c0_12 = arith.constant 0 : index
    %c0_13 = arith.constant 0 : index
    %15 = vector.load %arg6[%c0_11, %c0_12, %c0_13] : memref<2x32x96xf32, #tpu.memory_space<vmem>>, vector<1x32x96xf32>
    %16 = vector.shape_cast %15 : vector<1x32x96xf32> to vector<32x96xf32>
    %c0_14 = arith.constant 0 : index
    %c0_15 = arith.constant 0 : index
    %c0_16 = arith.constant 0 : index
    %17 = vector.load %arg7[%c0_14, %c0_15, %c0_16] : memref<2x1x96xf32, #tpu.memory_space<vmem>>, vector<1x1x96xf32>
    %18 = vector.shape_cast %17 : vector<1x1x96xf32> to vector<1x96xf32>
    %c0_17 = arith.constant 0 : index
    %c0_18 = arith.constant 0 : index
    %c0_19 = arith.constant 0 : index
    %19 = vector.load %arg8[%c0_17, %c0_18, %c0_19] : memref<2x32x32xf32, #tpu.memory_space<vmem>>, vector<1x32x32xf32>
    %20 = vector.shape_cast %19 : vector<1x32x32xf32> to vector<32x32xf32>
    %c0_20 = arith.constant 0 : index
    %c0_21 = arith.constant 0 : index
    %c0_22 = arith.constant 0 : index
    %21 = vector.load %arg9[%c0_20, %c0_21, %c0_22] : memref<2x1x32xf32, #tpu.memory_space<vmem>>, vector<1x1x32xf32>
    %22 = vector.shape_cast %21 : vector<1x1x32xf32> to vector<1x32xf32>
    %c0_23 = arith.constant 0 : index
    %c0_24 = arith.constant 0 : index
    %c0_25 = arith.constant 0 : index
    %23 = vector.load %arg10[%c0_23, %c0_24, %c0_25] : memref<2x1x32xf32, #tpu.memory_space<vmem>>, vector<1x1x32xf32>
    %24 = vector.shape_cast %23 : vector<1x1x32xf32> to vector<1x32xf32>
    %c0_26 = arith.constant 0 : index
    %c0_27 = arith.constant 0 : index
    %c0_28 = arith.constant 0 : index
    %25 = vector.load %arg11[%c0_26, %c0_27, %c0_28] : memref<2x1x32xf32, #tpu.memory_space<vmem>>, vector<1x1x32xf32>
    %26 = vector.shape_cast %25 : vector<1x1x32xf32> to vector<1x32xf32>
    %c0_29 = arith.constant 0 : index
    %c0_30 = arith.constant 0 : index
    %c0_31 = arith.constant 0 : index
    %27 = vector.load %arg12[%c0_29, %c0_30, %c0_31] : memref<2x32x32xf32, #tpu.memory_space<vmem>>, vector<1x32x32xf32>
    %28 = vector.shape_cast %27 : vector<1x32x32xf32> to vector<32x32xf32>
    %c0_32 = arith.constant 0 : index
    %c0_33 = arith.constant 0 : index
    %c0_34 = arith.constant 0 : index
    %29 = vector.load %arg13[%c0_32, %c0_33, %c0_34] : memref<2x1x32xf32, #tpu.memory_space<vmem>>, vector<1x1x32xf32>
    %30 = vector.shape_cast %29 : vector<1x1x32xf32> to vector<1x32xf32>
    %c0_35 = arith.constant 0 : index
    %c0_36 = arith.constant 0 : index
    %c0_37 = arith.constant 0 : index
    %31 = vector.load %arg14[%c0_35, %c0_36, %c0_37] : memref<2x32x64xf32, #tpu.memory_space<vmem>>, vector<1x32x64xf32>
    %32 = vector.shape_cast %31 : vector<1x32x64xf32> to vector<32x64xf32>
    %c0_38 = arith.constant 0 : index
    %c0_39 = arith.constant 0 : index
    %c0_40 = arith.constant 0 : index
    %33 = vector.load %arg15[%c0_38, %c0_39, %c0_40] : memref<2x1x64xf32, #tpu.memory_space<vmem>>, vector<1x1x64xf32>
    %34 = vector.shape_cast %33 : vector<1x1x64xf32> to vector<1x64xf32>
    %c0_41 = arith.constant 0 : index
    %c0_42 = arith.constant 0 : index
    %c0_43 = arith.constant 0 : index
    %35 = vector.load %arg16[%c0_41, %c0_42, %c0_43] : memref<2x32x32xf32, #tpu.memory_space<vmem>>, vector<1x32x32xf32>
    %36 = vector.shape_cast %35 : vector<1x32x32xf32> to vector<32x32xf32>
    %c0_44 = arith.constant 0 : index
    %c0_45 = arith.constant 0 : index
    %c0_46 = arith.constant 0 : index
    %37 = vector.load %arg17[%c0_44, %c0_45, %c0_46] : memref<2x1x32xf32, #tpu.memory_space<vmem>>, vector<1x1x32xf32>
    %38 = vector.shape_cast %37 : vector<1x1x32xf32> to vector<1x32xf32>
    %c0_47 = arith.constant 0 : index
    %c0_48 = arith.constant 0 : index
    %c0_49 = arith.constant 0 : index
    %39 = vector.load %arg18[%c0_47, %c0_48, %c0_49] : memref<2x1x32xf32, #tpu.memory_space<vmem>>, vector<1x1x32xf32>
    %40 = vector.shape_cast %39 : vector<1x1x32xf32> to vector<1x32xf32>
    %c0_50 = arith.constant 0 : index
    %c0_51 = arith.constant 0 : index
    %c0_52 = arith.constant 0 : index
    %41 = vector.load %arg19[%c0_50, %c0_51, %c0_52] : memref<2x1x32xf32, #tpu.memory_space<vmem>>, vector<1x1x32xf32>
    %42 = vector.shape_cast %41 : vector<1x1x32xf32> to vector<1x32xf32>
    %c0_53 = arith.constant 0 : index
    %c0_54 = arith.constant 0 : index
    %c0_55 = arith.constant 0 : index
    %43 = vector.load %arg20[%c0_53, %c0_54, %c0_55] : memref<2x32x128xf32, #tpu.memory_space<vmem>>, vector<1x32x128xf32>
    %44 = vector.shape_cast %43 : vector<1x32x128xf32> to vector<32x128xf32>
    %c0_56 = arith.constant 0 : index
    %c0_57 = arith.constant 0 : index
    %c0_58 = arith.constant 0 : index
    %45 = vector.load %arg21[%c0_56, %c0_57, %c0_58] : memref<2x1x128xf32, #tpu.memory_space<vmem>>, vector<1x1x128xf32>
    %46 = vector.shape_cast %45 : vector<1x1x128xf32> to vector<1x128xf32>
    %c0_59 = arith.constant 0 : index
    %c0_60 = arith.constant 0 : index
    %c0_61 = arith.constant 0 : index
    %47 = vector.load %arg22[%c0_59, %c0_60, %c0_61] : memref<2x128x32xf32, #tpu.memory_space<vmem>>, vector<1x128x32xf32>
    %48 = vector.shape_cast %47 : vector<1x128x32xf32> to vector<128x32xf32>
    %c0_62 = arith.constant 0 : index
    %c0_63 = arith.constant 0 : index
    %c0_64 = arith.constant 0 : index
    %49 = vector.load %arg23[%c0_62, %c0_63, %c0_64] : memref<2x1x32xf32, #tpu.memory_space<vmem>>, vector<1x1x32xf32>
    %50 = vector.shape_cast %49 : vector<1x1x32xf32> to vector<1x32xf32>
    %c0_65 = arith.constant 0 : index
    %c0_66 = arith.constant 0 : index
    %c0_67 = arith.constant 0 : index
    %51 = vector.load %arg24[%c0_65, %c0_66, %c0_67] : memref<2x1x32xf32, #tpu.memory_space<vmem>>, vector<1x1x32xf32>
    %52 = vector.shape_cast %51 : vector<1x1x32xf32> to vector<1x32xf32>
    %c0_68 = arith.constant 0 : index
    %c0_69 = arith.constant 0 : index
    %c0_70 = arith.constant 0 : index
    %53 = vector.load %arg25[%c0_68, %c0_69, %c0_70] : memref<2x1x32xf32, #tpu.memory_space<vmem>>, vector<1x1x32xf32>
    %54 = vector.shape_cast %53 : vector<1x1x32xf32> to vector<1x32xf32>
    %cst_71 = arith.constant dense<0.000000e+00> : vector<16x96xf32>
    %55 = tpu.matmul %11, %16, %cst_71 {dimension_numbers = #tpu.dot_dimension_numbers<[1], [0], [0], [1], [0, 0, 1, 1], [], []>} : vector<16x32xf32>, vector<32x96xf32>, vector<16x96xf32> -> vector<16x96xf32>
    %56 = vector.broadcast %18 : vector<1x96xf32> to vector<16x96xf32>
    %57 = arith.addf %55, %56 : vector<16x96xf32>
    %58 = vector.extract_strided_slice %57 {offsets = [0, 0], sizes = [16, 32], strides = [1, 1]} : vector<16x96xf32> to vector<16x32xf32>
    %59 = vector.extract_strided_slice %57 {offsets = [0, 32], sizes = [16, 32], strides = [1, 1]} : vector<16x96xf32> to vector<16x32xf32>
    %60 = vector.extract_strided_slice %57 {offsets = [0, 64], sizes = [16, 32], strides = [1, 1]} : vector<16x96xf32> to vector<16x32xf32>
    %61 = vector.extract_strided_slice %58 {offsets = [0, 0], sizes = [16, 8], strides = [1, 1]} : vector<16x32xf32> to vector<16x8xf32>
    %62 = vector.extract_strided_slice %58 {offsets = [0, 8], sizes = [16, 8], strides = [1, 1]} : vector<16x32xf32> to vector<16x8xf32>
    %63 = vector.extract_strided_slice %58 {offsets = [0, 16], sizes = [16, 8], strides = [1, 1]} : vector<16x32xf32> to vector<16x8xf32>
    %64 = vector.extract_strided_slice %58 {offsets = [0, 24], sizes = [16, 8], strides = [1, 1]} : vector<16x32xf32> to vector<16x8xf32>
    %65 = vector.shape_cast %61 : vector<16x8xf32> to vector<1x16x8xf32>
    %66 = vector.shape_cast %62 : vector<16x8xf32> to vector<1x16x8xf32>
    %67 = vector.shape_cast %63 : vector<16x8xf32> to vector<1x16x8xf32>
    %68 = vector.shape_cast %64 : vector<16x8xf32> to vector<1x16x8xf32>
    %69 = tpu.concatenate %65, %66, %67, %68 in 0 : vector<1x16x8xf32>, vector<1x16x8xf32>, vector<1x16x8xf32>, vector<1x16x8xf32> -> vector<4x16x8xf32>
    %70 = vector.extract_strided_slice %59 {offsets = [0, 0], sizes = [16, 8], strides = [1, 1]} : vector<16x32xf32> to vector<16x8xf32>
    %71 = vector.extract_strided_slice %59 {offsets = [0, 8], sizes = [16, 8], strides = [1, 1]} : vector<16x32xf32> to vector<16x8xf32>
    %72 = vector.extract_strided_slice %59 {offsets = [0, 16], sizes = [16, 8], strides = [1, 1]} : vector<16x32xf32> to vector<16x8xf32>
    %73 = vector.extract_strided_slice %59 {offsets = [0, 24], sizes = [16, 8], strides = [1, 1]} : vector<16x32xf32> to vector<16x8xf32>
    %74 = vector.shape_cast %70 : vector<16x8xf32> to vector<1x16x8xf32>
    %75 = vector.shape_cast %71 : vector<16x8xf32> to vector<1x16x8xf32>
    %76 = vector.shape_cast %72 : vector<16x8xf32> to vector<1x16x8xf32>
    %77 = vector.shape_cast %73 : vector<16x8xf32> to vector<1x16x8xf32>
    %78 = tpu.concatenate %74, %75, %76, %77 in 0 : vector<1x16x8xf32>, vector<1x16x8xf32>, vector<1x16x8xf32>, vector<1x16x8xf32> -> vector<4x16x8xf32>
    %79 = vector.extract_strided_slice %60 {offsets = [0, 0], sizes = [16, 8], strides = [1, 1]} : vector<16x32xf32> to vector<16x8xf32>
    %80 = vector.extract_strided_slice %60 {offsets = [0, 8], sizes = [16, 8], strides = [1, 1]} : vector<16x32xf32> to vector<16x8xf32>
    %81 = vector.extract_strided_slice %60 {offsets = [0, 16], sizes = [16, 8], strides = [1, 1]} : vector<16x32xf32> to vector<16x8xf32>
    %82 = vector.extract_strided_slice %60 {offsets = [0, 24], sizes = [16, 8], strides = [1, 1]} : vector<16x32xf32> to vector<16x8xf32>
    %83 = vector.shape_cast %79 : vector<16x8xf32> to vector<1x16x8xf32>
    %84 = vector.shape_cast %80 : vector<16x8xf32> to vector<1x16x8xf32>
    %85 = vector.shape_cast %81 : vector<16x8xf32> to vector<1x16x8xf32>
    %86 = vector.shape_cast %82 : vector<16x8xf32> to vector<1x16x8xf32>
    %87 = tpu.concatenate %83, %84, %85, %86 in 0 : vector<1x16x8xf32>, vector<1x16x8xf32>, vector<1x16x8xf32>, vector<1x16x8xf32> -> vector<4x16x8xf32>
    "tpu.trace_start"() <{level = 10 : i32, message = "hqd,hkd->hqk"}> : () -> ()
    %cst_72 = arith.constant dense<0.000000e+00> : vector<4x16x16xf32>
    %88 = tpu.matmul %69, %78, %cst_72 {dimension_numbers = #tpu.dot_dimension_numbers<[2], [2], [1], [1], [0, 0, 0, 1, 1, 1], [0], [0]>} : vector<4x16x8xf32>, vector<4x16x8xf32>, vector<4x16x16xf32> -> vector<4x16x16xf32>
    "tpu.trace_stop"() : () -> ()
    %cst_73 = arith.constant 0.353553385 : f32
    %89 = vector.broadcast %cst_73 : f32 to vector<4x16x16xf32>
    %90 = arith.mulf %88, %89 : vector<4x16x16xf32>
    %91 = vector.shape_cast %12 : vector<16x16xf32> to vector<1x16x16xf32>
    %92 = vector.broadcast %91 : vector<1x16x16xf32> to vector<4x16x16xf32>
    %93 = arith.addf %90, %92 : vector<4x16x16xf32>
    %cst_74 = arith.constant dense<0xFF800000> : vector<4x16xf32>
    %94 = vector.multi_reduction <maximumf>, %93, %cst_74 [2] : vector<4x16x16xf32> to vector<4x16xf32>
    %95 = vector.shape_cast %94 : vector<4x16xf32> to vector<4x16x1xf32>
    %96 = vector.broadcast %95 : vector<4x16x1xf32> to vector<4x16x16xf32>
    %97 = arith.subf %93, %96 : vector<4x16x16xf32>
    %98 = math.exp %97 : vector<4x16x16xf32>
    %cst_75 = arith.constant dense<0.000000e+00> : vector<4x16xf32>
    %99 = vector.multi_reduction <add>, %98, %cst_75 [2] : vector<4x16x16xf32> to vector<4x16xf32>
    %100 = vector.shape_cast %99 : vector<4x16xf32> to vector<4x16x1xf32>
    %101 = tpu.reciprocal %100 {approx = true} : vector<4x16x1xf32> -> vector<4x16x1xf32>
    %102 = arith.mulf %100, %101 : vector<4x16x1xf32>
    %cst_76 = arith.constant 2.000000e+00 : f32
    %103 = vector.broadcast %cst_76 : f32 to vector<4x16x1xf32>
    %104 = arith.subf %103, %102 : vector<4x16x1xf32>
    %105 = arith.mulf %101, %104 : vector<4x16x1xf32>
    %106 = vector.broadcast %105 : vector<4x16x1xf32> to vector<4x16x16xf32>
    %107 = arith.mulf %98, %106 : vector<4x16x16xf32>
    %c0_77 = arith.constant 0 : index
    %c0_78 = arith.constant 0 : index
    %c0_79 = arith.constant 0 : index
    %c0_80 = arith.constant 0 : index
    %108 = vector.load %arg27[%c0_77, %c0_78, %c0_79, %c0_80] : memref<2x4x16x16xf32, #tpu.memory_space<vmem>>, vector<1x4x16x16xf32>
    %109 = vector.shape_cast %108 : vector<1x4x16x16xf32> to vector<4x16x16xf32>
    %110 = vector.shape_cast %107 : vector<4x16x16xf32> to vector<1x4x16x16xf32>
    tpu.vector_store %arg27[%c0_77, %c0_78, %c0_79, %c0_80], %110 {strides = array<i32>} : memref<2x4x16x16xf32, #tpu.memory_space<vmem>>, vector<1x4x16x16xf32>,
    "tpu.trace_start"() <{level = 10 : i32, message = "hqk,hkd->hqd"}> : () -> ()
    %cst_81 = arith.constant dense<0.000000e+00> : vector<4x16x8xf32>
    %111 = tpu.matmul %107, %87, %cst_81 {dimension_numbers = #tpu.dot_dimension_numbers<[2], [1], [1], [2], [0, 0, 0, 1, 1, 2], [0], [0]>} : vector<4x16x16xf32>, vector<4x16x8xf32>, vector<4x16x8xf32> -> vector<4x16x8xf32>
    "tpu.trace_stop"() : () -> ()
    %112 = vector.extract_strided_slice %111 {offsets = [0, 0, 0], sizes = [1, 16, 8], strides = [1, 1, 1]} : vector<4x16x8xf32> to vector<1x16x8xf32>
    %113 = vector.shape_cast %112 : vector<1x16x8xf32> to vector<16x8xf32>
    %114 = vector.extract_strided_slice %111 {offsets = [1, 0, 0], sizes = [1, 16, 8], strides = [1, 1, 1]} : vector<4x16x8xf32> to vector<1x16x8xf32>
    %115 = vector.shape_cast %114 : vector<1x16x8xf32> to vector<16x8xf32>
    %116 = vector.extract_strided_slice %111 {offsets = [2, 0, 0], sizes = [1, 16, 8], strides = [1, 1, 1]} : vector<4x16x8xf32> to vector<1x16x8xf32>
    %117 = vector.shape_cast %116 : vector<1x16x8xf32> to vector<16x8xf32>
    %118 = vector.extract_strided_slice %111 {offsets = [3, 0, 0], sizes = [1, 16, 8], strides = [1, 1, 1]} : vector<4x16x8xf32> to vector<1x16x8xf32>
    %119 = vector.shape_cast %118 : vector<1x16x8xf32> to vector<16x8xf32>
    %120 = tpu.concatenate %113, %115, %117, %119 in 1 : vector<16x8xf32>, vector<16x8xf32>, vector<16x8xf32>, vector<16x8xf32> -> vector<16x32xf32>
    %cst_82 = arith.constant dense<0.000000e+00> : vector<16x32xf32>
    %121 = tpu.matmul %120, %20, %cst_82 {dimension_numbers = #tpu.dot_dimension_numbers<[1], [0], [0], [1], [0, 0, 1, 1], [], []>} : vector<16x32xf32>, vector<32x32xf32>, vector<16x32xf32> -> vector<16x32xf32>
    %122 = vector.broadcast %22 : vector<1x32xf32> to vector<16x32xf32>
    %123 = arith.addf %121, %122 : vector<16x32xf32>
    %124 = arith.addf %11, %123 : vector<16x32xf32>
    %cst_83 = arith.constant dense<0.000000e+00> : vector<16xf32>
    %125 = vector.multi_reduction <add>, %124, %cst_83 [1] : vector<16x32xf32> to vector<16xf32>
    %126 = vector.shape_cast %125 : vector<16xf32> to vector<16x1xf32>
    %cst_84 = arith.constant 3.200000e+01 : f32
    %127 = vector.broadcast %cst_84 : f32 to vector<16x1xf32>
    %128 = arith.divf %126, %127 : vector<16x1xf32>
    %129 = vector.broadcast %128 : vector<16x1xf32> to vector<16x32xf32>
    %130 = arith.subf %124, %129 : vector<16x32xf32>
    %131 = arith.mulf %130, %130 : vector<16x32xf32>
    %cst_85 = arith.constant dense<0.000000e+00> : vector<16xf32>
    %132 = vector.multi_reduction <add>, %131, %cst_85 [1] : vector<16x32xf32> to vector<16xf32>
    %133 = vector.shape_cast %132 : vector<16xf32> to vector<16x1xf32>
    %cst_86 = arith.constant 3.200000e+01 : f32
    %134 = vector.broadcast %cst_86 : f32 to vector<16x1xf32>
    %135 = arith.divf %133, %134 : vector<16x1xf32>
    %136 = vector.broadcast %128 : vector<16x1xf32> to vector<16x32xf32>
    %137 = arith.subf %124, %136 : vector<16x32xf32>
    %cst_87 = arith.constant 9.99999997E-7 : f32
    %138 = vector.broadcast %cst_87 : f32 to vector<16x1xf32>
    %139 = arith.addf %135, %138 : vector<16x1xf32>
    %140 = math.rsqrt %139 : vector<16x1xf32>
    %141 = vector.broadcast %140 : vector<16x1xf32> to vector<16x32xf32>
    %142 = arith.mulf %137, %141 : vector<16x32xf32>
    %143 = vector.broadcast %24 : vector<1x32xf32> to vector<16x32xf32>
    %144 = arith.mulf %142, %143 : vector<16x32xf32>
    %145 = vector.broadcast %26 : vector<1x32xf32> to vector<16x32xf32>
    %146 = arith.addf %144, %145 : vector<16x32xf32>
    %cst_88 = arith.constant dense<0.000000e+00> : vector<16x32xf32>
    %147 = tpu.matmul %146, %28, %cst_88 {dimension_numbers = #tpu.dot_dimension_numbers<[1], [0], [0], [1], [0, 0, 1, 1], [], []>} : vector<16x32xf32>, vector<32x32xf32>, vector<16x32xf32> -> vector<16x32xf32>
    %148 = vector.broadcast %30 : vector<1x32xf32> to vector<16x32xf32>
    %149 = arith.addf %147, %148 : vector<16x32xf32>
    %cst_89 = arith.constant dense<0.000000e+00> : vector<16x64xf32>
    %150 = tpu.matmul %14, %32, %cst_89 {dimension_numbers = #tpu.dot_dimension_numbers<[1], [0], [0], [1], [0, 0, 1, 1], [], []>} : vector<16x32xf32>, vector<32x64xf32>, vector<16x64xf32> -> vector<16x64xf32>
    %151 = vector.broadcast %34 : vector<1x64xf32> to vector<16x64xf32>
    %152 = arith.addf %150, %151 : vector<16x64xf32>
    %153 = vector.extract_strided_slice %152 {offsets = [0, 0], sizes = [16, 32], strides = [1, 1]} : vector<16x64xf32> to vector<16x32xf32>
    %154 = vector.extract_strided_slice %152 {offsets = [0, 32], sizes = [16, 32], strides = [1, 1]} : vector<16x64xf32> to vector<16x32xf32>
    %155 = vector.extract_strided_slice %149 {offsets = [0, 0], sizes = [16, 8], strides = [1, 1]} : vector<16x32xf32> to vector<16x8xf32>
    %156 = vector.extract_strided_slice %149 {offsets = [0, 8], sizes = [16, 8], strides = [1, 1]} : vector<16x32xf32> to vector<16x8xf32>
    %157 = vector.extract_strided_slice %149 {offsets = [0, 16], sizes = [16, 8], strides = [1, 1]} : vector<16x32xf32> to vector<16x8xf32>
    %158 = vector.extract_strided_slice %149 {offsets = [0, 24], sizes = [16, 8], strides = [1, 1]} : vector<16x32xf32> to vector<16x8xf32>
    %159 = vector.shape_cast %155 : vector<16x8xf32> to vector<1x16x8xf32>
    %160 = vector.shape_cast %156 : vector<16x8xf32> to vector<1x16x8xf32>
    %161 = vector.shape_cast %157 : vector<16x8xf32> to vector<1x16x8xf32>
    %162 = vector.shape_cast %158 : vector<16x8xf32> to vector<1x16x8xf32>
    %163 = tpu.concatenate %159, %160, %161, %162 in 0 : vector<1x16x8xf32>, vector<1x16x8xf32>, vector<1x16x8xf32>, vector<1x16x8xf32> -> vector<4x16x8xf32>
    %164 = vector.extract_strided_slice %153 {offsets = [0, 0], sizes = [16, 8], strides = [1, 1]} : vector<16x32xf32> to vector<16x8xf32>
    %165 = vector.extract_strided_slice %153 {offsets = [0, 8], sizes = [16, 8], strides = [1, 1]} : vector<16x32xf32> to vector<16x8xf32>
    %166 = vector.extract_strided_slice %153 {offsets = [0, 16], sizes = [16, 8], strides = [1, 1]} : vector<16x32xf32> to vector<16x8xf32>
    %167 = vector.extract_strided_slice %153 {offsets = [0, 24], sizes = [16, 8], strides = [1, 1]} : vector<16x32xf32> to vector<16x8xf32>
    %168 = vector.shape_cast %164 : vector<16x8xf32> to vector<1x16x8xf32>
    %169 = vector.shape_cast %165 : vector<16x8xf32> to vector<1x16x8xf32>
    %170 = vector.shape_cast %166 : vector<16x8xf32> to vector<1x16x8xf32>
    %171 = vector.shape_cast %167 : vector<16x8xf32> to vector<1x16x8xf32>
    %172 = tpu.concatenate %168, %169, %170, %171 in 0 : vector<1x16x8xf32>, vector<1x16x8xf32>, vector<1x16x8xf32>, vector<1x16x8xf32> -> vector<4x16x8xf32>
    %173 = vector.extract_strided_slice %154 {offsets = [0, 0], sizes = [16, 8], strides = [1, 1]} : vector<16x32xf32> to vector<16x8xf32>
    %174 = vector.extract_strided_slice %154 {offsets = [0, 8], sizes = [16, 8], strides = [1, 1]} : vector<16x32xf32> to vector<16x8xf32>
    %175 = vector.extract_strided_slice %154 {offsets = [0, 16], sizes = [16, 8], strides = [1, 1]} : vector<16x32xf32> to vector<16x8xf32>
    %176 = vector.extract_strided_slice %154 {offsets = [0, 24], sizes = [16, 8], strides = [1, 1]} : vector<16x32xf32> to vector<16x8xf32>
    %177 = vector.shape_cast %173 : vector<16x8xf32> to vector<1x16x8xf32>
    %178 = vector.shape_cast %174 : vector<16x8xf32> to vector<1x16x8xf32>
    %179 = vector.shape_cast %175 : vector<16x8xf32> to vector<1x16x8xf32>
    %180 = vector.shape_cast %176 : vector<16x8xf32> to vector<1x16x8xf32>
    %181 = tpu.concatenate %177, %178, %179, %180 in 0 : vector<1x16x8xf32>, vector<1x16x8xf32>, vector<1x16x8xf32>, vector<1x16x8xf32> -> vector<4x16x8xf32>
    "tpu.trace_start"() <{level = 10 : i32, message = "hqd,hkd->hqk"}> : () -> ()
    %cst_90 = arith.constant dense<0.000000e+00> : vector<4x16x16xf32>
    %182 = tpu.matmul %163, %172, %cst_90 {dimension_numbers = #tpu.dot_dimension_numbers<[2], [2], [1], [1], [0, 0, 0, 1, 1, 1], [0], [0]>} : vector<4x16x8xf32>, vector<4x16x8xf32>, vector<4x16x16xf32> -> vector<4x16x16xf32>
    "tpu.trace_stop"() : () -> ()
    %cst_91 = arith.constant 0.353553385 : f32
    %183 = vector.broadcast %cst_91 : f32 to vector<4x16x16xf32>
    %184 = arith.mulf %182, %183 : vector<4x16x16xf32>
    %185 = vector.shape_cast %13 : vector<16x16xf32> to vector<1x16x16xf32>
    %186 = vector.broadcast %185 : vector<1x16x16xf32> to vector<4x16x16xf32>
    %187 = arith.addf %184, %186 : vector<4x16x16xf32>
    %cst_92 = arith.constant dense<0xFF800000> : vector<4x16xf32>
    %188 = vector.multi_reduction <maximumf>, %187, %cst_92 [2] : vector<4x16x16xf32> to vector<4x16xf32>
    %189 = vector.shape_cast %188 : vector<4x16xf32> to vector<4x16x1xf32>
    %190 = vector.broadcast %189 : vector<4x16x1xf32> to vector<4x16x16xf32>
    %191 = arith.subf %187, %190 : vector<4x16x16xf32>
    %192 = math.exp %191 : vector<4x16x16xf32>
    %cst_93 = arith.constant dense<0.000000e+00> : vector<4x16xf32>
    %193 = vector.multi_reduction <add>, %192, %cst_93 [2] : vector<4x16x16xf32> to vector<4x16xf32>
    %194 = vector.shape_cast %193 : vector<4x16xf32> to vector<4x16x1xf32>
    %195 = tpu.reciprocal %194 {approx = true} : vector<4x16x1xf32> -> vector<4x16x1xf32>
    %196 = arith.mulf %194, %195 : vector<4x16x1xf32>
    %cst_94 = arith.constant 2.000000e+00 : f32
    %197 = vector.broadcast %cst_94 : f32 to vector<4x16x1xf32>
    %198 = arith.subf %197, %196 : vector<4x16x1xf32>
    %199 = arith.mulf %195, %198 : vector<4x16x1xf32>
    %200 = vector.broadcast %199 : vector<4x16x1xf32> to vector<4x16x16xf32>
    %201 = arith.mulf %192, %200 : vector<4x16x16xf32>
    %c0_95 = arith.constant 0 : index
    %c0_96 = arith.constant 0 : index
    %c0_97 = arith.constant 0 : index
    %c0_98 = arith.constant 0 : index
    %202 = vector.load %arg28[%c0_95, %c0_96, %c0_97, %c0_98] : memref<2x4x16x16xf32, #tpu.memory_space<vmem>>, vector<1x4x16x16xf32>
    %203 = vector.shape_cast %202 : vector<1x4x16x16xf32> to vector<4x16x16xf32>
    %204 = vector.shape_cast %201 : vector<4x16x16xf32> to vector<1x4x16x16xf32>
    tpu.vector_store %arg28[%c0_95, %c0_96, %c0_97, %c0_98], %204 {strides = array<i32>} : memref<2x4x16x16xf32, #tpu.memory_space<vmem>>, vector<1x4x16x16xf32>,
    "tpu.trace_start"() <{level = 10 : i32, message = "hqk,hkd->hqd"}> : () -> ()
    %cst_99 = arith.constant dense<0.000000e+00> : vector<4x16x8xf32>
    %205 = tpu.matmul %201, %181, %cst_99 {dimension_numbers = #tpu.dot_dimension_numbers<[2], [1], [1], [2], [0, 0, 0, 1, 1, 2], [0], [0]>} : vector<4x16x16xf32>, vector<4x16x8xf32>, vector<4x16x8xf32> -> vector<4x16x8xf32>
    "tpu.trace_stop"() : () -> ()
    %206 = vector.extract_strided_slice %205 {offsets = [0, 0, 0], sizes = [1, 16, 8], strides = [1, 1, 1]} : vector<4x16x8xf32> to vector<1x16x8xf32>
    %207 = vector.shape_cast %206 : vector<1x16x8xf32> to vector<16x8xf32>
    %208 = vector.extract_strided_slice %205 {offsets = [1, 0, 0], sizes = [1, 16, 8], strides = [1, 1, 1]} : vector<4x16x8xf32> to vector<1x16x8xf32>
    %209 = vector.shape_cast %208 : vector<1x16x8xf32> to vector<16x8xf32>
    %210 = vector.extract_strided_slice %205 {offsets = [2, 0, 0], sizes = [1, 16, 8], strides = [1, 1, 1]} : vector<4x16x8xf32> to vector<1x16x8xf32>
    %211 = vector.shape_cast %210 : vector<1x16x8xf32> to vector<16x8xf32>
    %212 = vector.extract_strided_slice %205 {offsets = [3, 0, 0], sizes = [1, 16, 8], strides = [1, 1, 1]} : vector<4x16x8xf32> to vector<1x16x8xf32>
    %213 = vector.shape_cast %212 : vector<1x16x8xf32> to vector<16x8xf32>
    %214 = tpu.concatenate %207, %209, %211, %213 in 1 : vector<16x8xf32>, vector<16x8xf32>, vector<16x8xf32>, vector<16x8xf32> -> vector<16x32xf32>
    %cst_100 = arith.constant dense<0.000000e+00> : vector<16x32xf32>
    %215 = tpu.matmul %214, %36, %cst_100 {dimension_numbers = #tpu.dot_dimension_numbers<[1], [0], [0], [1], [0, 0, 1, 1], [], []>} : vector<16x32xf32>, vector<32x32xf32>, vector<16x32xf32> -> vector<16x32xf32>
    %216 = vector.broadcast %38 : vector<1x32xf32> to vector<16x32xf32>
    %217 = arith.addf %215, %216 : vector<16x32xf32>
    %218 = arith.addf %146, %217 : vector<16x32xf32>
    %cst_101 = arith.constant dense<0.000000e+00> : vector<16xf32>
    %219 = vector.multi_reduction <add>, %218, %cst_101 [1] : vector<16x32xf32> to vector<16xf32>
    %220 = vector.shape_cast %219 : vector<16xf32> to vector<16x1xf32>
    %cst_102 = arith.constant 3.200000e+01 : f32
    %221 = vector.broadcast %cst_102 : f32 to vector<16x1xf32>
    %222 = arith.divf %220, %221 : vector<16x1xf32>
    %223 = vector.broadcast %222 : vector<16x1xf32> to vector<16x32xf32>
    %224 = arith.subf %218, %223 : vector<16x32xf32>
    %225 = arith.mulf %224, %224 : vector<16x32xf32>
    %cst_103 = arith.constant dense<0.000000e+00> : vector<16xf32>
    %226 = vector.multi_reduction <add>, %225, %cst_103 [1] : vector<16x32xf32> to vector<16xf32>
    %227 = vector.shape_cast %226 : vector<16xf32> to vector<16x1xf32>
    %cst_104 = arith.constant 3.200000e+01 : f32
    %228 = vector.broadcast %cst_104 : f32 to vector<16x1xf32>
    %229 = arith.divf %227, %228 : vector<16x1xf32>
    %230 = vector.broadcast %222 : vector<16x1xf32> to vector<16x32xf32>
    %231 = arith.subf %218, %230 : vector<16x32xf32>
    %cst_105 = arith.constant 9.99999997E-7 : f32
    %232 = vector.broadcast %cst_105 : f32 to vector<16x1xf32>
    %233 = arith.addf %229, %232 : vector<16x1xf32>
    %234 = math.rsqrt %233 : vector<16x1xf32>
    %235 = vector.broadcast %234 : vector<16x1xf32> to vector<16x32xf32>
    %236 = arith.mulf %231, %235 : vector<16x32xf32>
    %237 = vector.broadcast %40 : vector<1x32xf32> to vector<16x32xf32>
    %238 = arith.mulf %236, %237 : vector<16x32xf32>
    %239 = vector.broadcast %42 : vector<1x32xf32> to vector<16x32xf32>
    %240 = arith.addf %238, %239 : vector<16x32xf32>
    %cst_106 = arith.constant dense<0.000000e+00> : vector<16x128xf32>
    %241 = tpu.matmul %240, %44, %cst_106 {dimension_numbers = #tpu.dot_dimension_numbers<[1], [0], [0], [1], [0, 0, 1, 1], [], []>} : vector<16x32xf32>, vector<32x128xf32>, vector<16x128xf32> -> vector<16x128xf32>
    %242 = vector.broadcast %46 : vector<1x128xf32> to vector<16x128xf32>
    %243 = arith.addf %241, %242 : vector<16x128xf32>
    %cst_107 = arith.constant 5.000000e-01 : f32
    %244 = vector.broadcast %cst_107 : f32 to vector<16x128xf32>
    %245 = arith.mulf %244, %243 : vector<16x128xf32>
    %cst_108 = arith.constant 4.471500e-02 : f32
    %246 = vector.broadcast %cst_108 : f32 to vector<16x128xf32>
    %247 = arith.mulf %246, %243 : vector<16x128xf32>
    %248 = arith.mulf %247, %243 : vector<16x128xf32>
    %249 = arith.mulf %248, %243 : vector<16x128xf32>
    %250 = arith.addf %243, %249 : vector<16x128xf32>
    %cst_109 = arith.constant 0.797884583 : f32
    %251 = vector.broadcast %cst_109 : f32 to vector<16x128xf32>
    %252 = arith.mulf %251, %250 : vector<16x128xf32>
    %253 = math.tanh %252 : vector<16x128xf32>
    %cst_110 = arith.constant 1.000000e+00 : f32
    %254 = vector.broadcast %cst_110 : f32 to vector<16x128xf32>
    %255 = arith.addf %254, %253 : vector<16x128xf32>
    %256 = arith.mulf %245, %255 : vector<16x128xf32>
    %cst_111 = arith.constant dense<0.000000e+00> : vector<16x32xf32>
    %257 = tpu.matmul %256, %48, %cst_111 {dimension_numbers = #tpu.dot_dimension_numbers<[1], [0], [0], [1], [0, 0, 1, 1], [], []>} : vector<16x128xf32>, vector<128x32xf32>, vector<16x32xf32> -> vector<16x32xf32>
    %258 = vector.broadcast %50 : vector<1x32xf32> to vector<16x32xf32>
    %259 = arith.addf %257, %258 : vector<16x32xf32>
    %260 = arith.addf %240, %259 : vector<16x32xf32>
    %cst_112 = arith.constant dense<0.000000e+00> : vector<16xf32>
    %261 = vector.multi_reduction <add>, %260, %cst_112 [1] : vector<16x32xf32> to vector<16xf32>
    %262 = vector.shape_cast %261 : vector<16xf32> to vector<16x1xf32>
    %cst_113 = arith.constant 3.200000e+01 : f32
    %263 = vector.broadcast %cst_113 : f32 to vector<16x1xf32>
    %264 = arith.divf %262, %263 : vector<16x1xf32>
    %265 = vector.broadcast %264 : vector<16x1xf32> to vector<16x32xf32>
    %266 = arith.subf %260, %265 : vector<16x32xf32>
    %267 = arith.mulf %266, %266 : vector<16x32xf32>
    %cst_114 = arith.constant dense<0.000000e+00> : vector<16xf32>
    %268 = vector.multi_reduction <add>, %267, %cst_114 [1] : vector<16x32xf32> to vector<16xf32>
    %269 = vector.shape_cast %268 : vector<16xf32> to vector<16x1xf32>
    %cst_115 = arith.constant 3.200000e+01 : f32
    %270 = vector.broadcast %cst_115 : f32 to vector<16x1xf32>
    %271 = arith.divf %269, %270 : vector<16x1xf32>
    %272 = vector.broadcast %264 : vector<16x1xf32> to vector<16x32xf32>
    %273 = arith.subf %260, %272 : vector<16x32xf32>
    %cst_116 = arith.constant 9.99999997E-7 : f32
    %274 = vector.broadcast %cst_116 : f32 to vector<16x1xf32>
    %275 = arith.addf %271, %274 : vector<16x1xf32>
    %276 = math.rsqrt %275 : vector<16x1xf32>
    %277 = vector.broadcast %276 : vector<16x1xf32> to vector<16x32xf32>
    %278 = arith.mulf %273, %277 : vector<16x32xf32>
    %279 = vector.broadcast %52 : vector<1x32xf32> to vector<16x32xf32>
    %280 = arith.mulf %278, %279 : vector<16x32xf32>
    %281 = vector.broadcast %54 : vector<1x32xf32> to vector<16x32xf32>
    %282 = arith.addf %280, %281 : vector<16x32xf32>
    %c1 = arith.constant 1 : index
    %c0_117 = arith.constant 0 : index
    %c0_118 = arith.constant 0 : index
    %283 = vector.load %arg6[%c1, %c0_117, %c0_118] : memref<2x32x96xf32, #tpu.memory_space<vmem>>, vector<1x32x96xf32>
    %284 = vector.shape_cast %283 : vector<1x32x96xf32> to vector<32x96xf32>
    %c1_119 = arith.constant 1 : index
    %c0_120 = arith.constant 0 : index
    %c0_121 = arith.constant 0 : index
    %285 = vector.load %arg7[%c1_119, %c0_120, %c0_121] : memref<2x1x96xf32, #tpu.memory_space<vmem>>, vector<1x1x96xf32>
    %286 = vector.shape_cast %285 : vector<1x1x96xf32> to vector<1x96xf32>
    %c1_122 = arith.constant 1 : index
    %c0_123 = arith.constant 0 : index
    %c0_124 = arith.constant 0 : index
    %287 = vector.load %arg8[%c1_122, %c0_123, %c0_124] : memref<2x32x32xf32, #tpu.memory_space<vmem>>, vector<1x32x32xf32>
    %288 = vector.shape_cast %287 : vector<1x32x32xf32> to vector<32x32xf32>
    %c1_125 = arith.constant 1 : index
    %c0_126 = arith.constant 0 : index
    %c0_127 = arith.constant 0 : index
    %289 = vector.load %arg9[%c1_125, %c0_126, %c0_127] : memref<2x1x32xf32, #tpu.memory_space<vmem>>, vector<1x1x32xf32>
    %290 = vector.shape_cast %289 : vector<1x1x32xf32> to vector<1x32xf32>
    %c1_128 = arith.constant 1 : index
    %c0_129 = arith.constant 0 : index
    %c0_130 = arith.constant 0 : index
    %291 = vector.load %arg10[%c1_128, %c0_129, %c0_130] : memref<2x1x32xf32, #tpu.memory_space<vmem>>, vector<1x1x32xf32>
    %292 = vector.shape_cast %291 : vector<1x1x32xf32> to vector<1x32xf32>
    %c1_131 = arith.constant 1 : index
    %c0_132 = arith.constant 0 : index
    %c0_133 = arith.constant 0 : index
    %293 = vector.load %arg11[%c1_131, %c0_132, %c0_133] : memref<2x1x32xf32, #tpu.memory_space<vmem>>, vector<1x1x32xf32>
    %294 = vector.shape_cast %293 : vector<1x1x32xf32> to vector<1x32xf32>
    %c1_134 = arith.constant 1 : index
    %c0_135 = arith.constant 0 : index
    %c0_136 = arith.constant 0 : index
    %295 = vector.load %arg12[%c1_134, %c0_135, %c0_136] : memref<2x32x32xf32, #tpu.memory_space<vmem>>, vector<1x32x32xf32>
    %296 = vector.shape_cast %295 : vector<1x32x32xf32> to vector<32x32xf32>
    %c1_137 = arith.constant 1 : index
    %c0_138 = arith.constant 0 : index
    %c0_139 = arith.constant 0 : index
    %297 = vector.load %arg13[%c1_137, %c0_138, %c0_139] : memref<2x1x32xf32, #tpu.memory_space<vmem>>, vector<1x1x32xf32>
    %298 = vector.shape_cast %297 : vector<1x1x32xf32> to vector<1x32xf32>
    %c1_140 = arith.constant 1 : index
    %c0_141 = arith.constant 0 : index
    %c0_142 = arith.constant 0 : index
    %299 = vector.load %arg14[%c1_140, %c0_141, %c0_142] : memref<2x32x64xf32, #tpu.memory_space<vmem>>, vector<1x32x64xf32>
    %300 = vector.shape_cast %299 : vector<1x32x64xf32> to vector<32x64xf32>
    %c1_143 = arith.constant 1 : index
    %c0_144 = arith.constant 0 : index
    %c0_145 = arith.constant 0 : index
    %301 = vector.load %arg15[%c1_143, %c0_144, %c0_145] : memref<2x1x64xf32, #tpu.memory_space<vmem>>, vector<1x1x64xf32>
    %302 = vector.shape_cast %301 : vector<1x1x64xf32> to vector<1x64xf32>
    %c1_146 = arith.constant 1 : index
    %c0_147 = arith.constant 0 : index
    %c0_148 = arith.constant 0 : index
    %303 = vector.load %arg16[%c1_146, %c0_147, %c0_148] : memref<2x32x32xf32, #tpu.memory_space<vmem>>, vector<1x32x32xf32>
    %304 = vector.shape_cast %303 : vector<1x32x32xf32> to vector<32x32xf32>
    %c1_149 = arith.constant 1 : index
    %c0_150 = arith.constant 0 : index
    %c0_151 = arith.constant 0 : index
    %305 = vector.load %arg17[%c1_149, %c0_150, %c0_151] : memref<2x1x32xf32, #tpu.memory_space<vmem>>, vector<1x1x32xf32>
    %306 = vector.shape_cast %305 : vector<1x1x32xf32> to vector<1x32xf32>
    %c1_152 = arith.constant 1 : index
    %c0_153 = arith.constant 0 : index
    %c0_154 = arith.constant 0 : index
    %307 = vector.load %arg18[%c1_152, %c0_153, %c0_154] : memref<2x1x32xf32, #tpu.memory_space<vmem>>, vector<1x1x32xf32>
    %308 = vector.shape_cast %307 : vector<1x1x32xf32> to vector<1x32xf32>
    %c1_155 = arith.constant 1 : index
    %c0_156 = arith.constant 0 : index
    %c0_157 = arith.constant 0 : index
    %309 = vector.load %arg19[%c1_155, %c0_156, %c0_157] : memref<2x1x32xf32, #tpu.memory_space<vmem>>, vector<1x1x32xf32>
    %310 = vector.shape_cast %309 : vector<1x1x32xf32> to vector<1x32xf32>
    %c1_158 = arith.constant 1 : index
    %c0_159 = arith.constant 0 : index
    %c0_160 = arith.constant 0 : index
    %311 = vector.load %arg20[%c1_158, %c0_159, %c0_160] : memref<2x32x128xf32, #tpu.memory_space<vmem>>, vector<1x32x128xf32>
    %312 = vector.shape_cast %311 : vector<1x32x128xf32> to vector<32x128xf32>
    %c1_161 = arith.constant 1 : index
    %c0_162 = arith.constant 0 : index
    %c0_163 = arith.constant 0 : index
    %313 = vector.load %arg21[%c1_161, %c0_162, %c0_163] : memref<2x1x128xf32, #tpu.memory_space<vmem>>, vector<1x1x128xf32>
    %314 = vector.shape_cast %313 : vector<1x1x128xf32> to vector<1x128xf32>
    %c1_164 = arith.constant 1 : index
    %c0_165 = arith.constant 0 : index
    %c0_166 = arith.constant 0 : index
    %315 = vector.load %arg22[%c1_164, %c0_165, %c0_166] : memref<2x128x32xf32, #tpu.memory_space<vmem>>, vector<1x128x32xf32>
    %316 = vector.shape_cast %315 : vector<1x128x32xf32> to vector<128x32xf32>
    %c1_167 = arith.constant 1 : index
    %c0_168 = arith.constant 0 : index
    %c0_169 = arith.constant 0 : index
    %317 = vector.load %arg23[%c1_167, %c0_168, %c0_169] : memref<2x1x32xf32, #tpu.memory_space<vmem>>, vector<1x1x32xf32>
    %318 = vector.shape_cast %317 : vector<1x1x32xf32> to vector<1x32xf32>
    %c1_170 = arith.constant 1 : index
    %c0_171 = arith.constant 0 : index
    %c0_172 = arith.constant 0 : index
    %319 = vector.load %arg24[%c1_170, %c0_171, %c0_172] : memref<2x1x32xf32, #tpu.memory_space<vmem>>, vector<1x1x32xf32>
    %320 = vector.shape_cast %319 : vector<1x1x32xf32> to vector<1x32xf32>
    %c1_173 = arith.constant 1 : index
    %c0_174 = arith.constant 0 : index
    %c0_175 = arith.constant 0 : index
    %321 = vector.load %arg25[%c1_173, %c0_174, %c0_175] : memref<2x1x32xf32, #tpu.memory_space<vmem>>, vector<1x1x32xf32>
    %322 = vector.shape_cast %321 : vector<1x1x32xf32> to vector<1x32xf32>
    %cst_176 = arith.constant dense<0.000000e+00> : vector<16x96xf32>
    %323 = tpu.matmul %282, %284, %cst_176 {dimension_numbers = #tpu.dot_dimension_numbers<[1], [0], [0], [1], [0, 0, 1, 1], [], []>} : vector<16x32xf32>, vector<32x96xf32>, vector<16x96xf32> -> vector<16x96xf32>
    %324 = vector.broadcast %286 : vector<1x96xf32> to vector<16x96xf32>
    %325 = arith.addf %323, %324 : vector<16x96xf32>
    %326 = vector.extract_strided_slice %325 {offsets = [0, 0], sizes = [16, 32], strides = [1, 1]} : vector<16x96xf32> to vector<16x32xf32>
    %327 = vector.extract_strided_slice %325 {offsets = [0, 32], sizes = [16, 32], strides = [1, 1]} : vector<16x96xf32> to vector<16x32xf32>
    %328 = vector.extract_strided_slice %325 {offsets = [0, 64], sizes = [16, 32], strides = [1, 1]} : vector<16x96xf32> to vector<16x32xf32>
    %329 = vector.extract_strided_slice %326 {offsets = [0, 0], sizes = [16, 8], strides = [1, 1]} : vector<16x32xf32> to vector<16x8xf32>
    %330 = vector.extract_strided_slice %326 {offsets = [0, 8], sizes = [16, 8], strides = [1, 1]} : vector<16x32xf32> to vector<16x8xf32>
    %331 = vector.extract_strided_slice %326 {offsets = [0, 16], sizes = [16, 8], strides = [1, 1]} : vector<16x32xf32> to vector<16x8xf32>
    %332 = vector.extract_strided_slice %326 {offsets = [0, 24], sizes = [16, 8], strides = [1, 1]} : vector<16x32xf32> to vector<16x8xf32>
    %333 = vector.shape_cast %329 : vector<16x8xf32> to vector<1x16x8xf32>
    %334 = vector.shape_cast %330 : vector<16x8xf32> to vector<1x16x8xf32>
    %335 = vector.shape_cast %331 : vector<16x8xf32> to vector<1x16x8xf32>
    %336 = vector.shape_cast %332 : vector<16x8xf32> to vector<1x16x8xf32>
    %337 = tpu.concatenate %333, %334, %335, %336 in 0 : vector<1x16x8xf32>, vector<1x16x8xf32>, vector<1x16x8xf32>, vector<1x16x8xf32> -> vector<4x16x8xf32>
    %338 = vector.extract_strided_slice %327 {offsets = [0, 0], sizes = [16, 8], strides = [1, 1]} : vector<16x32xf32> to vector<16x8xf32>
    %339 = vector.extract_strided_slice %327 {offsets = [0, 8], sizes = [16, 8], strides = [1, 1]} : vector<16x32xf32> to vector<16x8xf32>
    %340 = vector.extract_strided_slice %327 {offsets = [0, 16], sizes = [16, 8], strides = [1, 1]} : vector<16x32xf32> to vector<16x8xf32>
    %341 = vector.extract_strided_slice %327 {offsets = [0, 24], sizes = [16, 8], strides = [1, 1]} : vector<16x32xf32> to vector<16x8xf32>
    %342 = vector.shape_cast %338 : vector<16x8xf32> to vector<1x16x8xf32>
    %343 = vector.shape_cast %339 : vector<16x8xf32> to vector<1x16x8xf32>
    %344 = vector.shape_cast %340 : vector<16x8xf32> to vector<1x16x8xf32>
    %345 = vector.shape_cast %341 : vector<16x8xf32> to vector<1x16x8xf32>
    %346 = tpu.concatenate %342, %343, %344, %345 in 0 : vector<1x16x8xf32>, vector<1x16x8xf32>, vector<1x16x8xf32>, vector<1x16x8xf32> -> vector<4x16x8xf32>
    %347 = vector.extract_strided_slice %328 {offsets = [0, 0], sizes = [16, 8], strides = [1, 1]} : vector<16x32xf32> to vector<16x8xf32>
    %348 = vector.extract_strided_slice %328 {offsets = [0, 8], sizes = [16, 8], strides = [1, 1]} : vector<16x32xf32> to vector<16x8xf32>
    %349 = vector.extract_strided_slice %328 {offsets = [0, 16], sizes = [16, 8], strides = [1, 1]} : vector<16x32xf32> to vector<16x8xf32>
    %350 = vector.extract_strided_slice %328 {offsets = [0, 24], sizes = [16, 8], strides = [1, 1]} : vector<16x32xf32> to vector<16x8xf32>
    %351 = vector.shape_cast %347 : vector<16x8xf32> to vector<1x16x8xf32>
    %352 = vector.shape_cast %348 : vector<16x8xf32> to vector<1x16x8xf32>
    %353 = vector.shape_cast %349 : vector<16x8xf32> to vector<1x16x8xf32>
    %354 = vector.shape_cast %350 : vector<16x8xf32> to vector<1x16x8xf32>
    %355 = tpu.concatenate %351, %352, %353, %354 in 0 : vector<1x16x8xf32>, vector<1x16x8xf32>, vector<1x16x8xf32>, vector<1x16x8xf32> -> vector<4x16x8xf32>
    "tpu.trace_start"() <{level = 10 : i32, message = "hqd,hkd->hqk"}> : () -> ()
    %cst_177 = arith.constant dense<0.000000e+00> : vector<4x16x16xf32>
    %356 = tpu.matmul %337, %346, %cst_177 {dimension_numbers = #tpu.dot_dimension_numbers<[2], [2], [1], [1], [0, 0, 0, 1, 1, 1], [0], [0]>} : vector<4x16x8xf32>, vector<4x16x8xf32>, vector<4x16x16xf32> -> vector<4x16x16xf32>
    "tpu.trace_stop"() : () -> ()
    %cst_178 = arith.constant 0.353553385 : f32
    %357 = vector.broadcast %cst_178 : f32 to vector<4x16x16xf32>
    %358 = arith.mulf %356, %357 : vector<4x16x16xf32>
    %359 = vector.shape_cast %12 : vector<16x16xf32> to vector<1x16x16xf32>
    %360 = vector.broadcast %359 : vector<1x16x16xf32> to vector<4x16x16xf32>
    %361 = arith.addf %358, %360 : vector<4x16x16xf32>
    %cst_179 = arith.constant dense<0xFF800000> : vector<4x16xf32>
    %362 = vector.multi_reduction <maximumf>, %361, %cst_179 [2] : vector<4x16x16xf32> to vector<4x16xf32>
    %363 = vector.shape_cast %362 : vector<4x16xf32> to vector<4x16x1xf32>
    %364 = vector.broadcast %363 : vector<4x16x1xf32> to vector<4x16x16xf32>
    %365 = arith.subf %361, %364 : vector<4x16x16xf32>
    %366 = math.exp %365 : vector<4x16x16xf32>
    %cst_180 = arith.constant dense<0.000000e+00> : vector<4x16xf32>
    %367 = vector.multi_reduction <add>, %366, %cst_180 [2] : vector<4x16x16xf32> to vector<4x16xf32>
    %368 = vector.shape_cast %367 : vector<4x16xf32> to vector<4x16x1xf32>
    %369 = tpu.reciprocal %368 {approx = true} : vector<4x16x1xf32> -> vector<4x16x1xf32>
    %370 = arith.mulf %368, %369 : vector<4x16x1xf32>
    %cst_181 = arith.constant 2.000000e+00 : f32
    %371 = vector.broadcast %cst_181 : f32 to vector<4x16x1xf32>
    %372 = arith.subf %371, %370 : vector<4x16x1xf32>
    %373 = arith.mulf %369, %372 : vector<4x16x1xf32>
    %374 = vector.broadcast %373 : vector<4x16x1xf32> to vector<4x16x16xf32>
    %375 = arith.mulf %366, %374 : vector<4x16x16xf32>
    %c1_182 = arith.constant 1 : index
    %c0_183 = arith.constant 0 : index
    %c0_184 = arith.constant 0 : index
    %c0_185 = arith.constant 0 : index
    %376 = vector.load %arg27[%c1_182, %c0_183, %c0_184, %c0_185] : memref<2x4x16x16xf32, #tpu.memory_space<vmem>>, vector<1x4x16x16xf32>
    %377 = vector.shape_cast %376 : vector<1x4x16x16xf32> to vector<4x16x16xf32>
    %378 = vector.shape_cast %375 : vector<4x16x16xf32> to vector<1x4x16x16xf32>
    tpu.vector_store %arg27[%c1_182, %c0_183, %c0_184, %c0_185], %378 {strides = array<i32>} : memref<2x4x16x16xf32, #tpu.memory_space<vmem>>, vector<1x4x16x16xf32>,
    "tpu.trace_start"() <{level = 10 : i32, message = "hqk,hkd->hqd"}> : () -> ()
    %cst_186 = arith.constant dense<0.000000e+00> : vector<4x16x8xf32>
    %379 = tpu.matmul %375, %355, %cst_186 {dimension_numbers = #tpu.dot_dimension_numbers<[2], [1], [1], [2], [0, 0, 0, 1, 1, 2], [0], [0]>} : vector<4x16x16xf32>, vector<4x16x8xf32>, vector<4x16x8xf32> -> vector<4x16x8xf32>
    "tpu.trace_stop"() : () -> ()
    %380 = vector.extract_strided_slice %379 {offsets = [0, 0, 0], sizes = [1, 16, 8], strides = [1, 1, 1]} : vector<4x16x8xf32> to vector<1x16x8xf32>
    %381 = vector.shape_cast %380 : vector<1x16x8xf32> to vector<16x8xf32>
    %382 = vector.extract_strided_slice %379 {offsets = [1, 0, 0], sizes = [1, 16, 8], strides = [1, 1, 1]} : vector<4x16x8xf32> to vector<1x16x8xf32>
    %383 = vector.shape_cast %382 : vector<1x16x8xf32> to vector<16x8xf32>
    %384 = vector.extract_strided_slice %379 {offsets = [2, 0, 0], sizes = [1, 16, 8], strides = [1, 1, 1]} : vector<4x16x8xf32> to vector<1x16x8xf32>
    %385 = vector.shape_cast %384 : vector<1x16x8xf32> to vector<16x8xf32>
    %386 = vector.extract_strided_slice %379 {offsets = [3, 0, 0], sizes = [1, 16, 8], strides = [1, 1, 1]} : vector<4x16x8xf32> to vector<1x16x8xf32>
    %387 = vector.shape_cast %386 : vector<1x16x8xf32> to vector<16x8xf32>
    %388 = tpu.concatenate %381, %383, %385, %387 in 1 : vector<16x8xf32>, vector<16x8xf32>, vector<16x8xf32>, vector<16x8xf32> -> vector<16x32xf32>
    %cst_187 = arith.constant dense<0.000000e+00> : vector<16x32xf32>
    %389 = tpu.matmul %388, %288, %cst_187 {dimension_numbers = #tpu.dot_dimension_numbers<[1], [0], [0], [1], [0, 0, 1, 1], [], []>} : vector<16x32xf32>, vector<32x32xf32>, vector<16x32xf32> -> vector<16x32xf32>
    %390 = vector.broadcast %290 : vector<1x32xf32> to vector<16x32xf32>
    %391 = arith.addf %389, %390 : vector<16x32xf32>
    %392 = arith.addf %282, %391 : vector<16x32xf32>
    %cst_188 = arith.constant dense<0.000000e+00> : vector<16xf32>
    %393 = vector.multi_reduction <add>, %392, %cst_188 [1] : vector<16x32xf32> to vector<16xf32>
    %394 = vector.shape_cast %393 : vector<16xf32> to vector<16x1xf32>
    %cst_189 = arith.constant 3.200000e+01 : f32
    %395 = vector.broadcast %cst_189 : f32 to vector<16x1xf32>
    %396 = arith.divf %394, %395 : vector<16x1xf32>
    %397 = vector.broadcast %396 : vector<16x1xf32> to vector<16x32xf32>
    %398 = arith.subf %392, %397 : vector<16x32xf32>
    %399 = arith.mulf %398, %398 : vector<16x32xf32>
    %cst_190 = arith.constant dense<0.000000e+00> : vector<16xf32>
    %400 = vector.multi_reduction <add>, %399, %cst_190 [1] : vector<16x32xf32> to vector<16xf32>
    %401 = vector.shape_cast %400 : vector<16xf32> to vector<16x1xf32>
    %cst_191 = arith.constant 3.200000e+01 : f32
    %402 = vector.broadcast %cst_191 : f32 to vector<16x1xf32>
    %403 = arith.divf %401, %402 : vector<16x1xf32>
    %404 = vector.broadcast %396 : vector<16x1xf32> to vector<16x32xf32>
    %405 = arith.subf %392, %404 : vector<16x32xf32>
    %cst_192 = arith.constant 9.99999997E-7 : f32
    %406 = vector.broadcast %cst_192 : f32 to vector<16x1xf32>
    %407 = arith.addf %403, %406 : vector<16x1xf32>
    %408 = math.rsqrt %407 : vector<16x1xf32>
    %409 = vector.broadcast %408 : vector<16x1xf32> to vector<16x32xf32>
    %410 = arith.mulf %405, %409 : vector<16x32xf32>
    %411 = vector.broadcast %292 : vector<1x32xf32> to vector<16x32xf32>
    %412 = arith.mulf %410, %411 : vector<16x32xf32>
    %413 = vector.broadcast %294 : vector<1x32xf32> to vector<16x32xf32>
    %414 = arith.addf %412, %413 : vector<16x32xf32>
    %cst_193 = arith.constant dense<0.000000e+00> : vector<16x32xf32>
    %415 = tpu.matmul %414, %296, %cst_193 {dimension_numbers = #tpu.dot_dimension_numbers<[1], [0], [0], [1], [0, 0, 1, 1], [], []>} : vector<16x32xf32>, vector<32x32xf32>, vector<16x32xf32> -> vector<16x32xf32>
    %416 = vector.broadcast %298 : vector<1x32xf32> to vector<16x32xf32>
    %417 = arith.addf %415, %416 : vector<16x32xf32>
    %cst_194 = arith.constant dense<0.000000e+00> : vector<16x64xf32>
    %418 = tpu.matmul %14, %300, %cst_194 {dimension_numbers = #tpu.dot_dimension_numbers<[1], [0], [0], [1], [0, 0, 1, 1], [], []>} : vector<16x32xf32>, vector<32x64xf32>, vector<16x64xf32> -> vector<16x64xf32>
    %419 = vector.broadcast %302 : vector<1x64xf32> to vector<16x64xf32>
    %420 = arith.addf %418, %419 : vector<16x64xf32>
    %421 = vector.extract_strided_slice %420 {offsets = [0, 0], sizes = [16, 32], strides = [1, 1]} : vector<16x64xf32> to vector<16x32xf32>
    %422 = vector.extract_strided_slice %420 {offsets = [0, 32], sizes = [16, 32], strides = [1, 1]} : vector<16x64xf32> to vector<16x32xf32>
    %423 = vector.extract_strided_slice %417 {offsets = [0, 0], sizes = [16, 8], strides = [1, 1]} : vector<16x32xf32> to vector<16x8xf32>
    %424 = vector.extract_strided_slice %417 {offsets = [0, 8], sizes = [16, 8], strides = [1, 1]} : vector<16x32xf32> to vector<16x8xf32>
    %425 = vector.extract_strided_slice %417 {offsets = [0, 16], sizes = [16, 8], strides = [1, 1]} : vector<16x32xf32> to vector<16x8xf32>
    %426 = vector.extract_strided_slice %417 {offsets = [0, 24], sizes = [16, 8], strides = [1, 1]} : vector<16x32xf32> to vector<16x8xf32>
    %427 = vector.shape_cast %423 : vector<16x8xf32> to vector<1x16x8xf32>
    %428 = vector.shape_cast %424 : vector<16x8xf32> to vector<1x16x8xf32>
    %429 = vector.shape_cast %425 : vector<16x8xf32> to vector<1x16x8xf32>
    %430 = vector.shape_cast %426 : vector<16x8xf32> to vector<1x16x8xf32>
    %431 = tpu.concatenate %427, %428, %429, %430 in 0 : vector<1x16x8xf32>, vector<1x16x8xf32>, vector<1x16x8xf32>, vector<1x16x8xf32> -> vector<4x16x8xf32>
    %432 = vector.extract_strided_slice %421 {offsets = [0, 0], sizes = [16, 8], strides = [1, 1]} : vector<16x32xf32> to vector<16x8xf32>
    %433 = vector.extract_strided_slice %421 {offsets = [0, 8], sizes = [16, 8], strides = [1, 1]} : vector<16x32xf32> to vector<16x8xf32>
    %434 = vector.extract_strided_slice %421 {offsets = [0, 16], sizes = [16, 8], strides = [1, 1]} : vector<16x32xf32> to vector<16x8xf32>
    %435 = vector.extract_strided_slice %421 {offsets = [0, 24], sizes = [16, 8], strides = [1, 1]} : vector<16x32xf32> to vector<16x8xf32>
    %436 = vector.shape_cast %432 : vector<16x8xf32> to vector<1x16x8xf32>
    %437 = vector.shape_cast %433 : vector<16x8xf32> to vector<1x16x8xf32>
    %438 = vector.shape_cast %434 : vector<16x8xf32> to vector<1x16x8xf32>
    %439 = vector.shape_cast %435 : vector<16x8xf32> to vector<1x16x8xf32>
    %440 = tpu.concatenate %436, %437, %438, %439 in 0 : vector<1x16x8xf32>, vector<1x16x8xf32>, vector<1x16x8xf32>, vector<1x16x8xf32> -> vector<4x16x8xf32>
    %441 = vector.extract_strided_slice %422 {offsets = [0, 0], sizes = [16, 8], strides = [1, 1]} : vector<16x32xf32> to vector<16x8xf32>
    %442 = vector.extract_strided_slice %422 {offsets = [0, 8], sizes = [16, 8], strides = [1, 1]} : vector<16x32xf32> to vector<16x8xf32>
    %443 = vector.extract_strided_slice %422 {offsets = [0, 16], sizes = [16, 8], strides = [1, 1]} : vector<16x32xf32> to vector<16x8xf32>
    %444 = vector.extract_strided_slice %422 {offsets = [0, 24], sizes = [16, 8], strides = [1, 1]} : vector<16x32xf32> to vector<16x8xf32>
    %445 = vector.shape_cast %441 : vector<16x8xf32> to vector<1x16x8xf32>
    %446 = vector.shape_cast %442 : vector<16x8xf32> to vector<1x16x8xf32>
    %447 = vector.shape_cast %443 : vector<16x8xf32> to vector<1x16x8xf32>
    %448 = vector.shape_cast %444 : vector<16x8xf32> to vector<1x16x8xf32>
    %449 = tpu.concatenate %445, %446, %447, %448 in 0 : vector<1x16x8xf32>, vector<1x16x8xf32>, vector<1x16x8xf32>, vector<1x16x8xf32> -> vector<4x16x8xf32>
    "tpu.trace_start"() <{level = 10 : i32, message = "hqd,hkd->hqk"}> : () -> ()
    %cst_195 = arith.constant dense<0.000000e+00> : vector<4x16x16xf32>
    %450 = tpu.matmul %431, %440, %cst_195 {dimension_numbers = #tpu.dot_dimension_numbers<[2], [2], [1], [1], [0, 0, 0, 1, 1, 1], [0], [0]>} : vector<4x16x8xf32>, vector<4x16x8xf32>, vector<4x16x16xf32> -> vector<4x16x16xf32>
    "tpu.trace_stop"() : () -> ()
    %cst_196 = arith.constant 0.353553385 : f32
    %451 = vector.broadcast %cst_196 : f32 to vector<4x16x16xf32>
    %452 = arith.mulf %450, %451 : vector<4x16x16xf32>
    %453 = vector.shape_cast %13 : vector<16x16xf32> to vector<1x16x16xf32>
    %454 = vector.broadcast %453 : vector<1x16x16xf32> to vector<4x16x16xf32>
    %455 = arith.addf %452, %454 : vector<4x16x16xf32>
    %cst_197 = arith.constant dense<0xFF800000> : vector<4x16xf32>
    %456 = vector.multi_reduction <maximumf>, %455, %cst_197 [2] : vector<4x16x16xf32> to vector<4x16xf32>
    %457 = vector.shape_cast %456 : vector<4x16xf32> to vector<4x16x1xf32>
    %458 = vector.broadcast %457 : vector<4x16x1xf32> to vector<4x16x16xf32>
    %459 = arith.subf %455, %458 : vector<4x16x16xf32>
    %460 = math.exp %459 : vector<4x16x16xf32>
    %cst_198 = arith.constant dense<0.000000e+00> : vector<4x16xf32>
    %461 = vector.multi_reduction <add>, %460, %cst_198 [2] : vector<4x16x16xf32> to vector<4x16xf32>
    %462 = vector.shape_cast %461 : vector<4x16xf32> to vector<4x16x1xf32>
    %463 = tpu.reciprocal %462 {approx = true} : vector<4x16x1xf32> -> vector<4x16x1xf32>
    %464 = arith.mulf %462, %463 : vector<4x16x1xf32>
    %cst_199 = arith.constant 2.000000e+00 : f32
    %465 = vector.broadcast %cst_199 : f32 to vector<4x16x1xf32>
    %466 = arith.subf %465, %464 : vector<4x16x1xf32>
    %467 = arith.mulf %463, %466 : vector<4x16x1xf32>
    %468 = vector.broadcast %467 : vector<4x16x1xf32> to vector<4x16x16xf32>
    %469 = arith.mulf %460, %468 : vector<4x16x16xf32>
    %c1_200 = arith.constant 1 : index
    %c0_201 = arith.constant 0 : index
    %c0_202 = arith.constant 0 : index
    %c0_203 = arith.constant 0 : index
    %470 = vector.load %arg28[%c1_200, %c0_201, %c0_202, %c0_203] : memref<2x4x16x16xf32, #tpu.memory_space<vmem>>, vector<1x4x16x16xf32>
    %471 = vector.shape_cast %470 : vector<1x4x16x16xf32> to vector<4x16x16xf32>
    %472 = vector.shape_cast %469 : vector<4x16x16xf32> to vector<1x4x16x16xf32>
    tpu.vector_store %arg28[%c1_200, %c0_201, %c0_202, %c0_203], %472 {strides = array<i32>} : memref<2x4x16x16xf32, #tpu.memory_space<vmem>>, vector<1x4x16x16xf32>,
    "tpu.trace_start"() <{level = 10 : i32, message = "hqk,hkd->hqd"}> : () -> ()
    %cst_204 = arith.constant dense<0.000000e+00> : vector<4x16x8xf32>
    %473 = tpu.matmul %469, %449, %cst_204 {dimension_numbers = #tpu.dot_dimension_numbers<[2], [1], [1], [2], [0, 0, 0, 1, 1, 2], [0], [0]>} : vector<4x16x16xf32>, vector<4x16x8xf32>, vector<4x16x8xf32> -> vector<4x16x8xf32>
    "tpu.trace_stop"() : () -> ()
    %474 = vector.extract_strided_slice %473 {offsets = [0, 0, 0], sizes = [1, 16, 8], strides = [1, 1, 1]} : vector<4x16x8xf32> to vector<1x16x8xf32>
    %475 = vector.shape_cast %474 : vector<1x16x8xf32> to vector<16x8xf32>
    %476 = vector.extract_strided_slice %473 {offsets = [1, 0, 0], sizes = [1, 16, 8], strides = [1, 1, 1]} : vector<4x16x8xf32> to vector<1x16x8xf32>
    %477 = vector.shape_cast %476 : vector<1x16x8xf32> to vector<16x8xf32>
    %478 = vector.extract_strided_slice %473 {offsets = [2, 0, 0], sizes = [1, 16, 8], strides = [1, 1, 1]} : vector<4x16x8xf32> to vector<1x16x8xf32>
    %479 = vector.shape_cast %478 : vector<1x16x8xf32> to vector<16x8xf32>
    %480 = vector.extract_strided_slice %473 {offsets = [3, 0, 0], sizes = [1, 16, 8], strides = [1, 1, 1]} : vector<4x16x8xf32> to vector<1x16x8xf32>
    %481 = vector.shape_cast %480 : vector<1x16x8xf32> to vector<16x8xf32>
    %482 = tpu.concatenate %475, %477, %479, %481 in 1 : vector<16x8xf32>, vector<16x8xf32>, vector<16x8xf32>, vector<16x8xf32> -> vector<16x32xf32>
    %cst_205 = arith.constant dense<0.000000e+00> : vector<16x32xf32>
    %483 = tpu.matmul %482, %304, %cst_205 {dimension_numbers = #tpu.dot_dimension_numbers<[1], [0], [0], [1], [0, 0, 1, 1], [], []>} : vector<16x32xf32>, vector<32x32xf32>, vector<16x32xf32> -> vector<16x32xf32>
    %484 = vector.broadcast %306 : vector<1x32xf32> to vector<16x32xf32>
    %485 = arith.addf %483, %484 : vector<16x32xf32>
    %486 = arith.addf %414, %485 : vector<16x32xf32>
    %cst_206 = arith.constant dense<0.000000e+00> : vector<16xf32>
    %487 = vector.multi_reduction <add>, %486, %cst_206 [1] : vector<16x32xf32> to vector<16xf32>
    %488 = vector.shape_cast %487 : vector<16xf32> to vector<16x1xf32>
    %cst_207 = arith.constant 3.200000e+01 : f32
    %489 = vector.broadcast %cst_207 : f32 to vector<16x1xf32>
    %490 = arith.divf %488, %489 : vector<16x1xf32>
    %491 = vector.broadcast %490 : vector<16x1xf32> to vector<16x32xf32>
    %492 = arith.subf %486, %491 : vector<16x32xf32>
    %493 = arith.mulf %492, %492 : vector<16x32xf32>
    %cst_208 = arith.constant dense<0.000000e+00> : vector<16xf32>
    %494 = vector.multi_reduction <add>, %493, %cst_208 [1] : vector<16x32xf32> to vector<16xf32>
    %495 = vector.shape_cast %494 : vector<16xf32> to vector<16x1xf32>
    %cst_209 = arith.constant 3.200000e+01 : f32
    %496 = vector.broadcast %cst_209 : f32 to vector<16x1xf32>
    %497 = arith.divf %495, %496 : vector<16x1xf32>
    %498 = vector.broadcast %490 : vector<16x1xf32> to vector<16x32xf32>
    %499 = arith.subf %486, %498 : vector<16x32xf32>
    %cst_210 = arith.constant 9.99999997E-7 : f32
    %500 = vector.broadcast %cst_210 : f32 to vector<16x1xf32>
    %501 = arith.addf %497, %500 : vector<16x1xf32>
    %502 = math.rsqrt %501 : vector<16x1xf32>
    %503 = vector.broadcast %502 : vector<16x1xf32> to vector<16x32xf32>
    %504 = arith.mulf %499, %503 : vector<16x32xf32>
    %505 = vector.broadcast %308 : vector<1x32xf32> to vector<16x32xf32>
    %506 = arith.mulf %504, %505 : vector<16x32xf32>
    %507 = vector.broadcast %310 : vector<1x32xf32> to vector<16x32xf32>
    %508 = arith.addf %506, %507 : vector<16x32xf32>
    %cst_211 = arith.constant dense<0.000000e+00> : vector<16x128xf32>
    %509 = tpu.matmul %508, %312, %cst_211 {dimension_numbers = #tpu.dot_dimension_numbers<[1], [0], [0], [1], [0, 0, 1, 1], [], []>} : vector<16x32xf32>, vector<32x128xf32>, vector<16x128xf32> -> vector<16x128xf32>
    %510 = vector.broadcast %314 : vector<1x128xf32> to vector<16x128xf32>
    %511 = arith.addf %509, %510 : vector<16x128xf32>
    %cst_212 = arith.constant 5.000000e-01 : f32
    %512 = vector.broadcast %cst_212 : f32 to vector<16x128xf32>
    %513 = arith.mulf %512, %511 : vector<16x128xf32>
    %cst_213 = arith.constant 4.471500e-02 : f32
    %514 = vector.broadcast %cst_213 : f32 to vector<16x128xf32>
    %515 = arith.mulf %514, %511 : vector<16x128xf32>
    %516 = arith.mulf %515, %511 : vector<16x128xf32>
    %517 = arith.mulf %516, %511 : vector<16x128xf32>
    %518 = arith.addf %511, %517 : vector<16x128xf32>
    %cst_214 = arith.constant 0.797884583 : f32
    %519 = vector.broadcast %cst_214 : f32 to vector<16x128xf32>
    %520 = arith.mulf %519, %518 : vector<16x128xf32>
    %521 = math.tanh %520 : vector<16x128xf32>
    %cst_215 = arith.constant 1.000000e+00 : f32
    %522 = vector.broadcast %cst_215 : f32 to vector<16x128xf32>
    %523 = arith.addf %522, %521 : vector<16x128xf32>
    %524 = arith.mulf %513, %523 : vector<16x128xf32>
    %cst_216 = arith.constant dense<0.000000e+00> : vector<16x32xf32>
    %525 = tpu.matmul %524, %316, %cst_216 {dimension_numbers = #tpu.dot_dimension_numbers<[1], [0], [0], [1], [0, 0, 1, 1], [], []>} : vector<16x128xf32>, vector<128x32xf32>, vector<16x32xf32> -> vector<16x32xf32>
    %526 = vector.broadcast %318 : vector<1x32xf32> to vector<16x32xf32>
    %527 = arith.addf %525, %526 : vector<16x32xf32>
    %528 = arith.addf %508, %527 : vector<16x32xf32>
    %cst_217 = arith.constant dense<0.000000e+00> : vector<16xf32>
    %529 = vector.multi_reduction <add>, %528, %cst_217 [1] : vector<16x32xf32> to vector<16xf32>
    %530 = vector.shape_cast %529 : vector<16xf32> to vector<16x1xf32>
    %cst_218 = arith.constant 3.200000e+01 : f32
    %531 = vector.broadcast %cst_218 : f32 to vector<16x1xf32>
    %532 = arith.divf %530, %531 : vector<16x1xf32>
    %533 = vector.broadcast %532 : vector<16x1xf32> to vector<16x32xf32>
    %534 = arith.subf %528, %533 : vector<16x32xf32>
    %535 = arith.mulf %534, %534 : vector<16x32xf32>
    %cst_219 = arith.constant dense<0.000000e+00> : vector<16xf32>
    %536 = vector.multi_reduction <add>, %535, %cst_219 [1] : vector<16x32xf32> to vector<16xf32>
    %537 = vector.shape_cast %536 : vector<16xf32> to vector<16x1xf32>
    %cst_220 = arith.constant 3.200000e+01 : f32
    %538 = vector.broadcast %cst_220 : f32 to vector<16x1xf32>
    %539 = arith.divf %537, %538 : vector<16x1xf32>
    %540 = vector.broadcast %532 : vector<16x1xf32> to vector<16x32xf32>
    %541 = arith.subf %528, %540 : vector<16x32xf32>
    %cst_221 = arith.constant 9.99999997E-7 : f32
    %542 = vector.broadcast %cst_221 : f32 to vector<16x1xf32>
    %543 = arith.addf %539, %542 : vector<16x1xf32>
    %544 = math.rsqrt %543 : vector<16x1xf32>
    %545 = vector.broadcast %544 : vector<16x1xf32> to vector<16x32xf32>
    %546 = arith.mulf %541, %545 : vector<16x32xf32>
    %547 = vector.broadcast %320 : vector<1x32xf32> to vector<16x32xf32>
    %548 = arith.mulf %546, %547 : vector<16x32xf32>
    %549 = vector.broadcast %322 : vector<1x32xf32> to vector<16x32xf32>
    %550 = arith.addf %548, %549 : vector<16x32xf32>
    %c0_222 = arith.constant 0 : index
    %c0_223 = arith.constant 0 : index
    %551 = vector.load %arg26[%c0_222, %c0_223] : memref<16x32xf32, #tpu.memory_space<vmem>>, vector<16x32xf32>
    tpu.vector_store %arg26[%c0_222, %c0_223], %550 {strides = array<i32>} : memref<16x32xf32, #tpu.memory_space<vmem>>, vector<16x32xf32>,
    return
  }
}

</mosaic_0001>

<llo_original>
// kernel: tpu_custom_call.1
$region0: #{tpu_custom_call.1}
  #allocation0 [shape = 'u32[]', space=smem, size = 0x4, offset = 0x4, fixed_abs, tag = 'smem constant byte address 0x4 - core index']
  #allocation1 [shape = 'u32[144,128]{1,0:T(1,128)}', space=vmem, size = 0x12000, scoped, tag = 'internal scratch']
  %s0 = inlined_call_operand.vmem [shape: s32[16,1], index: 0, kind: input, shape index: {}]
  %s1 = inlined_call_operand.vmem [shape: s32[16,1], index: 1, kind: input, shape index: {}]
  %s2 = inlined_call_operand.hbm [shape: f32[16,16], index: 2, kind: input, shape index: {}]
  %s3 = inlined_call_operand.hbm [shape: f32[16,16], index: 3, kind: input, shape index: {}]
  %s4 = inlined_call_operand.hbm [shape: f32[16,32], index: 4, kind: input, shape index: {}]
  %s5 = inlined_call_operand.vmem [shape: f32[48,32], index: 5, kind: input, shape index: {}]
  %s6 = inlined_call_operand.vmem [shape: f32[2,32,96], index: 6, kind: input, shape index: {}]
  %s7 = inlined_call_operand.vmem [shape: f32[2,1,96], index: 7, kind: input, shape index: {}]
  %s8 = inlined_call_operand.vmem [shape: f32[2,32,32], index: 8, kind: input, shape index: {}]
  %s9 = inlined_call_operand.vmem [shape: f32[2,1,32], index: 9, kind: input, shape index: {}]
  %s10 = inlined_call_operand.vmem [shape: f32[2,1,32], index: 10, kind: input, shape index: {}]
  %s11 = inlined_call_operand.vmem [shape: f32[2,1,32], index: 11, kind: input, shape index: {}]
  %s12 = inlined_call_operand.vmem [shape: f32[2,32,32], index: 12, kind: input, shape index: {}]
  %s13 = inlined_call_operand.vmem [shape: f32[2,1,32], index: 13, kind: input, shape index: {}]
  %s14 = inlined_call_operand.vmem [shape: f32[2,32,64], index: 14, kind: input, shape index: {}]
  %s15 = inlined_call_operand.vmem [shape: f32[2,1,64], index: 15, kind: input, shape index: {}]
  %s16 = inlined_call_operand.vmem [shape: f32[2,32,32], index: 16, kind: input, shape index: {}]
  %s17 = inlined_call_operand.vmem [shape: f32[2,1,32], index: 17, kind: input, shape index: {}]
  %s18 = inlined_call_operand.vmem [shape: f32[2,1,32], index: 18, kind: input, shape index: {}]
  %s19 = inlined_call_operand.vmem [shape: f32[2,1,32], index: 19, kind: input, shape index: {}]
  %s20 = inlined_call_operand.vmem [shape: f32[2,32,128], index: 20, kind: input, shape index: {}]
  %s21 = inlined_call_operand.vmem [shape: f32[2,1,128], index: 21, kind: input, shape index: {}]
  %s22 = inlined_call_operand.vmem [shape: f32[2,128,32], index: 22, kind: input, shape index: {}]
  %s23 = inlined_call_operand.vmem [shape: f32[2,1,32], index: 23, kind: input, shape index: {}]
  %s24 = inlined_call_operand.vmem [shape: f32[2,1,32], index: 24, kind: input, shape index: {}]
  %s25 = inlined_call_operand.vmem [shape: f32[2,1,32], index: 25, kind: input, shape index: {}]
  %s26 = inlined_call_operand.hbm [shape: f32[16,32], index: 26, kind: output, shape index: {0}]
  %s27 = inlined_call_operand.hbm [shape: f32[2,4,16,16], index: 27, kind: output, shape index: {1}]
  %s28 = inlined_call_operand.hbm [shape: f32[2,4,16,16], index: 28, kind: output, shape index: {2}]
  %29 = xla_tuple %s26, %s27, %s28
  %s30 = sld [smem:[#allocation0]]
  $region142: #{tpu_custom_call.1} parent=0
    _
  %s32 = ssub.s32 1, %s30
  %s33 = scalar_select 0, %s32, %s30
  $region1: #{tpu_custom_call.1} parent=0
    #allocation2 [shape = 'u8[8192]{0}', space=vmem, size = 0x2000, scoped, tag = 'input window, operand 2, single buffered']
    #allocation3 [shape = 's32[1]{0}', space=sflag, size = 0x4, scoped, tag = 'scoped memory for tpu_custom_call.1']
    #allocation4 [shape = 's32[1]{0}', space=sflag, size = 0x4, scoped, tag = 'scoped memory for tpu_custom_call.1']
    #allocation5 [shape = 'u8[8192]{0}', space=vmem, size = 0x2000, scoped, tag = 'input window, operand 3, single buffered']
    #allocation6 [shape = 's32[1]{0}', space=sflag, size = 0x4, scoped, tag = 'scoped memory for tpu_custom_call.1']
    #allocation7 [shape = 'u8[8192]{0}', space=vmem, size = 0x2000, scoped, tag = 'input window, operand 4, single buffered']
    #allocation8 [shape = 'u8[8192]{0}', space=vmem, size = 0x2000, scoped, tag = 'output window, operand 0, single buffered']
    #allocation9 [shape = 'u8[65536]{0}', space=vmem, size = 0x10000, scoped, tag = 'output window, operand 1, single buffered']
    #allocation10 [shape = 's32[1]{0}', space=sflag, size = 0x4, scoped, tag = 'scoped memory for tpu_custom_call.1']
    #allocation11 [shape = 'u8[65536]{0}', space=vmem, size = 0x10000, scoped, tag = 'output window, operand 2, single buffered']
    %34 = vsyncpa [#allocation3], 0
    %35 = vsyncpa [#allocation6], 0
    %36 = vsyncpa [#allocation4], 0
    %37 = vsyncpa [#allocation10], 0
    // Predicated region
    $region2: #{tpu_custom_call.1} parent=1 // pred_check
      _
    $region3: #{tpu_custom_call.1} parent=1 // pred_check_branch
      %39 = sbr.rel (0) target = $region5
    $region4: #{tpu_custom_call.1} parent=1 // pred_region
      _
    $region5: #{tpu_custom_call.1} parent=1 // pred_fallthru
      _
    // Predicated region
    $region6: #{tpu_custom_call.1} parent=1 // pred_check
      _
    $region7: #{tpu_custom_call.1} parent=1 // pred_check_branch
      %41 = sbr.rel (0) target = $region9
    $region8: #{tpu_custom_call.1} parent=1 // pred_region
      _
    $region9: #{tpu_custom_call.1} parent=1 // pred_fallthru
      _
    // Predicated region
    $region10: #{tpu_custom_call.1} parent=1 // pred_check
      _
    $region11: #{tpu_custom_call.1} parent=1 // pred_check_branch
      %43 = sbr.rel (0) target = $region13
    $region12: #{tpu_custom_call.1} parent=1 // pred_region
      %s45 = ssub.s32 256, 256
      %46 = vsyncadd [#allocation3], %s45
      %s47 = sshll.u32 [#allocation2], 4
      %s48 = int_to_ptr.vmem [resolvable:$true] %s47
      %53 = dma.hbm_to_vmem [thread:$0]  %s2, 256, %s48, [#allocation3], 128, 128, 8
    $region13: #{tpu_custom_call.1} parent=1 // pred_fallthru
      _
    // Predicated region
    $region14: #{tpu_custom_call.1} parent=1 // pred_check
      _
    $region15: #{tpu_custom_call.1} parent=1 // pred_check_branch
      %55 = sbr.rel (0) target = $region17
    $region16: #{tpu_custom_call.1} parent=1 // pred_region
      %s57 = ssub.s32 256, 256
      %58 = vsyncadd [#allocation6], %s57
      %s59 = sshll.u32 [#allocation5], 4
      %s60 = int_to_ptr.vmem [resolvable:$true] %s59
      %65 = dma.hbm_to_vmem [thread:$0]  %s3, 256, %s60, [#allocation6], 128, 128, 8
    $region17: #{tpu_custom_call.1} parent=1 // pred_fallthru
      _
    // Predicated region
    $region18: #{tpu_custom_call.1} parent=1 // pred_check
      _
    $region19: #{tpu_custom_call.1} parent=1 // pred_check_branch
      %67 = sbr.rel (0) target = $region21
    $region20: #{tpu_custom_call.1} parent=1 // pred_region
      %s69 = ssub.s32 256, 256
      %70 = vsyncadd [#allocation6], %s69
      %s71 = sshll.u32 [#allocation7], 4
      %s72 = int_to_ptr.vmem [resolvable:$true] %s71
      %77 = dma.hbm_to_vmem [thread:$0]  %s4, 256, %s72, [#allocation6], 128, 128, 8
    $region21: #{tpu_custom_call.1} parent=1 // pred_fallthru
      _
    // Predicated region
    $region22: #{tpu_custom_call.1} parent=1 // pred_check
      _
    $region23: #{tpu_custom_call.1} parent=1 // pred_check_branch
      %79 = sbr.rel (0) target = $region25
    $region24: #{tpu_custom_call.1} parent=1 // pred_region
      _
    $region25: #{tpu_custom_call.1} parent=1 // pred_fallthru
      _
    // Predicated region
    $region26: #{tpu_custom_call.1} parent=1 // pred_check
      _
    $region27: #{tpu_custom_call.1} parent=1 // pred_check_branch
      %81 = sbr.rel (0) target = $region29
    $region28: #{tpu_custom_call.1} parent=1 // pred_region
      _
    $region29: #{tpu_custom_call.1} parent=1 // pred_fallthru
      _
    // Predicated region
    $region30: #{tpu_custom_call.1} parent=1 // pred_check
      _
    $region31: #{tpu_custom_call.1} parent=1 // pred_check_branch
      %83 = sbr.rel (0) target = $region33
    $region32: #{tpu_custom_call.1} parent=1 // pred_region
      _
    $region33: #{tpu_custom_call.1} parent=1 // pred_fallthru
      _
    // Predicated region
    $region34: #{tpu_custom_call.1} parent=1 // pred_check
      _
    $region35: #{tpu_custom_call.1} parent=1 // pred_check_branch
      %85 = sbr.rel (0) target = $region37
    $region36: #{tpu_custom_call.1} parent=1 // pred_region
      _
    $region37: #{tpu_custom_call.1} parent=1 // pred_fallthru
      _
    // Predicated region
    $region38: #{tpu_custom_call.1} parent=1 // pred_check
      _
    $region39: #{tpu_custom_call.1} parent=1 // pred_check_branch
      %87 = sbr.rel (0) target = $region41
    $region40: #{tpu_custom_call.1} parent=1 // pred_region
      _
    $region41: #{tpu_custom_call.1} parent=1 // pred_fallthru
      _
    // Predicated region
    $region42: #{tpu_custom_call.1} parent=1 // pred_check
      _
    $region43: #{tpu_custom_call.1} parent=1 // pred_check_branch
      %89 = sbr.rel (0) target = $region45
    $region44: #{tpu_custom_call.1} parent=1 // pred_region
      _
    $region45: #{tpu_custom_call.1} parent=1 // pred_fallthru
      _
    // Predicated region
    $region46: #{tpu_custom_call.1} parent=1 // pred_check
      _
    $region47: #{tpu_custom_call.1} parent=1 // pred_check_branch
      %91 = sbr.rel (0) target = $region49
    $region48: #{tpu_custom_call.1} parent=1 // pred_region
      _
    $region49: #{tpu_custom_call.1} parent=1 // pred_fallthru
      _
    // Predicated region
    $region50: #{tpu_custom_call.1} parent=1 // pred_check
      _
    $region51: #{tpu_custom_call.1} parent=1 // pred_check_branch
      %93 = sbr.rel (0) target = $region53
    $region52: #{tpu_custom_call.1} parent=1 // pred_region
      _
    $region53: #{tpu_custom_call.1} parent=1 // pred_fallthru
      _
    // Predicated region
    $region54: #{tpu_custom_call.1} parent=1 // pred_check
      _
    $region55: #{tpu_custom_call.1} parent=1 // pred_check_branch
      %95 = sbr.rel (0) target = $region57
    $region56: #{tpu_custom_call.1} parent=1 // pred_region
      _
    $region57: #{tpu_custom_call.1} parent=1 // pred_fallthru
      _
    // Predicated region
    $region58: #{tpu_custom_call.1} parent=1 // pred_check
      _
    $region59: #{tpu_custom_call.1} parent=1 // pred_check_branch
      %97 = sbr.rel (0) target = $region61
    $region60: #{tpu_custom_call.1} parent=1 // pred_region
      _
    $region61: #{tpu_custom_call.1} parent=1 // pred_fallthru
      _
    // Predicated region
    $region62: #{tpu_custom_call.1} parent=1 // pred_check
      _
    $region63: #{tpu_custom_call.1} parent=1 // pred_check_branch
      %99 = sbr.rel (0) target = $region65
    $region64: #{tpu_custom_call.1} parent=1 // pred_region
      _
    $region65: #{tpu_custom_call.1} parent=1 // pred_fallthru
      _
    // Predicated region
    $region66: #{tpu_custom_call.1} parent=1 // pred_check
      _
    $region67: #{tpu_custom_call.1} parent=1 // pred_check_branch
      %101 = sbr.rel (0) target = $region69
    $region68: #{tpu_custom_call.1} parent=1 // pred_region
      _
    $region69: #{tpu_custom_call.1} parent=1 // pred_fallthru
      _
    // Predicated region
    $region70: #{tpu_custom_call.1} parent=1 // pred_check
      _
    $region71: #{tpu_custom_call.1} parent=1 // pred_check_branch
      %103 = sbr.rel (0) target = $region73
    $region72: #{tpu_custom_call.1} parent=1 // pred_region
      _
    $region73: #{tpu_custom_call.1} parent=1 // pred_fallthru
      _
    // Predicated region
    $region74: #{tpu_custom_call.1} parent=1 // pred_check
      _
    $region75: #{tpu_custom_call.1} parent=1 // pred_check_branch
      %105 = sbr.rel (0) target = $region77
    $region76: #{tpu_custom_call.1} parent=1 // pred_region
      _
    $region77: #{tpu_custom_call.1} parent=1 // pred_fallthru
      _
    // Predicated region
    $region78: #{tpu_custom_call.1} parent=1 // pred_check
      _
    $region79: #{tpu_custom_call.1} parent=1 // pred_check_branch
      %107 = sbr.rel (0) target = $region81
    $region80: #{tpu_custom_call.1} parent=1 // pred_region
      _
    $region81: #{tpu_custom_call.1} parent=1 // pred_fallthru
      _
    // Predicated region
    $region82: #{tpu_custom_call.1} parent=1 // pred_check
      _
    $region83: #{tpu_custom_call.1} parent=1 // pred_check_branch
      %109 = sbr.rel (0) target = $region85
    $region84: #{tpu_custom_call.1} parent=1 // pred_region
      _
    $region85: #{tpu_custom_call.1} parent=1 // pred_fallthru
      _
    // Predicated region
    $region86: #{tpu_custom_call.1} parent=1 // pred_check
      _
    $region87: #{tpu_custom_call.1} parent=1 // pred_check_branch
      %111 = sbr.rel (0) target = $region89
    $region88: #{tpu_custom_call.1} parent=1 // pred_region
      _
    $region89: #{tpu_custom_call.1} parent=1 // pred_fallthru
      _
    // Predicated region
    $region90: #{tpu_custom_call.1} parent=1 // pred_check
      _
    $region91: #{tpu_custom_call.1} parent=1 // pred_check_branch
      %113 = sbr.rel (0) target = $region93
    $region92: #{tpu_custom_call.1} parent=1 // pred_region
      _
    $region93: #{tpu_custom_call.1} parent=1 // pred_fallthru
      _
    // Predicated region
    $region94: #{tpu_custom_call.1} parent=1 // pred_check
      _
    $region95: #{tpu_custom_call.1} parent=1 // pred_check_branch
      %115 = sbr.rel (0) target = $region97
    $region96: #{tpu_custom_call.1} parent=1 // pred_region
      _
    $region97: #{tpu_custom_call.1} parent=1 // pred_fallthru
      _
    // Predicated region
    $region98: #{tpu_custom_call.1} parent=1 // pred_check
      _
    $region99: #{tpu_custom_call.1} parent=1 // pred_check_branch
      %117 = sbr.rel (0) target = $region101
    $region100: #{tpu_custom_call.1} parent=1 // pred_region
      _
    $region101: #{tpu_custom_call.1} parent=1 // pred_fallthru
      _
    // Predicated region
    $region102: #{tpu_custom_call.1} parent=1 // pred_check
      _
    $region103: #{tpu_custom_call.1} parent=1 // pred_check_branch
      %119 = sbr.rel (0) target = $region105
    $region104: #{tpu_custom_call.1} parent=1 // pred_region
      _
    $region105: #{tpu_custom_call.1} parent=1 // pred_fallthru
      _
    // Predicated region
    $region106: #{tpu_custom_call.1} parent=1 // pred_check
      _
    $region107: #{tpu_custom_call.1} parent=1 // pred_check_branch
      %121 = sbr.rel (0) target = $region109
    $region108: #{tpu_custom_call.1} parent=1 // pred_region
      %122 = dma.done [#allocation3], 256
    $region109: #{tpu_custom_call.1} parent=1 // pred_fallthru
      _
    // Predicated region
    $region110: #{tpu_custom_call.1} parent=1 // pred_check
      _
    $region111: #{tpu_custom_call.1} parent=1 // pred_check_branch
      %124 = sbr.rel (0) target = $region113
    $region112: #{tpu_custom_call.1} parent=1 // pred_region
      %125 = dma.done [#allocation6], 256
    $region113: #{tpu_custom_call.1} parent=1 // pred_fallthru
      _
    // Predicated region
    $region114: #{tpu_custom_call.1} parent=1 // pred_check
      _
    $region115: #{tpu_custom_call.1} parent=1 // pred_check_branch
      %127 = sbr.rel (0) target = $region117
    $region116: #{tpu_custom_call.1} parent=1 // pred_region
      %128 = dma.done [#allocation6], 256
    $region117: #{tpu_custom_call.1} parent=1 // pred_fallthru
      _
    %v129 = vld [vmem:[%s0] sm:$0xff]
    %v130 = vld [vmem:[%s0 + $0x8] sm:$0xff]
    %v131 = vld [vmem:[%s1] sm:$0xff]
    %v132 = vld [vmem:[%s1 + $0x8] sm:$0xff]
    %v133 = vlaneseq
    %v134 = vand.u32 %v133, 127
    %135 = vset.pattern.permute.xlu0 0
    %136 = vperm.xlu0 %135, %v129
    %v137 = vpop.permute.xlu0 %136
    %138 = vset.pattern.permute.xlu0 0
    %139 = vperm.xlu0 %138, %v130
    %v140 = vpop.permute.xlu0 %139
    %vm141 = vcmp.eq.s32.totalorder %v137, %v134
    %vm142 = vcmp.eq.s32.totalorder %v140, %v134
    %143 = vset.pattern.permute.xlu0 0
    %144 = vperm.xlu0 %143, %v131
    %v145 = vpop.permute.xlu0 %144
    %146 = vset.pattern.permute.xlu0 0
    %147 = vperm.xlu0 %146, %v132
    %v148 = vpop.permute.xlu0 %147
    %vm149 = vcmp.eq.s32.totalorder %v145, %v134
    %vm150 = vcmp.eq.s32.totalorder %v148, %v134
    %vm151 = vmor %vm141, %vm149
    %vm152 = vmor %vm142, %vm150
    %v153 = vsel %vm151, 1, 0
    %v154 = vsel %vm152, 1, 0
    %v155 = vcvt.s32.f32 %v153
    %v156 = vcvt.s32.f32 %v154
    %v157 = vld [vmem:[%s5] sm:$0xff]
    %v158 = vld [vmem:[%s5 + $0x8] sm:$0xff]
    %v159 = vld [vmem:[%s5 + $0x10] sm:$0xff]
    %v160 = vld [vmem:[%s5 + $0x18] sm:$0xff]
    %v161 = vld [vmem:[%s5 + $0x20] sm:$0xff]
    %v162 = vld [vmem:[%s5 + $0x28] sm:$0xff]
    %vm163 = vcmask 392192
    %v165 = vsel %vm163, %v155, 0
    %v168 = vsel %vm163, %v156, 0
    %170 = vmatprep.subr.mxu0 0.0
    %171 = vmatpush1.msra.mxu0 %v157
    %172 = vmatprep.subr.mxu0 0.0
    %173 = vmatpush1.msra.mxu0 %v158
    %174 = vmatprep.subr.mxu0 0.0
    %175 = vmatpush1.msra.mxu0 %v159
    %176 = vmatprep.subr.mxu0 0.0
    %177 = vmatpush1.msra.mxu0 %v160
    %178 = vmatprep.subr.mxu0 0.0
    %179 = vmatpush1.msra.mxu0 %v161
    %180 = vmatprep.subr.mxu0 0.0
    %181 = vmatpush1.msra.mxu0 %v162
    %182 = vmatprep.subr.mxu0 0.0
    %183 = vmatpush1.msra.mxu0 0.0
    %184 = vmatprep.subr.mxu0 0.0
    %185 = vmatpush1.msra.mxu0 0.0
    %186 = vmatprep.subr.mxu0 0.0
    %187 = vmatpush1.msra.mxu0 0.0
    %188 = vmatprep.subr.mxu0 0.0
    %189 = vmatpush1.msra.mxu0 0.0
    %190 = vmatprep.subr.mxu0 0.0
    %191 = vmatpush1.msra.mxu0 0.0
    %192 = vmatprep.subr.mxu0 0.0
    %193 = vmatpush1.msra.mxu0 0.0
    %194 = vmatprep.subr.mxu0 0.0
    %195 = vmatpush1.msra.mxu0 0.0
    %196 = vmatprep.subr.mxu0 0.0
    %197 = vmatpush1.msra.mxu0 0.0
    %198 = vmatprep.subr.mxu0 0.0
    %199 = vmatpush1.msra.mxu0 0.0
    %200 = vmatprep.subr.mxu0 0.0
    %201 = vmatpush1.msra.mxu0 0.0
    %202 = vmatprep.subr.mxu0 0.0
    %203 = vmatpush1.msra.mxu0 0.0
    %204 = vmatprep.subr.mxu0 0.0
    %205 = vmatpush1.msra.mxu0 0.0
    %206 = vmatprep.subr.mxu0 0.0
    %207 = vmatpush1.msra.mxu0 0.0
    %208 = vmatprep.subr.mxu0 0.0
    %209 = vmatpush1.msra.mxu0 0.0
    %210 = vmatprep.subr.mxu0 0.0
    %211 = vmatpush1.msra.mxu0 0.0
    %212 = vmatprep.subr.mxu0 0.0
    %213 = vmatpush1.msra.mxu0 0.0
    %214 = vmatprep.subr.mxu0 0.0
    %215 = vmatpush1.msra.mxu0 0.0
    %216 = vmatprep.subr.mxu0 0.0
    %217 = vmatpush1.msra.mxu0 0.0
    %218 = vmatprep.subr.mxu0 0.0
    %219 = vmatpush1.msra.mxu0 0.0
    %220 = vmatprep.subr.mxu0 0.0
    %221 = vmatpush1.msra.mxu0 0.0
    %222 = vmatprep.subr.mxu0 0.0
    %223 = vmatpush1.msra.mxu0 0.0
    %224 = vmatprep.subr.mxu0 0.0
    %225 = vmatpush1.msra.mxu0 0.0
    %226 = vmatprep.subr.mxu0 0.0
    %227 = vmatpush1.msra.mxu0 0.0
    %228 = vmatprep.subr.mxu0 0.0
    %229 = vmatpush1.msra.mxu0 0.0
    %230 = vmatprep.subr.mxu0 0.0
    %231 = vmatpush1.msra.mxu0 0.0
    %232 = vmatprep.subr.mxu0 0.0
    %233 = vmatpush1.msra.mxu0 0.0
    %234 = vmatprep.mubr.f32.mxu0 0.0
    %235 = vmatmul.mubr.f32.gmra.mrb[0].mxu0 %v165
    %v236 = vpop.f32.mrb[0].mxu0
    %v237 = vadd.f32 0.0, %v236
    %v238 = vpop.f32.mrb[0].mxu0
    %239 = vmatprep.mubr.f32.mxu0 0.0
    %240 = vmatmul.mubr.f32.gmra.mrb[0].mxu0 %v168
    %v241 = vpop.f32.mrb[0].mxu0
    %v242 = vadd.f32 0.0, %v241
    %v243 = vpop.f32.mrb[0].mxu0
    %244 = vdwg.mxu0
    %v245 = vld [vmem:[#allocation2] sm:$0xff]
    %v246 = vld [vmem:[#allocation2 + $0x8] sm:$0xff]
    %v247 = vld [vmem:[#allocation5] sm:$0xff]
    %v248 = vld [vmem:[#allocation5 + $0x8] sm:$0xff]
    %v249 = vld [vmem:[#allocation7] sm:$0xff]
    %v250 = vld [vmem:[#allocation7 + $0x8] sm:$0xff]
    %v251 = vld [vmem:[%s6] sm:$0xff]
    %v252 = vld [vmem:[%s6 + $0x8] sm:$0xff]
    %v253 = vld [vmem:[%s6 + $0x10] sm:$0xff]
    %v254 = vld [vmem:[%s6 + $0x18] sm:$0xff]
    %v255 = vld [vmem:[%s7] sm:$0x1]
    %v256 = vld [vmem:[%s8] sm:$0xff]
    %v257 = vld [vmem:[%s8 + $0x8] sm:$0xff]
    %v258 = vld [vmem:[%s8 + $0x10] sm:$0xff]
    %v259 = vld [vmem:[%s8 + $0x18] sm:$0xff]
    %v260 = vld [vmem:[%s9] sm:$0x1]
    %v261 = vld [vmem:[%s10] sm:$0x1]
    %v262 = vld [vmem:[%s11] sm:$0x1]
    %v263 = vld [vmem:[%s12] sm:$0xff]
    %v264 = vld [vmem:[%s12 + $0x8] sm:$0xff]
    %v265 = vld [vmem:[%s12 + $0x10] sm:$0xff]
    %v266 = vld [vmem:[%s12 + $0x18] sm:$0xff]
    %v267 = vld [vmem:[%s13] sm:$0x1]
    %v268 = vld [vmem:[%s14] sm:$0xff]
    %v269 = vld [vmem:[%s14 + $0x8] sm:$0xff]
    %v270 = vld [vmem:[%s14 + $0x10] sm:$0xff]
    %v271 = vld [vmem:[%s14 + $0x18] sm:$0xff]
    %v272 = vld [vmem:[%s15] sm:$0x1]
    %v273 = vld [vmem:[%s16] sm:$0xff]
    %v274 = vld [vmem:[%s16 + $0x8] sm:$0xff]
    %v275 = vld [vmem:[%s16 + $0x10] sm:$0xff]
    %v276 = vld [vmem:[%s16 + $0x18] sm:$0xff]
    %v277 = vld [vmem:[%s17] sm:$0x1]
    %v278 = vld [vmem:[%s18] sm:$0x1]
    %v279 = vld [vmem:[%s19] sm:$0x1]
    %v280 = vld [vmem:[%s20] sm:$0xff]
    %v281 = vld [vmem:[%s20 + $0x8] sm:$0xff]
    %v282 = vld [vmem:[%s20 + $0x10] sm:$0xff]
    %v283 = vld [vmem:[%s20 + $0x18] sm:$0xff]
    %v284 = vld [vmem:[%s21] sm:$0x1]
    %v285 = vld [vmem:[%s22] sm:$0xff]
    %v286 = vld [vmem:[%s22 + $0x8] sm:$0xff]
    %v287 = vld [vmem:[%s22 + $0x10] sm:$0xff]
    %v288 = vld [vmem:[%s22 + $0x18] sm:$0xff]
    %v289 = vld [vmem:[%s22 + $0x20] sm:$0xff]
    %v290 = vld [vmem:[%s22 + $0x28] sm:$0xff]
    %v291 = vld [vmem:[%s22 + $0x30] sm:$0xff]
    %v292 = vld [vmem:[%s22 + $0x38] sm:$0xff]
    %v293 = vld [vmem:[%s22 + $0x40] sm:$0xff]
    %v294 = vld [vmem:[%s22 + $0x48] sm:$0xff]
    %v295 = vld [vmem:[%s22 + $0x50] sm:$0xff]
    %v296 = vld [vmem:[%s22 + $0x58] sm:$0xff]
    %v297 = vld [vmem:[%s22 + $0x60] sm:$0xff]
    %v298 = vld [vmem:[%s22 + $0x68] sm:$0xff]
    %v299 = vld [vmem:[%s22 + $0x70] sm:$0xff]
    %v300 = vld [vmem:[%s22 + $0x78] sm:$0xff]
    %v301 = vld [vmem:[%s23] sm:$0x1]
    %v302 = vld [vmem:[%s24] sm:$0x1]
    %v303 = vld [vmem:[%s25] sm:$0x1]
    %v305 = vlaneseq
    %v306 = vshrl.u32 %v305, 7
    %v307 = vsub.s32 0, %v306
    %v308 = vrot.slane %v255, %v307
    %vm310 = vcmask 261120
    %v312 = vsel %vm310, %v237, 0
    %v315 = vsel %vm310, %v242, 0
    %317 = vmatprep.subr.mxu0 0.0
    %318 = vmatpush1.msra.mxu0 %v251
    %319 = vmatprep.subr.mxu0 0.0
    %320 = vmatpush1.msra.mxu0 %v252
    %321 = vmatprep.subr.mxu0 0.0
    %322 = vmatpush1.msra.mxu0 %v253
    %323 = vmatprep.subr.mxu0 0.0
    %324 = vmatpush1.msra.mxu0 %v254
    %325 = vmatprep.subr.mxu0 0.0
    %326 = vmatpush1.msra.mxu0 0.0
    %327 = vmatprep.subr.mxu0 0.0
    %328 = vmatpush1.msra.mxu0 0.0
    %329 = vmatprep.subr.mxu0 0.0
    %330 = vmatpush1.msra.mxu0 0.0
    %331 = vmatprep.subr.mxu0 0.0
    %332 = vmatpush1.msra.mxu0 0.0
    %333 = vmatprep.subr.mxu0 0.0
    %334 = vmatpush1.msra.mxu0 0.0
    %335 = vmatprep.subr.mxu0 0.0
    %336 = vmatpush1.msra.mxu0 0.0
    %337 = vmatprep.subr.mxu0 0.0
    %338 = vmatpush1.msra.mxu0 0.0
    %339 = vmatprep.subr.mxu0 0.0
    %340 = vmatpush1.msra.mxu0 0.0
    %341 = vmatprep.subr.mxu0 0.0
    %342 = vmatpush1.msra.mxu0 0.0
    %343 = vmatprep.subr.mxu0 0.0
    %344 = vmatpush1.msra.mxu0 0.0
    %345 = vmatprep.subr.mxu0 0.0
    %346 = vmatpush1.msra.mxu0 0.0
    %347 = vmatprep.subr.mxu0 0.0
    %348 = vmatpush1.msra.mxu0 0.0
    %349 = vmatprep.subr.mxu0 0.0
    %350 = vmatpush1.msra.mxu0 0.0
    %351 = vmatprep.subr.mxu0 0.0
    %352 = vmatpush1.msra.mxu0 0.0
    %353 = vmatprep.subr.mxu0 0.0
    %354 = vmatpush1.msra.mxu0 0.0
    %355 = vmatprep.subr.mxu0 0.0
    %356 = vmatpush1.msra.mxu0 0.0
    %357 = vmatprep.subr.mxu0 0.0
    %358 = vmatpush1.msra.mxu0 0.0
    %359 = vmatprep.subr.mxu0 0.0
    %360 = vmatpush1.msra.mxu0 0.0
    %361 = vmatprep.subr.mxu0 0.0
    %362 = vmatpush1.msra.mxu0 0.0
    %363 = vmatprep.subr.mxu0 0.0
    %364 = vmatpush1.msra.mxu0 0.0
    %365 = vmatprep.subr.mxu0 0.0
    %366 = vmatpush1.msra.mxu0 0.0
    %367 = vmatprep.subr.mxu0 0.0
    %368 = vmatpush1.msra.mxu0 0.0
    %369 = vmatprep.subr.mxu0 0.0
    %370 = vmatpush1.msra.mxu0 0.0
    %371 = vmatprep.subr.mxu0 0.0
    %372 = vmatpush1.msra.mxu0 0.0
    %373 = vmatprep.subr.mxu0 0.0
    %374 = vmatpush1.msra.mxu0 0.0
    %375 = vmatprep.subr.mxu0 0.0
    %376 = vmatpush1.msra.mxu0 0.0
    %377 = vmatprep.subr.mxu0 0.0
    %378 = vmatpush1.msra.mxu0 0.0
    %379 = vmatprep.subr.mxu0 0.0
    %380 = vmatpush1.msra.mxu0 0.0
    %381 = vmatprep.mubr.f32.mxu0 0.0
    %382 = vmatmul.mubr.f32.gmra.mrb[0].mxu0 %v312
    %v383 = vpop.f32.mrb[0].mxu0
    %v384 = vadd.f32 %v308, %v383
    %v385 = vpop.f32.mrb[0].mxu0
    %386 = vmatprep.mubr.f32.mxu0 0.0
    %387 = vmatmul.mubr.f32.gmra.mrb[0].mxu0 %v315
    %v388 = vpop.f32.mrb[0].mxu0
    %v389 = vadd.f32 %v308, %v388
    %v390 = vpop.f32.mrb[0].mxu0
    %391 = vdwg.mxu0
    %394 = vrot.lane.b32.xlu0 %v384, 120
    %v395 = vpop.permute.xlu0 %394
    %396 = vrot.lane.b32.xlu0 %v389, 120
    %v397 = vpop.permute.xlu0 %396
    %398 = vrot.lane.b32.xlu0 %v384, 112
    %v399 = vpop.permute.xlu0 %398
    %400 = vrot.lane.b32.xlu0 %v389, 112
    %v401 = vpop.permute.xlu0 %400
    %402 = vrot.lane.b32.xlu0 %v384, 104
    %v403 = vpop.permute.xlu0 %402
    %404 = vrot.lane.b32.xlu0 %v389, 104
    %v405 = vpop.permute.xlu0 %404
    %406 = vrot.lane.b32.xlu0 %v384, 96
    %v407 = vpop.permute.xlu0 %406
    %408 = vrot.lane.b32.xlu0 %v389, 96
    %v409 = vpop.permute.xlu0 %408
    %vm410 = vcmask 64512
    %v411 = vsel %vm410, %v384, 0
    %v413 = vsel %vm410, %v389, 0
    %v415 = vsel %vm410, %v407, 0
    %v417 = vsel %vm410, %v409, 0
    %419 = vmatprep.subr.mxu0 0.0
    %420 = vmatpush1.xpose.msra.mxu0 %v415
    %421 = vmatprep.subr.mxu0 0.0
    %422 = vmatpush1.xpose.msra.mxu0 %v417
    %423 = vmatprep.subr.mxu0 0.0
    %424 = vmatpush1.xpose.msra.mxu0 0.0
    %425 = vmatprep.subr.mxu0 0.0
    %426 = vmatpush1.xpose.msra.mxu0 0.0
    %427 = vmatprep.subr.mxu0 0.0
    %428 = vmatpush1.xpose.msra.mxu0 0.0
    %429 = vmatprep.subr.mxu0 0.0
    %430 = vmatpush1.xpose.msra.mxu0 0.0
    %431 = vmatprep.subr.mxu0 0.0
    %432 = vmatpush1.xpose.msra.mxu0 0.0
    %433 = vmatprep.subr.mxu0 0.0
    %434 = vmatpush1.xpose.msra.mxu0 0.0
    %435 = vmatprep.subr.mxu0 0.0
    %436 = vmatpush1.xpose.msra.mxu0 0.0
    %437 = vmatprep.subr.mxu0 0.0
    %438 = vmatpush1.xpose.msra.mxu0 0.0
    %439 = vmatprep.subr.mxu0 0.0
    %440 = vmatpush1.xpose.msra.mxu0 0.0
    %441 = vmatprep.subr.mxu0 0.0
    %442 = vmatpush1.xpose.msra.mxu0 0.0
    %443 = vmatprep.subr.mxu0 0.0
    %444 = vmatpush1.xpose.msra.mxu0 0.0
    %445 = vmatprep.subr.mxu0 0.0
    %446 = vmatpush1.xpose.msra.mxu0 0.0
    %447 = vmatprep.subr.mxu0 0.0
    %448 = vmatpush1.xpose.msra.mxu0 0.0
    %449 = vmatprep.subr.mxu0 0.0
    %450 = vmatpush1.xpose.msra.mxu0 0.0
    %451 = vmatprep.subr.mxu0 0.0
    %452 = vmatpush1.xpose.msra.mxu0 0.0
    %453 = vmatprep.subr.mxu0 0.0
    %454 = vmatpush1.xpose.msra.mxu0 0.0
    %455 = vmatprep.subr.mxu0 0.0
    %456 = vmatpush1.xpose.msra.mxu0 0.0
    %457 = vmatprep.subr.mxu0 0.0
    %458 = vmatpush1.xpose.msra.mxu0 0.0
    %459 = vmatprep.subr.mxu0 0.0
    %460 = vmatpush1.xpose.msra.mxu0 0.0
    %461 = vmatprep.subr.mxu0 0.0
    %462 = vmatpush1.xpose.msra.mxu0 0.0
    %463 = vmatprep.subr.mxu0 0.0
    %464 = vmatpush1.xpose.msra.mxu0 0.0
    %465 = vmatprep.subr.mxu0 0.0
    %466 = vmatpush1.xpose.msra.mxu0 0.0
    %467 = vmatprep.subr.mxu0 0.0
    %468 = vmatpush1.xpose.msra.mxu0 0.0
    %469 = vmatprep.subr.mxu0 0.0
    %470 = vmatpush1.xpose.msra.mxu0 0.0
    %471 = vmatprep.subr.mxu0 0.0
    %472 = vmatpush1.xpose.msra.mxu0 0.0
    %473 = vmatprep.subr.mxu0 0.0
    %474 = vmatpush1.xpose.msra.mxu0 0.0
    %475 = vmatprep.subr.mxu0 0.0
    %476 = vmatpush1.xpose.msra.mxu0 0.0
    %477 = vmatprep.subr.mxu0 0.0
    %478 = vmatpush1.xpose.msra.mxu0 0.0
    %479 = vmatprep.subr.mxu0 0.0
    %480 = vmatpush1.xpose.msra.mxu0 0.0
    %481 = vmatprep.subr.mxu0 0.0
    %482 = vmatpush1.xpose.msra.mxu0 0.0
    %483 = vmatprep.mubr.f32.mxu0 0.0
    %484 = vmatmul.mubr.f32.gmra.mrb[0].mxu0 %v411
    %v485 = vpop.f32.mrb[0].mxu0
    %v486 = vadd.f32 0.0, %v485
    %v487 = vpop.f32.mrb[0].mxu0
    %488 = vmatprep.mubr.f32.mxu0 0.0
    %489 = vmatmul.mubr.f32.gmra.mrb[0].mxu0 %v413
    %v490 = vpop.f32.mrb[0].mxu0
    %v491 = vadd.f32 0.0, %v490
    %v492 = vpop.f32.mrb[0].mxu0
    %493 = vdwg.mxu0
    %494 = vrot.lane.b32.xlu0 %v395, 96
    %v495 = vpop.permute.xlu0 %494
    %496 = vrot.lane.b32.xlu0 %v397, 96
    %v497 = vpop.permute.xlu0 %496
    %v498 = vsel %vm410, %v395, 0
    %v500 = vsel %vm410, %v397, 0
    %v502 = vsel %vm410, %v495, 0
    %v504 = vsel %vm410, %v497, 0
    %506 = vmatprep.subr.mxu0 0.0
    %507 = vmatpush1.xpose.msra.mxu0 %v502
    %508 = vmatprep.subr.mxu0 0.0
    %509 = vmatpush1.xpose.msra.mxu0 %v504
    %510 = vmatprep.subr.mxu0 0.0
    %511 = vmatpush1.xpose.msra.mxu0 0.0
    %512 = vmatprep.subr.mxu0 0.0
    %513 = vmatpush1.xpose.msra.mxu0 0.0
    %514 = vmatprep.subr.mxu0 0.0
    %515 = vmatpush1.xpose.msra.mxu0 0.0
    %516 = vmatprep.subr.mxu0 0.0
    %517 = vmatpush1.xpose.msra.mxu0 0.0
    %518 = vmatprep.subr.mxu0 0.0
    %519 = vmatpush1.xpose.msra.mxu0 0.0
    %520 = vmatprep.subr.mxu0 0.0
    %521 = vmatpush1.xpose.msra.mxu0 0.0
    %522 = vmatprep.subr.mxu0 0.0
    %523 = vmatpush1.xpose.msra.mxu0 0.0
    %524 = vmatprep.subr.mxu0 0.0
    %525 = vmatpush1.xpose.msra.mxu0 0.0
    %526 = vmatprep.subr.mxu0 0.0
    %527 = vmatpush1.xpose.msra.mxu0 0.0
    %528 = vmatprep.subr.mxu0 0.0
    %529 = vmatpush1.xpose.msra.mxu0 0.0
    %530 = vmatprep.subr.mxu0 0.0
    %531 = vmatpush1.xpose.msra.mxu0 0.0
    %532 = vmatprep.subr.mxu0 0.0
    %533 = vmatpush1.xpose.msra.mxu0 0.0
    %534 = vmatprep.subr.mxu0 0.0
    %535 = vmatpush1.xpose.msra.mxu0 0.0
    %536 = vmatprep.subr.mxu0 0.0
    %537 = vmatpush1.xpose.msra.mxu0 0.0
    %538 = vmatprep.subr.mxu0 0.0
    %539 = vmatpush1.xpose.msra.mxu0 0.0
    %540 = vmatprep.subr.mxu0 0.0
    %541 = vmatpush1.xpose.msra.mxu0 0.0
    %542 = vmatprep.subr.mxu0 0.0
    %543 = vmatpush1.xpose.msra.mxu0 0.0
    %544 = vmatprep.subr.mxu0 0.0
    %545 = vmatpush1.xpose.msra.mxu0 0.0
    %546 = vmatprep.subr.mxu0 0.0
    %547 = vmatpush1.xpose.msra.mxu0 0.0
    %548 = vmatprep.subr.mxu0 0.0
    %549 = vmatpush1.xpose.msra.mxu0 0.0
    %550 = vmatprep.subr.mxu0 0.0
    %551 = vmatpush1.xpose.msra.mxu0 0.0
    %552 = vmatprep.subr.mxu0 0.0
    %553 = vmatpush1.xpose.msra.mxu0 0.0
    %554 = vmatprep.subr.mxu0 0.0
    %555 = vmatpush1.xpose.msra.mxu0 0.0
    %556 = vmatprep.subr.mxu0 0.0
    %557 = vmatpush1.xpose.msra.mxu0 0.0
    %558 = vmatprep.subr.mxu0 0.0
    %559 = vmatpush1.xpose.msra.mxu0 0.0
    %560 = vmatprep.subr.mxu0 0.0
    %561 = vmatpush1.xpose.msra.mxu0 0.0
    %562 = vmatprep.subr.mxu0 0.0
    %563 = vmatpush1.xpose.msra.mxu0 0.0
    %564 = vmatprep.subr.mxu0 0.0
    %565 = vmatpush1.xpose.msra.mxu0 0.0
    %566 = vmatprep.subr.mxu0 0.0
    %567 = vmatpush1.xpose.msra.mxu0 0.0
    %568 = vmatprep.subr.mxu0 0.0
    %569 = vmatpush1.xpose.msra.mxu0 0.0
    %570 = vmatprep.mubr.f32.mxu0 0.0
    %571 = vmatmul.mubr.f32.gmra.mrb[0].mxu0 %v498
    %v572 = vpop.f32.mrb[0].mxu0
    %v573 = vadd.f32 0.0, %v572
    %v574 = vpop.f32.mrb[0].mxu0
    %575 = vmatprep.mubr.f32.mxu0 0.0
    %576 = vmatmul.mubr.f32.gmra.mrb[0].mxu0 %v500
    %v577 = vpop.f32.mrb[0].mxu0
    %v578 = vadd.f32 0.0, %v577
    %v579 = vpop.f32.mrb[0].mxu0
    %580 = vdwg.mxu0
    %581 = vrot.lane.b32.xlu0 %v399, 96
    %v582 = vpop.permute.xlu0 %581
    %583 = vrot.lane.b32.xlu0 %v401, 96
    %v584 = vpop.permute.xlu0 %583
    %v585 = vsel %vm410, %v399, 0
    %v587 = vsel %vm410, %v401, 0
    %v589 = vsel %vm410, %v582, 0
    %v591 = vsel %vm410, %v584, 0
    %593 = vmatprep.subr.mxu0 0.0
    %594 = vmatpush1.xpose.msra.mxu0 %v589
    %595 = vmatprep.subr.mxu0 0.0
    %596 = vmatpush1.xpose.msra.mxu0 %v591
    %597 = vmatprep.subr.mxu0 0.0
    %598 = vmatpush1.xpose.msra.mxu0 0.0
    %599 = vmatprep.subr.mxu0 0.0
    %600 = vmatpush1.xpose.msra.mxu0 0.0
    %601 = vmatprep.subr.mxu0 0.0
    %602 = vmatpush1.xpose.msra.mxu0 0.0
    %603 = vmatprep.subr.mxu0 0.0
    %604 = vmatpush1.xpose.msra.mxu0 0.0
    %605 = vmatprep.subr.mxu0 0.0
    %606 = vmatpush1.xpose.msra.mxu0 0.0
    %607 = vmatprep.subr.mxu0 0.0
    %608 = vmatpush1.xpose.msra.mxu0 0.0
    %609 = vmatprep.subr.mxu0 0.0
    %610 = vmatpush1.xpose.msra.mxu0 0.0
    %611 = vmatprep.subr.mxu0 0.0
    %612 = vmatpush1.xpose.msra.mxu0 0.0
    %613 = vmatprep.subr.mxu0 0.0
    %614 = vmatpush1.xpose.msra.mxu0 0.0
    %615 = vmatprep.subr.mxu0 0.0
    %616 = vmatpush1.xpose.msra.mxu0 0.0
    %617 = vmatprep.subr.mxu0 0.0
    %618 = vmatpush1.xpose.msra.mxu0 0.0
    %619 = vmatprep.subr.mxu0 0.0
    %620 = vmatpush1.xpose.msra.mxu0 0.0
    %621 = vmatprep.subr.mxu0 0.0
    %622 = vmatpush1.xpose.msra.mxu0 0.0
    %623 = vmatprep.subr.mxu0 0.0
    %624 = vmatpush1.xpose.msra.mxu0 0.0
    %625 = vmatprep.subr.mxu0 0.0
    %626 = vmatpush1.xpose.msra.mxu0 0.0
    %627 = vmatprep.subr.mxu0 0.0
    %628 = vmatpush1.xpose.msra.mxu0 0.0
    %629 = vmatprep.subr.mxu0 0.0
    %630 = vmatpush1.xpose.msra.mxu0 0.0
    %631 = vmatprep.subr.mxu0 0.0
    %632 = vmatpush1.xpose.msra.mxu0 0.0
    %633 = vmatprep.subr.mxu0 0.0
    %634 = vmatpush1.xpose.msra.mxu0 0.0
    %635 = vmatprep.subr.mxu0 0.0
    %636 = vmatpush1.xpose.msra.mxu0 0.0
    %637 = vmatprep.subr.mxu0 0.0
    %638 = vmatpush1.xpose.msra.mxu0 0.0
    %639 = vmatprep.subr.mxu0 0.0
    %640 = vmatpush1.xpose.msra.mxu0 0.0
    %641 = vmatprep.subr.mxu0 0.0
    %642 = vmatpush1.xpose.msra.mxu0 0.0
    %643 = vmatprep.subr.mxu0 0.0
    %644 = vmatpush1.xpose.msra.mxu0 0.0
    %645 = vmatprep.subr.mxu0 0.0
    %646 = vmatpush1.xpose.msra.mxu0 0.0
    %647 = vmatprep.subr.mxu0 0.0
    %648 = vmatpush1.xpose.msra.mxu0 0.0
    %649 = vmatprep.subr.mxu0 0.0
    %650 = vmatpush1.xpose.msra.mxu0 0.0
    %651 = vmatprep.subr.mxu0 0.0
    %652 = vmatpush1.xpose.msra.mxu0 0.0
    %653 = vmatprep.subr.mxu0 0.0
    %654 = vmatpush1.xpose.msra.mxu0 0.0
    %655 = vmatprep.subr.mxu0 0.0
    %656 = vmatpush1.xpose.msra.mxu0 0.0
    %657 = vmatprep.mubr.f32.mxu0 0.0
    %658 = vmatmul.mubr.f32.gmra.mrb[0].mxu0 %v585
    %v659 = vpop.f32.mrb[0].mxu0
    %v660 = vadd.f32 0.0, %v659
    %v661 = vpop.f32.mrb[0].mxu0
    %662 = vmatprep.mubr.f32.mxu0 0.0
    %663 = vmatmul.mubr.f32.gmra.mrb[0].mxu0 %v587
    %v664 = vpop.f32.mrb[0].mxu0
    %v665 = vadd.f32 0.0, %v664
    %v666 = vpop.f32.mrb[0].mxu0
    %667 = vdwg.mxu0
    %668 = vrot.lane.b32.xlu0 %v403, 96
    %v669 = vpop.permute.xlu0 %668
    %670 = vrot.lane.b32.xlu0 %v405, 96
    %v671 = vpop.permute.xlu0 %670
    %v672 = vsel %vm410, %v403, 0
    %v674 = vsel %vm410, %v405, 0
    %v676 = vsel %vm410, %v669, 0
    %v678 = vsel %vm410, %v671, 0
    %680 = vmatprep.subr.mxu0 0.0
    %681 = vmatpush1.xpose.msra.mxu0 %v676
    %682 = vmatprep.subr.mxu0 0.0
    %683 = vmatpush1.xpose.msra.mxu0 %v678
    %684 = vmatprep.subr.mxu0 0.0
    %685 = vmatpush1.xpose.msra.mxu0 0.0
    %686 = vmatprep.subr.mxu0 0.0
    %687 = vmatpush1.xpose.msra.mxu0 0.0
    %688 = vmatprep.subr.mxu0 0.0
    %689 = vmatpush1.xpose.msra.mxu0 0.0
    %690 = vmatprep.subr.mxu0 0.0
    %691 = vmatpush1.xpose.msra.mxu0 0.0
    %692 = vmatprep.subr.mxu0 0.0
    %693 = vmatpush1.xpose.msra.mxu0 0.0
    %694 = vmatprep.subr.mxu0 0.0
    %695 = vmatpush1.xpose.msra.mxu0 0.0
    %696 = vmatprep.subr.mxu0 0.0
    %697 = vmatpush1.xpose.msra.mxu0 0.0
    %698 = vmatprep.subr.mxu0 0.0
    %699 = vmatpush1.xpose.msra.mxu0 0.0
    %700 = vmatprep.subr.mxu0 0.0
    %701 = vmatpush1.xpose.msra.mxu0 0.0
    %702 = vmatprep.subr.mxu0 0.0
    %703 = vmatpush1.xpose.msra.mxu0 0.0
    %704 = vmatprep.subr.mxu0 0.0
    %705 = vmatpush1.xpose.msra.mxu0 0.0
    %706 = vmatprep.subr.mxu0 0.0
    %707 = vmatpush1.xpose.msra.mxu0 0.0
    %708 = vmatprep.subr.mxu0 0.0
    %709 = vmatpush1.xpose.msra.mxu0 0.0
    %710 = vmatprep.subr.mxu0 0.0
    %711 = vmatpush1.xpose.msra.mxu0 0.0
    %712 = vmatprep.subr.mxu0 0.0
    %713 = vmatpush1.xpose.msra.mxu0 0.0
    %714 = vmatprep.subr.mxu0 0.0
    %715 = vmatpush1.xpose.msra.mxu0 0.0
    %716 = vmatprep.subr.mxu0 0.0
    %717 = vmatpush1.xpose.msra.mxu0 0.0
    %718 = vmatprep.subr.mxu0 0.0
    %719 = vmatpush1.xpose.msra.mxu0 0.0
    %720 = vmatprep.subr.mxu0 0.0
    %721 = vmatpush1.xpose.msra.mxu0 0.0
    %722 = vmatprep.subr.mxu0 0.0
    %723 = vmatpush1.xpose.msra.mxu0 0.0
    %724 = vmatprep.subr.mxu0 0.0
    %725 = vmatpush1.xpose.msra.mxu0 0.0
    %726 = vmatprep.subr.mxu0 0.0
    %727 = vmatpush1.xpose.msra.mxu0 0.0
    %728 = vmatprep.subr.mxu0 0.0
    %729 = vmatpush1.xpose.msra.mxu0 0.0
    %730 = vmatprep.subr.mxu0 0.0
    %731 = vmatpush1.xpose.msra.mxu0 0.0
    %732 = vmatprep.subr.mxu0 0.0
    %733 = vmatpush1.xpose.msra.mxu0 0.0
    %734 = vmatprep.subr.mxu0 0.0
    %735 = vmatpush1.xpose.msra.mxu0 0.0
    %736 = vmatprep.subr.mxu0 0.0
    %737 = vmatpush1.xpose.msra.mxu0 0.0
    %738 = vmatprep.subr.mxu0 0.0
    %739 = vmatpush1.xpose.msra.mxu0 0.0
    %740 = vmatprep.subr.mxu0 0.0
    %741 = vmatpush1.xpose.msra.mxu0 0.0
    %742 = vmatprep.subr.mxu0 0.0
    %743 = vmatpush1.xpose.msra.mxu0 0.0
    %744 = vmatprep.mubr.f32.mxu0 0.0
    %745 = vmatmul.mubr.f32.gmra.mrb[0].mxu0 %v672
    %v746 = vpop.f32.mrb[0].mxu0
    %v747 = vadd.f32 0.0, %v746
    %v748 = vpop.f32.mrb[0].mxu0
    %749 = vmatprep.mubr.f32.mxu0 0.0
    %750 = vmatmul.mubr.f32.gmra.mrb[0].mxu0 %v674
    %v751 = vpop.f32.mrb[0].mxu0
    %v752 = vadd.f32 0.0, %v751
    %v753 = vpop.f32.mrb[0].mxu0
    %754 = vdwg.mxu0
    %v755 = vmul.f32 %v486, 0.35355338
    %v756 = vmul.f32 %v491, 0.35355338
    %v757 = vmul.f32 %v573, 0.35355338
    %v758 = vmul.f32 %v578, 0.35355338
    %v759 = vmul.f32 %v660, 0.35355338
    %v760 = vmul.f32 %v665, 0.35355338
    %v761 = vmul.f32 %v747, 0.35355338
    %v762 = vmul.f32 %v752, 0.35355338
    %v763 = vadd.f32 %v755, %v245
    %v764 = vadd.f32 %v756, %v246
    %v765 = vadd.f32 %v757, %v245
    %v766 = vadd.f32 %v758, %v246
    %v767 = vadd.f32 %v759, %v245
    %v768 = vadd.f32 %v760, %v246
    %v769 = vadd.f32 %v761, %v245
    %v770 = vadd.f32 %v762, %v246
    %vm771 = vcmask 130048
    %v772 = vsel %vm771, %v763, -inf
    %773 = vmax.xlane.f32.xlu0 %v772
    %v774 = vpop.xlane.xlu0 %773
    %v775 = vsel %vm771, %v764, -inf
    %776 = vmax.xlane.f32.xlu0 %v775
    %v777 = vpop.xlane.xlu0 %776
    %v778 = vsel %vm771, %v765, -inf
    %779 = vmax.xlane.f32.xlu0 %v778
    %v780 = vpop.xlane.xlu0 %779
    %v781 = vsel %vm771, %v766, -inf
    %782 = vmax.xlane.f32.xlu0 %v781
    %v783 = vpop.xlane.xlu0 %782
    %v784 = vsel %vm771, %v767, -inf
    %785 = vmax.xlane.f32.xlu0 %v784
    %v786 = vpop.xlane.xlu0 %785
    %v787 = vsel %vm771, %v768, -inf
    %788 = vmax.xlane.f32.xlu0 %v787
    %v789 = vpop.xlane.xlu0 %788
    %v790 = vsel %vm771, %v769, -inf
    %791 = vmax.xlane.f32.xlu0 %v790
    %v792 = vpop.xlane.xlu0 %791
    %v793 = vsel %vm771, %v770, -inf
    %794 = vmax.xlane.f32.xlu0 %v793
    %v795 = vpop.xlane.xlu0 %794
    %v796 = vsub.f32 %v763, %v774
    %v797 = vsub.f32 %v764, %v777
    %v798 = vsub.f32 %v765, %v780
    %v799 = vsub.f32 %v766, %v783
    %v800 = vsub.f32 %v767, %v786
    %v801 = vsub.f32 %v768, %v789
    %v802 = vsub.f32 %v769, %v792
    %v803 = vsub.f32 %v770, %v795
    %v804 = vmul.f32 %v796, 1.442695
    %v805 = vpow.pop %v804
    %v806 = vmul.f32 %v797, 1.442695
    %v807 = vpow.pop %v806
    %v808 = vmul.f32 %v798, 1.442695
    %v809 = vpow.pop %v808
    %v810 = vmul.f32 %v799, 1.442695
    %v811 = vpow.pop %v810
    %v812 = vmul.f32 %v800, 1.442695
    %v813 = vpow.pop %v812
    %v814 = vmul.f32 %v801, 1.442695
    %v815 = vpow.pop %v814
    %v816 = vmul.f32 %v802, 1.442695
    %v817 = vpow.pop %v816
    %v818 = vmul.f32 %v803, 1.442695
    %v819 = vpow.pop %v818
    %v820 = vsel %vm771, %v805, 0.0
    %821 = vadd.xlane.f32.xlu0 %v820
    %v822 = vpop.xlane.xlu0 %821
    %v823 = vsel %vm771, %v807, 0.0
    %824 = vadd.xlane.f32.xlu0 %v823
    %v825 = vpop.xlane.xlu0 %824
    %v826 = vsel %vm771, %v809, 0.0
    %827 = vadd.xlane.f32.xlu0 %v826
    %v828 = vpop.xlane.xlu0 %827
    %v829 = vsel %vm771, %v811, 0.0
    %830 = vadd.xlane.f32.xlu0 %v829
    %v831 = vpop.xlane.xlu0 %830
    %v832 = vsel %vm771, %v813, 0.0
    %833 = vadd.xlane.f32.xlu0 %v832
    %v834 = vpop.xlane.xlu0 %833
    %v835 = vsel %vm771, %v815, 0.0
    %836 = vadd.xlane.f32.xlu0 %v835
    %v837 = vpop.xlane.xlu0 %836
    %v838 = vsel %vm771, %v817, 0.0
    %839 = vadd.xlane.f32.xlu0 %v838
    %v840 = vpop.xlane.xlu0 %839
    %v841 = vsel %vm771, %v819, 0.0
    %842 = vadd.xlane.f32.xlu0 %v841
    %v843 = vpop.xlane.xlu0 %842
    %v844 = vrcp.pop %v822
    %v845 = vrcp.pop %v825
    %v846 = vrcp.pop %v828
    %v847 = vrcp.pop %v831
    %v848 = vrcp.pop %v834
    %v849 = vrcp.pop %v837
    %v850 = vrcp.pop %v840
    %v851 = vrcp.pop %v843
    %v852 = vmul.f32 %v822, %v844
    %v853 = vmul.f32 %v825, %v845
    %v854 = vmul.f32 %v828, %v846
    %v855 = vmul.f32 %v831, %v847
    %v856 = vmul.f32 %v834, %v848
    %v857 = vmul.f32 %v837, %v849
    %v858 = vmul.f32 %v840, %v850
    %v859 = vmul.f32 %v843, %v851
    %v860 = vsub.f32 2.0, %v852
    %v861 = vsub.f32 2.0, %v853
    %v862 = vsub.f32 2.0, %v854
    %v863 = vsub.f32 2.0, %v855
    %v864 = vsub.f32 2.0, %v856
    %v865 = vsub.f32 2.0, %v857
    %v866 = vsub.f32 2.0, %v858
    %v867 = vsub.f32 2.0, %v859
    %v868 = vmul.f32 %v844, %v860
    %v869 = vmul.f32 %v845, %v861
    %v870 = vmul.f32 %v846, %v862
    %v871 = vmul.f32 %v847, %v863
    %v872 = vmul.f32 %v848, %v864
    %v873 = vmul.f32 %v849, %v865
    %v874 = vmul.f32 %v850, %v866
    %v875 = vmul.f32 %v851, %v867
    %v876 = vmul.f32 %v805, %v868
    %v877 = vmul.f32 %v807, %v869
    %v878 = vmul.f32 %v809, %v870
    %v879 = vmul.f32 %v811, %v871
    %v880 = vmul.f32 %v813, %v872
    %v881 = vmul.f32 %v815, %v873
    %v882 = vmul.f32 %v817, %v874
    %v883 = vmul.f32 %v819, %v875
    %884 = vst.msk [vmem:[#allocation9] sm:$0xff] %vm771, %v876
    %885 = vst.msk [vmem:[#allocation9 + $0x8] sm:$0xff] %vm771, %v877
    %886 = vst.msk [vmem:[#allocation9 + $0x10] sm:$0xff] %vm771, %v878
    %887 = vst.msk [vmem:[#allocation9 + $0x18] sm:$0xff] %vm771, %v879
    %888 = vst.msk [vmem:[#allocation9 + $0x20] sm:$0xff] %vm771, %v880
    %889 = vst.msk [vmem:[#allocation9 + $0x28] sm:$0xff] %vm771, %v881
    %890 = vst.msk [vmem:[#allocation9 + $0x30] sm:$0xff] %vm771, %v882
    %891 = vst.msk [vmem:[#allocation9 + $0x38] sm:$0xff] %vm771, %v883
    %892 = vrot.lane.b32.xlu0 %v384, 64
    %v893 = vpop.permute.xlu0 %892
    %894 = vrot.lane.b32.xlu0 %v389, 64
    %v895 = vpop.permute.xlu0 %894
    %v899 = vsel %vm771, %v876, 0
    %v902 = vsel %vm771, %v877, 0
    %904 = vmatprep.subr.mxu0 0.0
    %905 = vmatpush1.msra.mxu0 %v893
    %906 = vmatprep.subr.mxu0 0.0
    %907 = vmatpush1.msra.mxu0 %v895
    %908 = vmatprep.subr.mxu0 0.0
    %909 = vmatpush1.msra.mxu0 0.0
    %910 = vmatprep.subr.mxu0 0.0
    %911 = vmatpush1.msra.mxu0 0.0
    %912 = vmatprep.subr.mxu0 0.0
    %913 = vmatpush1.msra.mxu0 0.0
    %914 = vmatprep.subr.mxu0 0.0
    %915 = vmatpush1.msra.mxu0 0.0
    %916 = vmatprep.subr.mxu0 0.0
    %917 = vmatpush1.msra.mxu0 0.0
    %918 = vmatprep.subr.mxu0 0.0
    %919 = vmatpush1.msra.mxu0 0.0
    %920 = vmatprep.subr.mxu0 0.0
    %921 = vmatpush1.msra.mxu0 0.0
    %922 = vmatprep.subr.mxu0 0.0
    %923 = vmatpush1.msra.mxu0 0.0
    %924 = vmatprep.subr.mxu0 0.0
    %925 = vmatpush1.msra.mxu0 0.0
    %926 = vmatprep.subr.mxu0 0.0
    %927 = vmatpush1.msra.mxu0 0.0
    %928 = vmatprep.subr.mxu0 0.0
    %929 = vmatpush1.msra.mxu0 0.0
    %930 = vmatprep.subr.mxu0 0.0
    %931 = vmatpush1.msra.mxu0 0.0
    %932 = vmatprep.subr.mxu0 0.0
    %933 = vmatpush1.msra.mxu0 0.0
    %934 = vmatprep.subr.mxu0 0.0
    %935 = vmatpush1.msra.mxu0 0.0
    %936 = vmatprep.subr.mxu0 0.0
    %937 = vmatpush1.msra.mxu0 0.0
    %938 = vmatprep.subr.mxu0 0.0
    %939 = vmatpush1.msra.mxu0 0.0
    %940 = vmatprep.subr.mxu0 0.0
    %941 = vmatpush1.msra.mxu0 0.0
    %942 = vmatprep.subr.mxu0 0.0
    %943 = vmatpush1.msra.mxu0 0.0
    %944 = vmatprep.subr.mxu0 0.0
    %945 = vmatpush1.msra.mxu0 0.0
    %946 = vmatprep.subr.mxu0 0.0
    %947 = vmatpush1.msra.mxu0 0.0
    %948 = vmatprep.subr.mxu0 0.0
    %949 = vmatpush1.msra.mxu0 0.0
    %950 = vmatprep.subr.mxu0 0.0
    %951 = vmatpush1.msra.mxu0 0.0
    %952 = vmatprep.subr.mxu0 0.0
    %953 = vmatpush1.msra.mxu0 0.0
    %954 = vmatprep.subr.mxu0 0.0
    %955 = vmatpush1.msra.mxu0 0.0
    %956 = vmatprep.subr.mxu0 0.0
    %957 = vmatpush1.msra.mxu0 0.0
    %958 = vmatprep.subr.mxu0 0.0
    %959 = vmatpush1.msra.mxu0 0.0
    %960 = vmatprep.subr.mxu0 0.0
    %961 = vmatpush1.msra.mxu0 0.0
    %962 = vmatprep.subr.mxu0 0.0
    %963 = vmatpush1.msra.mxu0 0.0
    %964 = vmatprep.subr.mxu0 0.0
    %965 = vmatpush1.msra.mxu0 0.0
    %966 = vmatprep.subr.mxu0 0.0
    %967 = vmatpush1.msra.mxu0 0.0
    %968 = vmatprep.mubr.f32.mxu0 0.0
    %969 = vmatmul.mubr.f32.gmra.mrb[0].mxu0 %v899
    %v970 = vpop.f32.mrb[0].mxu0
    %v971 = vadd.f32 0.0, %v970
    %v972 = vpop.f32.mrb[0].mxu0
    %973 = vmatprep.mubr.f32.mxu0 0.0
    %974 = vmatmul.mubr.f32.gmra.mrb[0].mxu0 %v902
    %v975 = vpop.f32.mrb[0].mxu0
    %v976 = vadd.f32 0.0, %v975
    %v977 = vpop.f32.mrb[0].mxu0
    %978 = vdwg.mxu0
    %979 = vrot.lane.b32.xlu0 %v395, 64
    %v980 = vpop.permute.xlu0 %979
    %981 = vrot.lane.b32.xlu0 %v397, 64
    %v982 = vpop.permute.xlu0 %981
    %v986 = vsel %vm771, %v878, 0
    %v989 = vsel %vm771, %v879, 0
    %991 = vmatprep.subr.mxu0 0.0
    %992 = vmatpush1.msra.mxu0 %v980
    %993 = vmatprep.subr.mxu0 0.0
    %994 = vmatpush1.msra.mxu0 %v982
    %995 = vmatprep.subr.mxu0 0.0
    %996 = vmatpush1.msra.mxu0 0.0
    %997 = vmatprep.subr.mxu0 0.0
    %998 = vmatpush1.msra.mxu0 0.0
    %999 = vmatprep.subr.mxu0 0.0
    %1000 = vmatpush1.msra.mxu0 0.0
    %1001 = vmatprep.subr.mxu0 0.0
    %1002 = vmatpush1.msra.mxu0 0.0
    %1003 = vmatprep.subr.mxu0 0.0
    %1004 = vmatpush1.msra.mxu0 0.0
    %1005 = vmatprep.subr.mxu0 0.0
    %1006 = vmatpush1.msra.mxu0 0.0
    %1007 = vmatprep.subr.mxu0 0.0
    %1008 = vmatpush1.msra.mxu0 0.0
    %1009 = vmatprep.subr.mxu0 0.0
    %1010 = vmatpush1.msra.mxu0 0.0
    %1011 = vmatprep.subr.mxu0 0.0
    %1012 = vmatpush1.msra.mxu0 0.0
    %1013 = vmatprep.subr.mxu0 0.0
    %1014 = vmatpush1.msra.mxu0 0.0
    %1015 = vmatprep.subr.mxu0 0.0
    %1016 = vmatpush1.msra.mxu0 0.0
    %1017 = vmatprep.subr.mxu0 0.0
    %1018 = vmatpush1.msra.mxu0 0.0
    %1019 = vmatprep.subr.mxu0 0.0
    %1020 = vmatpush1.msra.mxu0 0.0
    %1021 = vmatprep.subr.mxu0 0.0
    %1022 = vmatpush1.msra.mxu0 0.0
    %1023 = vmatprep.subr.mxu0 0.0
    %1024 = vmatpush1.msra.mxu0 0.0
    %1025 = vmatprep.subr.mxu0 0.0
    %1026 = vmatpush1.msra.mxu0 0.0
    %1027 = vmatprep.subr.mxu0 0.0
    %1028 = vmatpush1.msra.mxu0 0.0
    %1029 = vmatprep.subr.mxu0 0.0
    %1030 = vmatpush1.msra.mxu0 0.0
    %1031 = vmatprep.subr.mxu0 0.0
    %1032 = vmatpush1.msra.mxu0 0.0
    %1033 = vmatprep.subr.mxu0 0.0
    %1034 = vmatpush1.msra.mxu0 0.0
    %1035 = vmatprep.subr.mxu0 0.0
    %1036 = vmatpush1.msra.mxu0 0.0
    %1037 = vmatprep.subr.mxu0 0.0
    %1038 = vmatpush1.msra.mxu0 0.0
    %1039 = vmatprep.subr.mxu0 0.0
    %1040 = vmatpush1.msra.mxu0 0.0
    %1041 = vmatprep.subr.mxu0 0.0
    %1042 = vmatpush1.msra.mxu0 0.0
    %1043 = vmatprep.subr.mxu0 0.0
    %1044 = vmatpush1.msra.mxu0 0.0
    %1045 = vmatprep.subr.mxu0 0.0
    %1046 = vmatpush1.msra.mxu0 0.0
    %1047 = vmatprep.subr.mxu0 0.0
    %1048 = vmatpush1.msra.mxu0 0.0
    %1049 = vmatprep.subr.mxu0 0.0
    %1050 = vmatpush1.msra.mxu0 0.0
    %1051 = vmatprep.subr.mxu0 0.0
    %1052 = vmatpush1.msra.mxu0 0.0
    %1053 = vmatprep.subr.mxu0 0.0
    %1054 = vmatpush1.msra.mxu0 0.0
    %1055 = vmatprep.mubr.f32.mxu0 0.0
    %1056 = vmatmul.mubr.f32.gmra.mrb[0].mxu0 %v986
    %v1057 = vpop.f32.mrb[0].mxu0
    %v1058 = vadd.f32 0.0, %v1057
    %v1059 = vpop.f32.mrb[0].mxu0
    %1060 = vmatprep.mubr.f32.mxu0 0.0
    %1061 = vmatmul.mubr.f32.gmra.mrb[0].mxu0 %v989
    %v1062 = vpop.f32.mrb[0].mxu0
    %v1063 = vadd.f32 0.0, %v1062
    %v1064 = vpop.f32.mrb[0].mxu0
    %1065 = vdwg.mxu0
    %1066 = vrot.lane.b32.xlu0 %v399, 64
    %v1067 = vpop.permute.xlu0 %1066
    %1068 = vrot.lane.b32.xlu0 %v401, 64
    %v1069 = vpop.permute.xlu0 %1068
    %v1073 = vsel %vm771, %v880, 0
    %v1076 = vsel %vm771, %v881, 0
    %1078 = vmatprep.subr.mxu0 0.0
    %1079 = vmatpush1.msra.mxu0 %v1067
    %1080 = vmatprep.subr.mxu0 0.0
    %1081 = vmatpush1.msra.mxu0 %v1069
    %1082 = vmatprep.subr.mxu0 0.0
    %1083 = vmatpush1.msra.mxu0 0.0
    %1084 = vmatprep.subr.mxu0 0.0
    %1085 = vmatpush1.msra.mxu0 0.0
    %1086 = vmatprep.subr.mxu0 0.0
    %1087 = vmatpush1.msra.mxu0 0.0
    %1088 = vmatprep.subr.mxu0 0.0
    %1089 = vmatpush1.msra.mxu0 0.0
    %1090 = vmatprep.subr.mxu0 0.0
    %1091 = vmatpush1.msra.mxu0 0.0
    %1092 = vmatprep.subr.mxu0 0.0
    %1093 = vmatpush1.msra.mxu0 0.0
    %1094 = vmatprep.subr.mxu0 0.0
    %1095 = vmatpush1.msra.mxu0 0.0
    %1096 = vmatprep.subr.mxu0 0.0
    %1097 = vmatpush1.msra.mxu0 0.0
    %1098 = vmatprep.subr.mxu0 0.0
    %1099 = vmatpush1.msra.mxu0 0.0
    %1100 = vmatprep.subr.mxu0 0.0
    %1101 = vmatpush1.msra.mxu0 0.0
    %1102 = vmatprep.subr.mxu0 0.0
    %1103 = vmatpush1.msra.mxu0 0.0
    %1104 = vmatprep.subr.mxu0 0.0
    %1105 = vmatpush1.msra.mxu0 0.0
    %1106 = vmatprep.subr.mxu0 0.0
    %1107 = vmatpush1.msra.mxu0 0.0
    %1108 = vmatprep.subr.mxu0 0.0
    %1109 = vmatpush1.msra.mxu0 0.0
    %1110 = vmatprep.subr.mxu0 0.0
    %1111 = vmatpush1.msra.mxu0 0.0
    %1112 = vmatprep.subr.mxu0 0.0
    %1113 = vmatpush1.msra.mxu0 0.0
    %1114 = vmatprep.subr.mxu0 0.0
    %1115 = vmatpush1.msra.mxu0 0.0
    %1116 = vmatprep.subr.mxu0 0.0
    %1117 = vmatpush1.msra.mxu0 0.0
    %1118 = vmatprep.subr.mxu0 0.0
    %1119 = vmatpush1.msra.mxu0 0.0
    %1120 = vmatprep.subr.mxu0 0.0
    %1121 = vmatpush1.msra.mxu0 0.0
    %1122 = vmatprep.subr.mxu0 0.0
    %1123 = vmatpush1.msra.mxu0 0.0
    %1124 = vmatprep.subr.mxu0 0.0
    %1125 = vmatpush1.msra.mxu0 0.0
    %1126 = vmatprep.subr.mxu0 0.0
    %1127 = vmatpush1.msra.mxu0 0.0
    %1128 = vmatprep.subr.mxu0 0.0
    %1129 = vmatpush1.msra.mxu0 0.0
    %1130 = vmatprep.subr.mxu0 0.0
    %1131 = vmatpush1.msra.mxu0 0.0
    %1132 = vmatprep.subr.mxu0 0.0
    %1133 = vmatpush1.msra.mxu0 0.0
    %1134 = vmatprep.subr.mxu0 0.0
    %1135 = vmatpush1.msra.mxu0 0.0
    %1136 = vmatprep.subr.mxu0 0.0
    %1137 = vmatpush1.msra.mxu0 0.0
    %1138 = vmatprep.subr.mxu0 0.0
    %1139 = vmatpush1.msra.mxu0 0.0
    %1140 = vmatprep.subr.mxu0 0.0
    %1141 = vmatpush1.msra.mxu0 0.0
    %1142 = vmatprep.mubr.f32.mxu0 0.0
    %1143 = vmatmul.mubr.f32.gmra.mrb[0].mxu0 %v1073
    %v1144 = vpop.f32.mrb[0].mxu0
    %v1145 = vadd.f32 0.0, %v1144
    %v1146 = vpop.f32.mrb[0].mxu0
    %1147 = vmatprep.mubr.f32.mxu0 0.0
    %1148 = vmatmul.mubr.f32.gmra.mrb[0].mxu0 %v1076
    %v1149 = vpop.f32.mrb[0].mxu0
    %v1150 = vadd.f32 0.0, %v1149
    %v1151 = vpop.f32.mrb[0].mxu0
    %1152 = vdwg.mxu0
    %1153 = vrot.lane.b32.xlu0 %v403, 64
    %v1154 = vpop.permute.xlu0 %1153
    %1155 = vrot.lane.b32.xlu0 %v405, 64
    %v1156 = vpop.permute.xlu0 %1155
    %v1160 = vsel %vm771, %v882, 0
    %v1163 = vsel %vm771, %v883, 0
    %1165 = vmatprep.subr.mxu0 0.0
    %1166 = vmatpush1.msra.mxu0 %v1154
    %1167 = vmatprep.subr.mxu0 0.0
    %1168 = vmatpush1.msra.mxu0 %v1156
    %1169 = vmatprep.subr.mxu0 0.0
    %1170 = vmatpush1.msra.mxu0 0.0
    %1171 = vmatprep.subr.mxu0 0.0
    %1172 = vmatpush1.msra.mxu0 0.0
    %1173 = vmatprep.subr.mxu0 0.0
    %1174 = vmatpush1.msra.mxu0 0.0
    %1175 = vmatprep.subr.mxu0 0.0
    %1176 = vmatpush1.msra.mxu0 0.0
    %1177 = vmatprep.subr.mxu0 0.0
    %1178 = vmatpush1.msra.mxu0 0.0
    %1179 = vmatprep.subr.mxu0 0.0
    %1180 = vmatpush1.msra.mxu0 0.0
    %1181 = vmatprep.subr.mxu0 0.0
    %1182 = vmatpush1.msra.mxu0 0.0
    %1183 = vmatprep.subr.mxu0 0.0
    %1184 = vmatpush1.msra.mxu0 0.0
    %1185 = vmatprep.subr.mxu0 0.0
    %1186 = vmatpush1.msra.mxu0 0.0
    %1187 = vmatprep.subr.mxu0 0.0
    %1188 = vmatpush1.msra.mxu0 0.0
    %1189 = vmatprep.subr.mxu0 0.0
    %1190 = vmatpush1.msra.mxu0 0.0
    %1191 = vmatprep.subr.mxu0 0.0
    %1192 = vmatpush1.msra.mxu0 0.0
    %1193 = vmatprep.subr.mxu0 0.0
    %1194 = vmatpush1.msra.mxu0 0.0
    %1195 = vmatprep.subr.mxu0 0.0
    %1196 = vmatpush1.msra.mxu0 0.0
    %1197 = vmatprep.subr.mxu0 0.0
    %1198 = vmatpush1.msra.mxu0 0.0
    %1199 = vmatprep.subr.mxu0 0.0
    %1200 = vmatpush1.msra.mxu0 0.0
    %1201 = vmatprep.subr.mxu0 0.0
    %1202 = vmatpush1.msra.mxu0 0.0
    %1203 = vmatprep.subr.mxu0 0.0
    %1204 = vmatpush1.msra.mxu0 0.0
    %1205 = vmatprep.subr.mxu0 0.0
    %1206 = vmatpush1.msra.mxu0 0.0
    %1207 = vmatprep.subr.mxu0 0.0
    %1208 = vmatpush1.msra.mxu0 0.0
    %1209 = vmatprep.subr.mxu0 0.0
    %1210 = vmatpush1.msra.mxu0 0.0
    %1211 = vmatprep.subr.mxu0 0.0
    %1212 = vmatpush1.msra.mxu0 0.0
    %1213 = vmatprep.subr.mxu0 0.0
    %1214 = vmatpush1.msra.mxu0 0.0
    %1215 = vmatprep.subr.mxu0 0.0
    %1216 = vmatpush1.msra.mxu0 0.0
    %1217 = vmatprep.subr.mxu0 0.0
    %1218 = vmatpush1.msra.mxu0 0.0
    %1219 = vmatprep.subr.mxu0 0.0
    %1220 = vmatpush1.msra.mxu0 0.0
    %1221 = vmatprep.subr.mxu0 0.0
    %1222 = vmatpush1.msra.mxu0 0.0
    %1223 = vmatprep.subr.mxu0 0.0
    %1224 = vmatpush1.msra.mxu0 0.0
    %1225 = vmatprep.subr.mxu0 0.0
    %1226 = vmatpush1.msra.mxu0 0.0
    %1227 = vmatprep.subr.mxu0 0.0
    %1228 = vmatpush1.msra.mxu0 0.0
    %1229 = vmatprep.mubr.f32.mxu0 0.0
    %1230 = vmatmul.mubr.f32.gmra.mrb[0].mxu0 %v1160
    %v1231 = vpop.f32.mrb[0].mxu0
    %v1232 = vadd.f32 0.0, %v1231
    %v1233 = vpop.f32.mrb[0].mxu0
    %1234 = vmatprep.mubr.f32.mxu0 0.0
    %1235 = vmatmul.mubr.f32.gmra.mrb[0].mxu0 %v1163
    %v1236 = vpop.f32.mrb[0].mxu0
    %v1237 = vadd.f32 0.0, %v1236
    %v1238 = vpop.f32.mrb[0].mxu0
    %1239 = vdwg.mxu0
    %1242 = vrot.lane.b32.xlu0 %v1058, 8
    %v1243 = vpop.permute.xlu0 %1242
    %1244 = vrot.lane.b32.xlu0 %v1063, 8
    %v1245 = vpop.permute.xlu0 %1244
    %1250 = vrot.lane.b32.xlu0 %v1145, 16
    %v1251 = vpop.permute.xlu0 %1250
    %1252 = vrot.lane.b32.xlu0 %v1150, 16
    %v1253 = vpop.permute.xlu0 %1252
    %1258 = vrot.lane.b32.xlu0 %v1232, 24
    %v1259 = vpop.permute.xlu0 %1258
    %1260 = vrot.lane.b32.xlu0 %v1237, 24
    %v1261 = vpop.permute.xlu0 %1260
    %v1264 = vsel %vm410, %v971, %v1243
    %v1265 = vsel %vm410, %v976, %v1245
    %v1266 = vsel %vm771, %v1264, %v1251
    %v1267 = vsel %vm771, %v1265, %v1253
    %vm1268 = vcmask 195584
    %v1269 = vsel %vm1268, %v1266, %v1259
    %v1270 = vsel %vm1268, %v1267, %v1261
    %v1272 = vlaneseq
    %v1273 = vshrl.u32 %v1272, 7
    %v1274 = vsub.s32 0, %v1273
    %v1275 = vrot.slane %v260, %v1274
    %v1278 = vsel %vm310, %v1269, 0
    %v1281 = vsel %vm310, %v1270, 0
    %1283 = vmatprep.subr.mxu0 0.0
    %1284 = vmatpush1.msra.mxu0 %v256
    %1285 = vmatprep.subr.mxu0 0.0
    %1286 = vmatpush1.msra.mxu0 %v257
    %1287 = vmatprep.subr.mxu0 0.0
    %1288 = vmatpush1.msra.mxu0 %v258
    %1289 = vmatprep.subr.mxu0 0.0
    %1290 = vmatpush1.msra.mxu0 %v259
    %1291 = vmatprep.subr.mxu0 0.0
    %1292 = vmatpush1.msra.mxu0 0.0
    %1293 = vmatprep.subr.mxu0 0.0
    %1294 = vmatpush1.msra.mxu0 0.0
    %1295 = vmatprep.subr.mxu0 0.0
    %1296 = vmatpush1.msra.mxu0 0.0
    %1297 = vmatprep.subr.mxu0 0.0
    %1298 = vmatpush1.msra.mxu0 0.0
    %1299 = vmatprep.subr.mxu0 0.0
    %1300 = vmatpush1.msra.mxu0 0.0
    %1301 = vmatprep.subr.mxu0 0.0
    %1302 = vmatpush1.msra.mxu0 0.0
    %1303 = vmatprep.subr.mxu0 0.0
    %1304 = vmatpush1.msra.mxu0 0.0
    %1305 = vmatprep.subr.mxu0 0.0
    %1306 = vmatpush1.msra.mxu0 0.0
    %1307 = vmatprep.subr.mxu0 0.0
    %1308 = vmatpush1.msra.mxu0 0.0
    %1309 = vmatprep.subr.mxu0 0.0
    %1310 = vmatpush1.msra.mxu0 0.0
    %1311 = vmatprep.subr.mxu0 0.0
    %1312 = vmatpush1.msra.mxu0 0.0
    %1313 = vmatprep.subr.mxu0 0.0
    %1314 = vmatpush1.msra.mxu0 0.0
    %1315 = vmatprep.subr.mxu0 0.0
    %1316 = vmatpush1.msra.mxu0 0.0
    %1317 = vmatprep.subr.mxu0 0.0
    %1318 = vmatpush1.msra.mxu0 0.0
    %1319 = vmatprep.subr.mxu0 0.0
    %1320 = vmatpush1.msra.mxu0 0.0
    %1321 = vmatprep.subr.mxu0 0.0
    %1322 = vmatpush1.msra.mxu0 0.0
    %1323 = vmatprep.subr.mxu0 0.0
    %1324 = vmatpush1.msra.mxu0 0.0
    %1325 = vmatprep.subr.mxu0 0.0
    %1326 = vmatpush1.msra.mxu0 0.0
    %1327 = vmatprep.subr.mxu0 0.0
    %1328 = vmatpush1.msra.mxu0 0.0
    %1329 = vmatprep.subr.mxu0 0.0
    %1330 = vmatpush1.msra.mxu0 0.0
    %1331 = vmatprep.subr.mxu0 0.0
    %1332 = vmatpush1.msra.mxu0 0.0
    %1333 = vmatprep.subr.mxu0 0.0
    %1334 = vmatpush1.msra.mxu0 0.0
    %1335 = vmatprep.subr.mxu0 0.0
    %1336 = vmatpush1.msra.mxu0 0.0
    %1337 = vmatprep.subr.mxu0 0.0
    %1338 = vmatpush1.msra.mxu0 0.0
    %1339 = vmatprep.subr.mxu0 0.0
    %1340 = vmatpush1.msra.mxu0 0.0
    %1341 = vmatprep.subr.mxu0 0.0
    %1342 = vmatpush1.msra.mxu0 0.0
    %1343 = vmatprep.subr.mxu0 0.0
    %1344 = vmatpush1.msra.mxu0 0.0
    %1345 = vmatprep.subr.mxu0 0.0
    %1346 = vmatpush1.msra.mxu0 0.0
    %1347 = vmatprep.mubr.f32.mxu0 0.0
    %1348 = vmatmul.mubr.f32.gmra.mrb[0].mxu0 %v1278
    %v1349 = vpop.f32.mrb[0].mxu0
    %v1350 = vadd.f32 %v1275, %v1349
    %v1351 = vpop.f32.mrb[0].mxu0
    %1352 = vmatprep.mubr.f32.mxu0 0.0
    %1353 = vmatmul.mubr.f32.gmra.mrb[0].mxu0 %v1281
    %v1354 = vpop.f32.mrb[0].mxu0
    %v1355 = vadd.f32 %v1275, %v1354
    %v1356 = vpop.f32.mrb[0].mxu0
    %1357 = vdwg.mxu0
    %v1358 = vadd.f32 %v237, %v1350
    %v1359 = vadd.f32 %v242, %v1355
    %v1360 = vsel %vm310, %v1358, 0.0
    %1361 = vadd.xlane.f32.xlu0 %v1360
    %v1362 = vpop.xlane.xlu0 %1361
    %v1363 = vsel %vm310, %v1359, 0.0
    %1364 = vadd.xlane.f32.xlu0 %v1363
    %v1365 = vpop.xlane.xlu0 %1364
    %v1366 = vrcp.pop 32.0
    %v1367 = vmul.f32 %v1362, %v1366
    %v1368 = vmul.f32 %v1365, %v1366
    %v1369 = vsub.f32 %v1358, %v1367
    %v1370 = vsub.f32 %v1359, %v1368
    %v1371 = vmul.f32 %v1369, %v1369
    %v1372 = vmul.f32 %v1370, %v1370
    %v1373 = vsel %vm310, %v1371, 0.0
    %1374 = vadd.xlane.f32.xlu0 %v1373
    %v1375 = vpop.xlane.xlu0 %1374
    %v1376 = vsel %vm310, %v1372, 0.0
    %1377 = vadd.xlane.f32.xlu0 %v1376
    %v1378 = vpop.xlane.xlu0 %1377
    %v1379 = vmul.f32 %v1375, %v1366
    %v1380 = vmul.f32 %v1378, %v1366
    %v1381 = vadd.f32 %v1379, 1e-06
    %v1382 = vadd.f32 %v1380, 1e-06
    %v1383 = vrsqrt.pop %v1381
    %v1384 = vrsqrt.pop %v1382
    %v1385 = vmul.f32 %v1369, %v1383
    %v1386 = vmul.f32 %v1370, %v1384
    %v1388 = vlaneseq
    %v1389 = vshrl.u32 %v1388, 7
    %v1390 = vsub.s32 0, %v1389
    %v1391 = vrot.slane %v261, %v1390
    %v1393 = vmul.f32 %v1385, %v1391
    %v1394 = vmul.f32 %v1386, %v1391
    %v1396 = vlaneseq
    %v1397 = vshrl.u32 %v1396, 7
    %v1398 = vsub.s32 0, %v1397
    %v1399 = vrot.slane %v262, %v1398
    %v1401 = vadd.f32 %v1393, %v1399
    %v1402 = vadd.f32 %v1394, %v1399
    %v1404 = vlaneseq
    %v1405 = vshrl.u32 %v1404, 7
    %v1406 = vsub.s32 0, %v1405
    %v1407 = vrot.slane %v267, %v1406
    %v1410 = vsel %vm310, %v1401, 0
    %v1413 = vsel %vm310, %v1402, 0
    %1415 = vmatprep.subr.mxu0 0.0
    %1416 = vmatpush1.msra.mxu0 %v263
    %1417 = vmatprep.subr.mxu0 0.0
    %1418 = vmatpush1.msra.mxu0 %v264
    %1419 = vmatprep.subr.mxu0 0.0
    %1420 = vmatpush1.msra.mxu0 %v265
    %1421 = vmatprep.subr.mxu0 0.0
    %1422 = vmatpush1.msra.mxu0 %v266
    %1423 = vmatprep.subr.mxu0 0.0
    %1424 = vmatpush1.msra.mxu0 0.0
    %1425 = vmatprep.subr.mxu0 0.0
    %1426 = vmatpush1.msra.mxu0 0.0
    %1427 = vmatprep.subr.mxu0 0.0
    %1428 = vmatpush1.msra.mxu0 0.0
    %1429 = vmatprep.subr.mxu0 0.0
    %1430 = vmatpush1.msra.mxu0 0.0
    %1431 = vmatprep.subr.mxu0 0.0
    %1432 = vmatpush1.msra.mxu0 0.0
    %1433 = vmatprep.subr.mxu0 0.0
    %1434 = vmatpush1.msra.mxu0 0.0
    %1435 = vmatprep.subr.mxu0 0.0
    %1436 = vmatpush1.msra.mxu0 0.0
    %1437 = vmatprep.subr.mxu0 0.0
    %1438 = vmatpush1.msra.mxu0 0.0
    %1439 = vmatprep.subr.mxu0 0.0
    %1440 = vmatpush1.msra.mxu0 0.0
    %1441 = vmatprep.subr.mxu0 0.0
    %1442 = vmatpush1.msra.mxu0 0.0
    %1443 = vmatprep.subr.mxu0 0.0
    %1444 = vmatpush1.msra.mxu0 0.0
    %1445 = vmatprep.subr.mxu0 0.0
    %1446 = vmatpush1.msra.mxu0 0.0
    %1447 = vmatprep.subr.mxu0 0.0
    %1448 = vmatpush1.msra.mxu0 0.0
    %1449 = vmatprep.subr.mxu0 0.0
    %1450 = vmatpush1.msra.mxu0 0.0
    %1451 = vmatprep.subr.mxu0 0.0
    %1452 = vmatpush1.msra.mxu0 0.0
    %1453 = vmatprep.subr.mxu0 0.0
    %1454 = vmatpush1.msra.mxu0 0.0
    %1455 = vmatprep.subr.mxu0 0.0
    %1456 = vmatpush1.msra.mxu0 0.0
    %1457 = vmatprep.subr.mxu0 0.0
    %1458 = vmatpush1.msra.mxu0 0.0
    %1459 = vmatprep.subr.mxu0 0.0
    %1460 = vmatpush1.msra.mxu0 0.0
    %1461 = vmatprep.subr.mxu0 0.0
    %1462 = vmatpush1.msra.mxu0 0.0
    %1463 = vmatprep.subr.mxu0 0.0
    %1464 = vmatpush1.msra.mxu0 0.0
    %1465 = vmatprep.subr.mxu0 0.0
    %1466 = vmatpush1.msra.mxu0 0.0
    %1467 = vmatprep.subr.mxu0 0.0
    %1468 = vmatpush1.msra.mxu0 0.0
    %1469 = vmatprep.subr.mxu0 0.0
    %1470 = vmatpush1.msra.mxu0 0.0
    %1471 = vmatprep.subr.mxu0 0.0
    %1472 = vmatpush1.msra.mxu0 0.0
    %1473 = vmatprep.subr.mxu0 0.0
    %1474 = vmatpush1.msra.mxu0 0.0
    %1475 = vmatprep.subr.mxu0 0.0
    %1476 = vmatpush1.msra.mxu0 0.0
    %1477 = vmatprep.subr.mxu0 0.0
    %1478 = vmatpush1.msra.mxu0 0.0
    %1479 = vmatprep.mubr.f32.mxu0 0.0
    %1480 = vmatmul.mubr.f32.gmra.mrb[0].mxu0 %v1410
    %v1481 = vpop.f32.mrb[0].mxu0
    %v1482 = vadd.f32 %v1407, %v1481
    %v1483 = vpop.f32.mrb[0].mxu0
    %1484 = vmatprep.mubr.f32.mxu0 0.0
    %1485 = vmatmul.mubr.f32.gmra.mrb[0].mxu0 %v1413
    %v1486 = vpop.f32.mrb[0].mxu0
    %v1487 = vadd.f32 %v1407, %v1486
    %v1488 = vpop.f32.mrb[0].mxu0
    %1489 = vdwg.mxu0
    %v1491 = vlaneseq
    %v1492 = vshrl.u32 %v1491, 7
    %v1493 = vsub.s32 0, %v1492
    %v1494 = vrot.slane %v272, %v1493
    %v1497 = vsel %vm310, %v249, 0
    %v1500 = vsel %vm310, %v250, 0
    %1502 = vmatprep.subr.mxu0 0.0
    %1503 = vmatpush1.msra.mxu0 %v268
    %1504 = vmatprep.subr.mxu0 0.0
    %1505 = vmatpush1.msra.mxu0 %v269
    %1506 = vmatprep.subr.mxu0 0.0
    %1507 = vmatpush1.msra.mxu0 %v270
    %1508 = vmatprep.subr.mxu0 0.0
    %1509 = vmatpush1.msra.mxu0 %v271
    %1510 = vmatprep.subr.mxu0 0.0
    %1511 = vmatpush1.msra.mxu0 0.0
    %1512 = vmatprep.subr.mxu0 0.0
    %1513 = vmatpush1.msra.mxu0 0.0
    %1514 = vmatprep.subr.mxu0 0.0
    %1515 = vmatpush1.msra.mxu0 0.0
    %1516 = vmatprep.subr.mxu0 0.0
    %1517 = vmatpush1.msra.mxu0 0.0
    %1518 = vmatprep.subr.mxu0 0.0
    %1519 = vmatpush1.msra.mxu0 0.0
    %1520 = vmatprep.subr.mxu0 0.0
    %1521 = vmatpush1.msra.mxu0 0.0
    %1522 = vmatprep.subr.mxu0 0.0
    %1523 = vmatpush1.msra.mxu0 0.0
    %1524 = vmatprep.subr.mxu0 0.0
    %1525 = vmatpush1.msra.mxu0 0.0
    %1526 = vmatprep.subr.mxu0 0.0
    %1527 = vmatpush1.msra.mxu0 0.0
    %1528 = vmatprep.subr.mxu0 0.0
    %1529 = vmatpush1.msra.mxu0 0.0
    %1530 = vmatprep.subr.mxu0 0.0
    %1531 = vmatpush1.msra.mxu0 0.0
    %1532 = vmatprep.subr.mxu0 0.0
    %1533 = vmatpush1.msra.mxu0 0.0
    %1534 = vmatprep.subr.mxu0 0.0
    %1535 = vmatpush1.msra.mxu0 0.0
    %1536 = vmatprep.subr.mxu0 0.0
    %1537 = vmatpush1.msra.mxu0 0.0
    %1538 = vmatprep.subr.mxu0 0.0
    %1539 = vmatpush1.msra.mxu0 0.0
    %1540 = vmatprep.subr.mxu0 0.0
    %1541 = vmatpush1.msra.mxu0 0.0
    %1542 = vmatprep.subr.mxu0 0.0
    %1543 = vmatpush1.msra.mxu0 0.0
    %1544 = vmatprep.subr.mxu0 0.0
    %1545 = vmatpush1.msra.mxu0 0.0
    %1546 = vmatprep.subr.mxu0 0.0
    %1547 = vmatpush1.msra.mxu0 0.0
    %1548 = vmatprep.subr.mxu0 0.0
    %1549 = vmatpush1.msra.mxu0 0.0
    %1550 = vmatprep.subr.mxu0 0.0
    %1551 = vmatpush1.msra.mxu0 0.0
    %1552 = vmatprep.subr.mxu0 0.0
    %1553 = vmatpush1.msra.mxu0 0.0
    %1554 = vmatprep.subr.mxu0 0.0
    %1555 = vmatpush1.msra.mxu0 0.0
    %1556 = vmatprep.subr.mxu0 0.0
    %1557 = vmatpush1.msra.mxu0 0.0
    %1558 = vmatprep.subr.mxu0 0.0
    %1559 = vmatpush1.msra.mxu0 0.0
    %1560 = vmatprep.subr.mxu0 0.0
    %1561 = vmatpush1.msra.mxu0 0.0
    %1562 = vmatprep.subr.mxu0 0.0
    %1563 = vmatpush1.msra.mxu0 0.0
    %1564 = vmatprep.subr.mxu0 0.0
    %1565 = vmatpush1.msra.mxu0 0.0
    %1566 = vmatprep.mubr.f32.mxu0 0.0
    %1567 = vmatmul.mubr.f32.gmra.mrb[0].mxu0 %v1497
    %v1568 = vpop.f32.mrb[0].mxu0
    %v1569 = vadd.f32 %v1494, %v1568
    %v1570 = vpop.f32.mrb[0].mxu0
    %1571 = vmatprep.mubr.f32.mxu0 0.0
    %1572 = vmatmul.mubr.f32.gmra.mrb[0].mxu0 %v1500
    %v1573 = vpop.f32.mrb[0].mxu0
    %v1574 = vadd.f32 %v1494, %v1573
    %v1575 = vpop.f32.mrb[0].mxu0
    %1576 = vdwg.mxu0
    %1579 = vrot.lane.b32.xlu0 %v1482, 120
    %v1580 = vpop.permute.xlu0 %1579
    %1581 = vrot.lane.b32.xlu0 %v1487, 120
    %v1582 = vpop.permute.xlu0 %1581
    %1583 = vrot.lane.b32.xlu0 %v1482, 112
    %v1584 = vpop.permute.xlu0 %1583
    %1585 = vrot.lane.b32.xlu0 %v1487, 112
    %v1586 = vpop.permute.xlu0 %1585
    %1587 = vrot.lane.b32.xlu0 %v1482, 104
    %v1588 = vpop.permute.xlu0 %1587
    %1589 = vrot.lane.b32.xlu0 %v1487, 104
    %v1590 = vpop.permute.xlu0 %1589
    %1593 = vrot.lane.b32.xlu0 %v1569, 120
    %v1594 = vpop.permute.xlu0 %1593
    %1595 = vrot.lane.b32.xlu0 %v1574, 120
    %v1596 = vpop.permute.xlu0 %1595
    %1597 = vrot.lane.b32.xlu0 %v1569, 112
    %v1598 = vpop.permute.xlu0 %1597
    %1599 = vrot.lane.b32.xlu0 %v1574, 112
    %v1600 = vpop.permute.xlu0 %1599
    %1601 = vrot.lane.b32.xlu0 %v1569, 104
    %v1602 = vpop.permute.xlu0 %1601
    %1603 = vrot.lane.b32.xlu0 %v1574, 104
    %v1604 = vpop.permute.xlu0 %1603
    %v1605 = vsel %vm410, %v1482, 0
    %v1607 = vsel %vm410, %v1487, 0
    %v1609 = vsel %vm410, %v1569, 0
    %v1611 = vsel %vm410, %v1574, 0
    %1613 = vmatprep.subr.mxu0 0.0
    %1614 = vmatpush1.xpose.msra.mxu0 %v1609
    %1615 = vmatprep.subr.mxu0 0.0
    %1616 = vmatpush1.xpose.msra.mxu0 %v1611
    %1617 = vmatprep.subr.mxu0 0.0
    %1618 = vmatpush1.xpose.msra.mxu0 0.0
    %1619 = vmatprep.subr.mxu0 0.0
    %1620 = vmatpush1.xpose.msra.mxu0 0.0
    %1621 = vmatprep.subr.mxu0 0.0
    %1622 = vmatpush1.xpose.msra.mxu0 0.0
    %1623 = vmatprep.subr.mxu0 0.0
    %1624 = vmatpush1.xpose.msra.mxu0 0.0
    %1625 = vmatprep.subr.mxu0 0.0
    %1626 = vmatpush1.xpose.msra.mxu0 0.0
    %1627 = vmatprep.subr.mxu0 0.0
    %1628 = vmatpush1.xpose.msra.mxu0 0.0
    %1629 = vmatprep.subr.mxu0 0.0
    %1630 = vmatpush1.xpose.msra.mxu0 0.0
    %1631 = vmatprep.subr.mxu0 0.0
    %1632 = vmatpush1.xpose.msra.mxu0 0.0
    %1633 = vmatprep.subr.mxu0 0.0
    %1634 = vmatpush1.xpose.msra.mxu0 0.0
    %1635 = vmatprep.subr.mxu0 0.0
    %1636 = vmatpush1.xpose.msra.mxu0 0.0
    %1637 = vmatprep.subr.mxu0 0.0
    %1638 = vmatpush1.xpose.msra.mxu0 0.0
    %1639 = vmatprep.subr.mxu0 0.0
    %1640 = vmatpush1.xpose.msra.mxu0 0.0
    %1641 = vmatprep.subr.mxu0 0.0
    %1642 = vmatpush1.xpose.msra.mxu0 0.0
    %1643 = vmatprep.subr.mxu0 0.0
    %1644 = vmatpush1.xpose.msra.mxu0 0.0
    %1645 = vmatprep.subr.mxu0 0.0
    %1646 = vmatpush1.xpose.msra.mxu0 0.0
    %1647 = vmatprep.subr.mxu0 0.0
    %1648 = vmatpush1.xpose.msra.mxu0 0.0
    %1649 = vmatprep.subr.mxu0 0.0
    %1650 = vmatpush1.xpose.msra.mxu0 0.0
    %1651 = vmatprep.subr.mxu0 0.0
    %1652 = vmatpush1.xpose.msra.mxu0 0.0
    %1653 = vmatprep.subr.mxu0 0.0
    %1654 = vmatpush1.xpose.msra.mxu0 0.0
    %1655 = vmatprep.subr.mxu0 0.0
    %1656 = vmatpush1.xpose.msra.mxu0 0.0
    %1657 = vmatprep.subr.mxu0 0.0
    %1658 = vmatpush1.xpose.msra.mxu0 0.0
    %1659 = vmatprep.subr.mxu0 0.0
    %1660 = vmatpush1.xpose.msra.mxu0 0.0
    %1661 = vmatprep.subr.mxu0 0.0
    %1662 = vmatpush1.xpose.msra.mxu0 0.0
    %1663 = vmatprep.subr.mxu0 0.0
    %1664 = vmatpush1.xpose.msra.mxu0 0.0
    %1665 = vmatprep.subr.mxu0 0.0
    %1666 = vmatpush1.xpose.msra.mxu0 0.0
    %1667 = vmatprep.subr.mxu0 0.0
    %1668 = vmatpush1.xpose.msra.mxu0 0.0
    %1669 = vmatprep.subr.mxu0 0.0
    %1670 = vmatpush1.xpose.msra.mxu0 0.0
    %1671 = vmatprep.subr.mxu0 0.0
    %1672 = vmatpush1.xpose.msra.mxu0 0.0
    %1673 = vmatprep.subr.mxu0 0.0
    %1674 = vmatpush1.xpose.msra.mxu0 0.0
    %1675 = vmatprep.subr.mxu0 0.0
    %1676 = vmatpush1.xpose.msra.mxu0 0.0
    %1677 = vmatprep.mubr.f32.mxu0 0.0
    %1678 = vmatmul.mubr.f32.gmra.mrb[0].mxu0 %v1605
    %v1679 = vpop.f32.mrb[0].mxu0
    %v1680 = vadd.f32 0.0, %v1679
    %v1681 = vpop.f32.mrb[0].mxu0
    %1682 = vmatprep.mubr.f32.mxu0 0.0
    %1683 = vmatmul.mubr.f32.gmra.mrb[0].mxu0 %v1607
    %v1684 = vpop.f32.mrb[0].mxu0
    %v1685 = vadd.f32 0.0, %v1684
    %v1686 = vpop.f32.mrb[0].mxu0
    %1687 = vdwg.mxu0
    %v1688 = vsel %vm410, %v1580, 0
    %v1690 = vsel %vm410, %v1582, 0
    %v1692 = vsel %vm410, %v1594, 0
    %v1694 = vsel %vm410, %v1596, 0
    %1696 = vmatprep.subr.mxu0 0.0
    %1697 = vmatpush1.xpose.msra.mxu0 %v1692
    %1698 = vmatprep.subr.mxu0 0.0
    %1699 = vmatpush1.xpose.msra.mxu0 %v1694
    %1700 = vmatprep.subr.mxu0 0.0
    %1701 = vmatpush1.xpose.msra.mxu0 0.0
    %1702 = vmatprep.subr.mxu0 0.0
    %1703 = vmatpush1.xpose.msra.mxu0 0.0
    %1704 = vmatprep.subr.mxu0 0.0
    %1705 = vmatpush1.xpose.msra.mxu0 0.0
    %1706 = vmatprep.subr.mxu0 0.0
    %1707 = vmatpush1.xpose.msra.mxu0 0.0
    %1708 = vmatprep.subr.mxu0 0.0
    %1709 = vmatpush1.xpose.msra.mxu0 0.0
    %1710 = vmatprep.subr.mxu0 0.0
    %1711 = vmatpush1.xpose.msra.mxu0 0.0
    %1712 = vmatprep.subr.mxu0 0.0
    %1713 = vmatpush1.xpose.msra.mxu0 0.0
    %1714 = vmatprep.subr.mxu0 0.0
    %1715 = vmatpush1.xpose.msra.mxu0 0.0
    %1716 = vmatprep.subr.mxu0 0.0
    %1717 = vmatpush1.xpose.msra.mxu0 0.0
    %1718 = vmatprep.subr.mxu0 0.0
    %1719 = vmatpush1.xpose.msra.mxu0 0.0
    %1720 = vmatprep.subr.mxu0 0.0
    %1721 = vmatpush1.xpose.msra.mxu0 0.0
    %1722 = vmatprep.subr.mxu0 0.0
    %1723 = vmatpush1.xpose.msra.mxu0 0.0
    %1724 = vmatprep.subr.mxu0 0.0
    %1725 = vmatpush1.xpose.msra.mxu0 0.0
    %1726 = vmatprep.subr.mxu0 0.0
    %1727 = vmatpush1.xpose.msra.mxu0 0.0
    %1728 = vmatprep.subr.mxu0 0.0
    %1729 = vmatpush1.xpose.msra.mxu0 0.0
    %1730 = vmatprep.subr.mxu0 0.0
    %1731 = vmatpush1.xpose.msra.mxu0 0.0
    %1732 = vmatprep.subr.mxu0 0.0
    %1733 = vmatpush1.xpose.msra.mxu0 0.0
    %1734 = vmatprep.subr.mxu0 0.0
    %1735 = vmatpush1.xpose.msra.mxu0 0.0
    %1736 = vmatprep.subr.mxu0 0.0
    %1737 = vmatpush1.xpose.msra.mxu0 0.0
    %1738 = vmatprep.subr.mxu0 0.0
    %1739 = vmatpush1.xpose.msra.mxu0 0.0
    %1740 = vmatprep.subr.mxu0 0.0
    %1741 = vmatpush1.xpose.msra.mxu0 0.0
    %1742 = vmatprep.subr.mxu0 0.0
    %1743 = vmatpush1.xpose.msra.mxu0 0.0
    %1744 = vmatprep.subr.mxu0 0.0
    %1745 = vmatpush1.xpose.msra.mxu0 0.0
    %1746 = vmatprep.subr.mxu0 0.0
    %1747 = vmatpush1.xpose.msra.mxu0 0.0
    %1748 = vmatprep.subr.mxu0 0.0
    %1749 = vmatpush1.xpose.msra.mxu0 0.0
    %1750 = vmatprep.subr.mxu0 0.0
    %1751 = vmatpush1.xpose.msra.mxu0 0.0
    %1752 = vmatprep.subr.mxu0 0.0
    %1753 = vmatpush1.xpose.msra.mxu0 0.0
    %1754 = vmatprep.subr.mxu0 0.0
    %1755 = vmatpush1.xpose.msra.mxu0 0.0
    %1756 = vmatprep.subr.mxu0 0.0
    %1757 = vmatpush1.xpose.msra.mxu0 0.0
    %1758 = vmatprep.subr.mxu0 0.0
    %1759 = vmatpush1.xpose.msra.mxu0 0.0
    %1760 = vmatprep.mubr.f32.mxu0 0.0
    %1761 = vmatmul.mubr.f32.gmra.mrb[0].mxu0 %v1688
    %v1762 = vpop.f32.mrb[0].mxu0
    %v1763 = vadd.f32 0.0, %v1762
    %v1764 = vpop.f32.mrb[0].mxu0
    %1765 = vmatprep.mubr.f32.mxu0 0.0
    %1766 = vmatmul.mubr.f32.gmra.mrb[0].mxu0 %v1690
    %v1767 = vpop.f32.mrb[0].mxu0
    %v1768 = vadd.f32 0.0, %v1767
    %v1769 = vpop.f32.mrb[0].mxu0
    %1770 = vdwg.mxu0
    %v1771 = vsel %vm410, %v1584, 0
    %v1773 = vsel %vm410, %v1586, 0
    %v1775 = vsel %vm410, %v1598, 0
    %v1777 = vsel %vm410, %v1600, 0
    %1779 = vmatprep.subr.mxu0 0.0
    %1780 = vmatpush1.xpose.msra.mxu0 %v1775
    %1781 = vmatprep.subr.mxu0 0.0
    %1782 = vmatpush1.xpose.msra.mxu0 %v1777
    %1783 = vmatprep.subr.mxu0 0.0
    %1784 = vmatpush1.xpose.msra.mxu0 0.0
    %1785 = vmatprep.subr.mxu0 0.0
    %1786 = vmatpush1.xpose.msra.mxu0 0.0
    %1787 = vmatprep.subr.mxu0 0.0
    %1788 = vmatpush1.xpose.msra.mxu0 0.0
    %1789 = vmatprep.subr.mxu0 0.0
    %1790 = vmatpush1.xpose.msra.mxu0 0.0
    %1791 = vmatprep.subr.mxu0 0.0
    %1792 = vmatpush1.xpose.msra.mxu0 0.0
    %1793 = vmatprep.subr.mxu0 0.0
    %1794 = vmatpush1.xpose.msra.mxu0 0.0
    %1795 = vmatprep.subr.mxu0 0.0
    %1796 = vmatpush1.xpose.msra.mxu0 0.0
    %1797 = vmatprep.subr.mxu0 0.0
    %1798 = vmatpush1.xpose.msra.mxu0 0.0
    %1799 = vmatprep.subr.mxu0 0.0
    %1800 = vmatpush1.xpose.msra.mxu0 0.0
    %1801 = vmatprep.subr.mxu0 0.0
    %1802 = vmatpush1.xpose.msra.mxu0 0.0
    %1803 = vmatprep.subr.mxu0 0.0
    %1804 = vmatpush1.xpose.msra.mxu0 0.0
    %1805 = vmatprep.subr.mxu0 0.0
    %1806 = vmatpush1.xpose.msra.mxu0 0.0
    %1807 = vmatprep.subr.mxu0 0.0
    %1808 = vmatpush1.xpose.msra.mxu0 0.0
    %1809 = vmatprep.subr.mxu0 0.0
    %1810 = vmatpush1.xpose.msra.mxu0 0.0
    %1811 = vmatprep.subr.mxu0 0.0
    %1812 = vmatpush1.xpose.msra.mxu0 0.0
    %1813 = vmatprep.subr.mxu0 0.0
    %1814 = vmatpush1.xpose.msra.mxu0 0.0
    %1815 = vmatprep.subr.mxu0 0.0
    %1816 = vmatpush1.xpose.msra.mxu0 0.0
    %1817 = vmatprep.subr.mxu0 0.0
    %1818 = vmatpush1.xpose.msra.mxu0 0.0
    %1819 = vmatprep.subr.mxu0 0.0
    %1820 = vmatpush1.xpose.msra.mxu0 0.0
    %1821 = vmatprep.subr.mxu0 0.0
    %1822 = vmatpush1.xpose.msra.mxu0 0.0
    %1823 = vmatprep.subr.mxu0 0.0
    %1824 = vmatpush1.xpose.msra.mxu0 0.0
    %1825 = vmatprep.subr.mxu0 0.0
    %1826 = vmatpush1.xpose.msra.mxu0 0.0
    %1827 = vmatprep.subr.mxu0 0.0
    %1828 = vmatpush1.xpose.msra.mxu0 0.0
    %1829 = vmatprep.subr.mxu0 0.0
    %1830 = vmatpush1.xpose.msra.mxu0 0.0
    %1831 = vmatprep.subr.mxu0 0.0
    %1832 = vmatpush1.xpose.msra.mxu0 0.0
    %1833 = vmatprep.subr.mxu0 0.0
    %1834 = vmatpush1.xpose.msra.mxu0 0.0
    %1835 = vmatprep.subr.mxu0 0.0
    %1836 = vmatpush1.xpose.msra.mxu0 0.0
    %1837 = vmatprep.subr.mxu0 0.0
    %1838 = vmatpush1.xpose.msra.mxu0 0.0
    %1839 = vmatprep.subr.mxu0 0.0
    %1840 = vmatpush1.xpose.msra.mxu0 0.0
    %1841 = vmatprep.subr.mxu0 0.0
    %1842 = vmatpush1.xpose.msra.mxu0 0.0
    %1843 = vmatprep.mubr.f32.mxu0 0.0
    %1844 = vmatmul.mubr.f32.gmra.mrb[0].mxu0 %v1771
    %v1845 = vpop.f32.mrb[0].mxu0
    %v1846 = vadd.f32 0.0, %v1845
    %v1847 = vpop.f32.mrb[0].mxu0
    %1848 = vmatprep.mubr.f32.mxu0 0.0
    %1849 = vmatmul.mubr.f32.gmra.mrb[0].mxu0 %v1773
    %v1850 = vpop.f32.mrb[0].mxu0
    %v1851 = vadd.f32 0.0, %v1850
    %v1852 = vpop.f32.mrb[0].mxu0
    %1853 = vdwg.mxu0
    %v1854 = vsel %vm410, %v1588, 0
    %v1856 = vsel %vm410, %v1590, 0
    %v1858 = vsel %vm410, %v1602, 0
    %v1860 = vsel %vm410, %v1604, 0
    %1862 = vmatprep.subr.mxu0 0.0
    %1863 = vmatpush1.xpose.msra.mxu0 %v1858
    %1864 = vmatprep.subr.mxu0 0.0
    %1865 = vmatpush1.xpose.msra.mxu0 %v1860
    %1866 = vmatprep.subr.mxu0 0.0
    %1867 = vmatpush1.xpose.msra.mxu0 0.0
    %1868 = vmatprep.subr.mxu0 0.0
    %1869 = vmatpush1.xpose.msra.mxu0 0.0
    %1870 = vmatprep.subr.mxu0 0.0
    %1871 = vmatpush1.xpose.msra.mxu0 0.0
    %1872 = vmatprep.subr.mxu0 0.0
    %1873 = vmatpush1.xpose.msra.mxu0 0.0
    %1874 = vmatprep.subr.mxu0 0.0
    %1875 = vmatpush1.xpose.msra.mxu0 0.0
    %1876 = vmatprep.subr.mxu0 0.0
    %1877 = vmatpush1.xpose.msra.mxu0 0.0
    %1878 = vmatprep.subr.mxu0 0.0
    %1879 = vmatpush1.xpose.msra.mxu0 0.0
    %1880 = vmatprep.subr.mxu0 0.0
    %1881 = vmatpush1.xpose.msra.mxu0 0.0
    %1882 = vmatprep.subr.mxu0 0.0
    %1883 = vmatpush1.xpose.msra.mxu0 0.0
    %1884 = vmatprep.subr.mxu0 0.0
    %1885 = vmatpush1.xpose.msra.mxu0 0.0
    %1886 = vmatprep.subr.mxu0 0.0
    %1887 = vmatpush1.xpose.msra.mxu0 0.0
    %1888 = vmatprep.subr.mxu0 0.0
    %1889 = vmatpush1.xpose.msra.mxu0 0.0
    %1890 = vmatprep.subr.mxu0 0.0
    %1891 = vmatpush1.xpose.msra.mxu0 0.0
    %1892 = vmatprep.subr.mxu0 0.0
    %1893 = vmatpush1.xpose.msra.mxu0 0.0
    %1894 = vmatprep.subr.mxu0 0.0
    %1895 = vmatpush1.xpose.msra.mxu0 0.0
    %1896 = vmatprep.subr.mxu0 0.0
    %1897 = vmatpush1.xpose.msra.mxu0 0.0
    %1898 = vmatprep.subr.mxu0 0.0
    %1899 = vmatpush1.xpose.msra.mxu0 0.0
    %1900 = vmatprep.subr.mxu0 0.0
    %1901 = vmatpush1.xpose.msra.mxu0 0.0
    %1902 = vmatprep.subr.mxu0 0.0
    %1903 = vmatpush1.xpose.msra.mxu0 0.0
    %1904 = vmatprep.subr.mxu0 0.0
    %1905 = vmatpush1.xpose.msra.mxu0 0.0
    %1906 = vmatprep.subr.mxu0 0.0
    %1907 = vmatpush1.xpose.msra.mxu0 0.0
    %1908 = vmatprep.subr.mxu0 0.0
    %1909 = vmatpush1.xpose.msra.mxu0 0.0
    %1910 = vmatprep.subr.mxu0 0.0
    %1911 = vmatpush1.xpose.msra.mxu0 0.0
    %1912 = vmatprep.subr.mxu0 0.0
    %1913 = vmatpush1.xpose.msra.mxu0 0.0
    %1914 = vmatprep.subr.mxu0 0.0
    %1915 = vmatpush1.xpose.msra.mxu0 0.0
    %1916 = vmatprep.subr.mxu0 0.0
    %1917 = vmatpush1.xpose.msra.mxu0 0.0
    %1918 = vmatprep.subr.mxu0 0.0
    %1919 = vmatpush1.xpose.msra.mxu0 0.0
    %1920 = vmatprep.subr.mxu0 0.0
    %1921 = vmatpush1.xpose.msra.mxu0 0.0
    %1922 = vmatprep.subr.mxu0 0.0
    %1923 = vmatpush1.xpose.msra.mxu0 0.0
    %1924 = vmatprep.subr.mxu0 0.0
    %1925 = vmatpush1.xpose.msra.mxu0 0.0
    %1926 = vmatprep.mubr.f32.mxu0 0.0
    %1927 = vmatmul.mubr.f32.gmra.mrb[0].mxu0 %v1854
    %v1928 = vpop.f32.mrb[0].mxu0
    %v1929 = vadd.f32 0.0, %v1928
    %v1930 = vpop.f32.mrb[0].mxu0
    %1931 = vmatprep.mubr.f32.mxu0 0.0
    %1932 = vmatmul.mubr.f32.gmra.mrb[0].mxu0 %v1856
    %v1933 = vpop.f32.mrb[0].mxu0
    %v1934 = vadd.f32 0.0, %v1933
    %v1935 = vpop.f32.mrb[0].mxu0
    %1936 = vdwg.mxu0
    %v1937 = vmul.f32 %v1680, 0.35355338
    %v1938 = vmul.f32 %v1685, 0.35355338
    %v1939 = vmul.f32 %v1763, 0.35355338
    %v1940 = vmul.f32 %v1768, 0.35355338
    %v1941 = vmul.f32 %v1846, 0.35355338
    %v1942 = vmul.f32 %v1851, 0.35355338
    %v1943 = vmul.f32 %v1929, 0.35355338
    %v1944 = vmul.f32 %v1934, 0.35355338
    %v1945 = vadd.f32 %v1937, %v247
    %v1946 = vadd.f32 %v1938, %v248
    %v1947 = vadd.f32 %v1939, %v247
    %v1948 = vadd.f32 %v1940, %v248
    %v1949 = vadd.f32 %v1941, %v247
    %v1950 = vadd.f32 %v1942, %v248
    %v1951 = vadd.f32 %v1943, %v247
    %v1952 = vadd.f32 %v1944, %v248
    %v1953 = vsel %vm771, %v1945, -inf
    %1954 = vmax.xlane.f32.xlu0 %v1953
    %v1955 = vpop.xlane.xlu0 %1954
    %v1956 = vsel %vm771, %v1946, -inf
    %1957 = vmax.xlane.f32.xlu0 %v1956
    %v1958 = vpop.xlane.xlu0 %1957
    %v1959 = vsel %vm771, %v1947, -inf
    %1960 = vmax.xlane.f32.xlu0 %v1959
    %v1961 = vpop.xlane.xlu0 %1960
    %v1962 = vsel %vm771, %v1948, -inf
    %1963 = vmax.xlane.f32.xlu0 %v1962
    %v1964 = vpop.xlane.xlu0 %1963
    %v1965 = vsel %vm771, %v1949, -inf
    %1966 = vmax.xlane.f32.xlu0 %v1965
    %v1967 = vpop.xlane.xlu0 %1966
    %v1968 = vsel %vm771, %v1950, -inf
    %1969 = vmax.xlane.f32.xlu0 %v1968
    %v1970 = vpop.xlane.xlu0 %1969
    %v1971 = vsel %vm771, %v1951, -inf
    %1972 = vmax.xlane.f32.xlu0 %v1971
    %v1973 = vpop.xlane.xlu0 %1972
    %v1974 = vsel %vm771, %v1952, -inf
    %1975 = vmax.xlane.f32.xlu0 %v1974
    %v1976 = vpop.xlane.xlu0 %1975
    %v1977 = vsub.f32 %v1945, %v1955
    %v1978 = vsub.f32 %v1946, %v1958
    %v1979 = vsub.f32 %v1947, %v1961
    %v1980 = vsub.f32 %v1948, %v1964
    %v1981 = vsub.f32 %v1949, %v1967
    %v1982 = vsub.f32 %v1950, %v1970
    %v1983 = vsub.f32 %v1951, %v1973
    %v1984 = vsub.f32 %v1952, %v1976
    %v1985 = vmul.f32 %v1977, 1.442695
    %v1986 = vpow.pop %v1985
    %v1987 = vmul.f32 %v1978, 1.442695
    %v1988 = vpow.pop %v1987
    %v1989 = vmul.f32 %v1979, 1.442695
    %v1990 = vpow.pop %v1989
    %v1991 = vmul.f32 %v1980, 1.442695
    %v1992 = vpow.pop %v1991
    %v1993 = vmul.f32 %v1981, 1.442695
    %v1994 = vpow.pop %v1993
    %v1995 = vmul.f32 %v1982, 1.442695
    %v1996 = vpow.pop %v1995
    %v1997 = vmul.f32 %v1983, 1.442695
    %v1998 = vpow.pop %v1997
    %v1999 = vmul.f32 %v1984, 1.442695
    %v2000 = vpow.pop %v1999
    %v2001 = vsel %vm771, %v1986, 0.0
    %2002 = vadd.xlane.f32.xlu0 %v2001
    %v2003 = vpop.xlane.xlu0 %2002
    %v2004 = vsel %vm771, %v1988, 0.0
    %2005 = vadd.xlane.f32.xlu0 %v2004
    %v2006 = vpop.xlane.xlu0 %2005
    %v2007 = vsel %vm771, %v1990, 0.0
    %2008 = vadd.xlane.f32.xlu0 %v2007
    %v2009 = vpop.xlane.xlu0 %2008
    %v2010 = vsel %vm771, %v1992, 0.0
    %2011 = vadd.xlane.f32.xlu0 %v2010
    %v2012 = vpop.xlane.xlu0 %2011
    %v2013 = vsel %vm771, %v1994, 0.0
    %2014 = vadd.xlane.f32.xlu0 %v2013
    %v2015 = vpop.xlane.xlu0 %2014
    %v2016 = vsel %vm771, %v1996, 0.0
    %2017 = vadd.xlane.f32.xlu0 %v2016
    %v2018 = vpop.xlane.xlu0 %2017
    %v2019 = vsel %vm771, %v1998, 0.0
    %2020 = vadd.xlane.f32.xlu0 %v2019
    %v2021 = vpop.xlane.xlu0 %2020
    %v2022 = vsel %vm771, %v2000, 0.0
    %2023 = vadd.xlane.f32.xlu0 %v2022
    %v2024 = vpop.xlane.xlu0 %2023
    %v2025 = vrcp.pop %v2003
    %v2026 = vrcp.pop %v2006
    %v2027 = vrcp.pop %v2009
    %v2028 = vrcp.pop %v2012
    %v2029 = vrcp.pop %v2015
    %v2030 = vrcp.pop %v2018
    %v2031 = vrcp.pop %v2021
    %v2032 = vrcp.pop %v2024
    %v2033 = vmul.f32 %v2003, %v2025
    %v2034 = vmul.f32 %v2006, %v2026
    %v2035 = vmul.f32 %v2009, %v2027
    %v2036 = vmul.f32 %v2012, %v2028
    %v2037 = vmul.f32 %v2015, %v2029
    %v2038 = vmul.f32 %v2018, %v2030
    %v2039 = vmul.f32 %v2021, %v2031
    %v2040 = vmul.f32 %v2024, %v2032
    %v2041 = vsub.f32 2.0, %v2033
    %v2042 = vsub.f32 2.0, %v2034
    %v2043 = vsub.f32 2.0, %v2035
    %v2044 = vsub.f32 2.0, %v2036
    %v2045 = vsub.f32 2.0, %v2037
    %v2046 = vsub.f32 2.0, %v2038
    %v2047 = vsub.f32 2.0, %v2039
    %v2048 = vsub.f32 2.0, %v2040
    %v2049 = vmul.f32 %v2025, %v2041
    %v2050 = vmul.f32 %v2026, %v2042
    %v2051 = vmul.f32 %v2027, %v2043
    %v2052 = vmul.f32 %v2028, %v2044
    %v2053 = vmul.f32 %v2029, %v2045
    %v2054 = vmul.f32 %v2030, %v2046
    %v2055 = vmul.f32 %v2031, %v2047
    %v2056 = vmul.f32 %v2032, %v2048
    %v2057 = vmul.f32 %v1986, %v2049
    %v2058 = vmul.f32 %v1988, %v2050
    %v2059 = vmul.f32 %v1990, %v2051
    %v2060 = vmul.f32 %v1992, %v2052
    %v2061 = vmul.f32 %v1994, %v2053
    %v2062 = vmul.f32 %v1996, %v2054
    %v2063 = vmul.f32 %v1998, %v2055
    %v2064 = vmul.f32 %v2000, %v2056
    %2065 = vst.msk [vmem:[#allocation11] sm:$0xff] %vm771, %v2057
    %2066 = vst.msk [vmem:[#allocation11 + $0x8] sm:$0xff] %vm771, %v2058
    %2067 = vst.msk [vmem:[#allocation11 + $0x10] sm:$0xff] %vm771, %v2059
    %2068 = vst.msk [vmem:[#allocation11 + $0x18] sm:$0xff] %vm771, %v2060
    %2069 = vst.msk [vmem:[#allocation11 + $0x20] sm:$0xff] %vm771, %v2061
    %2070 = vst.msk [vmem:[#allocation11 + $0x28] sm:$0xff] %vm771, %v2062
    %2071 = vst.msk [vmem:[#allocation11 + $0x30] sm:$0xff] %vm771, %v2063
    %2072 = vst.msk [vmem:[#allocation11 + $0x38] sm:$0xff] %vm771, %v2064
    %2073 = vrot.lane.b32.xlu0 %v1569, 96
    %v2074 = vpop.permute.xlu0 %2073
    %2075 = vrot.lane.b32.xlu0 %v1574, 96
    %v2076 = vpop.permute.xlu0 %2075
    %v2080 = vsel %vm771, %v2057, 0
    %v2083 = vsel %vm771, %v2058, 0
    %2085 = vmatprep.subr.mxu0 0.0
    %2086 = vmatpush1.msra.mxu0 %v2074
    %2087 = vmatprep.subr.mxu0 0.0
    %2088 = vmatpush1.msra.mxu0 %v2076
    %2089 = vmatprep.subr.mxu0 0.0
    %2090 = vmatpush1.msra.mxu0 0.0
    %2091 = vmatprep.subr.mxu0 0.0
    %2092 = vmatpush1.msra.mxu0 0.0
    %2093 = vmatprep.subr.mxu0 0.0
    %2094 = vmatpush1.msra.mxu0 0.0
    %2095 = vmatprep.subr.mxu0 0.0
    %2096 = vmatpush1.msra.mxu0 0.0
    %2097 = vmatprep.subr.mxu0 0.0
    %2098 = vmatpush1.msra.mxu0 0.0
    %2099 = vmatprep.subr.mxu0 0.0
    %2100 = vmatpush1.msra.mxu0 0.0
    %2101 = vmatprep.subr.mxu0 0.0
    %2102 = vmatpush1.msra.mxu0 0.0
    %2103 = vmatprep.subr.mxu0 0.0
    %2104 = vmatpush1.msra.mxu0 0.0
    %2105 = vmatprep.subr.mxu0 0.0
    %2106 = vmatpush1.msra.mxu0 0.0
    %2107 = vmatprep.subr.mxu0 0.0
    %2108 = vmatpush1.msra.mxu0 0.0
    %2109 = vmatprep.subr.mxu0 0.0
    %2110 = vmatpush1.msra.mxu0 0.0
    %2111 = vmatprep.subr.mxu0 0.0
    %2112 = vmatpush1.msra.mxu0 0.0
    %2113 = vmatprep.subr.mxu0 0.0
    %2114 = vmatpush1.msra.mxu0 0.0
    %2115 = vmatprep.subr.mxu0 0.0
    %2116 = vmatpush1.msra.mxu0 0.0
    %2117 = vmatprep.subr.mxu0 0.0
    %2118 = vmatpush1.msra.mxu0 0.0
    %2119 = vmatprep.subr.mxu0 0.0
    %2120 = vmatpush1.msra.mxu0 0.0
    %2121 = vmatprep.subr.mxu0 0.0
    %2122 = vmatpush1.msra.mxu0 0.0
    %2123 = vmatprep.subr.mxu0 0.0
    %2124 = vmatpush1.msra.mxu0 0.0
    %2125 = vmatprep.subr.mxu0 0.0
    %2126 = vmatpush1.msra.mxu0 0.0
    %2127 = vmatprep.subr.mxu0 0.0
    %2128 = vmatpush1.msra.mxu0 0.0
    %2129 = vmatprep.subr.mxu0 0.0
    %2130 = vmatpush1.msra.mxu0 0.0
    %2131 = vmatprep.subr.mxu0 0.0
    %2132 = vmatpush1.msra.mxu0 0.0
    %2133 = vmatprep.subr.mxu0 0.0
    %2134 = vmatpush1.msra.mxu0 0.0
    %2135 = vmatprep.subr.mxu0 0.0
    %2136 = vmatpush1.msra.mxu0 0.0
    %2137 = vmatprep.subr.mxu0 0.0
    %2138 = vmatpush1.msra.mxu0 0.0
    %2139 = vmatprep.subr.mxu0 0.0
    %2140 = vmatpush1.msra.mxu0 0.0
    %2141 = vmatprep.subr.mxu0 0.0
    %2142 = vmatpush1.msra.mxu0 0.0
    %2143 = vmatprep.subr.mxu0 0.0
    %2144 = vmatpush1.msra.mxu0 0.0
    %2145 = vmatprep.subr.mxu0 0.0
    %2146 = vmatpush1.msra.mxu0 0.0
    %2147 = vmatprep.subr.mxu0 0.0
    %2148 = vmatpush1.msra.mxu0 0.0
    %2149 = vmatprep.mubr.f32.mxu0 0.0
    %2150 = vmatmul.mubr.f32.gmra.mrb[0].mxu0 %v2080
    %v2151 = vpop.f32.mrb[0].mxu0
    %v2152 = vadd.f32 0.0, %v2151
    %v2153 = vpop.f32.mrb[0].mxu0
    %2154 = vmatprep.mubr.f32.mxu0 0.0
    %2155 = vmatmul.mubr.f32.gmra.mrb[0].mxu0 %v2083
    %v2156 = vpop.f32.mrb[0].mxu0
    %v2157 = vadd.f32 0.0, %v2156
    %v2158 = vpop.f32.mrb[0].mxu0
    %2159 = vdwg.mxu0
    %2160 = vrot.lane.b32.xlu0 %v1594, 96
    %v2161 = vpop.permute.xlu0 %2160
    %2162 = vrot.lane.b32.xlu0 %v1596, 96
    %v2163 = vpop.permute.xlu0 %2162
    %v2167 = vsel %vm771, %v2059, 0
    %v2170 = vsel %vm771, %v2060, 0
    %2172 = vmatprep.subr.mxu0 0.0
    %2173 = vmatpush1.msra.mxu0 %v2161
    %2174 = vmatprep.subr.mxu0 0.0
    %2175 = vmatpush1.msra.mxu0 %v2163
    %2176 = vmatprep.subr.mxu0 0.0
    %2177 = vmatpush1.msra.mxu0 0.0
    %2178 = vmatprep.subr.mxu0 0.0
    %2179 = vmatpush1.msra.mxu0 0.0
    %2180 = vmatprep.subr.mxu0 0.0
    %2181 = vmatpush1.msra.mxu0 0.0
    %2182 = vmatprep.subr.mxu0 0.0
    %2183 = vmatpush1.msra.mxu0 0.0
    %2184 = vmatprep.subr.mxu0 0.0
    %2185 = vmatpush1.msra.mxu0 0.0
    %2186 = vmatprep.subr.mxu0 0.0
    %2187 = vmatpush1.msra.mxu0 0.0
    %2188 = vmatprep.subr.mxu0 0.0
    %2189 = vmatpush1.msra.mxu0 0.0
    %2190 = vmatprep.subr.mxu0 0.0
    %2191 = vmatpush1.msra.mxu0 0.0
    %2192 = vmatprep.subr.mxu0 0.0
    %2193 = vmatpush1.msra.mxu0 0.0
    %2194 = vmatprep.subr.mxu0 0.0
    %2195 = vmatpush1.msra.mxu0 0.0
    %2196 = vmatprep.subr.mxu0 0.0
    %2197 = vmatpush1.msra.mxu0 0.0
    %2198 = vmatprep.subr.mxu0 0.0
    %2199 = vmatpush1.msra.mxu0 0.0
    %2200 = vmatprep.subr.mxu0 0.0
    %2201 = vmatpush1.msra.mxu0 0.0
    %2202 = vmatprep.subr.mxu0 0.0
    %2203 = vmatpush1.msra.mxu0 0.0
    %2204 = vmatprep.subr.mxu0 0.0
    %2205 = vmatpush1.msra.mxu0 0.0
    %2206 = vmatprep.subr.mxu0 0.0
    %2207 = vmatpush1.msra.mxu0 0.0
    %2208 = vmatprep.subr.mxu0 0.0
    %2209 = vmatpush1.msra.mxu0 0.0
    %2210 = vmatprep.subr.mxu0 0.0
    %2211 = vmatpush1.msra.mxu0 0.0
    %2212 = vmatprep.subr.mxu0 0.0
    %2213 = vmatpush1.msra.mxu0 0.0
    %2214 = vmatprep.subr.mxu0 0.0
    %2215 = vmatpush1.msra.mxu0 0.0
    %2216 = vmatprep.subr.mxu0 0.0
    %2217 = vmatpush1.msra.mxu0 0.0
    %2218 = vmatprep.subr.mxu0 0.0
    %2219 = vmatpush1.msra.mxu0 0.0
    %2220 = vmatprep.subr.mxu0 0.0
    %2221 = vmatpush1.msra.mxu0 0.0
    %2222 = vmatprep.subr.mxu0 0.0
    %2223 = vmatpush1.msra.mxu0 0.0
    %2224 = vmatprep.subr.mxu0 0.0
    %2225 = vmatpush1.msra.mxu0 0.0
    %2226 = vmatprep.subr.mxu0 0.0
    %2227 = vmatpush1.msra.mxu0 0.0
    %2228 = vmatprep.subr.mxu0 0.0
    %2229 = vmatpush1.msra.mxu0 0.0
    %2230 = vmatprep.subr.mxu0 0.0
    %2231 = vmatpush1.msra.mxu0 0.0
    %2232 = vmatprep.subr.mxu0 0.0
    %2233 = vmatpush1.msra.mxu0 0.0
    %2234 = vmatprep.subr.mxu0 0.0
    %2235 = vmatpush1.msra.mxu0 0.0
    %2236 = vmatprep.mubr.f32.mxu0 0.0
    %2237 = vmatmul.mubr.f32.gmra.mrb[0].mxu0 %v2167
    %v2238 = vpop.f32.mrb[0].mxu0
    %v2239 = vadd.f32 0.0, %v2238
    %v2240 = vpop.f32.mrb[0].mxu0
    %2241 = vmatprep.mubr.f32.mxu0 0.0
    %2242 = vmatmul.mubr.f32.gmra.mrb[0].mxu0 %v2170
    %v2243 = vpop.f32.mrb[0].mxu0
    %v2244 = vadd.f32 0.0, %v2243
    %v2245 = vpop.f32.mrb[0].mxu0
    %2246 = vdwg.mxu0
    %2247 = vrot.lane.b32.xlu0 %v1598, 96
    %v2248 = vpop.permute.xlu0 %2247
    %2249 = vrot.lane.b32.xlu0 %v1600, 96
    %v2250 = vpop.permute.xlu0 %2249
    %v2254 = vsel %vm771, %v2061, 0
    %v2257 = vsel %vm771, %v2062, 0
    %2259 = vmatprep.subr.mxu0 0.0
    %2260 = vmatpush1.msra.mxu0 %v2248
    %2261 = vmatprep.subr.mxu0 0.0
    %2262 = vmatpush1.msra.mxu0 %v2250
    %2263 = vmatprep.subr.mxu0 0.0
    %2264 = vmatpush1.msra.mxu0 0.0
    %2265 = vmatprep.subr.mxu0 0.0
    %2266 = vmatpush1.msra.mxu0 0.0
    %2267 = vmatprep.subr.mxu0 0.0
    %2268 = vmatpush1.msra.mxu0 0.0
    %2269 = vmatprep.subr.mxu0 0.0
    %2270 = vmatpush1.msra.mxu0 0.0
    %2271 = vmatprep.subr.mxu0 0.0
    %2272 = vmatpush1.msra.mxu0 0.0
    %2273 = vmatprep.subr.mxu0 0.0
    %2274 = vmatpush1.msra.mxu0 0.0
    %2275 = vmatprep.subr.mxu0 0.0
    %2276 = vmatpush1.msra.mxu0 0.0
    %2277 = vmatprep.subr.mxu0 0.0
    %2278 = vmatpush1.msra.mxu0 0.0
    %2279 = vmatprep.subr.mxu0 0.0
    %2280 = vmatpush1.msra.mxu0 0.0
    %2281 = vmatprep.subr.mxu0 0.0
    %2282 = vmatpush1.msra.mxu0 0.0
    %2283 = vmatprep.subr.mxu0 0.0
    %2284 = vmatpush1.msra.mxu0 0.0
    %2285 = vmatprep.subr.mxu0 0.0
    %2286 = vmatpush1.msra.mxu0 0.0
    %2287 = vmatprep.subr.mxu0 0.0
    %2288 = vmatpush1.msra.mxu0 0.0
    %2289 = vmatprep.subr.mxu0 0.0
    %2290 = vmatpush1.msra.mxu0 0.0
    %2291 = vmatprep.subr.mxu0 0.0
    %2292 = vmatpush1.msra.mxu0 0.0
    %2293 = vmatprep.subr.mxu0 0.0
    %2294 = vmatpush1.msra.mxu0 0.0
    %2295 = vmatprep.subr.mxu0 0.0
    %2296 = vmatpush1.msra.mxu0 0.0
    %2297 = vmatprep.subr.mxu0 0.0
    %2298 = vmatpush1.msra.mxu0 0.0
    %2299 = vmatprep.subr.mxu0 0.0
    %2300 = vmatpush1.msra.mxu0 0.0
    %2301 = vmatprep.subr.mxu0 0.0
    %2302 = vmatpush1.msra.mxu0 0.0
    %2303 = vmatprep.subr.mxu0 0.0
    %2304 = vmatpush1.msra.mxu0 0.0
    %2305 = vmatprep.subr.mxu0 0.0
    %2306 = vmatpush1.msra.mxu0 0.0
    %2307 = vmatprep.subr.mxu0 0.0
    %2308 = vmatpush1.msra.mxu0 0.0
    %2309 = vmatprep.subr.mxu0 0.0
    %2310 = vmatpush1.msra.mxu0 0.0
    %2311 = vmatprep.subr.mxu0 0.0
    %2312 = vmatpush1.msra.mxu0 0.0
    %2313 = vmatprep.subr.mxu0 0.0
    %2314 = vmatpush1.msra.mxu0 0.0
    %2315 = vmatprep.subr.mxu0 0.0
    %2316 = vmatpush1.msra.mxu0 0.0
    %2317 = vmatprep.subr.mxu0 0.0
    %2318 = vmatpush1.msra.mxu0 0.0
    %2319 = vmatprep.subr.mxu0 0.0
    %2320 = vmatpush1.msra.mxu0 0.0
    %2321 = vmatprep.subr.mxu0 0.0
    %2322 = vmatpush1.msra.mxu0 0.0
    %2323 = vmatprep.mubr.f32.mxu0 0.0
    %2324 = vmatmul.mubr.f32.gmra.mrb[0].mxu0 %v2254
    %v2325 = vpop.f32.mrb[0].mxu0
    %v2326 = vadd.f32 0.0, %v2325
    %v2327 = vpop.f32.mrb[0].mxu0
    %2328 = vmatprep.mubr.f32.mxu0 0.0
    %2329 = vmatmul.mubr.f32.gmra.mrb[0].mxu0 %v2257
    %v2330 = vpop.f32.mrb[0].mxu0
    %v2331 = vadd.f32 0.0, %v2330
    %v2332 = vpop.f32.mrb[0].mxu0
    %2333 = vdwg.mxu0
    %2334 = vrot.lane.b32.xlu0 %v1602, 96
    %v2335 = vpop.permute.xlu0 %2334
    %2336 = vrot.lane.b32.xlu0 %v1604, 96
    %v2337 = vpop.permute.xlu0 %2336
    %v2341 = vsel %vm771, %v2063, 0
    %v2344 = vsel %vm771, %v2064, 0
    %2346 = vmatprep.subr.mxu0 0.0
    %2347 = vmatpush1.msra.mxu0 %v2335
    %2348 = vmatprep.subr.mxu0 0.0
    %2349 = vmatpush1.msra.mxu0 %v2337
    %2350 = vmatprep.subr.mxu0 0.0
    %2351 = vmatpush1.msra.mxu0 0.0
    %2352 = vmatprep.subr.mxu0 0.0
    %2353 = vmatpush1.msra.mxu0 0.0
    %2354 = vmatprep.subr.mxu0 0.0
    %2355 = vmatpush1.msra.mxu0 0.0
    %2356 = vmatprep.subr.mxu0 0.0
    %2357 = vmatpush1.msra.mxu0 0.0
    %2358 = vmatprep.subr.mxu0 0.0
    %2359 = vmatpush1.msra.mxu0 0.0
    %2360 = vmatprep.subr.mxu0 0.0
    %2361 = vmatpush1.msra.mxu0 0.0
    %2362 = vmatprep.subr.mxu0 0.0
    %2363 = vmatpush1.msra.mxu0 0.0
    %2364 = vmatprep.subr.mxu0 0.0
    %2365 = vmatpush1.msra.mxu0 0.0
    %2366 = vmatprep.subr.mxu0 0.0
    %2367 = vmatpush1.msra.mxu0 0.0
    %2368 = vmatprep.subr.mxu0 0.0
    %2369 = vmatpush1.msra.mxu0 0.0
    %2370 = vmatprep.subr.mxu0 0.0
    %2371 = vmatpush1.msra.mxu0 0.0
    %2372 = vmatprep.subr.mxu0 0.0
    %2373 = vmatpush1.msra.mxu0 0.0
    %2374 = vmatprep.subr.mxu0 0.0
    %2375 = vmatpush1.msra.mxu0 0.0
    %2376 = vmatprep.subr.mxu0 0.0
    %2377 = vmatpush1.msra.mxu0 0.0
    %2378 = vmatprep.subr.mxu0 0.0
    %2379 = vmatpush1.msra.mxu0 0.0
    %2380 = vmatprep.subr.mxu0 0.0
    %2381 = vmatpush1.msra.mxu0 0.0
    %2382 = vmatprep.subr.mxu0 0.0
    %2383 = vmatpush1.msra.mxu0 0.0
    %2384 = vmatprep.subr.mxu0 0.0
    %2385 = vmatpush1.msra.mxu0 0.0
    %2386 = vmatprep.subr.mxu0 0.0
    %2387 = vmatpush1.msra.mxu0 0.0
    %2388 = vmatprep.subr.mxu0 0.0
    %2389 = vmatpush1.msra.mxu0 0.0
    %2390 = vmatprep.subr.mxu0 0.0
    %2391 = vmatpush1.msra.mxu0 0.0
    %2392 = vmatprep.subr.mxu0 0.0
    %2393 = vmatpush1.msra.mxu0 0.0
    %2394 = vmatprep.subr.mxu0 0.0
    %2395 = vmatpush1.msra.mxu0 0.0
    %2396 = vmatprep.subr.mxu0 0.0
    %2397 = vmatpush1.msra.mxu0 0.0
    %2398 = vmatprep.subr.mxu0 0.0
    %2399 = vmatpush1.msra.mxu0 0.0
    %2400 = vmatprep.subr.mxu0 0.0
    %2401 = vmatpush1.msra.mxu0 0.0
    %2402 = vmatprep.subr.mxu0 0.0
    %2403 = vmatpush1.msra.mxu0 0.0
    %2404 = vmatprep.subr.mxu0 0.0
    %2405 = vmatpush1.msra.mxu0 0.0
    %2406 = vmatprep.subr.mxu0 0.0
    %2407 = vmatpush1.msra.mxu0 0.0
    %2408 = vmatprep.subr.mxu0 0.0
    %2409 = vmatpush1.msra.mxu0 0.0
    %2410 = vmatprep.mubr.f32.mxu0 0.0
    %2411 = vmatmul.mubr.f32.gmra.mrb[0].mxu0 %v2341
    %v2412 = vpop.f32.mrb[0].mxu0
    %v2413 = vadd.f32 0.0, %v2412
    %v2414 = vpop.f32.mrb[0].mxu0
    %2415 = vmatprep.mubr.f32.mxu0 0.0
    %2416 = vmatmul.mubr.f32.gmra.mrb[0].mxu0 %v2344
    %v2417 = vpop.f32.mrb[0].mxu0
    %v2418 = vadd.f32 0.0, %v2417
    %v2419 = vpop.f32.mrb[0].mxu0
    %2420 = vdwg.mxu0
    %2423 = vrot.lane.b32.xlu0 %v2239, 8
    %v2424 = vpop.permute.xlu0 %2423
    %2425 = vrot.lane.b32.xlu0 %v2244, 8
    %v2426 = vpop.permute.xlu0 %2425
    %2431 = vrot.lane.b32.xlu0 %v2326, 16
    %v2432 = vpop.permute.xlu0 %2431
    %2433 = vrot.lane.b32.xlu0 %v2331, 16
    %v2434 = vpop.permute.xlu0 %2433
    %2439 = vrot.lane.b32.xlu0 %v2413, 24
    %v2440 = vpop.permute.xlu0 %2439
    %2441 = vrot.lane.b32.xlu0 %v2418, 24
    %v2442 = vpop.permute.xlu0 %2441
    %v2445 = vsel %vm410, %v2152, %v2424
    %v2446 = vsel %vm410, %v2157, %v2426
    %v2447 = vsel %vm771, %v2445, %v2432
    %v2448 = vsel %vm771, %v2446, %v2434
    %v2449 = vsel %vm1268, %v2447, %v2440
    %v2450 = vsel %vm1268, %v2448, %v2442
    %v2452 = vlaneseq
    %v2453 = vshrl.u32 %v2452, 7
    %v2454 = vsub.s32 0, %v2453
    %v2455 = vrot.slane %v277, %v2454
    %v2458 = vsel %vm310, %v2449, 0
    %v2461 = vsel %vm310, %v2450, 0
    %2463 = vmatprep.subr.mxu0 0.0
    %2464 = vmatpush1.msra.mxu0 %v273
    %2465 = vmatprep.subr.mxu0 0.0
    %2466 = vmatpush1.msra.mxu0 %v274
    %2467 = vmatprep.subr.mxu0 0.0
    %2468 = vmatpush1.msra.mxu0 %v275
    %2469 = vmatprep.subr.mxu0 0.0
    %2470 = vmatpush1.msra.mxu0 %v276
    %2471 = vmatprep.subr.mxu0 0.0
    %2472 = vmatpush1.msra.mxu0 0.0
    %2473 = vmatprep.subr.mxu0 0.0
    %2474 = vmatpush1.msra.mxu0 0.0
    %2475 = vmatprep.subr.mxu0 0.0
    %2476 = vmatpush1.msra.mxu0 0.0
    %2477 = vmatprep.subr.mxu0 0.0
    %2478 = vmatpush1.msra.mxu0 0.0
    %2479 = vmatprep.subr.mxu0 0.0
    %2480 = vmatpush1.msra.mxu0 0.0
    %2481 = vmatprep.subr.mxu0 0.0
    %2482 = vmatpush1.msra.mxu0 0.0
    %2483 = vmatprep.subr.mxu0 0.0
    %2484 = vmatpush1.msra.mxu0 0.0
    %2485 = vmatprep.subr.mxu0 0.0
    %2486 = vmatpush1.msra.mxu0 0.0
    %2487 = vmatprep.subr.mxu0 0.0
    %2488 = vmatpush1.msra.mxu0 0.0
    %2489 = vmatprep.subr.mxu0 0.0
    %2490 = vmatpush1.msra.mxu0 0.0
    %2491 = vmatprep.subr.mxu0 0.0
    %2492 = vmatpush1.msra.mxu0 0.0
    %2493 = vmatprep.subr.mxu0 0.0
    %2494 = vmatpush1.msra.mxu0 0.0
    %2495 = vmatprep.subr.mxu0 0.0
    %2496 = vmatpush1.msra.mxu0 0.0
    %2497 = vmatprep.subr.mxu0 0.0
    %2498 = vmatpush1.msra.mxu0 0.0
    %2499 = vmatprep.subr.mxu0 0.0
    %2500 = vmatpush1.msra.mxu0 0.0
    %2501 = vmatprep.subr.mxu0 0.0
    %2502 = vmatpush1.msra.mxu0 0.0
    %2503 = vmatprep.subr.mxu0 0.0
    %2504 = vmatpush1.msra.mxu0 0.0
    %2505 = vmatprep.subr.mxu0 0.0
    %2506 = vmatpush1.msra.mxu0 0.0
    %2507 = vmatprep.subr.mxu0 0.0
    %2508 = vmatpush1.msra.mxu0 0.0
    %2509 = vmatprep.subr.mxu0 0.0
    %2510 = vmatpush1.msra.mxu0 0.0
    %2511 = vmatprep.subr.mxu0 0.0
    %2512 = vmatpush1.msra.mxu0 0.0
    %2513 = vmatprep.subr.mxu0 0.0
    %2514 = vmatpush1.msra.mxu0 0.0
    %2515 = vmatprep.subr.mxu0 0.0
    %2516 = vmatpush1.msra.mxu0 0.0
    %2517 = vmatprep.subr.mxu0 0.0
    %2518 = vmatpush1.msra.mxu0 0.0
    %2519 = vmatprep.subr.mxu0 0.0
    %2520 = vmatpush1.msra.mxu0 0.0
    %2521 = vmatprep.subr.mxu0 0.0
    %2522 = vmatpush1.msra.mxu0 0.0
    %2523 = vmatprep.subr.mxu0 0.0
    %2524 = vmatpush1.msra.mxu0 0.0
    %2525 = vmatprep.subr.mxu0 0.0
    %2526 = vmatpush1.msra.mxu0 0.0
    %2527 = vmatprep.mubr.f32.mxu0 0.0
    %2528 = vmatmul.mubr.f32.gmra.mrb[0].mxu0 %v2458
    %v2529 = vpop.f32.mrb[0].mxu0
    %v2530 = vadd.f32 %v2455, %v2529
    %v2531 = vpop.f32.mrb[0].mxu0
    %2532 = vmatprep.mubr.f32.mxu0 0.0
    %2533 = vmatmul.mubr.f32.gmra.mrb[0].mxu0 %v2461
    %v2534 = vpop.f32.mrb[0].mxu0
    %v2535 = vadd.f32 %v2455, %v2534
    %v2536 = vpop.f32.mrb[0].mxu0
    %2537 = vdwg.mxu0
    %v2538 = vadd.f32 %v1401, %v2530
    %v2539 = vadd.f32 %v1402, %v2535
    %v2540 = vsel %vm310, %v2538, 0.0
    %2541 = vadd.xlane.f32.xlu0 %v2540
    %v2542 = vpop.xlane.xlu0 %2541
    %v2543 = vsel %vm310, %v2539, 0.0
    %2544 = vadd.xlane.f32.xlu0 %v2543
    %v2545 = vpop.xlane.xlu0 %2544
    %v2546 = vmul.f32 %v2542, %v1366
    %v2547 = vmul.f32 %v2545, %v1366
    %v2548 = vsub.f32 %v2538, %v2546
    %v2549 = vsub.f32 %v2539, %v2547
    %v2550 = vmul.f32 %v2548, %v2548
    %v2551 = vmul.f32 %v2549, %v2549
    %v2552 = vsel %vm310, %v2550, 0.0
    %2553 = vadd.xlane.f32.xlu0 %v2552
    %v2554 = vpop.xlane.xlu0 %2553
    %v2555 = vsel %vm310, %v2551, 0.0
    %2556 = vadd.xlane.f32.xlu0 %v2555
    %v2557 = vpop.xlane.xlu0 %2556
    %v2558 = vmul.f32 %v2554, %v1366
    %v2559 = vmul.f32 %v2557, %v1366
    %v2560 = vadd.f32 %v2558, 1e-06
    %v2561 = vadd.f32 %v2559, 1e-06
    %v2562 = vrsqrt.pop %v2560
    %v2563 = vrsqrt.pop %v2561
    %v2564 = vmul.f32 %v2548, %v2562
    %v2565 = vmul.f32 %v2549, %v2563
    %v2567 = vlaneseq
    %v2568 = vshrl.u32 %v2567, 7
    %v2569 = vsub.s32 0, %v2568
    %v2570 = vrot.slane %v278, %v2569
    %v2572 = vmul.f32 %v2564, %v2570
    %v2573 = vmul.f32 %v2565, %v2570
    %v2575 = vlaneseq
    %v2576 = vshrl.u32 %v2575, 7
    %v2577 = vsub.s32 0, %v2576
    %v2578 = vrot.slane %v279, %v2577
    %v2580 = vadd.f32 %v2572, %v2578
    %v2581 = vadd.f32 %v2573, %v2578
    %v2583 = vlaneseq
    %v2584 = vshrl.u32 %v2583, 7
    %v2585 = vsub.s32 0, %v2584
    %v2586 = vrot.slane %v284, %v2585
    %v2589 = vsel %vm310, %v2580, 0
    %v2592 = vsel %vm310, %v2581, 0
    %2594 = vmatprep.subr.mxu0 0.0
    %2595 = vmatpush1.msra.mxu0 %v280
    %2596 = vmatprep.subr.mxu0 0.0
    %2597 = vmatpush1.msra.mxu0 %v281
    %2598 = vmatprep.subr.mxu0 0.0
    %2599 = vmatpush1.msra.mxu0 %v282
    %2600 = vmatprep.subr.mxu0 0.0
    %2601 = vmatpush1.msra.mxu0 %v283
    %2602 = vmatprep.subr.mxu0 0.0
    %2603 = vmatpush1.msra.mxu0 0.0
    %2604 = vmatprep.subr.mxu0 0.0
    %2605 = vmatpush1.msra.mxu0 0.0
    %2606 = vmatprep.subr.mxu0 0.0
    %2607 = vmatpush1.msra.mxu0 0.0
    %2608 = vmatprep.subr.mxu0 0.0
    %2609 = vmatpush1.msra.mxu0 0.0
    %2610 = vmatprep.subr.mxu0 0.0
    %2611 = vmatpush1.msra.mxu0 0.0
    %2612 = vmatprep.subr.mxu0 0.0
    %2613 = vmatpush1.msra.mxu0 0.0
    %2614 = vmatprep.subr.mxu0 0.0
    %2615 = vmatpush1.msra.mxu0 0.0
    %2616 = vmatprep.subr.mxu0 0.0
    %2617 = vmatpush1.msra.mxu0 0.0
    %2618 = vmatprep.subr.mxu0 0.0
    %2619 = vmatpush1.msra.mxu0 0.0
    %2620 = vmatprep.subr.mxu0 0.0
    %2621 = vmatpush1.msra.mxu0 0.0
    %2622 = vmatprep.subr.mxu0 0.0
    %2623 = vmatpush1.msra.mxu0 0.0
    %2624 = vmatprep.subr.mxu0 0.0
    %2625 = vmatpush1.msra.mxu0 0.0
    %2626 = vmatprep.subr.mxu0 0.0
    %2627 = vmatpush1.msra.mxu0 0.0
    %2628 = vmatprep.subr.mxu0 0.0
    %2629 = vmatpush1.msra.mxu0 0.0
    %2630 = vmatprep.subr.mxu0 0.0
    %2631 = vmatpush1.msra.mxu0 0.0
    %2632 = vmatprep.subr.mxu0 0.0
    %2633 = vmatpush1.msra.mxu0 0.0
    %2634 = vmatprep.subr.mxu0 0.0
    %2635 = vmatpush1.msra.mxu0 0.0
    %2636 = vmatprep.subr.mxu0 0.0
    %2637 = vmatpush1.msra.mxu0 0.0
    %2638 = vmatprep.subr.mxu0 0.0
    %2639 = vmatpush1.msra.mxu0 0.0
    %2640 = vmatprep.subr.mxu0 0.0
    %2641 = vmatpush1.msra.mxu0 0.0
    %2642 = vmatprep.subr.mxu0 0.0
    %2643 = vmatpush1.msra.mxu0 0.0
    %2644 = vmatprep.subr.mxu0 0.0
    %2645 = vmatpush1.msra.mxu0 0.0
    %2646 = vmatprep.subr.mxu0 0.0
    %2647 = vmatpush1.msra.mxu0 0.0
    %2648 = vmatprep.subr.mxu0 0.0
    %2649 = vmatpush1.msra.mxu0 0.0
    %2650 = vmatprep.subr.mxu0 0.0
    %2651 = vmatpush1.msra.mxu0 0.0
    %2652 = vmatprep.subr.mxu0 0.0
    %2653 = vmatpush1.msra.mxu0 0.0
    %2654 = vmatprep.subr.mxu0 0.0
    %2655 = vmatpush1.msra.mxu0 0.0
    %2656 = vmatprep.subr.mxu0 0.0
    %2657 = vmatpush1.msra.mxu0 0.0
    %2658 = vmatprep.mubr.f32.mxu0 0.0
    %2659 = vmatmul.mubr.f32.gmra.mrb[0].mxu0 %v2589
    %v2660 = vpop.f32.mrb[0].mxu0
    %v2661 = vadd.f32 %v2586, %v2660
    %v2662 = vpop.f32.mrb[0].mxu0
    %2663 = vmatprep.mubr.f32.mxu0 0.0
    %2664 = vmatmul.mubr.f32.gmra.mrb[0].mxu0 %v2592
    %v2665 = vpop.f32.mrb[0].mxu0
    %v2666 = vadd.f32 %v2586, %v2665
    %v2667 = vpop.f32.mrb[0].mxu0
    %2668 = vdwg.mxu0
    %v2669 = vmul.f32 %v2661, 0.5
    %v2670 = vmul.f32 %v2666, 0.5
    %v2671 = vmul.f32 %v2661, 0.044715
    %v2672 = vmul.f32 %v2666, 0.044715
    %v2673 = vmul.f32 %v2671, %v2661
    %v2674 = vmul.f32 %v2672, %v2666
    %v2675 = vmul.f32 %v2673, %v2661
    %v2676 = vmul.f32 %v2674, %v2666
    %v2677 = vadd.f32 %v2661, %v2675
    %v2678 = vadd.f32 %v2666, %v2676
    %v2679 = vmul.f32 %v2677, 0.7978846
    %v2680 = vmul.f32 %v2678, 0.7978846
    %v2681 = vtanh.pop %v2679
    %v2682 = vtanh.pop %v2680
    %v2683 = vadd.f32 %v2681, 1.0
    %v2684 = vadd.f32 %v2682, 1.0
    %v2685 = vmul.f32 %v2669, %v2683
    %v2686 = vmul.f32 %v2670, %v2684
    %v2688 = vlaneseq
    %v2689 = vshrl.u32 %v2688, 7
    %v2690 = vsub.s32 0, %v2689
    %v2691 = vrot.slane %v301, %v2690
    %2693 = vmatprep.subr.mxu0 0.0
    %2694 = vmatpush1.msra.mxu0 %v285
    %2695 = vmatprep.subr.mxu0 0.0
    %2696 = vmatpush1.msra.mxu0 %v286
    %2697 = vmatprep.subr.mxu0 0.0
    %2698 = vmatpush1.msra.mxu0 %v287
    %2699 = vmatprep.subr.mxu0 0.0
    %2700 = vmatpush1.msra.mxu0 %v288
    %2701 = vmatprep.subr.mxu0 0.0
    %2702 = vmatpush1.msra.mxu0 %v289
    %2703 = vmatprep.subr.mxu0 0.0
    %2704 = vmatpush1.msra.mxu0 %v290
    %2705 = vmatprep.subr.mxu0 0.0
    %2706 = vmatpush1.msra.mxu0 %v291
    %2707 = vmatprep.subr.mxu0 0.0
    %2708 = vmatpush1.msra.mxu0 %v292
    %2709 = vmatprep.subr.mxu0 0.0
    %2710 = vmatpush1.msra.mxu0 %v293
    %2711 = vmatprep.subr.mxu0 0.0
    %2712 = vmatpush1.msra.mxu0 %v294
    %2713 = vmatprep.subr.mxu0 0.0
    %2714 = vmatpush1.msra.mxu0 %v295
    %2715 = vmatprep.subr.mxu0 0.0
    %2716 = vmatpush1.msra.mxu0 %v296
    %2717 = vmatprep.subr.mxu0 0.0
    %2718 = vmatpush1.msra.mxu0 %v297
    %2719 = vmatprep.subr.mxu0 0.0
    %2720 = vmatpush1.msra.mxu0 %v298
    %2721 = vmatprep.subr.mxu0 0.0
    %2722 = vmatpush1.msra.mxu0 %v299
    %2723 = vmatprep.subr.mxu0 0.0
    %2724 = vmatpush1.msra.mxu0 %v300
    %2725 = vmatprep.subr.mxu0 0.0
    %2726 = vmatpush1.msra.mxu0 0.0
    %2727 = vmatprep.subr.mxu0 0.0
    %2728 = vmatpush1.msra.mxu0 0.0
    %2729 = vmatprep.subr.mxu0 0.0
    %2730 = vmatpush1.msra.mxu0 0.0
    %2731 = vmatprep.subr.mxu0 0.0
    %2732 = vmatpush1.msra.mxu0 0.0
    %2733 = vmatprep.subr.mxu0 0.0
    %2734 = vmatpush1.msra.mxu0 0.0
    %2735 = vmatprep.subr.mxu0 0.0
    %2736 = vmatpush1.msra.mxu0 0.0
    %2737 = vmatprep.subr.mxu0 0.0
    %2738 = vmatpush1.msra.mxu0 0.0
    %2739 = vmatprep.subr.mxu0 0.0
    %2740 = vmatpush1.msra.mxu0 0.0
    %2741 = vmatprep.subr.mxu0 0.0
    %2742 = vmatpush1.msra.mxu0 0.0
    %2743 = vmatprep.subr.mxu0 0.0
    %2744 = vmatpush1.msra.mxu0 0.0
    %2745 = vmatprep.subr.mxu0 0.0
    %2746 = vmatpush1.msra.mxu0 0.0
    %2747 = vmatprep.subr.mxu0 0.0
    %2748 = vmatpush1.msra.mxu0 0.0
    %2749 = vmatprep.subr.mxu0 0.0
    %2750 = vmatpush1.msra.mxu0 0.0
    %2751 = vmatprep.subr.mxu0 0.0
    %2752 = vmatpush1.msra.mxu0 0.0
    %2753 = vmatprep.subr.mxu0 0.0
    %2754 = vmatpush1.msra.mxu0 0.0
    %2755 = vmatprep.subr.mxu0 0.0
    %2756 = vmatpush1.msra.mxu0 0.0
    %2757 = vmatprep.mubr.f32.mxu0 0.0
    %2758 = vmatmul.mubr.f32.gmra.mrb[0].mxu0 %v2685
    %v2759 = vpop.f32.mrb[0].mxu0
    %v2760 = vadd.f32 %v2691, %v2759
    %v2761 = vpop.f32.mrb[0].mxu0
    %2762 = vmatprep.mubr.f32.mxu0 0.0
    %2763 = vmatmul.mubr.f32.gmra.mrb[0].mxu0 %v2686
    %v2764 = vpop.f32.mrb[0].mxu0
    %v2765 = vadd.f32 %v2691, %v2764
    %v2766 = vpop.f32.mrb[0].mxu0
    %2767 = vdwg.mxu0
    %v2768 = vadd.f32 %v2580, %v2760
    %v2769 = vadd.f32 %v2581, %v2765
    %v2770 = vsel %vm310, %v2768, 0.0
    %2771 = vadd.xlane.f32.xlu0 %v2770
    %v2772 = vpop.xlane.xlu0 %2771
    %v2773 = vsel %vm310, %v2769, 0.0
    %2774 = vadd.xlane.f32.xlu0 %v2773
    %v2775 = vpop.xlane.xlu0 %2774
    %v2776 = vmul.f32 %v2772, %v1366
    %v2777 = vmul.f32 %v2775, %v1366
    %v2778 = vsub.f32 %v2768, %v2776
    %v2779 = vsub.f32 %v2769, %v2777
    %v2780 = vmul.f32 %v2778, %v2778
    %v2781 = vmul.f32 %v2779, %v2779
    %v2782 = vsel %vm310, %v2780, 0.0
    %2783 = vadd.xlane.f32.xlu0 %v2782
    %v2784 = vpop.xlane.xlu0 %2783
    %v2785 = vsel %vm310, %v2781, 0.0
    %2786 = vadd.xlane.f32.xlu0 %v2785
    %v2787 = vpop.xlane.xlu0 %2786
    %v2788 = vmul.f32 %v2784, %v1366
    %v2789 = vmul.f32 %v2787, %v1366
    %v2790 = vadd.f32 %v2788, 1e-06
    %v2791 = vadd.f32 %v2789, 1e-06
    %v2792 = vrsqrt.pop %v2790
    %v2793 = vrsqrt.pop %v2791
    %v2794 = vmul.f32 %v2778, %v2792
    %v2795 = vmul.f32 %v2779, %v2793
    %v2797 = vlaneseq
    %v2798 = vshrl.u32 %v2797, 7
    %v2799 = vsub.s32 0, %v2798
    %v2800 = vrot.slane %v302, %v2799
    %v2802 = vmul.f32 %v2794, %v2800
    %v2803 = vmul.f32 %v2795, %v2800
    %v2805 = vlaneseq
    %v2806 = vshrl.u32 %v2805, 7
    %v2807 = vsub.s32 0, %v2806
    %v2808 = vrot.slane %v303, %v2807
    %v2810 = vadd.f32 %v2802, %v2808
    %v2811 = vadd.f32 %v2803, %v2808
    %s2812 = scalar_lea.vmem %s6, 32
    %v2813 = vld [vmem:[%s2812] sm:$0xff]
    %v2814 = vld [vmem:[%s2812 + $0x8] sm:$0xff]
    %v2815 = vld [vmem:[%s2812 + $0x10] sm:$0xff]
    %v2816 = vld [vmem:[%s2812 + $0x18] sm:$0xff]
    %s2817 = scalar_lea.vmem %s7, 1
    %v2818 = vld [vmem:[%s2817] sm:$0x1]
    %s2819 = scalar_lea.vmem %s8, 32
    %v2820 = vld [vmem:[%s2819] sm:$0xff]
    %v2821 = vld [vmem:[%s2819 + $0x8] sm:$0xff]
    %v2822 = vld [vmem:[%s2819 + $0x10] sm:$0xff]
    %v2823 = vld [vmem:[%s2819 + $0x18] sm:$0xff]
    %s2824 = scalar_lea.vmem %s9, 1
    %v2825 = vld [vmem:[%s2824] sm:$0x1]
    %s2826 = scalar_lea.vmem %s10, 1
    %v2827 = vld [vmem:[%s2826] sm:$0x1]
    %s2828 = scalar_lea.vmem %s11, 1
    %v2829 = vld [vmem:[%s2828] sm:$0x1]
    %s2830 = scalar_lea.vmem %s12, 32
    %v2831 = vld [vmem:[%s2830] sm:$0xff]
    %v2832 = vld [vmem:[%s2830 + $0x8] sm:$0xff]
    %v2833 = vld [vmem:[%s2830 + $0x10] sm:$0xff]
    %v2834 = vld [vmem:[%s2830 + $0x18] sm:$0xff]
    %s2835 = scalar_lea.vmem %s13, 1
    %v2836 = vld [vmem:[%s2835] sm:$0x1]
    %s2837 = scalar_lea.vmem %s14, 32
    %v2838 = vld [vmem:[%s2837] sm:$0xff]
    %v2839 = vld [vmem:[%s2837 + $0x8] sm:$0xff]
    %v2840 = vld [vmem:[%s2837 + $0x10] sm:$0xff]
    %v2841 = vld [vmem:[%s2837 + $0x18] sm:$0xff]
    %s2842 = scalar_lea.vmem %s15, 1
    %v2843 = vld [vmem:[%s2842] sm:$0x1]
    %s2844 = scalar_lea.vmem %s16, 32
    %v2845 = vld [vmem:[%s2844] sm:$0xff]
    %v2846 = vld [vmem:[%s2844 + $0x8] sm:$0xff]
    %v2847 = vld [vmem:[%s2844 + $0x10] sm:$0xff]
    %v2848 = vld [vmem:[%s2844 + $0x18] sm:$0xff]
    %s2849 = scalar_lea.vmem %s17, 1
    %v2850 = vld [vmem:[%s2849] sm:$0x1]
    %s2851 = scalar_lea.vmem %s18, 1
    %v2852 = vld [vmem:[%s2851] sm:$0x1]
    %s2853 = scalar_lea.vmem %s19, 1
    %v2854 = vld [vmem:[%s2853] sm:$0x1]
    %s2855 = scalar_lea.vmem %s20, 32
    %v2856 = vld [vmem:[%s2855] sm:$0xff]
    %v2857 = vld [vmem:[%s2855 + $0x8] sm:$0xff]
    %v2858 = vld [vmem:[%s2855 + $0x10] sm:$0xff]
    %v2859 = vld [vmem:[%s2855 + $0x18] sm:$0xff]
    %s2860 = scalar_lea.vmem %s21, 1
    %v2861 = vld [vmem:[%s2860] sm:$0x1]
    %s2862 = scalar_lea.vmem %s22, 128
    %v2863 = vld [vmem:[%s2862] sm:$0xff]
    %v2864 = vld [vmem:[%s2862 + $0x8] sm:$0xff]
    %v2865 = vld [vmem:[%s2862 + $0x10] sm:$0xff]
    %v2866 = vld [vmem:[%s2862 + $0x18] sm:$0xff]
    %v2867 = vld [vmem:[%s2862 + $0x20] sm:$0xff]
    %v2868 = vld [vmem:[%s2862 + $0x28] sm:$0xff]
    %v2869 = vld [vmem:[%s2862 + $0x30] sm:$0xff]
    %v2870 = vld [vmem:[%s2862 + $0x38] sm:$0xff]
    %v2871 = vld [vmem:[%s2862 + $0x40] sm:$0xff]
    %v2872 = vld [vmem:[%s2862 + $0x48] sm:$0xff]
    %v2873 = vld [vmem:[%s2862 + $0x50] sm:$0xff]
    %v2874 = vld [vmem:[%s2862 + $0x58] sm:$0xff]
    %v2875 = vld [vmem:[%s2862 + $0x60] sm:$0xff]
    %v2876 = vld [vmem:[%s2862 + $0x68] sm:$0xff]
    %v2877 = vld [vmem:[%s2862 + $0x70] sm:$0xff]
    %v2878 = vld [vmem:[%s2862 + $0x78] sm:$0xff]
    %s2879 = scalar_lea.vmem %s23, 1
    %v2880 = vld [vmem:[%s2879] sm:$0x1]
    %s2881 = scalar_lea.vmem %s24, 1
    %v2882 = vld [vmem:[%s2881] sm:$0x1]
    %s2883 = scalar_lea.vmem %s25, 1
    %v2884 = vld [vmem:[%s2883] sm:$0x1]
    %v2886 = vlaneseq
    %v2887 = vshrl.u32 %v2886, 7
    %v2888 = vsub.s32 0, %v2887
    %v2889 = vrot.slane %v2818, %v2888
    %v2892 = vsel %vm310, %v2810, 0
    %v2895 = vsel %vm310, %v2811, 0
    %2897 = vmatprep.subr.mxu0 0.0
    %2898 = vmatpush1.msra.mxu0 %v2813
    %2899 = vmatprep.subr.mxu0 0.0
    %2900 = vmatpush1.msra.mxu0 %v2814
    %2901 = vmatprep.subr.mxu0 0.0
    %2902 = vmatpush1.msra.mxu0 %v2815
    %2903 = vmatprep.subr.mxu0 0.0
    %2904 = vmatpush1.msra.mxu0 %v2816
    %2905 = vmatprep.subr.mxu0 0.0
    %2906 = vmatpush1.msra.mxu0 0.0
    %2907 = vmatprep.subr.mxu0 0.0
    %2908 = vmatpush1.msra.mxu0 0.0
    %2909 = vmatprep.subr.mxu0 0.0
    %2910 = vmatpush1.msra.mxu0 0.0
    %2911 = vmatprep.subr.mxu0 0.0
    %2912 = vmatpush1.msra.mxu0 0.0
    %2913 = vmatprep.subr.mxu0 0.0
    %2914 = vmatpush1.msra.mxu0 0.0
    %2915 = vmatprep.subr.mxu0 0.0
    %2916 = vmatpush1.msra.mxu0 0.0
    %2917 = vmatprep.subr.mxu0 0.0
    %2918 = vmatpush1.msra.mxu0 0.0
    %2919 = vmatprep.subr.mxu0 0.0
    %2920 = vmatpush1.msra.mxu0 0.0
    %2921 = vmatprep.subr.mxu0 0.0
    %2922 = vmatpush1.msra.mxu0 0.0
    %2923 = vmatprep.subr.mxu0 0.0
    %2924 = vmatpush1.msra.mxu0 0.0
    %2925 = vmatprep.subr.mxu0 0.0
    %2926 = vmatpush1.msra.mxu0 0.0
    %2927 = vmatprep.subr.mxu0 0.0
    %2928 = vmatpush1.msra.mxu0 0.0
    %2929 = vmatprep.subr.mxu0 0.0
    %2930 = vmatpush1.msra.mxu0 0.0
    %2931 = vmatprep.subr.mxu0 0.0
    %2932 = vmatpush1.msra.mxu0 0.0
    %2933 = vmatprep.subr.mxu0 0.0
    %2934 = vmatpush1.msra.mxu0 0.0
    %2935 = vmatprep.subr.mxu0 0.0
    %2936 = vmatpush1.msra.mxu0 0.0
    %2937 = vmatprep.subr.mxu0 0.0
    %2938 = vmatpush1.msra.mxu0 0.0
    %2939 = vmatprep.subr.mxu0 0.0
    %2940 = vmatpush1.msra.mxu0 0.0
    %2941 = vmatprep.subr.mxu0 0.0
    %2942 = vmatpush1.msra.mxu0 0.0
    %2943 = vmatprep.subr.mxu0 0.0
    %2944 = vmatpush1.msra.mxu0 0.0
    %2945 = vmatprep.subr.mxu0 0.0
    %2946 = vmatpush1.msra.mxu0 0.0
    %2947 = vmatprep.subr.mxu0 0.0
    %2948 = vmatpush1.msra.mxu0 0.0
    %2949 = vmatprep.subr.mxu0 0.0
    %2950 = vmatpush1.msra.mxu0 0.0
    %2951 = vmatprep.subr.mxu0 0.0
    %2952 = vmatpush1.msra.mxu0 0.0
    %2953 = vmatprep.subr.mxu0 0.0
    %2954 = vmatpush1.msra.mxu0 0.0
    %2955 = vmatprep.subr.mxu0 0.0
    %2956 = vmatpush1.msra.mxu0 0.0
    %2957 = vmatprep.subr.mxu0 0.0
    %2958 = vmatpush1.msra.mxu0 0.0
    %2959 = vmatprep.subr.mxu0 0.0
    %2960 = vmatpush1.msra.mxu0 0.0
    %2961 = vmatprep.mubr.f32.mxu0 0.0
    %2962 = vmatmul.mubr.f32.gmra.mrb[0].mxu0 %v2892
    %v2963 = vpop.f32.mrb[0].mxu0
    %v2964 = vadd.f32 %v2889, %v2963
    %v2965 = vpop.f32.mrb[0].mxu0
    %2966 = vmatprep.mubr.f32.mxu0 0.0
    %2967 = vmatmul.mubr.f32.gmra.mrb[0].mxu0 %v2895
    %v2968 = vpop.f32.mrb[0].mxu0
    %v2969 = vadd.f32 %v2889, %v2968
    %v2970 = vpop.f32.mrb[0].mxu0
    %2971 = vdwg.mxu0
    %2974 = vrot.lane.b32.xlu0 %v2964, 120
    %v2975 = vpop.permute.xlu0 %2974
    %2976 = vrot.lane.b32.xlu0 %v2969, 120
    %v2977 = vpop.permute.xlu0 %2976
    %2978 = vrot.lane.b32.xlu0 %v2964, 112
    %v2979 = vpop.permute.xlu0 %2978
    %2980 = vrot.lane.b32.xlu0 %v2969, 112
    %v2981 = vpop.permute.xlu0 %2980
    %2982 = vrot.lane.b32.xlu0 %v2964, 104
    %v2983 = vpop.permute.xlu0 %2982
    %2984 = vrot.lane.b32.xlu0 %v2969, 104
    %v2985 = vpop.permute.xlu0 %2984
    %2986 = vrot.lane.b32.xlu0 %v2964, 96
    %v2987 = vpop.permute.xlu0 %2986
    %2988 = vrot.lane.b32.xlu0 %v2969, 96
    %v2989 = vpop.permute.xlu0 %2988
    %v2990 = vsel %vm410, %v2964, 0
    %v2992 = vsel %vm410, %v2969, 0
    %v2994 = vsel %vm410, %v2987, 0
    %v2996 = vsel %vm410, %v2989, 0
    %2998 = vmatprep.subr.mxu0 0.0
    %2999 = vmatpush1.xpose.msra.mxu0 %v2994
    %3000 = vmatprep.subr.mxu0 0.0
    %3001 = vmatpush1.xpose.msra.mxu0 %v2996
    %3002 = vmatprep.subr.mxu0 0.0
    %3003 = vmatpush1.xpose.msra.mxu0 0.0
    %3004 = vmatprep.subr.mxu0 0.0
    %3005 = vmatpush1.xpose.msra.mxu0 0.0
    %3006 = vmatprep.subr.mxu0 0.0
    %3007 = vmatpush1.xpose.msra.mxu0 0.0
    %3008 = vmatprep.subr.mxu0 0.0
    %3009 = vmatpush1.xpose.msra.mxu0 0.0
    %3010 = vmatprep.subr.mxu0 0.0
    %3011 = vmatpush1.xpose.msra.mxu0 0.0
    %3012 = vmatprep.subr.mxu0 0.0
    %3013 = vmatpush1.xpose.msra.mxu0 0.0
    %3014 = vmatprep.subr.mxu0 0.0
    %3015 = vmatpush1.xpose.msra.mxu0 0.0
    %3016 = vmatprep.subr.mxu0 0.0
    %3017 = vmatpush1.xpose.msra.mxu0 0.0
    %3018 = vmatprep.subr.mxu0 0.0
    %3019 = vmatpush1.xpose.msra.mxu0 0.0
    %3020 = vmatprep.subr.mxu0 0.0
    %3021 = vmatpush1.xpose.msra.mxu0 0.0
    %3022 = vmatprep.subr.mxu0 0.0
    %3023 = vmatpush1.xpose.msra.mxu0 0.0
    %3024 = vmatprep.subr.mxu0 0.0
    %3025 = vmatpush1.xpose.msra.mxu0 0.0
    %3026 = vmatprep.subr.mxu0 0.0
    %3027 = vmatpush1.xpose.msra.mxu0 0.0
    %3028 = vmatprep.subr.mxu0 0.0
    %3029 = vmatpush1.xpose.msra.mxu0 0.0
    %3030 = vmatprep.subr.mxu0 0.0
    %3031 = vmatpush1.xpose.msra.mxu0 0.0
    %3032 = vmatprep.subr.mxu0 0.0
    %3033 = vmatpush1.xpose.msra.mxu0 0.0
    %3034 = vmatprep.subr.mxu0 0.0
    %3035 = vmatpush1.xpose.msra.mxu0 0.0
    %3036 = vmatprep.subr.mxu0 0.0
    %3037 = vmatpush1.xpose.msra.mxu0 0.0
    %3038 = vmatprep.subr.mxu0 0.0
    %3039 = vmatpush1.xpose.msra.mxu0 0.0
    %3040 = vmatprep.subr.mxu0 0.0
    %3041 = vmatpush1.xpose.msra.mxu0 0.0
    %3042 = vmatprep.subr.mxu0 0.0
    %3043 = vmatpush1.xpose.msra.mxu0 0.0
    %3044 = vmatprep.subr.mxu0 0.0
    %3045 = vmatpush1.xpose.msra.mxu0 0.0
    %3046 = vmatprep.subr.mxu0 0.0
    %3047 = vmatpush1.xpose.msra.mxu0 0.0
    %3048 = vmatprep.subr.mxu0 0.0
    %3049 = vmatpush1.xpose.msra.mxu0 0.0
    %3050 = vmatprep.subr.mxu0 0.0
    %3051 = vmatpush1.xpose.msra.mxu0 0.0
    %3052 = vmatprep.subr.mxu0 0.0
    %3053 = vmatpush1.xpose.msra.mxu0 0.0
    %3054 = vmatprep.subr.mxu0 0.0
    %3055 = vmatpush1.xpose.msra.mxu0 0.0
    %3056 = vmatprep.subr.mxu0 0.0
    %3057 = vmatpush1.xpose.msra.mxu0 0.0
    %3058 = vmatprep.subr.mxu0 0.0
    %3059 = vmatpush1.xpose.msra.mxu0 0.0
    %3060 = vmatprep.subr.mxu0 0.0
    %3061 = vmatpush1.xpose.msra.mxu0 0.0
    %3062 = vmatprep.mubr.f32.mxu0 0.0
    %3063 = vmatmul.mubr.f32.gmra.mrb[0].mxu0 %v2990
    %v3064 = vpop.f32.mrb[0].mxu0
    %v3065 = vadd.f32 0.0, %v3064
    %v3066 = vpop.f32.mrb[0].mxu0
    %3067 = vmatprep.mubr.f32.mxu0 0.0
    %3068 = vmatmul.mubr.f32.gmra.mrb[0].mxu0 %v2992
    %v3069 = vpop.f32.mrb[0].mxu0
    %v3070 = vadd.f32 0.0, %v3069
    %v3071 = vpop.f32.mrb[0].mxu0
    %3072 = vdwg.mxu0
    %3073 = vrot.lane.b32.xlu0 %v2975, 96
    %v3074 = vpop.permute.xlu0 %3073
    %3075 = vrot.lane.b32.xlu0 %v2977, 96
    %v3076 = vpop.permute.xlu0 %3075
    %v3077 = vsel %vm410, %v2975, 0
    %v3079 = vsel %vm410, %v2977, 0
    %v3081 = vsel %vm410, %v3074, 0
    %v3083 = vsel %vm410, %v3076, 0
    %3085 = vmatprep.subr.mxu0 0.0
    %3086 = vmatpush1.xpose.msra.mxu0 %v3081
    %3087 = vmatprep.subr.mxu0 0.0
    %3088 = vmatpush1.xpose.msra.mxu0 %v3083
    %3089 = vmatprep.subr.mxu0 0.0
    %3090 = vmatpush1.xpose.msra.mxu0 0.0
    %3091 = vmatprep.subr.mxu0 0.0
    %3092 = vmatpush1.xpose.msra.mxu0 0.0
    %3093 = vmatprep.subr.mxu0 0.0
    %3094 = vmatpush1.xpose.msra.mxu0 0.0
    %3095 = vmatprep.subr.mxu0 0.0
    %3096 = vmatpush1.xpose.msra.mxu0 0.0
    %3097 = vmatprep.subr.mxu0 0.0
    %3098 = vmatpush1.xpose.msra.mxu0 0.0
    %3099 = vmatprep.subr.mxu0 0.0
    %3100 = vmatpush1.xpose.msra.mxu0 0.0
    %3101 = vmatprep.subr.mxu0 0.0
    %3102 = vmatpush1.xpose.msra.mxu0 0.0
    %3103 = vmatprep.subr.mxu0 0.0
    %3104 = vmatpush1.xpose.msra.mxu0 0.0
    %3105 = vmatprep.subr.mxu0 0.0
    %3106 = vmatpush1.xpose.msra.mxu0 0.0
    %3107 = vmatprep.subr.mxu0 0.0
    %3108 = vmatpush1.xpose.msra.mxu0 0.0
    %3109 = vmatprep.subr.mxu0 0.0
    %3110 = vmatpush1.xpose.msra.mxu0 0.0
    %3111 = vmatprep.subr.mxu0 0.0
    %3112 = vmatpush1.xpose.msra.mxu0 0.0
    %3113 = vmatprep.subr.mxu0 0.0
    %3114 = vmatpush1.xpose.msra.mxu0 0.0
    %3115 = vmatprep.subr.mxu0 0.0
    %3116 = vmatpush1.xpose.msra.mxu0 0.0
    %3117 = vmatprep.subr.mxu0 0.0
    %3118 = vmatpush1.xpose.msra.mxu0 0.0
    %3119 = vmatprep.subr.mxu0 0.0
    %3120 = vmatpush1.xpose.msra.mxu0 0.0
    %3121 = vmatprep.subr.mxu0 0.0
    %3122 = vmatpush1.xpose.msra.mxu0 0.0
    %3123 = vmatprep.subr.mxu0 0.0
    %3124 = vmatpush1.xpose.msra.mxu0 0.0
    %3125 = vmatprep.subr.mxu0 0.0
    %3126 = vmatpush1.xpose.msra.mxu0 0.0
    %3127 = vmatprep.subr.mxu0 0.0
    %3128 = vmatpush1.xpose.msra.mxu0 0.0
    %3129 = vmatprep.subr.mxu0 0.0
    %3130 = vmatpush1.xpose.msra.mxu0 0.0
    %3131 = vmatprep.subr.mxu0 0.0
    %3132 = vmatpush1.xpose.msra.mxu0 0.0
    %3133 = vmatprep.subr.mxu0 0.0
    %3134 = vmatpush1.xpose.msra.mxu0 0.0
    %3135 = vmatprep.subr.mxu0 0.0
    %3136 = vmatpush1.xpose.msra.mxu0 0.0
    %3137 = vmatprep.subr.mxu0 0.0
    %3138 = vmatpush1.xpose.msra.mxu0 0.0
    %3139 = vmatprep.subr.mxu0 0.0
    %3140 = vmatpush1.xpose.msra.mxu0 0.0
    %3141 = vmatprep.subr.mxu0 0.0
    %3142 = vmatpush1.xpose.msra.mxu0 0.0
    %3143 = vmatprep.subr.mxu0 0.0
    %3144 = vmatpush1.xpose.msra.mxu0 0.0
    %3145 = vmatprep.subr.mxu0 0.0
    %3146 = vmatpush1.xpose.msra.mxu0 0.0
    %3147 = vmatprep.subr.mxu0 0.0
    %3148 = vmatpush1.xpose.msra.mxu0 0.0
    %3149 = vmatprep.mubr.f32.mxu0 0.0
    %3150 = vmatmul.mubr.f32.gmra.mrb[0].mxu0 %v3077
    %v3151 = vpop.f32.mrb[0].mxu0
    %v3152 = vadd.f32 0.0, %v3151
    %v3153 = vpop.f32.mrb[0].mxu0
    %3154 = vmatprep.mubr.f32.mxu0 0.0
    %3155 = vmatmul.mubr.f32.gmra.mrb[0].mxu0 %v3079
    %v3156 = vpop.f32.mrb[0].mxu0
    %v3157 = vadd.f32 0.0, %v3156
    %v3158 = vpop.f32.mrb[0].mxu0
    %3159 = vdwg.mxu0
    %3160 = vrot.lane.b32.xlu0 %v2979, 96
    %v3161 = vpop.permute.xlu0 %3160
    %3162 = vrot.lane.b32.xlu0 %v2981, 96
    %v3163 = vpop.permute.xlu0 %3162
    %v3164 = vsel %vm410, %v2979, 0
    %v3166 = vsel %vm410, %v2981, 0
    %v3168 = vsel %vm410, %v3161, 0
    %v3170 = vsel %vm410, %v3163, 0
    %3172 = vmatprep.subr.mxu0 0.0
    %3173 = vmatpush1.xpose.msra.mxu0 %v3168
    %3174 = vmatprep.subr.mxu0 0.0
    %3175 = vmatpush1.xpose.msra.mxu0 %v3170
    %3176 = vmatprep.subr.mxu0 0.0
    %3177 = vmatpush1.xpose.msra.mxu0 0.0
    %3178 = vmatprep.subr.mxu0 0.0
    %3179 = vmatpush1.xpose.msra.mxu0 0.0
    %3180 = vmatprep.subr.mxu0 0.0
    %3181 = vmatpush1.xpose.msra.mxu0 0.0
    %3182 = vmatprep.subr.mxu0 0.0
    %3183 = vmatpush1.xpose.msra.mxu0 0.0
    %3184 = vmatprep.subr.mxu0 0.0
    %3185 = vmatpush1.xpose.msra.mxu0 0.0
    %3186 = vmatprep.subr.mxu0 0.0
    %3187 = vmatpush1.xpose.msra.mxu0 0.0
    %3188 = vmatprep.subr.mxu0 0.0
    %3189 = vmatpush1.xpose.msra.mxu0 0.0
    %3190 = vmatprep.subr.mxu0 0.0
    %3191 = vmatpush1.xpose.msra.mxu0 0.0
    %3192 = vmatprep.subr.mxu0 0.0
    %3193 = vmatpush1.xpose.msra.mxu0 0.0
    %3194 = vmatprep.subr.mxu0 0.0
    %3195 = vmatpush1.xpose.msra.mxu0 0.0
    %3196 = vmatprep.subr.mxu0 0.0
    %3197 = vmatpush1.xpose.msra.mxu0 0.0
    %3198 = vmatprep.subr.mxu0 0.0
    %3199 = vmatpush1.xpose.msra.mxu0 0.0
    %3200 = vmatprep.subr.mxu0 0.0
    %3201 = vmatpush1.xpose.msra.mxu0 0.0
    %3202 = vmatprep.subr.mxu0 0.0
    %3203 = vmatpush1.xpose.msra.mxu0 0.0
    %3204 = vmatprep.subr.mxu0 0.0
    %3205 = vmatpush1.xpose.msra.mxu0 0.0
    %3206 = vmatprep.subr.mxu0 0.0
    %3207 = vmatpush1.xpose.msra.mxu0 0.0
    %3208 = vmatprep.subr.mxu0 0.0
    %3209 = vmatpush1.xpose.msra.mxu0 0.0
    %3210 = vmatprep.subr.mxu0 0.0
    %3211 = vmatpush1.xpose.msra.mxu0 0.0
    %3212 = vmatprep.subr.mxu0 0.0
    %3213 = vmatpush1.xpose.msra.mxu0 0.0
    %3214 = vmatprep.subr.mxu0 0.0
    %3215 = vmatpush1.xpose.msra.mxu0 0.0
    %3216 = vmatprep.subr.mxu0 0.0
    %3217 = vmatpush1.xpose.msra.mxu0 0.0
    %3218 = vmatprep.subr.mxu0 0.0
    %3219 = vmatpush1.xpose.msra.mxu0 0.0
    %3220 = vmatprep.subr.mxu0 0.0
    %3221 = vmatpush1.xpose.msra.mxu0 0.0
    %3222 = vmatprep.subr.mxu0 0.0
    %3223 = vmatpush1.xpose.msra.mxu0 0.0
    %3224 = vmatprep.subr.mxu0 0.0
    %3225 = vmatpush1.xpose.msra.mxu0 0.0
    %3226 = vmatprep.subr.mxu0 0.0
    %3227 = vmatpush1.xpose.msra.mxu0 0.0
    %3228 = vmatprep.subr.mxu0 0.0
    %3229 = vmatpush1.xpose.msra.mxu0 0.0
    %3230 = vmatprep.subr.mxu0 0.0
    %3231 = vmatpush1.xpose.msra.mxu0 0.0
    %3232 = vmatprep.subr.mxu0 0.0
    %3233 = vmatpush1.xpose.msra.mxu0 0.0
    %3234 = vmatprep.subr.mxu0 0.0
    %3235 = vmatpush1.xpose.msra.mxu0 0.0
    %3236 = vmatprep.mubr.f32.mxu0 0.0
    %3237 = vmatmul.mubr.f32.gmra.mrb[0].mxu0 %v3164
    %v3238 = vpop.f32.mrb[0].mxu0
    %v3239 = vadd.f32 0.0, %v3238
    %v3240 = vpop.f32.mrb[0].mxu0
    %3241 = vmatprep.mubr.f32.mxu0 0.0
    %3242 = vmatmul.mubr.f32.gmra.mrb[0].mxu0 %v3166
    %v3243 = vpop.f32.mrb[0].mxu0
    %v3244 = vadd.f32 0.0, %v3243
    %v3245 = vpop.f32.mrb[0].mxu0
    %3246 = vdwg.mxu0
    %3247 = vrot.lane.b32.xlu0 %v2983, 96
    %v3248 = vpop.permute.xlu0 %3247
    %3249 = vrot.lane.b32.xlu0 %v2985, 96
    %v3250 = vpop.permute.xlu0 %3249
    %v3251 = vsel %vm410, %v2983, 0
    %v3253 = vsel %vm410, %v2985, 0
    %v3255 = vsel %vm410, %v3248, 0
    %v3257 = vsel %vm410, %v3250, 0
    %3259 = vmatprep.subr.mxu0 0.0
    %3260 = vmatpush1.xpose.msra.mxu0 %v3255
    %3261 = vmatprep.subr.mxu0 0.0
    %3262 = vmatpush1.xpose.msra.mxu0 %v3257
    %3263 = vmatprep.subr.mxu0 0.0
    %3264 = vmatpush1.xpose.msra.mxu0 0.0
    %3265 = vmatprep.subr.mxu0 0.0
    %3266 = vmatpush1.xpose.msra.mxu0 0.0
    %3267 = vmatprep.subr.mxu0 0.0
    %3268 = vmatpush1.xpose.msra.mxu0 0.0
    %3269 = vmatprep.subr.mxu0 0.0
    %3270 = vmatpush1.xpose.msra.mxu0 0.0
    %3271 = vmatprep.subr.mxu0 0.0
    %3272 = vmatpush1.xpose.msra.mxu0 0.0
    %3273 = vmatprep.subr.mxu0 0.0
    %3274 = vmatpush1.xpose.msra.mxu0 0.0
    %3275 = vmatprep.subr.mxu0 0.0
    %3276 = vmatpush1.xpose.msra.mxu0 0.0
    %3277 = vmatprep.subr.mxu0 0.0
    %3278 = vmatpush1.xpose.msra.mxu0 0.0
    %3279 = vmatprep.subr.mxu0 0.0
    %3280 = vmatpush1.xpose.msra.mxu0 0.0
    %3281 = vmatprep.subr.mxu0 0.0
    %3282 = vmatpush1.xpose.msra.mxu0 0.0
    %3283 = vmatprep.subr.mxu0 0.0
    %3284 = vmatpush1.xpose.msra.mxu0 0.0
    %3285 = vmatprep.subr.mxu0 0.0
    %3286 = vmatpush1.xpose.msra.mxu0 0.0
    %3287 = vmatprep.subr.mxu0 0.0
    %3288 = vmatpush1.xpose.msra.mxu0 0.0
    %3289 = vmatprep.subr.mxu0 0.0
    %3290 = vmatpush1.xpose.msra.mxu0 0.0
    %3291 = vmatprep.subr.mxu0 0.0
    %3292 = vmatpush1.xpose.msra.mxu0 0.0
    %3293 = vmatprep.subr.mxu0 0.0
    %3294 = vmatpush1.xpose.msra.mxu0 0.0
    %3295 = vmatprep.subr.mxu0 0.0
    %3296 = vmatpush1.xpose.msra.mxu0 0.0
    %3297 = vmatprep.subr.mxu0 0.0
    %3298 = vmatpush1.xpose.msra.mxu0 0.0
    %3299 = vmatprep.subr.mxu0 0.0
    %3300 = vmatpush1.xpose.msra.mxu0 0.0
    %3301 = vmatprep.subr.mxu0 0.0
    %3302 = vmatpush1.xpose.msra.mxu0 0.0
    %3303 = vmatprep.subr.mxu0 0.0
    %3304 = vmatpush1.xpose.msra.mxu0 0.0
    %3305 = vmatprep.subr.mxu0 0.0
    %3306 = vmatpush1.xpose.msra.mxu0 0.0
    %3307 = vmatprep.subr.mxu0 0.0
    %3308 = vmatpush1.xpose.msra.mxu0 0.0
    %3309 = vmatprep.subr.mxu0 0.0
    %3310 = vmatpush1.xpose.msra.mxu0 0.0
    %3311 = vmatprep.subr.mxu0 0.0
    %3312 = vmatpush1.xpose.msra.mxu0 0.0
    %3313 = vmatprep.subr.mxu0 0.0
    %3314 = vmatpush1.xpose.msra.mxu0 0.0
    %3315 = vmatprep.subr.mxu0 0.0
    %3316 = vmatpush1.xpose.msra.mxu0 0.0
    %3317 = vmatprep.subr.mxu0 0.0
    %3318 = vmatpush1.xpose.msra.mxu0 0.0
    %3319 = vmatprep.subr.mxu0 0.0
    %3320 = vmatpush1.xpose.msra.mxu0 0.0
    %3321 = vmatprep.subr.mxu0 0.0
    %3322 = vmatpush1.xpose.msra.mxu0 0.0
    %3323 = vmatprep.mubr.f32.mxu0 0.0
    %3324 = vmatmul.mubr.f32.gmra.mrb[0].mxu0 %v3251
    %v3325 = vpop.f32.mrb[0].mxu0
    %v3326 = vadd.f32 0.0, %v3325
    %v3327 = vpop.f32.mrb[0].mxu0
    %3328 = vmatprep.mubr.f32.mxu0 0.0
    %3329 = vmatmul.mubr.f32.gmra.mrb[0].mxu0 %v3253
    %v3330 = vpop.f32.mrb[0].mxu0
    %v3331 = vadd.f32 0.0, %v3330
    %v3332 = vpop.f32.mrb[0].mxu0
    %3333 = vdwg.mxu0
    %v3334 = vmul.f32 %v3065, 0.35355338
    %v3335 = vmul.f32 %v3070, 0.35355338
    %v3336 = vmul.f32 %v3152, 0.35355338
    %v3337 = vmul.f32 %v3157, 0.35355338
    %v3338 = vmul.f32 %v3239, 0.35355338
    %v3339 = vmul.f32 %v3244, 0.35355338
    %v3340 = vmul.f32 %v3326, 0.35355338
    %v3341 = vmul.f32 %v3331, 0.35355338
    %v3342 = vadd.f32 %v3334, %v245
    %v3343 = vadd.f32 %v3335, %v246
    %v3344 = vadd.f32 %v3336, %v245
    %v3345 = vadd.f32 %v3337, %v246
    %v3346 = vadd.f32 %v3338, %v245
    %v3347 = vadd.f32 %v3339, %v246
    %v3348 = vadd.f32 %v3340, %v245
    %v3349 = vadd.f32 %v3341, %v246
    %v3350 = vsel %vm771, %v3342, -inf
    %3351 = vmax.xlane.f32.xlu0 %v3350
    %v3352 = vpop.xlane.xlu0 %3351
    %v3353 = vsel %vm771, %v3343, -inf
    %3354 = vmax.xlane.f32.xlu0 %v3353
    %v3355 = vpop.xlane.xlu0 %3354
    %v3356 = vsel %vm771, %v3344, -inf
    %3357 = vmax.xlane.f32.xlu0 %v3356
    %v3358 = vpop.xlane.xlu0 %3357
    %v3359 = vsel %vm771, %v3345, -inf
    %3360 = vmax.xlane.f32.xlu0 %v3359
    %v3361 = vpop.xlane.xlu0 %3360
    %v3362 = vsel %vm771, %v3346, -inf
    %3363 = vmax.xlane.f32.xlu0 %v3362
    %v3364 = vpop.xlane.xlu0 %3363
    %v3365 = vsel %vm771, %v3347, -inf
    %3366 = vmax.xlane.f32.xlu0 %v3365
    %v3367 = vpop.xlane.xlu0 %3366
    %v3368 = vsel %vm771, %v3348, -inf
    %3369 = vmax.xlane.f32.xlu0 %v3368
    %v3370 = vpop.xlane.xlu0 %3369
    %v3371 = vsel %vm771, %v3349, -inf
    %3372 = vmax.xlane.f32.xlu0 %v3371
    %v3373 = vpop.xlane.xlu0 %3372
    %v3374 = vsub.f32 %v3342, %v3352
    %v3375 = vsub.f32 %v3343, %v3355
    %v3376 = vsub.f32 %v3344, %v3358
    %v3377 = vsub.f32 %v3345, %v3361
    %v3378 = vsub.f32 %v3346, %v3364
    %v3379 = vsub.f32 %v3347, %v3367
    %v3380 = vsub.f32 %v3348, %v3370
    %v3381 = vsub.f32 %v3349, %v3373
    %v3382 = vmul.f32 %v3374, 1.442695
    %v3383 = vpow.pop %v3382
    %v3384 = vmul.f32 %v3375, 1.442695
    %v3385 = vpow.pop %v3384
    %v3386 = vmul.f32 %v3376, 1.442695
    %v3387 = vpow.pop %v3386
    %v3388 = vmul.f32 %v3377, 1.442695
    %v3389 = vpow.pop %v3388
    %v3390 = vmul.f32 %v3378, 1.442695
    %v3391 = vpow.pop %v3390
    %v3392 = vmul.f32 %v3379, 1.442695
    %v3393 = vpow.pop %v3392
    %v3394 = vmul.f32 %v3380, 1.442695
    %v3395 = vpow.pop %v3394
    %v3396 = vmul.f32 %v3381, 1.442695
    %v3397 = vpow.pop %v3396
    %v3398 = vsel %vm771, %v3383, 0.0
    %3399 = vadd.xlane.f32.xlu0 %v3398
    %v3400 = vpop.xlane.xlu0 %3399
    %v3401 = vsel %vm771, %v3385, 0.0
    %3402 = vadd.xlane.f32.xlu0 %v3401
    %v3403 = vpop.xlane.xlu0 %3402
    %v3404 = vsel %vm771, %v3387, 0.0
    %3405 = vadd.xlane.f32.xlu0 %v3404
    %v3406 = vpop.xlane.xlu0 %3405
    %v3407 = vsel %vm771, %v3389, 0.0
    %3408 = vadd.xlane.f32.xlu0 %v3407
    %v3409 = vpop.xlane.xlu0 %3408
    %v3410 = vsel %vm771, %v3391, 0.0
    %3411 = vadd.xlane.f32.xlu0 %v3410
    %v3412 = vpop.xlane.xlu0 %3411
    %v3413 = vsel %vm771, %v3393, 0.0
    %3414 = vadd.xlane.f32.xlu0 %v3413
    %v3415 = vpop.xlane.xlu0 %3414
    %v3416 = vsel %vm771, %v3395, 0.0
    %3417 = vadd.xlane.f32.xlu0 %v3416
    %v3418 = vpop.xlane.xlu0 %3417
    %v3419 = vsel %vm771, %v3397, 0.0
    %3420 = vadd.xlane.f32.xlu0 %v3419
    %v3421 = vpop.xlane.xlu0 %3420
    %v3422 = vrcp.pop %v3400
    %v3423 = vrcp.pop %v3403
    %v3424 = vrcp.pop %v3406
    %v3425 = vrcp.pop %v3409
    %v3426 = vrcp.pop %v3412
    %v3427 = vrcp.pop %v3415
    %v3428 = vrcp.pop %v3418
    %v3429 = vrcp.pop %v3421
    %v3430 = vmul.f32 %v3400, %v3422
    %v3431 = vmul.f32 %v3403, %v3423
    %v3432 = vmul.f32 %v3406, %v3424
    %v3433 = vmul.f32 %v3409, %v3425
    %v3434 = vmul.f32 %v3412, %v3426
    %v3435 = vmul.f32 %v3415, %v3427
    %v3436 = vmul.f32 %v3418, %v3428
    %v3437 = vmul.f32 %v3421, %v3429
    %v3438 = vsub.f32 2.0, %v3430
    %v3439 = vsub.f32 2.0, %v3431
    %v3440 = vsub.f32 2.0, %v3432
    %v3441 = vsub.f32 2.0, %v3433
    %v3442 = vsub.f32 2.0, %v3434
    %v3443 = vsub.f32 2.0, %v3435
    %v3444 = vsub.f32 2.0, %v3436
    %v3445 = vsub.f32 2.0, %v3437
    %v3446 = vmul.f32 %v3422, %v3438
    %v3447 = vmul.f32 %v3423, %v3439
    %v3448 = vmul.f32 %v3424, %v3440
    %v3449 = vmul.f32 %v3425, %v3441
    %v3450 = vmul.f32 %v3426, %v3442
    %v3451 = vmul.f32 %v3427, %v3443
    %v3452 = vmul.f32 %v3428, %v3444
    %v3453 = vmul.f32 %v3429, %v3445
    %v3454 = vmul.f32 %v3383, %v3446
    %v3455 = vmul.f32 %v3385, %v3447
    %v3456 = vmul.f32 %v3387, %v3448
    %v3457 = vmul.f32 %v3389, %v3449
    %v3458 = vmul.f32 %v3391, %v3450
    %v3459 = vmul.f32 %v3393, %v3451
    %v3460 = vmul.f32 %v3395, %v3452
    %v3461 = vmul.f32 %v3397, %v3453
    %s3462 = scalar_lea.vmem [#allocation9], 64
    %3463 = vst.msk [vmem:[%s3462] sm:$0xff] %vm771, %v3454
    %3464 = vst.msk [vmem:[%s3462 + $0x8] sm:$0xff] %vm771, %v3455
    %3465 = vst.msk [vmem:[%s3462 + $0x10] sm:$0xff] %vm771, %v3456
    %3466 = vst.msk [vmem:[%s3462 + $0x18] sm:$0xff] %vm771, %v3457
    %3467 = vst.msk [vmem:[%s3462 + $0x20] sm:$0xff] %vm771, %v3458
    %3468 = vst.msk [vmem:[%s3462 + $0x28] sm:$0xff] %vm771, %v3459
    %3469 = vst.msk [vmem:[%s3462 + $0x30] sm:$0xff] %vm771, %v3460
    %3470 = vst.msk [vmem:[%s3462 + $0x38] sm:$0xff] %vm771, %v3461
    %3471 = vrot.lane.b32.xlu0 %v2964, 64
    %v3472 = vpop.permute.xlu0 %3471
    %3473 = vrot.lane.b32.xlu0 %v2969, 64
    %v3474 = vpop.permute.xlu0 %3473
    %v3478 = vsel %vm771, %v3454, 0
    %v3481 = vsel %vm771, %v3455, 0
    %3483 = vmatprep.subr.mxu0 0.0
    %3484 = vmatpush1.msra.mxu0 %v3472
    %3485 = vmatprep.subr.mxu0 0.0
    %3486 = vmatpush1.msra.mxu0 %v3474
    %3487 = vmatprep.subr.mxu0 0.0
    %3488 = vmatpush1.msra.mxu0 0.0
    %3489 = vmatprep.subr.mxu0 0.0
    %3490 = vmatpush1.msra.mxu0 0.0
    %3491 = vmatprep.subr.mxu0 0.0
    %3492 = vmatpush1.msra.mxu0 0.0
    %3493 = vmatprep.subr.mxu0 0.0
    %3494 = vmatpush1.msra.mxu0 0.0
    %3495 = vmatprep.subr.mxu0 0.0
    %3496 = vmatpush1.msra.mxu0 0.0
    %3497 = vmatprep.subr.mxu0 0.0
    %3498 = vmatpush1.msra.mxu0 0.0
    %3499 = vmatprep.subr.mxu0 0.0
    %3500 = vmatpush1.msra.mxu0 0.0
    %3501 = vmatprep.subr.mxu0 0.0
    %3502 = vmatpush1.msra.mxu0 0.0
    %3503 = vmatprep.subr.mxu0 0.0
    %3504 = vmatpush1.msra.mxu0 0.0
    %3505 = vmatprep.subr.mxu0 0.0
    %3506 = vmatpush1.msra.mxu0 0.0
    %3507 = vmatprep.subr.mxu0 0.0
    %3508 = vmatpush1.msra.mxu0 0.0
    %3509 = vmatprep.subr.mxu0 0.0
    %3510 = vmatpush1.msra.mxu0 0.0
    %3511 = vmatprep.subr.mxu0 0.0
    %3512 = vmatpush1.msra.mxu0 0.0
    %3513 = vmatprep.subr.mxu0 0.0
    %3514 = vmatpush1.msra.mxu0 0.0
    %3515 = vmatprep.subr.mxu0 0.0
    %3516 = vmatpush1.msra.mxu0 0.0
    %3517 = vmatprep.subr.mxu0 0.0
    %3518 = vmatpush1.msra.mxu0 0.0
    %3519 = vmatprep.subr.mxu0 0.0
    %3520 = vmatpush1.msra.mxu0 0.0
    %3521 = vmatprep.subr.mxu0 0.0
    %3522 = vmatpush1.msra.mxu0 0.0
    %3523 = vmatprep.subr.mxu0 0.0
    %3524 = vmatpush1.msra.mxu0 0.0
    %3525 = vmatprep.subr.mxu0 0.0
    %3526 = vmatpush1.msra.mxu0 0.0
    %3527 = vmatprep.subr.mxu0 0.0
    %3528 = vmatpush1.msra.mxu0 0.0
    %3529 = vmatprep.subr.mxu0 0.0
    %3530 = vmatpush1.msra.mxu0 0.0
    %3531 = vmatprep.subr.mxu0 0.0
    %3532 = vmatpush1.msra.mxu0 0.0
    %3533 = vmatprep.subr.mxu0 0.0
    %3534 = vmatpush1.msra.mxu0 0.0
    %3535 = vmatprep.subr.mxu0 0.0
    %3536 = vmatpush1.msra.mxu0 0.0
    %3537 = vmatprep.subr.mxu0 0.0
    %3538 = vmatpush1.msra.mxu0 0.0
    %3539 = vmatprep.subr.mxu0 0.0
    %3540 = vmatpush1.msra.mxu0 0.0
    %3541 = vmatprep.subr.mxu0 0.0
    %3542 = vmatpush1.msra.mxu0 0.0
    %3543 = vmatprep.subr.mxu0 0.0
    %3544 = vmatpush1.msra.mxu0 0.0
    %3545 = vmatprep.subr.mxu0 0.0
    %3546 = vmatpush1.msra.mxu0 0.0
    %3547 = vmatprep.mubr.f32.mxu0 0.0
    %3548 = vmatmul.mubr.f32.gmra.mrb[0].mxu0 %v3478
    %v3549 = vpop.f32.mrb[0].mxu0
    %v3550 = vadd.f32 0.0, %v3549
    %v3551 = vpop.f32.mrb[0].mxu0
    %3552 = vmatprep.mubr.f32.mxu0 0.0
    %3553 = vmatmul.mubr.f32.gmra.mrb[0].mxu0 %v3481
    %v3554 = vpop.f32.mrb[0].mxu0
    %v3555 = vadd.f32 0.0, %v3554
    %v3556 = vpop.f32.mrb[0].mxu0
    %3557 = vdwg.mxu0
    %3558 = vrot.lane.b32.xlu0 %v2975, 64
    %v3559 = vpop.permute.xlu0 %3558
    %3560 = vrot.lane.b32.xlu0 %v2977, 64
    %v3561 = vpop.permute.xlu0 %3560
    %v3565 = vsel %vm771, %v3456, 0
    %v3568 = vsel %vm771, %v3457, 0
    %3570 = vmatprep.subr.mxu0 0.0
    %3571 = vmatpush1.msra.mxu0 %v3559
    %3572 = vmatprep.subr.mxu0 0.0
    %3573 = vmatpush1.msra.mxu0 %v3561
    %3574 = vmatprep.subr.mxu0 0.0
    %3575 = vmatpush1.msra.mxu0 0.0
    %3576 = vmatprep.subr.mxu0 0.0
    %3577 = vmatpush1.msra.mxu0 0.0
    %3578 = vmatprep.subr.mxu0 0.0
    %3579 = vmatpush1.msra.mxu0 0.0
    %3580 = vmatprep.subr.mxu0 0.0
    %3581 = vmatpush1.msra.mxu0 0.0
    %3582 = vmatprep.subr.mxu0 0.0
    %3583 = vmatpush1.msra.mxu0 0.0
    %3584 = vmatprep.subr.mxu0 0.0
    %3585 = vmatpush1.msra.mxu0 0.0
    %3586 = vmatprep.subr.mxu0 0.0
    %3587 = vmatpush1.msra.mxu0 0.0
    %3588 = vmatprep.subr.mxu0 0.0
    %3589 = vmatpush1.msra.mxu0 0.0
    %3590 = vmatprep.subr.mxu0 0.0
    %3591 = vmatpush1.msra.mxu0 0.0
    %3592 = vmatprep.subr.mxu0 0.0
    %3593 = vmatpush1.msra.mxu0 0.0
    %3594 = vmatprep.subr.mxu0 0.0
    %3595 = vmatpush1.msra.mxu0 0.0
    %3596 = vmatprep.subr.mxu0 0.0
    %3597 = vmatpush1.msra.mxu0 0.0
    %3598 = vmatprep.subr.mxu0 0.0
    %3599 = vmatpush1.msra.mxu0 0.0
    %3600 = vmatprep.subr.mxu0 0.0
    %3601 = vmatpush1.msra.mxu0 0.0
    %3602 = vmatprep.subr.mxu0 0.0
    %3603 = vmatpush1.msra.mxu0 0.0
    %3604 = vmatprep.subr.mxu0 0.0
    %3605 = vmatpush1.msra.mxu0 0.0
    %3606 = vmatprep.subr.mxu0 0.0
    %3607 = vmatpush1.msra.mxu0 0.0
    %3608 = vmatprep.subr.mxu0 0.0
    %3609 = vmatpush1.msra.mxu0 0.0
    %3610 = vmatprep.subr.mxu0 0.0
    %3611 = vmatpush1.msra.mxu0 0.0
    %3612 = vmatprep.subr.mxu0 0.0
    %3613 = vmatpush1.msra.mxu0 0.0
    %3614 = vmatprep.subr.mxu0 0.0
    %3615 = vmatpush1.msra.mxu0 0.0
    %3616 = vmatprep.subr.mxu0 0.0
    %3617 = vmatpush1.msra.mxu0 0.0
    %3618 = vmatprep.subr.mxu0 0.0
    %3619 = vmatpush1.msra.mxu0 0.0
    %3620 = vmatprep.subr.mxu0 0.0
    %3621 = vmatpush1.msra.mxu0 0.0
    %3622 = vmatprep.subr.mxu0 0.0
    %3623 = vmatpush1.msra.mxu0 0.0
    %3624 = vmatprep.subr.mxu0 0.0
    %3625 = vmatpush1.msra.mxu0 0.0
    %3626 = vmatprep.subr.mxu0 0.0
    %3627 = vmatpush1.msra.mxu0 0.0
    %3628 = vmatprep.subr.mxu0 0.0
    %3629 = vmatpush1.msra.mxu0 0.0
    %3630 = vmatprep.subr.mxu0 0.0
    %3631 = vmatpush1.msra.mxu0 0.0
    %3632 = vmatprep.subr.mxu0 0.0
    %3633 = vmatpush1.msra.mxu0 0.0
    %3634 = vmatprep.mubr.f32.mxu0 0.0
    %3635 = vmatmul.mubr.f32.gmra.mrb[0].mxu0 %v3565
    %v3636 = vpop.f32.mrb[0].mxu0
    %v3637 = vadd.f32 0.0, %v3636
    %v3638 = vpop.f32.mrb[0].mxu0
    %3639 = vmatprep.mubr.f32.mxu0 0.0
    %3640 = vmatmul.mubr.f32.gmra.mrb[0].mxu0 %v3568
    %v3641 = vpop.f32.mrb[0].mxu0
    %v3642 = vadd.f32 0.0, %v3641
    %v3643 = vpop.f32.mrb[0].mxu0
    %3644 = vdwg.mxu0
    %3645 = vrot.lane.b32.xlu0 %v2979, 64
    %v3646 = vpop.permute.xlu0 %3645
    %3647 = vrot.lane.b32.xlu0 %v2981, 64
    %v3648 = vpop.permute.xlu0 %3647
    %v3652 = vsel %vm771, %v3458, 0
    %v3655 = vsel %vm771, %v3459, 0
    %3657 = vmatprep.subr.mxu0 0.0
    %3658 = vmatpush1.msra.mxu0 %v3646
    %3659 = vmatprep.subr.mxu0 0.0
    %3660 = vmatpush1.msra.mxu0 %v3648
    %3661 = vmatprep.subr.mxu0 0.0
    %3662 = vmatpush1.msra.mxu0 0.0
    %3663 = vmatprep.subr.mxu0 0.0
    %3664 = vmatpush1.msra.mxu0 0.0
    %3665 = vmatprep.subr.mxu0 0.0
    %3666 = vmatpush1.msra.mxu0 0.0
    %3667 = vmatprep.subr.mxu0 0.0
    %3668 = vmatpush1.msra.mxu0 0.0
    %3669 = vmatprep.subr.mxu0 0.0
    %3670 = vmatpush1.msra.mxu0 0.0
    %3671 = vmatprep.subr.mxu0 0.0
    %3672 = vmatpush1.msra.mxu0 0.0
    %3673 = vmatprep.subr.mxu0 0.0
    %3674 = vmatpush1.msra.mxu0 0.0
    %3675 = vmatprep.subr.mxu0 0.0
    %3676 = vmatpush1.msra.mxu0 0.0
    %3677 = vmatprep.subr.mxu0 0.0
    %3678 = vmatpush1.msra.mxu0 0.0
    %3679 = vmatprep.subr.mxu0 0.0
    %3680 = vmatpush1.msra.mxu0 0.0
    %3681 = vmatprep.subr.mxu0 0.0
    %3682 = vmatpush1.msra.mxu0 0.0
    %3683 = vmatprep.subr.mxu0 0.0
    %3684 = vmatpush1.msra.mxu0 0.0
    %3685 = vmatprep.subr.mxu0 0.0
    %3686 = vmatpush1.msra.mxu0 0.0
    %3687 = vmatprep.subr.mxu0 0.0
    %3688 = vmatpush1.msra.mxu0 0.0
    %3689 = vmatprep.subr.mxu0 0.0
    %3690 = vmatpush1.msra.mxu0 0.0
    %3691 = vmatprep.subr.mxu0 0.0
    %3692 = vmatpush1.msra.mxu0 0.0
    %3693 = vmatprep.subr.mxu0 0.0
    %3694 = vmatpush1.msra.mxu0 0.0
    %3695 = vmatprep.subr.mxu0 0.0
    %3696 = vmatpush1.msra.mxu0 0.0
    %3697 = vmatprep.subr.mxu0 0.0
    %3698 = vmatpush1.msra.mxu0 0.0
    %3699 = vmatprep.subr.mxu0 0.0
    %3700 = vmatpush1.msra.mxu0 0.0
    %3701 = vmatprep.subr.mxu0 0.0
    %3702 = vmatpush1.msra.mxu0 0.0
    %3703 = vmatprep.subr.mxu0 0.0
    %3704 = vmatpush1.msra.mxu0 0.0
    %3705 = vmatprep.subr.mxu0 0.0
    %3706 = vmatpush1.msra.mxu0 0.0
    %3707 = vmatprep.subr.mxu0 0.0
    %3708 = vmatpush1.msra.mxu0 0.0
    %3709 = vmatprep.subr.mxu0 0.0
    %3710 = vmatpush1.msra.mxu0 0.0
    %3711 = vmatprep.subr.mxu0 0.0
    %3712 = vmatpush1.msra.mxu0 0.0
    %3713 = vmatprep.subr.mxu0 0.0
    %3714 = vmatpush1.msra.mxu0 0.0
    %3715 = vmatprep.subr.mxu0 0.0
    %3716 = vmatpush1.msra.mxu0 0.0
    %3717 = vmatprep.subr.mxu0 0.0
    %3718 = vmatpush1.msra.mxu0 0.0
    %3719 = vmatprep.subr.mxu0 0.0
    %3720 = vmatpush1.msra.mxu0 0.0
    %3721 = vmatprep.mubr.f32.mxu0 0.0
    %3722 = vmatmul.mubr.f32.gmra.mrb[0].mxu0 %v3652
    %v3723 = vpop.f32.mrb[0].mxu0
    %v3724 = vadd.f32 0.0, %v3723
    %v3725 = vpop.f32.mrb[0].mxu0
    %3726 = vmatprep.mubr.f32.mxu0 0.0
    %3727 = vmatmul.mubr.f32.gmra.mrb[0].mxu0 %v3655
    %v3728 = vpop.f32.mrb[0].mxu0
    %v3729 = vadd.f32 0.0, %v3728
    %v3730 = vpop.f32.mrb[0].mxu0
    %3731 = vdwg.mxu0
    %3732 = vrot.lane.b32.xlu0 %v2983, 64
    %v3733 = vpop.permute.xlu0 %3732
    %3734 = vrot.lane.b32.xlu0 %v2985, 64
    %v3735 = vpop.permute.xlu0 %3734
    %v3739 = vsel %vm771, %v3460, 0
    %v3742 = vsel %vm771, %v3461, 0
    %3744 = vmatprep.subr.mxu0 0.0
    %3745 = vmatpush1.msra.mxu0 %v3733
    %3746 = vmatprep.subr.mxu0 0.0
    %3747 = vmatpush1.msra.mxu0 %v3735
    %3748 = vmatprep.subr.mxu0 0.0
    %3749 = vmatpush1.msra.mxu0 0.0
    %3750 = vmatprep.subr.mxu0 0.0
    %3751 = vmatpush1.msra.mxu0 0.0
    %3752 = vmatprep.subr.mxu0 0.0
    %3753 = vmatpush1.msra.mxu0 0.0
    %3754 = vmatprep.subr.mxu0 0.0
    %3755 = vmatpush1.msra.mxu0 0.0
    %3756 = vmatprep.subr.mxu0 0.0
    %3757 = vmatpush1.msra.mxu0 0.0
    %3758 = vmatprep.subr.mxu0 0.0
    %3759 = vmatpush1.msra.mxu0 0.0
    %3760 = vmatprep.subr.mxu0 0.0
    %3761 = vmatpush1.msra.mxu0 0.0
    %3762 = vmatprep.subr.mxu0 0.0
    %3763 = vmatpush1.msra.mxu0 0.0
    %3764 = vmatprep.subr.mxu0 0.0
    %3765 = vmatpush1.msra.mxu0 0.0
    %3766 = vmatprep.subr.mxu0 0.0
    %3767 = vmatpush1.msra.mxu0 0.0
    %3768 = vmatprep.subr.mxu0 0.0
    %3769 = vmatpush1.msra.mxu0 0.0
    %3770 = vmatprep.subr.mxu0 0.0
    %3771 = vmatpush1.msra.mxu0 0.0
    %3772 = vmatprep.subr.mxu0 0.0
    %3773 = vmatpush1.msra.mxu0 0.0
    %3774 = vmatprep.subr.mxu0 0.0
    %3775 = vmatpush1.msra.mxu0 0.0
    %3776 = vmatprep.subr.mxu0 0.0
    %3777 = vmatpush1.msra.mxu0 0.0
    %3778 = vmatprep.subr.mxu0 0.0
    %3779 = vmatpush1.msra.mxu0 0.0
    %3780 = vmatprep.subr.mxu0 0.0
    %3781 = vmatpush1.msra.mxu0 0.0
    %3782 = vmatprep.subr.mxu0 0.0
    %3783 = vmatpush1.msra.mxu0 0.0
    %3784 = vmatprep.subr.mxu0 0.0
    %3785 = vmatpush1.msra.mxu0 0.0
    %3786 = vmatprep.subr.mxu0 0.0
    %3787 = vmatpush1.msra.mxu0 0.0
    %3788 = vmatprep.subr.mxu0 0.0
    %3789 = vmatpush1.msra.mxu0 0.0
    %3790 = vmatprep.subr.mxu0 0.0
    %3791 = vmatpush1.msra.mxu0 0.0
    %3792 = vmatprep.subr.mxu0 0.0
    %3793 = vmatpush1.msra.mxu0 0.0
    %3794 = vmatprep.subr.mxu0 0.0
    %3795 = vmatpush1.msra.mxu0 0.0
    %3796 = vmatprep.subr.mxu0 0.0
    %3797 = vmatpush1.msra.mxu0 0.0
    %3798 = vmatprep.subr.mxu0 0.0
    %3799 = vmatpush1.msra.mxu0 0.0
    %3800 = vmatprep.subr.mxu0 0.0
    %3801 = vmatpush1.msra.mxu0 0.0
    %3802 = vmatprep.subr.mxu0 0.0
    %3803 = vmatpush1.msra.mxu0 0.0
    %3804 = vmatprep.subr.mxu0 0.0
    %3805 = vmatpush1.msra.mxu0 0.0
    %3806 = vmatprep.subr.mxu0 0.0
    %3807 = vmatpush1.msra.mxu0 0.0
    %3808 = vmatprep.mubr.f32.mxu0 0.0
    %3809 = vmatmul.mubr.f32.gmra.mrb[0].mxu0 %v3739
    %v3810 = vpop.f32.mrb[0].mxu0
    %v3811 = vadd.f32 0.0, %v3810
    %v3812 = vpop.f32.mrb[0].mxu0
    %3813 = vmatprep.mubr.f32.mxu0 0.0
    %3814 = vmatmul.mubr.f32.gmra.mrb[0].mxu0 %v3742
    %v3815 = vpop.f32.mrb[0].mxu0
    %v3816 = vadd.f32 0.0, %v3815
    %v3817 = vpop.f32.mrb[0].mxu0
    %3818 = vdwg.mxu0
    %3821 = vrot.lane.b32.xlu0 %v3637, 8
    %v3822 = vpop.permute.xlu0 %3821
    %3823 = vrot.lane.b32.xlu0 %v3642, 8
    %v3824 = vpop.permute.xlu0 %3823
    %3829 = vrot.lane.b32.xlu0 %v3724, 16
    %v3830 = vpop.permute.xlu0 %3829
    %3831 = vrot.lane.b32.xlu0 %v3729, 16
    %v3832 = vpop.permute.xlu0 %3831
    %3837 = vrot.lane.b32.xlu0 %v3811, 24
    %v3838 = vpop.permute.xlu0 %3837
    %3839 = vrot.lane.b32.xlu0 %v3816, 24
    %v3840 = vpop.permute.xlu0 %3839
    %v3843 = vsel %vm410, %v3550, %v3822
    %v3844 = vsel %vm410, %v3555, %v3824
    %v3845 = vsel %vm771, %v3843, %v3830
    %v3846 = vsel %vm771, %v3844, %v3832
    %v3847 = vsel %vm1268, %v3845, %v3838
    %v3848 = vsel %vm1268, %v3846, %v3840
    %v3850 = vlaneseq
    %v3851 = vshrl.u32 %v3850, 7
    %v3852 = vsub.s32 0, %v3851
    %v3853 = vrot.slane %v2825, %v3852
    %v3856 = vsel %vm310, %v3847, 0
    %v3859 = vsel %vm310, %v3848, 0
    %3861 = vmatprep.subr.mxu0 0.0
    %3862 = vmatpush1.msra.mxu0 %v2820
    %3863 = vmatprep.subr.mxu0 0.0
    %3864 = vmatpush1.msra.mxu0 %v2821
    %3865 = vmatprep.subr.mxu0 0.0
    %3866 = vmatpush1.msra.mxu0 %v2822
    %3867 = vmatprep.subr.mxu0 0.0
    %3868 = vmatpush1.msra.mxu0 %v2823
    %3869 = vmatprep.subr.mxu0 0.0
    %3870 = vmatpush1.msra.mxu0 0.0
    %3871 = vmatprep.subr.mxu0 0.0
    %3872 = vmatpush1.msra.mxu0 0.0
    %3873 = vmatprep.subr.mxu0 0.0
    %3874 = vmatpush1.msra.mxu0 0.0
    %3875 = vmatprep.subr.mxu0 0.0
    %3876 = vmatpush1.msra.mxu0 0.0
    %3877 = vmatprep.subr.mxu0 0.0
    %3878 = vmatpush1.msra.mxu0 0.0
    %3879 = vmatprep.subr.mxu0 0.0
    %3880 = vmatpush1.msra.mxu0 0.0
    %3881 = vmatprep.subr.mxu0 0.0
    %3882 = vmatpush1.msra.mxu0 0.0
    %3883 = vmatprep.subr.mxu0 0.0
    %3884 = vmatpush1.msra.mxu0 0.0
    %3885 = vmatprep.subr.mxu0 0.0
    %3886 = vmatpush1.msra.mxu0 0.0
    %3887 = vmatprep.subr.mxu0 0.0
    %3888 = vmatpush1.msra.mxu0 0.0
    %3889 = vmatprep.subr.mxu0 0.0
    %3890 = vmatpush1.msra.mxu0 0.0
    %3891 = vmatprep.subr.mxu0 0.0
    %3892 = vmatpush1.msra.mxu0 0.0
    %3893 = vmatprep.subr.mxu0 0.0
    %3894 = vmatpush1.msra.mxu0 0.0
    %3895 = vmatprep.subr.mxu0 0.0
    %3896 = vmatpush1.msra.mxu0 0.0
    %3897 = vmatprep.subr.mxu0 0.0
    %3898 = vmatpush1.msra.mxu0 0.0
    %3899 = vmatprep.subr.mxu0 0.0
    %3900 = vmatpush1.msra.mxu0 0.0
    %3901 = vmatprep.subr.mxu0 0.0
    %3902 = vmatpush1.msra.mxu0 0.0
    %3903 = vmatprep.subr.mxu0 0.0
    %3904 = vmatpush1.msra.mxu0 0.0
    %3905 = vmatprep.subr.mxu0 0.0
    %3906 = vmatpush1.msra.mxu0 0.0
    %3907 = vmatprep.subr.mxu0 0.0
    %3908 = vmatpush1.msra.mxu0 0.0
    %3909 = vmatprep.subr.mxu0 0.0
    %3910 = vmatpush1.msra.mxu0 0.0
    %3911 = vmatprep.subr.mxu0 0.0
    %3912 = vmatpush1.msra.mxu0 0.0
    %3913 = vmatprep.subr.mxu0 0.0
    %3914 = vmatpush1.msra.mxu0 0.0
    %3915 = vmatprep.subr.mxu0 0.0
    %3916 = vmatpush1.msra.mxu0 0.0
    %3917 = vmatprep.subr.mxu0 0.0
    %3918 = vmatpush1.msra.mxu0 0.0
    %3919 = vmatprep.subr.mxu0 0.0
    %3920 = vmatpush1.msra.mxu0 0.0
    %3921 = vmatprep.subr.mxu0 0.0
    %3922 = vmatpush1.msra.mxu0 0.0
    %3923 = vmatprep.subr.mxu0 0.0
    %3924 = vmatpush1.msra.mxu0 0.0
    %3925 = vmatprep.mubr.f32.mxu0 0.0
    %3926 = vmatmul.mubr.f32.gmra.mrb[0].mxu0 %v3856
    %v3927 = vpop.f32.mrb[0].mxu0
    %v3928 = vadd.f32 %v3853, %v3927
    %v3929 = vpop.f32.mrb[0].mxu0
    %3930 = vmatprep.mubr.f32.mxu0 0.0
    %3931 = vmatmul.mubr.f32.gmra.mrb[0].mxu0 %v3859
    %v3932 = vpop.f32.mrb[0].mxu0
    %v3933 = vadd.f32 %v3853, %v3932
    %v3934 = vpop.f32.mrb[0].mxu0
    %3935 = vdwg.mxu0
    %v3936 = vadd.f32 %v2810, %v3928
    %v3937 = vadd.f32 %v2811, %v3933
    %v3938 = vsel %vm310, %v3936, 0.0
    %3939 = vadd.xlane.f32.xlu0 %v3938
    %v3940 = vpop.xlane.xlu0 %3939
    %v3941 = vsel %vm310, %v3937, 0.0
    %3942 = vadd.xlane.f32.xlu0 %v3941
    %v3943 = vpop.xlane.xlu0 %3942
    %v3944 = vmul.f32 %v3940, %v1366
    %v3945 = vmul.f32 %v3943, %v1366
    %v3946 = vsub.f32 %v3936, %v3944
    %v3947 = vsub.f32 %v3937, %v3945
    %v3948 = vmul.f32 %v3946, %v3946
    %v3949 = vmul.f32 %v3947, %v3947
    %v3950 = vsel %vm310, %v3948, 0.0
    %3951 = vadd.xlane.f32.xlu0 %v3950
    %v3952 = vpop.xlane.xlu0 %3951
    %v3953 = vsel %vm310, %v3949, 0.0
    %3954 = vadd.xlane.f32.xlu0 %v3953
    %v3955 = vpop.xlane.xlu0 %3954
    %v3956 = vmul.f32 %v3952, %v1366
    %v3957 = vmul.f32 %v3955, %v1366
    %v3958 = vadd.f32 %v3956, 1e-06
    %v3959 = vadd.f32 %v3957, 1e-06
    %v3960 = vrsqrt.pop %v3958
    %v3961 = vrsqrt.pop %v3959
    %v3962 = vmul.f32 %v3946, %v3960
    %v3963 = vmul.f32 %v3947, %v3961
    %v3965 = vlaneseq
    %v3966 = vshrl.u32 %v3965, 7
    %v3967 = vsub.s32 0, %v3966
    %v3968 = vrot.slane %v2827, %v3967
    %v3970 = vmul.f32 %v3962, %v3968
    %v3971 = vmul.f32 %v3963, %v3968
    %v3973 = vlaneseq
    %v3974 = vshrl.u32 %v3973, 7
    %v3975 = vsub.s32 0, %v3974
    %v3976 = vrot.slane %v2829, %v3975
    %v3978 = vadd.f32 %v3970, %v3976
    %v3979 = vadd.f32 %v3971, %v3976
    %v3981 = vlaneseq
    %v3982 = vshrl.u32 %v3981, 7
    %v3983 = vsub.s32 0, %v3982
    %v3984 = vrot.slane %v2836, %v3983
    %v3987 = vsel %vm310, %v3978, 0
    %v3990 = vsel %vm310, %v3979, 0
    %3992 = vmatprep.subr.mxu0 0.0
    %3993 = vmatpush1.msra.mxu0 %v2831
    %3994 = vmatprep.subr.mxu0 0.0
    %3995 = vmatpush1.msra.mxu0 %v2832
    %3996 = vmatprep.subr.mxu0 0.0
    %3997 = vmatpush1.msra.mxu0 %v2833
    %3998 = vmatprep.subr.mxu0 0.0
    %3999 = vmatpush1.msra.mxu0 %v2834
    %4000 = vmatprep.subr.mxu0 0.0
    %4001 = vmatpush1.msra.mxu0 0.0
    %4002 = vmatprep.subr.mxu0 0.0
    %4003 = vmatpush1.msra.mxu0 0.0
    %4004 = vmatprep.subr.mxu0 0.0
    %4005 = vmatpush1.msra.mxu0 0.0
    %4006 = vmatprep.subr.mxu0 0.0
    %4007 = vmatpush1.msra.mxu0 0.0
    %4008 = vmatprep.subr.mxu0 0.0
    %4009 = vmatpush1.msra.mxu0 0.0
    %4010 = vmatprep.subr.mxu0 0.0
    %4011 = vmatpush1.msra.mxu0 0.0
    %4012 = vmatprep.subr.mxu0 0.0
    %4013 = vmatpush1.msra.mxu0 0.0
    %4014 = vmatprep.subr.mxu0 0.0
    %4015 = vmatpush1.msra.mxu0 0.0
    %4016 = vmatprep.subr.mxu0 0.0
    %4017 = vmatpush1.msra.mxu0 0.0
    %4018 = vmatprep.subr.mxu0 0.0
    %4019 = vmatpush1.msra.mxu0 0.0
    %4020 = vmatprep.subr.mxu0 0.0
    %4021 = vmatpush1.msra.mxu0 0.0
    %4022 = vmatprep.subr.mxu0 0.0
    %4023 = vmatpush1.msra.mxu0 0.0
    %4024 = vmatprep.subr.mxu0 0.0
    %4025 = vmatpush1.msra.mxu0 0.0
    %4026 = vmatprep.subr.mxu0 0.0
    %4027 = vmatpush1.msra.mxu0 0.0
    %4028 = vmatprep.subr.mxu0 0.0
    %4029 = vmatpush1.msra.mxu0 0.0
    %4030 = vmatprep.subr.mxu0 0.0
    %4031 = vmatpush1.msra.mxu0 0.0
    %4032 = vmatprep.subr.mxu0 0.0
    %4033 = vmatpush1.msra.mxu0 0.0
    %4034 = vmatprep.subr.mxu0 0.0
    %4035 = vmatpush1.msra.mxu0 0.0
    %4036 = vmatprep.subr.mxu0 0.0
    %4037 = vmatpush1.msra.mxu0 0.0
    %4038 = vmatprep.subr.mxu0 0.0
    %4039 = vmatpush1.msra.mxu0 0.0
    %4040 = vmatprep.subr.mxu0 0.0
    %4041 = vmatpush1.msra.mxu0 0.0
    %4042 = vmatprep.subr.mxu0 0.0
    %4043 = vmatpush1.msra.mxu0 0.0
    %4044 = vmatprep.subr.mxu0 0.0
    %4045 = vmatpush1.msra.mxu0 0.0
    %4046 = vmatprep.subr.mxu0 0.0
    %4047 = vmatpush1.msra.mxu0 0.0
    %4048 = vmatprep.subr.mxu0 0.0
    %4049 = vmatpush1.msra.mxu0 0.0
    %4050 = vmatprep.subr.mxu0 0.0
    %4051 = vmatpush1.msra.mxu0 0.0
    %4052 = vmatprep.subr.mxu0 0.0
    %4053 = vmatpush1.msra.mxu0 0.0
    %4054 = vmatprep.subr.mxu0 0.0
    %4055 = vmatpush1.msra.mxu0 0.0
    %4056 = vmatprep.mubr.f32.mxu0 0.0
    %4057 = vmatmul.mubr.f32.gmra.mrb[0].mxu0 %v3987
    %v4058 = vpop.f32.mrb[0].mxu0
    %v4059 = vadd.f32 %v3984, %v4058
    %v4060 = vpop.f32.mrb[0].mxu0
    %4061 = vmatprep.mubr.f32.mxu0 0.0
    %4062 = vmatmul.mubr.f32.gmra.mrb[0].mxu0 %v3990
    %v4063 = vpop.f32.mrb[0].mxu0
    %v4064 = vadd.f32 %v3984, %v4063
    %v4065 = vpop.f32.mrb[0].mxu0
    %4066 = vdwg.mxu0
    %v4068 = vlaneseq
    %v4069 = vshrl.u32 %v4068, 7
    %v4070 = vsub.s32 0, %v4069
    %v4071 = vrot.slane %v2843, %v4070
    %4073 = vmatprep.subr.mxu0 0.0
    %4074 = vmatpush1.msra.mxu0 %v2838
    %4075 = vmatprep.subr.mxu0 0.0
    %4076 = vmatpush1.msra.mxu0 %v2839
    %4077 = vmatprep.subr.mxu0 0.0
    %4078 = vmatpush1.msra.mxu0 %v2840
    %4079 = vmatprep.subr.mxu0 0.0
    %4080 = vmatpush1.msra.mxu0 %v2841
    %4081 = vmatprep.subr.mxu0 0.0
    %4082 = vmatpush1.msra.mxu0 0.0
    %4083 = vmatprep.subr.mxu0 0.0
    %4084 = vmatpush1.msra.mxu0 0.0
    %4085 = vmatprep.subr.mxu0 0.0
    %4086 = vmatpush1.msra.mxu0 0.0
    %4087 = vmatprep.subr.mxu0 0.0
    %4088 = vmatpush1.msra.mxu0 0.0
    %4089 = vmatprep.subr.mxu0 0.0
    %4090 = vmatpush1.msra.mxu0 0.0
    %4091 = vmatprep.subr.mxu0 0.0
    %4092 = vmatpush1.msra.mxu0 0.0
    %4093 = vmatprep.subr.mxu0 0.0
    %4094 = vmatpush1.msra.mxu0 0.0
    %4095 = vmatprep.subr.mxu0 0.0
    %4096 = vmatpush1.msra.mxu0 0.0
    %4097 = vmatprep.subr.mxu0 0.0
    %4098 = vmatpush1.msra.mxu0 0.0
    %4099 = vmatprep.subr.mxu0 0.0
    %4100 = vmatpush1.msra.mxu0 0.0
    %4101 = vmatprep.subr.mxu0 0.0
    %4102 = vmatpush1.msra.mxu0 0.0
    %4103 = vmatprep.subr.mxu0 0.0
    %4104 = vmatpush1.msra.mxu0 0.0
    %4105 = vmatprep.subr.mxu0 0.0
    %4106 = vmatpush1.msra.mxu0 0.0
    %4107 = vmatprep.subr.mxu0 0.0
    %4108 = vmatpush1.msra.mxu0 0.0
    %4109 = vmatprep.subr.mxu0 0.0
    %4110 = vmatpush1.msra.mxu0 0.0
    %4111 = vmatprep.subr.mxu0 0.0
    %4112 = vmatpush1.msra.mxu0 0.0
    %4113 = vmatprep.subr.mxu0 0.0
    %4114 = vmatpush1.msra.mxu0 0.0
    %4115 = vmatprep.subr.mxu0 0.0
    %4116 = vmatpush1.msra.mxu0 0.0
    %4117 = vmatprep.subr.mxu0 0.0
    %4118 = vmatpush1.msra.mxu0 0.0
    %4119 = vmatprep.subr.mxu0 0.0
    %4120 = vmatpush1.msra.mxu0 0.0
    %4121 = vmatprep.subr.mxu0 0.0
    %4122 = vmatpush1.msra.mxu0 0.0
    %4123 = vmatprep.subr.mxu0 0.0
    %4124 = vmatpush1.msra.mxu0 0.0
    %4125 = vmatprep.subr.mxu0 0.0
    %4126 = vmatpush1.msra.mxu0 0.0
    %4127 = vmatprep.subr.mxu0 0.0
    %4128 = vmatpush1.msra.mxu0 0.0
    %4129 = vmatprep.subr.mxu0 0.0
    %4130 = vmatpush1.msra.mxu0 0.0
    %4131 = vmatprep.subr.mxu0 0.0
    %4132 = vmatpush1.msra.mxu0 0.0
    %4133 = vmatprep.subr.mxu0 0.0
    %4134 = vmatpush1.msra.mxu0 0.0
    %4135 = vmatprep.subr.mxu0 0.0
    %4136 = vmatpush1.msra.mxu0 0.0
    %4137 = vmatprep.mubr.f32.mxu0 0.0
    %4138 = vmatmul.mubr.f32.gmra.mrb[0].mxu0 %v1497
    %v4139 = vpop.f32.mrb[0].mxu0
    %v4140 = vadd.f32 %v4071, %v4139
    %v4141 = vpop.f32.mrb[0].mxu0
    %4142 = vmatprep.mubr.f32.mxu0 0.0
    %4143 = vmatmul.mubr.f32.gmra.mrb[0].mxu0 %v1500
    %v4144 = vpop.f32.mrb[0].mxu0
    %v4145 = vadd.f32 %v4071, %v4144
    %v4146 = vpop.f32.mrb[0].mxu0
    %4147 = vdwg.mxu0
    %4150 = vrot.lane.b32.xlu0 %v4059, 120
    %v4151 = vpop.permute.xlu0 %4150
    %4152 = vrot.lane.b32.xlu0 %v4064, 120
    %v4153 = vpop.permute.xlu0 %4152
    %4154 = vrot.lane.b32.xlu0 %v4059, 112
    %v4155 = vpop.permute.xlu0 %4154
    %4156 = vrot.lane.b32.xlu0 %v4064, 112
    %v4157 = vpop.permute.xlu0 %4156
    %4158 = vrot.lane.b32.xlu0 %v4059, 104
    %v4159 = vpop.permute.xlu0 %4158
    %4160 = vrot.lane.b32.xlu0 %v4064, 104
    %v4161 = vpop.permute.xlu0 %4160
    %4164 = vrot.lane.b32.xlu0 %v4140, 120
    %v4165 = vpop.permute.xlu0 %4164
    %4166 = vrot.lane.b32.xlu0 %v4145, 120
    %v4167 = vpop.permute.xlu0 %4166
    %4168 = vrot.lane.b32.xlu0 %v4140, 112
    %v4169 = vpop.permute.xlu0 %4168
    %4170 = vrot.lane.b32.xlu0 %v4145, 112
    %v4171 = vpop.permute.xlu0 %4170
    %4172 = vrot.lane.b32.xlu0 %v4140, 104
    %v4173 = vpop.permute.xlu0 %4172
    %4174 = vrot.lane.b32.xlu0 %v4145, 104
    %v4175 = vpop.permute.xlu0 %4174
    %v4176 = vsel %vm410, %v4059, 0
    %v4178 = vsel %vm410, %v4064, 0
    %v4180 = vsel %vm410, %v4140, 0
    %v4182 = vsel %vm410, %v4145, 0
    %4184 = vmatprep.subr.mxu0 0.0
    %4185 = vmatpush1.xpose.msra.mxu0 %v4180
    %4186 = vmatprep.subr.mxu0 0.0
    %4187 = vmatpush1.xpose.msra.mxu0 %v4182
    %4188 = vmatprep.subr.mxu0 0.0
    %4189 = vmatpush1.xpose.msra.mxu0 0.0
    %4190 = vmatprep.subr.mxu0 0.0
    %4191 = vmatpush1.xpose.msra.mxu0 0.0
    %4192 = vmatprep.subr.mxu0 0.0
    %4193 = vmatpush1.xpose.msra.mxu0 0.0
    %4194 = vmatprep.subr.mxu0 0.0
    %4195 = vmatpush1.xpose.msra.mxu0 0.0
    %4196 = vmatprep.subr.mxu0 0.0
    %4197 = vmatpush1.xpose.msra.mxu0 0.0
    %4198 = vmatprep.subr.mxu0 0.0
    %4199 = vmatpush1.xpose.msra.mxu0 0.0
    %4200 = vmatprep.subr.mxu0 0.0
    %4201 = vmatpush1.xpose.msra.mxu0 0.0
    %4202 = vmatprep.subr.mxu0 0.0
    %4203 = vmatpush1.xpose.msra.mxu0 0.0
    %4204 = vmatprep.subr.mxu0 0.0
    %4205 = vmatpush1.xpose.msra.mxu0 0.0
    %4206 = vmatprep.subr.mxu0 0.0
    %4207 = vmatpush1.xpose.msra.mxu0 0.0
    %4208 = vmatprep.subr.mxu0 0.0
    %4209 = vmatpush1.xpose.msra.mxu0 0.0
    %4210 = vmatprep.subr.mxu0 0.0
    %4211 = vmatpush1.xpose.msra.mxu0 0.0
    %4212 = vmatprep.subr.mxu0 0.0
    %4213 = vmatpush1.xpose.msra.mxu0 0.0
    %4214 = vmatprep.subr.mxu0 0.0
    %4215 = vmatpush1.xpose.msra.mxu0 0.0
    %4216 = vmatprep.subr.mxu0 0.0
    %4217 = vmatpush1.xpose.msra.mxu0 0.0
    %4218 = vmatprep.subr.mxu0 0.0
    %4219 = vmatpush1.xpose.msra.mxu0 0.0
    %4220 = vmatprep.subr.mxu0 0.0
    %4221 = vmatpush1.xpose.msra.mxu0 0.0
    %4222 = vmatprep.subr.mxu0 0.0
    %4223 = vmatpush1.xpose.msra.mxu0 0.0
    %4224 = vmatprep.subr.mxu0 0.0
    %4225 = vmatpush1.xpose.msra.mxu0 0.0
    %4226 = vmatprep.subr.mxu0 0.0
    %4227 = vmatpush1.xpose.msra.mxu0 0.0
    %4228 = vmatprep.subr.mxu0 0.0
    %4229 = vmatpush1.xpose.msra.mxu0 0.0
    %4230 = vmatprep.subr.mxu0 0.0
    %4231 = vmatpush1.xpose.msra.mxu0 0.0
    %4232 = vmatprep.subr.mxu0 0.0
    %4233 = vmatpush1.xpose.msra.mxu0 0.0
    %4234 = vmatprep.subr.mxu0 0.0
    %4235 = vmatpush1.xpose.msra.mxu0 0.0
    %4236 = vmatprep.subr.mxu0 0.0
    %4237 = vmatpush1.xpose.msra.mxu0 0.0
    %4238 = vmatprep.subr.mxu0 0.0
    %4239 = vmatpush1.xpose.msra.mxu0 0.0
    %4240 = vmatprep.subr.mxu0 0.0
    %4241 = vmatpush1.xpose.msra.mxu0 0.0
    %4242 = vmatprep.subr.mxu0 0.0
    %4243 = vmatpush1.xpose.msra.mxu0 0.0
    %4244 = vmatprep.subr.mxu0 0.0
    %4245 = vmatpush1.xpose.msra.mxu0 0.0
    %4246 = vmatprep.subr.mxu0 0.0
    %4247 = vmatpush1.xpose.msra.mxu0 0.0
    %4248 = vmatprep.mubr.f32.mxu0 0.0
    %4249 = vmatmul.mubr.f32.gmra.mrb[0].mxu0 %v4176
    %v4250 = vpop.f32.mrb[0].mxu0
    %v4251 = vadd.f32 0.0, %v4250
    %v4252 = vpop.f32.mrb[0].mxu0
    %4253 = vmatprep.mubr.f32.mxu0 0.0
    %4254 = vmatmul.mubr.f32.gmra.mrb[0].mxu0 %v4178
    %v4255 = vpop.f32.mrb[0].mxu0
    %v4256 = vadd.f32 0.0, %v4255
    %v4257 = vpop.f32.mrb[0].mxu0
    %4258 = vdwg.mxu0
    %v4259 = vsel %vm410, %v4151, 0
    %v4261 = vsel %vm410, %v4153, 0
    %v4263 = vsel %vm410, %v4165, 0
    %v4265 = vsel %vm410, %v4167, 0
    %4267 = vmatprep.subr.mxu0 0.0
    %4268 = vmatpush1.xpose.msra.mxu0 %v4263
    %4269 = vmatprep.subr.mxu0 0.0
    %4270 = vmatpush1.xpose.msra.mxu0 %v4265
    %4271 = vmatprep.subr.mxu0 0.0
    %4272 = vmatpush1.xpose.msra.mxu0 0.0
    %4273 = vmatprep.subr.mxu0 0.0
    %4274 = vmatpush1.xpose.msra.mxu0 0.0
    %4275 = vmatprep.subr.mxu0 0.0
    %4276 = vmatpush1.xpose.msra.mxu0 0.0
    %4277 = vmatprep.subr.mxu0 0.0
    %4278 = vmatpush1.xpose.msra.mxu0 0.0
    %4279 = vmatprep.subr.mxu0 0.0
    %4280 = vmatpush1.xpose.msra.mxu0 0.0
    %4281 = vmatprep.subr.mxu0 0.0
    %4282 = vmatpush1.xpose.msra.mxu0 0.0
    %4283 = vmatprep.subr.mxu0 0.0
    %4284 = vmatpush1.xpose.msra.mxu0 0.0
    %4285 = vmatprep.subr.mxu0 0.0
    %4286 = vmatpush1.xpose.msra.mxu0 0.0
    %4287 = vmatprep.subr.mxu0 0.0
    %4288 = vmatpush1.xpose.msra.mxu0 0.0
    %4289 = vmatprep.subr.mxu0 0.0
    %4290 = vmatpush1.xpose.msra.mxu0 0.0
    %4291 = vmatprep.subr.mxu0 0.0
    %4292 = vmatpush1.xpose.msra.mxu0 0.0
    %4293 = vmatprep.subr.mxu0 0.0
    %4294 = vmatpush1.xpose.msra.mxu0 0.0
    %4295 = vmatprep.subr.mxu0 0.0
    %4296 = vmatpush1.xpose.msra.mxu0 0.0
    %4297 = vmatprep.subr.mxu0 0.0
    %4298 = vmatpush1.xpose.msra.mxu0 0.0
    %4299 = vmatprep.subr.mxu0 0.0
    %4300 = vmatpush1.xpose.msra.mxu0 0.0
    %4301 = vmatprep.subr.mxu0 0.0
    %4302 = vmatpush1.xpose.msra.mxu0 0.0
    %4303 = vmatprep.subr.mxu0 0.0
    %4304 = vmatpush1.xpose.msra.mxu0 0.0
    %4305 = vmatprep.subr.mxu0 0.0
    %4306 = vmatpush1.xpose.msra.mxu0 0.0
    %4307 = vmatprep.subr.mxu0 0.0
    %4308 = vmatpush1.xpose.msra.mxu0 0.0
    %4309 = vmatprep.subr.mxu0 0.0
    %4310 = vmatpush1.xpose.msra.mxu0 0.0
    %4311 = vmatprep.subr.mxu0 0.0
    %4312 = vmatpush1.xpose.msra.mxu0 0.0
    %4313 = vmatprep.subr.mxu0 0.0
    %4314 = vmatpush1.xpose.msra.mxu0 0.0
    %4315 = vmatprep.subr.mxu0 0.0
    %4316 = vmatpush1.xpose.msra.mxu0 0.0
    %4317 = vmatprep.subr.mxu0 0.0
    %4318 = vmatpush1.xpose.msra.mxu0 0.0
    %4319 = vmatprep.subr.mxu0 0.0
    %4320 = vmatpush1.xpose.msra.mxu0 0.0
    %4321 = vmatprep.subr.mxu0 0.0
    %4322 = vmatpush1.xpose.msra.mxu0 0.0
    %4323 = vmatprep.subr.mxu0 0.0
    %4324 = vmatpush1.xpose.msra.mxu0 0.0
    %4325 = vmatprep.subr.mxu0 0.0
    %4326 = vmatpush1.xpose.msra.mxu0 0.0
    %4327 = vmatprep.subr.mxu0 0.0
    %4328 = vmatpush1.xpose.msra.mxu0 0.0
    %4329 = vmatprep.subr.mxu0 0.0
    %4330 = vmatpush1.xpose.msra.mxu0 0.0
    %4331 = vmatprep.mubr.f32.mxu0 0.0
    %4332 = vmatmul.mubr.f32.gmra.mrb[0].mxu0 %v4259
    %v4333 = vpop.f32.mrb[0].mxu0
    %v4334 = vadd.f32 0.0, %v4333
    %v4335 = vpop.f32.mrb[0].mxu0
    %4336 = vmatprep.mubr.f32.mxu0 0.0
    %4337 = vmatmul.mubr.f32.gmra.mrb[0].mxu0 %v4261
    %v4338 = vpop.f32.mrb[0].mxu0
    %v4339 = vadd.f32 0.0, %v4338
    %v4340 = vpop.f32.mrb[0].mxu0
    %4341 = vdwg.mxu0
    %v4342 = vsel %vm410, %v4155, 0
    %v4344 = vsel %vm410, %v4157, 0
    %v4346 = vsel %vm410, %v4169, 0
    %v4348 = vsel %vm410, %v4171, 0
    %4350 = vmatprep.subr.mxu0 0.0
    %4351 = vmatpush1.xpose.msra.mxu0 %v4346
    %4352 = vmatprep.subr.mxu0 0.0
    %4353 = vmatpush1.xpose.msra.mxu0 %v4348
    %4354 = vmatprep.subr.mxu0 0.0
    %4355 = vmatpush1.xpose.msra.mxu0 0.0
    %4356 = vmatprep.subr.mxu0 0.0
    %4357 = vmatpush1.xpose.msra.mxu0 0.0
    %4358 = vmatprep.subr.mxu0 0.0
    %4359 = vmatpush1.xpose.msra.mxu0 0.0
    %4360 = vmatprep.subr.mxu0 0.0
    %4361 = vmatpush1.xpose.msra.mxu0 0.0
    %4362 = vmatprep.subr.mxu0 0.0
    %4363 = vmatpush1.xpose.msra.mxu0 0.0
    %4364 = vmatprep.subr.mxu0 0.0
    %4365 = vmatpush1.xpose.msra.mxu0 0.0
    %4366 = vmatprep.subr.mxu0 0.0
    %4367 = vmatpush1.xpose.msra.mxu0 0.0
    %4368 = vmatprep.subr.mxu0 0.0
    %4369 = vmatpush1.xpose.msra.mxu0 0.0
    %4370 = vmatprep.subr.mxu0 0.0
    %4371 = vmatpush1.xpose.msra.mxu0 0.0
    %4372 = vmatprep.subr.mxu0 0.0
    %4373 = vmatpush1.xpose.msra.mxu0 0.0
    %4374 = vmatprep.subr.mxu0 0.0
    %4375 = vmatpush1.xpose.msra.mxu0 0.0
    %4376 = vmatprep.subr.mxu0 0.0
    %4377 = vmatpush1.xpose.msra.mxu0 0.0
    %4378 = vmatprep.subr.mxu0 0.0
    %4379 = vmatpush1.xpose.msra.mxu0 0.0
    %4380 = vmatprep.subr.mxu0 0.0
    %4381 = vmatpush1.xpose.msra.mxu0 0.0
    %4382 = vmatprep.subr.mxu0 0.0
    %4383 = vmatpush1.xpose.msra.mxu0 0.0
    %4384 = vmatprep.subr.mxu0 0.0
    %4385 = vmatpush1.xpose.msra.mxu0 0.0
    %4386 = vmatprep.subr.mxu0 0.0
    %4387 = vmatpush1.xpose.msra.mxu0 0.0
    %4388 = vmatprep.subr.mxu0 0.0
    %4389 = vmatpush1.xpose.msra.mxu0 0.0
    %4390 = vmatprep.subr.mxu0 0.0
    %4391 = vmatpush1.xpose.msra.mxu0 0.0
    %4392 = vmatprep.subr.mxu0 0.0
    %4393 = vmatpush1.xpose.msra.mxu0 0.0
    %4394 = vmatprep.subr.mxu0 0.0
    %4395 = vmatpush1.xpose.msra.mxu0 0.0
    %4396 = vmatprep.subr.mxu0 0.0
    %4397 = vmatpush1.xpose.msra.mxu0 0.0
    %4398 = vmatprep.subr.mxu0 0.0
    %4399 = vmatpush1.xpose.msra.mxu0 0.0
    %4400 = vmatprep.subr.mxu0 0.0
    %4401 = vmatpush1.xpose.msra.mxu0 0.0
    %4402 = vmatprep.subr.mxu0 0.0
    %4403 = vmatpush1.xpose.msra.mxu0 0.0
    %4404 = vmatprep.subr.mxu0 0.0
    %4405 = vmatpush1.xpose.msra.mxu0 0.0
    %4406 = vmatprep.subr.mxu0 0.0
    %4407 = vmatpush1.xpose.msra.mxu0 0.0
    %4408 = vmatprep.subr.mxu0 0.0
    %4409 = vmatpush1.xpose.msra.mxu0 0.0
    %4410 = vmatprep.subr.mxu0 0.0
    %4411 = vmatpush1.xpose.msra.mxu0 0.0
    %4412 = vmatprep.subr.mxu0 0.0
    %4413 = vmatpush1.xpose.msra.mxu0 0.0
    %4414 = vmatprep.mubr.f32.mxu0 0.0
    %4415 = vmatmul.mubr.f32.gmra.mrb[0].mxu0 %v4342
    %v4416 = vpop.f32.mrb[0].mxu0
    %v4417 = vadd.f32 0.0, %v4416
    %v4418 = vpop.f32.mrb[0].mxu0
    %4419 = vmatprep.mubr.f32.mxu0 0.0
    %4420 = vmatmul.mubr.f32.gmra.mrb[0].mxu0 %v4344
    %v4421 = vpop.f32.mrb[0].mxu0
    %v4422 = vadd.f32 0.0, %v4421
    %v4423 = vpop.f32.mrb[0].mxu0
    %4424 = vdwg.mxu0
    %v4425 = vsel %vm410, %v4159, 0
    %v4427 = vsel %vm410, %v4161, 0
    %v4429 = vsel %vm410, %v4173, 0
    %v4431 = vsel %vm410, %v4175, 0
    %4433 = vmatprep.subr.mxu0 0.0
    %4434 = vmatpush1.xpose.msra.mxu0 %v4429
    %4435 = vmatprep.subr.mxu0 0.0
    %4436 = vmatpush1.xpose.msra.mxu0 %v4431
    %4437 = vmatprep.subr.mxu0 0.0
    %4438 = vmatpush1.xpose.msra.mxu0 0.0
    %4439 = vmatprep.subr.mxu0 0.0
    %4440 = vmatpush1.xpose.msra.mxu0 0.0
    %4441 = vmatprep.subr.mxu0 0.0
    %4442 = vmatpush1.xpose.msra.mxu0 0.0
    %4443 = vmatprep.subr.mxu0 0.0
    %4444 = vmatpush1.xpose.msra.mxu0 0.0
    %4445 = vmatprep.subr.mxu0 0.0
    %4446 = vmatpush1.xpose.msra.mxu0 0.0
    %4447 = vmatprep.subr.mxu0 0.0
    %4448 = vmatpush1.xpose.msra.mxu0 0.0
    %4449 = vmatprep.subr.mxu0 0.0
    %4450 = vmatpush1.xpose.msra.mxu0 0.0
    %4451 = vmatprep.subr.mxu0 0.0
    %4452 = vmatpush1.xpose.msra.mxu0 0.0
    %4453 = vmatprep.subr.mxu0 0.0
    %4454 = vmatpush1.xpose.msra.mxu0 0.0
    %4455 = vmatprep.subr.mxu0 0.0
    %4456 = vmatpush1.xpose.msra.mxu0 0.0
    %4457 = vmatprep.subr.mxu0 0.0
    %4458 = vmatpush1.xpose.msra.mxu0 0.0
    %4459 = vmatprep.subr.mxu0 0.0
    %4460 = vmatpush1.xpose.msra.mxu0 0.0
    %4461 = vmatprep.subr.mxu0 0.0
    %4462 = vmatpush1.xpose.msra.mxu0 0.0
    %4463 = vmatprep.subr.mxu0 0.0
    %4464 = vmatpush1.xpose.msra.mxu0 0.0
    %4465 = vmatprep.subr.mxu0 0.0
    %4466 = vmatpush1.xpose.msra.mxu0 0.0
    %4467 = vmatprep.subr.mxu0 0.0
    %4468 = vmatpush1.xpose.msra.mxu0 0.0
    %4469 = vmatprep.subr.mxu0 0.0
    %4470 = vmatpush1.xpose.msra.mxu0 0.0
    %4471 = vmatprep.subr.mxu0 0.0
    %4472 = vmatpush1.xpose.msra.mxu0 0.0
    %4473 = vmatprep.subr.mxu0 0.0
    %4474 = vmatpush1.xpose.msra.mxu0 0.0
    %4475 = vmatprep.subr.mxu0 0.0
    %4476 = vmatpush1.xpose.msra.mxu0 0.0
    %4477 = vmatprep.subr.mxu0 0.0
    %4478 = vmatpush1.xpose.msra.mxu0 0.0
    %4479 = vmatprep.subr.mxu0 0.0
    %4480 = vmatpush1.xpose.msra.mxu0 0.0
    %4481 = vmatprep.subr.mxu0 0.0
    %4482 = vmatpush1.xpose.msra.mxu0 0.0
    %4483 = vmatprep.subr.mxu0 0.0
    %4484 = vmatpush1.xpose.msra.mxu0 0.0
    %4485 = vmatprep.subr.mxu0 0.0
    %4486 = vmatpush1.xpose.msra.mxu0 0.0
    %4487 = vmatprep.subr.mxu0 0.0
    %4488 = vmatpush1.xpose.msra.mxu0 0.0
    %4489 = vmatprep.subr.mxu0 0.0
    %4490 = vmatpush1.xpose.msra.mxu0 0.0
    %4491 = vmatprep.subr.mxu0 0.0
    %4492 = vmatpush1.xpose.msra.mxu0 0.0
    %4493 = vmatprep.subr.mxu0 0.0
    %4494 = vmatpush1.xpose.msra.mxu0 0.0
    %4495 = vmatprep.subr.mxu0 0.0
    %4496 = vmatpush1.xpose.msra.mxu0 0.0
    %4497 = vmatprep.mubr.f32.mxu0 0.0
    %4498 = vmatmul.mubr.f32.gmra.mrb[0].mxu0 %v4425
    %v4499 = vpop.f32.mrb[0].mxu0
    %v4500 = vadd.f32 0.0, %v4499
    %v4501 = vpop.f32.mrb[0].mxu0
    %4502 = vmatprep.mubr.f32.mxu0 0.0
    %4503 = vmatmul.mubr.f32.gmra.mrb[0].mxu0 %v4427
    %v4504 = vpop.f32.mrb[0].mxu0
    %v4505 = vadd.f32 0.0, %v4504
    %v4506 = vpop.f32.mrb[0].mxu0
    %4507 = vdwg.mxu0
    %v4508 = vmul.f32 %v4251, 0.35355338
    %v4509 = vmul.f32 %v4256, 0.35355338
    %v4510 = vmul.f32 %v4334, 0.35355338
    %v4511 = vmul.f32 %v4339, 0.35355338
    %v4512 = vmul.f32 %v4417, 0.35355338
    %v4513 = vmul.f32 %v4422, 0.35355338
    %v4514 = vmul.f32 %v4500, 0.35355338
    %v4515 = vmul.f32 %v4505, 0.35355338
    %v4516 = vadd.f32 %v4508, %v247
    %v4517 = vadd.f32 %v4509, %v248
    %v4518 = vadd.f32 %v4510, %v247
    %v4519 = vadd.f32 %v4511, %v248
    %v4520 = vadd.f32 %v4512, %v247
    %v4521 = vadd.f32 %v4513, %v248
    %v4522 = vadd.f32 %v4514, %v247
    %v4523 = vadd.f32 %v4515, %v248
    %v4524 = vsel %vm771, %v4516, -inf
    %4525 = vmax.xlane.f32.xlu0 %v4524
    %v4526 = vpop.xlane.xlu0 %4525
    %v4527 = vsel %vm771, %v4517, -inf
    %4528 = vmax.xlane.f32.xlu0 %v4527
    %v4529 = vpop.xlane.xlu0 %4528
    %v4530 = vsel %vm771, %v4518, -inf
    %4531 = vmax.xlane.f32.xlu0 %v4530
    %v4532 = vpop.xlane.xlu0 %4531
    %v4533 = vsel %vm771, %v4519, -inf
    %4534 = vmax.xlane.f32.xlu0 %v4533
    %v4535 = vpop.xlane.xlu0 %4534
    %v4536 = vsel %vm771, %v4520, -inf
    %4537 = vmax.xlane.f32.xlu0 %v4536
    %v4538 = vpop.xlane.xlu0 %4537
    %v4539 = vsel %vm771, %v4521, -inf
    %4540 = vmax.xlane.f32.xlu0 %v4539
    %v4541 = vpop.xlane.xlu0 %4540
    %v4542 = vsel %vm771, %v4522, -inf
    %4543 = vmax.xlane.f32.xlu0 %v4542
    %v4544 = vpop.xlane.xlu0 %4543
    %v4545 = vsel %vm771, %v4523, -inf
    %4546 = vmax.xlane.f32.xlu0 %v4545
    %v4547 = vpop.xlane.xlu0 %4546
    %v4548 = vsub.f32 %v4516, %v4526
    %v4549 = vsub.f32 %v4517, %v4529
    %v4550 = vsub.f32 %v4518, %v4532
    %v4551 = vsub.f32 %v4519, %v4535
    %v4552 = vsub.f32 %v4520, %v4538
    %v4553 = vsub.f32 %v4521, %v4541
    %v4554 = vsub.f32 %v4522, %v4544
    %v4555 = vsub.f32 %v4523, %v4547
    %v4556 = vmul.f32 %v4548, 1.442695
    %v4557 = vpow.pop %v4556
    %v4558 = vmul.f32 %v4549, 1.442695
    %v4559 = vpow.pop %v4558
    %v4560 = vmul.f32 %v4550, 1.442695
    %v4561 = vpow.pop %v4560
    %v4562 = vmul.f32 %v4551, 1.442695
    %v4563 = vpow.pop %v4562
    %v4564 = vmul.f32 %v4552, 1.442695
    %v4565 = vpow.pop %v4564
    %v4566 = vmul.f32 %v4553, 1.442695
    %v4567 = vpow.pop %v4566
    %v4568 = vmul.f32 %v4554, 1.442695
    %v4569 = vpow.pop %v4568
    %v4570 = vmul.f32 %v4555, 1.442695
    %v4571 = vpow.pop %v4570
    %v4572 = vsel %vm771, %v4557, 0.0
    %4573 = vadd.xlane.f32.xlu0 %v4572
    %v4574 = vpop.xlane.xlu0 %4573
    %v4575 = vsel %vm771, %v4559, 0.0
    %4576 = vadd.xlane.f32.xlu0 %v4575
    %v4577 = vpop.xlane.xlu0 %4576
    %v4578 = vsel %vm771, %v4561, 0.0
    %4579 = vadd.xlane.f32.xlu0 %v4578
    %v4580 = vpop.xlane.xlu0 %4579
    %v4581 = vsel %vm771, %v4563, 0.0
    %4582 = vadd.xlane.f32.xlu0 %v4581
    %v4583 = vpop.xlane.xlu0 %4582
    %v4584 = vsel %vm771, %v4565, 0.0
    %4585 = vadd.xlane.f32.xlu0 %v4584
    %v4586 = vpop.xlane.xlu0 %4585
    %v4587 = vsel %vm771, %v4567, 0.0
    %4588 = vadd.xlane.f32.xlu0 %v4587
    %v4589 = vpop.xlane.xlu0 %4588
    %v4590 = vsel %vm771, %v4569, 0.0
    %4591 = vadd.xlane.f32.xlu0 %v4590
    %v4592 = vpop.xlane.xlu0 %4591
    %v4593 = vsel %vm771, %v4571, 0.0
    %4594 = vadd.xlane.f32.xlu0 %v4593
    %v4595 = vpop.xlane.xlu0 %4594
    %v4596 = vrcp.pop %v4574
    %v4597 = vrcp.pop %v4577
    %v4598 = vrcp.pop %v4580
    %v4599 = vrcp.pop %v4583
    %v4600 = vrcp.pop %v4586
    %v4601 = vrcp.pop %v4589
    %v4602 = vrcp.pop %v4592
    %v4603 = vrcp.pop %v4595
    %v4604 = vmul.f32 %v4574, %v4596
    %v4605 = vmul.f32 %v4577, %v4597
    %v4606 = vmul.f32 %v4580, %v4598
    %v4607 = vmul.f32 %v4583, %v4599
    %v4608 = vmul.f32 %v4586, %v4600
    %v4609 = vmul.f32 %v4589, %v4601
    %v4610 = vmul.f32 %v4592, %v4602
    %v4611 = vmul.f32 %v4595, %v4603
    %v4612 = vsub.f32 2.0, %v4604
    %v4613 = vsub.f32 2.0, %v4605
    %v4614 = vsub.f32 2.0, %v4606
    %v4615 = vsub.f32 2.0, %v4607
    %v4616 = vsub.f32 2.0, %v4608
    %v4617 = vsub.f32 2.0, %v4609
    %v4618 = vsub.f32 2.0, %v4610
    %v4619 = vsub.f32 2.0, %v4611
    %v4620 = vmul.f32 %v4596, %v4612
    %v4621 = vmul.f32 %v4597, %v4613
    %v4622 = vmul.f32 %v4598, %v4614
    %v4623 = vmul.f32 %v4599, %v4615
    %v4624 = vmul.f32 %v4600, %v4616
    %v4625 = vmul.f32 %v4601, %v4617
    %v4626 = vmul.f32 %v4602, %v4618
    %v4627 = vmul.f32 %v4603, %v4619
    %v4628 = vmul.f32 %v4557, %v4620
    %v4629 = vmul.f32 %v4559, %v4621
    %v4630 = vmul.f32 %v4561, %v4622
    %v4631 = vmul.f32 %v4563, %v4623
    %v4632 = vmul.f32 %v4565, %v4624
    %v4633 = vmul.f32 %v4567, %v4625
    %v4634 = vmul.f32 %v4569, %v4626
    %v4635 = vmul.f32 %v4571, %v4627
    %s4636 = scalar_lea.vmem [#allocation11], 64
    %4637 = vst.msk [vmem:[%s4636] sm:$0xff] %vm771, %v4628
    %4638 = vst.msk [vmem:[%s4636 + $0x8] sm:$0xff] %vm771, %v4629
    %4639 = vst.msk [vmem:[%s4636 + $0x10] sm:$0xff] %vm771, %v4630
    %4640 = vst.msk [vmem:[%s4636 + $0x18] sm:$0xff] %vm771, %v4631
    %4641 = vst.msk [vmem:[%s4636 + $0x20] sm:$0xff] %vm771, %v4632
    %4642 = vst.msk [vmem:[%s4636 + $0x28] sm:$0xff] %vm771, %v4633
    %4643 = vst.msk [vmem:[%s4636 + $0x30] sm:$0xff] %vm771, %v4634
    %4644 = vst.msk [vmem:[%s4636 + $0x38] sm:$0xff] %vm771, %v4635
    %4645 = vrot.lane.b32.xlu0 %v4140, 96
    %v4646 = vpop.permute.xlu0 %4645
    %4647 = vrot.lane.b32.xlu0 %v4145, 96
    %v4648 = vpop.permute.xlu0 %4647
    %v4652 = vsel %vm771, %v4628, 0
    %v4655 = vsel %vm771, %v4629, 0
    %4657 = vmatprep.subr.mxu0 0.0
    %4658 = vmatpush1.msra.mxu0 %v4646
    %4659 = vmatprep.subr.mxu0 0.0
    %4660 = vmatpush1.msra.mxu0 %v4648
    %4661 = vmatprep.subr.mxu0 0.0
    %4662 = vmatpush1.msra.mxu0 0.0
    %4663 = vmatprep.subr.mxu0 0.0
    %4664 = vmatpush1.msra.mxu0 0.0
    %4665 = vmatprep.subr.mxu0 0.0
    %4666 = vmatpush1.msra.mxu0 0.0
    %4667 = vmatprep.subr.mxu0 0.0
    %4668 = vmatpush1.msra.mxu0 0.0
    %4669 = vmatprep.subr.mxu0 0.0
    %4670 = vmatpush1.msra.mxu0 0.0
    %4671 = vmatprep.subr.mxu0 0.0
    %4672 = vmatpush1.msra.mxu0 0.0
    %4673 = vmatprep.subr.mxu0 0.0
    %4674 = vmatpush1.msra.mxu0 0.0
    %4675 = vmatprep.subr.mxu0 0.0
    %4676 = vmatpush1.msra.mxu0 0.0
    %4677 = vmatprep.subr.mxu0 0.0
    %4678 = vmatpush1.msra.mxu0 0.0
    %4679 = vmatprep.subr.mxu0 0.0
    %4680 = vmatpush1.msra.mxu0 0.0
    %4681 = vmatprep.subr.mxu0 0.0
    %4682 = vmatpush1.msra.mxu0 0.0
    %4683 = vmatprep.subr.mxu0 0.0
    %4684 = vmatpush1.msra.mxu0 0.0
    %4685 = vmatprep.subr.mxu0 0.0
    %4686 = vmatpush1.msra.mxu0 0.0
    %4687 = vmatprep.subr.mxu0 0.0
    %4688 = vmatpush1.msra.mxu0 0.0
    %4689 = vmatprep.subr.mxu0 0.0
    %4690 = vmatpush1.msra.mxu0 0.0
    %4691 = vmatprep.subr.mxu0 0.0
    %4692 = vmatpush1.msra.mxu0 0.0
    %4693 = vmatprep.subr.mxu0 0.0
    %4694 = vmatpush1.msra.mxu0 0.0
    %4695 = vmatprep.subr.mxu0 0.0
    %4696 = vmatpush1.msra.mxu0 0.0
    %4697 = vmatprep.subr.mxu0 0.0
    %4698 = vmatpush1.msra.mxu0 0.0
    %4699 = vmatprep.subr.mxu0 0.0
    %4700 = vmatpush1.msra.mxu0 0.0
    %4701 = vmatprep.subr.mxu0 0.0
    %4702 = vmatpush1.msra.mxu0 0.0
    %4703 = vmatprep.subr.mxu0 0.0
    %4704 = vmatpush1.msra.mxu0 0.0
    %4705 = vmatprep.subr.mxu0 0.0
    %4706 = vmatpush1.msra.mxu0 0.0
    %4707 = vmatprep.subr.mxu0 0.0
    %4708 = vmatpush1.msra.mxu0 0.0
    %4709 = vmatprep.subr.mxu0 0.0
    %4710 = vmatpush1.msra.mxu0 0.0
    %4711 = vmatprep.subr.mxu0 0.0
    %4712 = vmatpush1.msra.mxu0 0.0
    %4713 = vmatprep.subr.mxu0 0.0
    %4714 = vmatpush1.msra.mxu0 0.0
    %4715 = vmatprep.subr.mxu0 0.0
    %4716 = vmatpush1.msra.mxu0 0.0
    %4717 = vmatprep.subr.mxu0 0.0
    %4718 = vmatpush1.msra.mxu0 0.0
    %4719 = vmatprep.subr.mxu0 0.0
    %4720 = vmatpush1.msra.mxu0 0.0
    %4721 = vmatprep.mubr.f32.mxu0 0.0
    %4722 = vmatmul.mubr.f32.gmra.mrb[0].mxu0 %v4652
    %v4723 = vpop.f32.mrb[0].mxu0
    %v4724 = vadd.f32 0.0, %v4723
    %v4725 = vpop.f32.mrb[0].mxu0
    %4726 = vmatprep.mubr.f32.mxu0 0.0
    %4727 = vmatmul.mubr.f32.gmra.mrb[0].mxu0 %v4655
    %v4728 = vpop.f32.mrb[0].mxu0
    %v4729 = vadd.f32 0.0, %v4728
    %v4730 = vpop.f32.mrb[0].mxu0
    %4731 = vdwg.mxu0
    %4732 = vrot.lane.b32.xlu0 %v4165, 96
    %v4733 = vpop.permute.xlu0 %4732
    %4734 = vrot.lane.b32.xlu0 %v4167, 96
    %v4735 = vpop.permute.xlu0 %4734
    %v4739 = vsel %vm771, %v4630, 0
    %v4742 = vsel %vm771, %v4631, 0
    %4744 = vmatprep.subr.mxu0 0.0
    %4745 = vmatpush1.msra.mxu0 %v4733
    %4746 = vmatprep.subr.mxu0 0.0
    %4747 = vmatpush1.msra.mxu0 %v4735
    %4748 = vmatprep.subr.mxu0 0.0
    %4749 = vmatpush1.msra.mxu0 0.0
    %4750 = vmatprep.subr.mxu0 0.0
    %4751 = vmatpush1.msra.mxu0 0.0
    %4752 = vmatprep.subr.mxu0 0.0
    %4753 = vmatpush1.msra.mxu0 0.0
    %4754 = vmatprep.subr.mxu0 0.0
    %4755 = vmatpush1.msra.mxu0 0.0
    %4756 = vmatprep.subr.mxu0 0.0
    %4757 = vmatpush1.msra.mxu0 0.0
    %4758 = vmatprep.subr.mxu0 0.0
    %4759 = vmatpush1.msra.mxu0 0.0
    %4760 = vmatprep.subr.mxu0 0.0
    %4761 = vmatpush1.msra.mxu0 0.0
    %4762 = vmatprep.subr.mxu0 0.0
    %4763 = vmatpush1.msra.mxu0 0.0
    %4764 = vmatprep.subr.mxu0 0.0
    %4765 = vmatpush1.msra.mxu0 0.0
    %4766 = vmatprep.subr.mxu0 0.0
    %4767 = vmatpush1.msra.mxu0 0.0
    %4768 = vmatprep.subr.mxu0 0.0
    %4769 = vmatpush1.msra.mxu0 0.0
    %4770 = vmatprep.subr.mxu0 0.0
    %4771 = vmatpush1.msra.mxu0 0.0
    %4772 = vmatprep.subr.mxu0 0.0
    %4773 = vmatpush1.msra.mxu0 0.0
    %4774 = vmatprep.subr.mxu0 0.0
    %4775 = vmatpush1.msra.mxu0 0.0
    %4776 = vmatprep.subr.mxu0 0.0
    %4777 = vmatpush1.msra.mxu0 0.0
    %4778 = vmatprep.subr.mxu0 0.0
    %4779 = vmatpush1.msra.mxu0 0.0
    %4780 = vmatprep.subr.mxu0 0.0
    %4781 = vmatpush1.msra.mxu0 0.0
    %4782 = vmatprep.subr.mxu0 0.0
    %4783 = vmatpush1.msra.mxu0 0.0
    %4784 = vmatprep.subr.mxu0 0.0
    %4785 = vmatpush1.msra.mxu0 0.0
    %4786 = vmatprep.subr.mxu0 0.0
    %4787 = vmatpush1.msra.mxu0 0.0
    %4788 = vmatprep.subr.mxu0 0.0
    %4789 = vmatpush1.msra.mxu0 0.0
    %4790 = vmatprep.subr.mxu0 0.0
    %4791 = vmatpush1.msra.mxu0 0.0
    %4792 = vmatprep.subr.mxu0 0.0
    %4793 = vmatpush1.msra.mxu0 0.0
    %4794 = vmatprep.subr.mxu0 0.0
    %4795 = vmatpush1.msra.mxu0 0.0
    %4796 = vmatprep.subr.mxu0 0.0
    %4797 = vmatpush1.msra.mxu0 0.0
    %4798 = vmatprep.subr.mxu0 0.0
    %4799 = vmatpush1.msra.mxu0 0.0
    %4800 = vmatprep.subr.mxu0 0.0
    %4801 = vmatpush1.msra.mxu0 0.0
    %4802 = vmatprep.subr.mxu0 0.0
    %4803 = vmatpush1.msra.mxu0 0.0
    %4804 = vmatprep.subr.mxu0 0.0
    %4805 = vmatpush1.msra.mxu0 0.0
    %4806 = vmatprep.subr.mxu0 0.0
    %4807 = vmatpush1.msra.mxu0 0.0
    %4808 = vmatprep.mubr.f32.mxu0 0.0
    %4809 = vmatmul.mubr.f32.gmra.mrb[0].mxu0 %v4739
    %v4810 = vpop.f32.mrb[0].mxu0
    %v4811 = vadd.f32 0.0, %v4810
    %v4812 = vpop.f32.mrb[0].mxu0
    %4813 = vmatprep.mubr.f32.mxu0 0.0
    %4814 = vmatmul.mubr.f32.gmra.mrb[0].mxu0 %v4742
    %v4815 = vpop.f32.mrb[0].mxu0
    %v4816 = vadd.f32 0.0, %v4815
    %v4817 = vpop.f32.mrb[0].mxu0
    %4818 = vdwg.mxu0
    %4819 = vrot.lane.b32.xlu0 %v4169, 96
    %v4820 = vpop.permute.xlu0 %4819
    %4821 = vrot.lane.b32.xlu0 %v4171, 96
    %v4822 = vpop.permute.xlu0 %4821
    %v4826 = vsel %vm771, %v4632, 0
    %v4829 = vsel %vm771, %v4633, 0
    %4831 = vmatprep.subr.mxu0 0.0
    %4832 = vmatpush1.msra.mxu0 %v4820
    %4833 = vmatprep.subr.mxu0 0.0
    %4834 = vmatpush1.msra.mxu0 %v4822
    %4835 = vmatprep.subr.mxu0 0.0
    %4836 = vmatpush1.msra.mxu0 0.0
    %4837 = vmatprep.subr.mxu0 0.0
    %4838 = vmatpush1.msra.mxu0 0.0
    %4839 = vmatprep.subr.mxu0 0.0
    %4840 = vmatpush1.msra.mxu0 0.0
    %4841 = vmatprep.subr.mxu0 0.0
    %4842 = vmatpush1.msra.mxu0 0.0
    %4843 = vmatprep.subr.mxu0 0.0
    %4844 = vmatpush1.msra.mxu0 0.0
    %4845 = vmatprep.subr.mxu0 0.0
    %4846 = vmatpush1.msra.mxu0 0.0
    %4847 = vmatprep.subr.mxu0 0.0
    %4848 = vmatpush1.msra.mxu0 0.0
    %4849 = vmatprep.subr.mxu0 0.0
    %4850 = vmatpush1.msra.mxu0 0.0
    %4851 = vmatprep.subr.mxu0 0.0
    %4852 = vmatpush1.msra.mxu0 0.0
    %4853 = vmatprep.subr.mxu0 0.0
    %4854 = vmatpush1.msra.mxu0 0.0
    %4855 = vmatprep.subr.mxu0 0.0
    %4856 = vmatpush1.msra.mxu0 0.0
    %4857 = vmatprep.subr.mxu0 0.0
    %4858 = vmatpush1.msra.mxu0 0.0
    %4859 = vmatprep.subr.mxu0 0.0
    %4860 = vmatpush1.msra.mxu0 0.0
    %4861 = vmatprep.subr.mxu0 0.0
    %4862 = vmatpush1.msra.mxu0 0.0
    %4863 = vmatprep.subr.mxu0 0.0
    %4864 = vmatpush1.msra.mxu0 0.0
    %4865 = vmatprep.subr.mxu0 0.0
    %4866 = vmatpush1.msra.mxu0 0.0
    %4867 = vmatprep.subr.mxu0 0.0
    %4868 = vmatpush1.msra.mxu0 0.0
    %4869 = vmatprep.subr.mxu0 0.0
    %4870 = vmatpush1.msra.mxu0 0.0
    %4871 = vmatprep.subr.mxu0 0.0
    %4872 = vmatpush1.msra.mxu0 0.0
    %4873 = vmatprep.subr.mxu0 0.0
    %4874 = vmatpush1.msra.mxu0 0.0
    %4875 = vmatprep.subr.mxu0 0.0
    %4876 = vmatpush1.msra.mxu0 0.0
    %4877 = vmatprep.subr.mxu0 0.0
    %4878 = vmatpush1.msra.mxu0 0.0
    %4879 = vmatprep.subr.mxu0 0.0
    %4880 = vmatpush1.msra.mxu0 0.0
    %4881 = vmatprep.subr.mxu0 0.0
    %4882 = vmatpush1.msra.mxu0 0.0
    %4883 = vmatprep.subr.mxu0 0.0
    %4884 = vmatpush1.msra.mxu0 0.0
    %4885 = vmatprep.subr.mxu0 0.0
    %4886 = vmatpush1.msra.mxu0 0.0
    %4887 = vmatprep.subr.mxu0 0.0
    %4888 = vmatpush1.msra.mxu0 0.0
    %4889 = vmatprep.subr.mxu0 0.0
    %4890 = vmatpush1.msra.mxu0 0.0
    %4891 = vmatprep.subr.mxu0 0.0
    %4892 = vmatpush1.msra.mxu0 0.0
    %4893 = vmatprep.subr.mxu0 0.0
    %4894 = vmatpush1.msra.mxu0 0.0
    %4895 = vmatprep.mubr.f32.mxu0 0.0
    %4896 = vmatmul.mubr.f32.gmra.mrb[0].mxu0 %v4826
    %v4897 = vpop.f32.mrb[0].mxu0
    %v4898 = vadd.f32 0.0, %v4897
    %v4899 = vpop.f32.mrb[0].mxu0
    %4900 = vmatprep.mubr.f32.mxu0 0.0
    %4901 = vmatmul.mubr.f32.gmra.mrb[0].mxu0 %v4829
    %v4902 = vpop.f32.mrb[0].mxu0
    %v4903 = vadd.f32 0.0, %v4902
    %v4904 = vpop.f32.mrb[0].mxu0
    %4905 = vdwg.mxu0
    %4906 = vrot.lane.b32.xlu0 %v4173, 96
    %v4907 = vpop.permute.xlu0 %4906
    %4908 = vrot.lane.b32.xlu0 %v4175, 96
    %v4909 = vpop.permute.xlu0 %4908
    %v4913 = vsel %vm771, %v4634, 0
    %v4916 = vsel %vm771, %v4635, 0
    %4918 = vmatprep.subr.mxu0 0.0
    %4919 = vmatpush1.msra.mxu0 %v4907
    %4920 = vmatprep.subr.mxu0 0.0
    %4921 = vmatpush1.msra.mxu0 %v4909
    %4922 = vmatprep.subr.mxu0 0.0
    %4923 = vmatpush1.msra.mxu0 0.0
    %4924 = vmatprep.subr.mxu0 0.0
    %4925 = vmatpush1.msra.mxu0 0.0
    %4926 = vmatprep.subr.mxu0 0.0
    %4927 = vmatpush1.msra.mxu0 0.0
    %4928 = vmatprep.subr.mxu0 0.0
    %4929 = vmatpush1.msra.mxu0 0.0
    %4930 = vmatprep.subr.mxu0 0.0
    %4931 = vmatpush1.msra.mxu0 0.0
    %4932 = vmatprep.subr.mxu0 0.0
    %4933 = vmatpush1.msra.mxu0 0.0
    %4934 = vmatprep.subr.mxu0 0.0
    %4935 = vmatpush1.msra.mxu0 0.0
    %4936 = vmatprep.subr.mxu0 0.0
    %4937 = vmatpush1.msra.mxu0 0.0
    %4938 = vmatprep.subr.mxu0 0.0
    %4939 = vmatpush1.msra.mxu0 0.0
    %4940 = vmatprep.subr.mxu0 0.0
    %4941 = vmatpush1.msra.mxu0 0.0
    %4942 = vmatprep.subr.mxu0 0.0
    %4943 = vmatpush1.msra.mxu0 0.0
    %4944 = vmatprep.subr.mxu0 0.0
    %4945 = vmatpush1.msra.mxu0 0.0
    %4946 = vmatprep.subr.mxu0 0.0
    %4947 = vmatpush1.msra.mxu0 0.0
    %4948 = vmatprep.subr.mxu0 0.0
    %4949 = vmatpush1.msra.mxu0 0.0
    %4950 = vmatprep.subr.mxu0 0.0
    %4951 = vmatpush1.msra.mxu0 0.0
    %4952 = vmatprep.subr.mxu0 0.0
    %4953 = vmatpush1.msra.mxu0 0.0
    %4954 = vmatprep.subr.mxu0 0.0
    %4955 = vmatpush1.msra.mxu0 0.0
    %4956 = vmatprep.subr.mxu0 0.0
    %4957 = vmatpush1.msra.mxu0 0.0
    %4958 = vmatprep.subr.mxu0 0.0
    %4959 = vmatpush1.msra.mxu0 0.0
    %4960 = vmatprep.subr.mxu0 0.0
    %4961 = vmatpush1.msra.mxu0 0.0
    %4962 = vmatprep.subr.mxu0 0.0
    %4963 = vmatpush1.msra.mxu0 0.0
    %4964 = vmatprep.subr.mxu0 0.0
    %4965 = vmatpush1.msra.mxu0 0.0
    %4966 = vmatprep.subr.mxu0 0.0
    %4967 = vmatpush1.msra.mxu0 0.0
    %4968 = vmatprep.subr.mxu0 0.0
    %4969 = vmatpush1.msra.mxu0 0.0
    %4970 = vmatprep.subr.mxu0 0.0
    %4971 = vmatpush1.msra.mxu0 0.0
    %4972 = vmatprep.subr.mxu0 0.0
    %4973 = vmatpush1.msra.mxu0 0.0
    %4974 = vmatprep.subr.mxu0 0.0
    %4975 = vmatpush1.msra.mxu0 0.0
    %4976 = vmatprep.subr.mxu0 0.0
    %4977 = vmatpush1.msra.mxu0 0.0
    %4978 = vmatprep.subr.mxu0 0.0
    %4979 = vmatpush1.msra.mxu0 0.0
    %4980 = vmatprep.subr.mxu0 0.0
    %4981 = vmatpush1.msra.mxu0 0.0
    %4982 = vmatprep.mubr.f32.mxu0 0.0
    %4983 = vmatmul.mubr.f32.gmra.mrb[0].mxu0 %v4913
    %v4984 = vpop.f32.mrb[0].mxu0
    %v4985 = vadd.f32 0.0, %v4984
    %v4986 = vpop.f32.mrb[0].mxu0
    %4987 = vmatprep.mubr.f32.mxu0 0.0
    %4988 = vmatmul.mubr.f32.gmra.mrb[0].mxu0 %v4916
    %v4989 = vpop.f32.mrb[0].mxu0
    %v4990 = vadd.f32 0.0, %v4989
    %v4991 = vpop.f32.mrb[0].mxu0
    %4992 = vdwg.mxu0
    %4995 = vrot.lane.b32.xlu0 %v4811, 8
    %v4996 = vpop.permute.xlu0 %4995
    %4997 = vrot.lane.b32.xlu0 %v4816, 8
    %v4998 = vpop.permute.xlu0 %4997
    %5003 = vrot.lane.b32.xlu0 %v4898, 16
    %v5004 = vpop.permute.xlu0 %5003
    %5005 = vrot.lane.b32.xlu0 %v4903, 16
    %v5006 = vpop.permute.xlu0 %5005
    %5011 = vrot.lane.b32.xlu0 %v4985, 24
    %v5012 = vpop.permute.xlu0 %5011
    %5013 = vrot.lane.b32.xlu0 %v4990, 24
    %v5014 = vpop.permute.xlu0 %5013
    %v5017 = vsel %vm410, %v4724, %v4996
    %v5018 = vsel %vm410, %v4729, %v4998
    %v5019 = vsel %vm771, %v5017, %v5004
    %v5020 = vsel %vm771, %v5018, %v5006
    %v5021 = vsel %vm1268, %v5019, %v5012
    %v5022 = vsel %vm1268, %v5020, %v5014
    %v5024 = vlaneseq
    %v5025 = vshrl.u32 %v5024, 7
    %v5026 = vsub.s32 0, %v5025
    %v5027 = vrot.slane %v2850, %v5026
    %v5030 = vsel %vm310, %v5021, 0
    %v5033 = vsel %vm310, %v5022, 0
    %5035 = vmatprep.subr.mxu0 0.0
    %5036 = vmatpush1.msra.mxu0 %v2845
    %5037 = vmatprep.subr.mxu0 0.0
    %5038 = vmatpush1.msra.mxu0 %v2846
    %5039 = vmatprep.subr.mxu0 0.0
    %5040 = vmatpush1.msra.mxu0 %v2847
    %5041 = vmatprep.subr.mxu0 0.0
    %5042 = vmatpush1.msra.mxu0 %v2848
    %5043 = vmatprep.subr.mxu0 0.0
    %5044 = vmatpush1.msra.mxu0 0.0
    %5045 = vmatprep.subr.mxu0 0.0
    %5046 = vmatpush1.msra.mxu0 0.0
    %5047 = vmatprep.subr.mxu0 0.0
    %5048 = vmatpush1.msra.mxu0 0.0
    %5049 = vmatprep.subr.mxu0 0.0
    %5050 = vmatpush1.msra.mxu0 0.0
    %5051 = vmatprep.subr.mxu0 0.0
    %5052 = vmatpush1.msra.mxu0 0.0
    %5053 = vmatprep.subr.mxu0 0.0
    %5054 = vmatpush1.msra.mxu0 0.0
    %5055 = vmatprep.subr.mxu0 0.0
    %5056 = vmatpush1.msra.mxu0 0.0
    %5057 = vmatprep.subr.mxu0 0.0
    %5058 = vmatpush1.msra.mxu0 0.0
    %5059 = vmatprep.subr.mxu0 0.0
    %5060 = vmatpush1.msra.mxu0 0.0
    %5061 = vmatprep.subr.mxu0 0.0
    %5062 = vmatpush1.msra.mxu0 0.0
    %5063 = vmatprep.subr.mxu0 0.0
    %5064 = vmatpush1.msra.mxu0 0.0
    %5065 = vmatprep.subr.mxu0 0.0
    %5066 = vmatpush1.msra.mxu0 0.0
    %5067 = vmatprep.subr.mxu0 0.0
    %5068 = vmatpush1.msra.mxu0 0.0
    %5069 = vmatprep.subr.mxu0 0.0
    %5070 = vmatpush1.msra.mxu0 0.0
    %5071 = vmatprep.subr.mxu0 0.0
    %5072 = vmatpush1.msra.mxu0 0.0
    %5073 = vmatprep.subr.mxu0 0.0
    %5074 = vmatpush1.msra.mxu0 0.0
    %5075 = vmatprep.subr.mxu0 0.0
    %5076 = vmatpush1.msra.mxu0 0.0
    %5077 = vmatprep.subr.mxu0 0.0
    %5078 = vmatpush1.msra.mxu0 0.0
    %5079 = vmatprep.subr.mxu0 0.0
    %5080 = vmatpush1.msra.mxu0 0.0
    %5081 = vmatprep.subr.mxu0 0.0
    %5082 = vmatpush1.msra.mxu0 0.0
    %5083 = vmatprep.subr.mxu0 0.0
    %5084 = vmatpush1.msra.mxu0 0.0
    %5085 = vmatprep.subr.mxu0 0.0
    %5086 = vmatpush1.msra.mxu0 0.0
    %5087 = vmatprep.subr.mxu0 0.0
    %5088 = vmatpush1.msra.mxu0 0.0
    %5089 = vmatprep.subr.mxu0 0.0
    %5090 = vmatpush1.msra.mxu0 0.0
    %5091 = vmatprep.subr.mxu0 0.0
    %5092 = vmatpush1.msra.mxu0 0.0
    %5093 = vmatprep.subr.mxu0 0.0
    %5094 = vmatpush1.msra.mxu0 0.0
    %5095 = vmatprep.subr.mxu0 0.0
    %5096 = vmatpush1.msra.mxu0 0.0
    %5097 = vmatprep.subr.mxu0 0.0
    %5098 = vmatpush1.msra.mxu0 0.0
    %5099 = vmatprep.mubr.f32.mxu0 0.0
    %5100 = vmatmul.mubr.f32.gmra.mrb[0].mxu0 %v5030
    %v5101 = vpop.f32.mrb[0].mxu0
    %v5102 = vadd.f32 %v5027, %v5101
    %v5103 = vpop.f32.mrb[0].mxu0
    %5104 = vmatprep.mubr.f32.mxu0 0.0
    %5105 = vmatmul.mubr.f32.gmra.mrb[0].mxu0 %v5033
    %v5106 = vpop.f32.mrb[0].mxu0
    %v5107 = vadd.f32 %v5027, %v5106
    %v5108 = vpop.f32.mrb[0].mxu0
    %5109 = vdwg.mxu0
    %v5110 = vadd.f32 %v3978, %v5102
    %v5111 = vadd.f32 %v3979, %v5107
    %v5112 = vsel %vm310, %v5110, 0.0
    %5113 = vadd.xlane.f32.xlu0 %v5112
    %v5114 = vpop.xlane.xlu0 %5113
    %v5115 = vsel %vm310, %v5111, 0.0
    %5116 = vadd.xlane.f32.xlu0 %v5115
    %v5117 = vpop.xlane.xlu0 %5116
    %v5118 = vmul.f32 %v5114, %v1366
    %v5119 = vmul.f32 %v5117, %v1366
    %v5120 = vsub.f32 %v5110, %v5118
    %v5121 = vsub.f32 %v5111, %v5119
    %v5122 = vmul.f32 %v5120, %v5120
    %v5123 = vmul.f32 %v5121, %v5121
    %v5124 = vsel %vm310, %v5122, 0.0
    %5125 = vadd.xlane.f32.xlu0 %v5124
    %v5126 = vpop.xlane.xlu0 %5125
    %v5127 = vsel %vm310, %v5123, 0.0
    %5128 = vadd.xlane.f32.xlu0 %v5127
    %v5129 = vpop.xlane.xlu0 %5128
    %v5130 = vmul.f32 %v5126, %v1366
    %v5131 = vmul.f32 %v5129, %v1366
    %v5132 = vadd.f32 %v5130, 1e-06
    %v5133 = vadd.f32 %v5131, 1e-06
    %v5134 = vrsqrt.pop %v5132
    %v5135 = vrsqrt.pop %v5133
    %v5136 = vmul.f32 %v5120, %v5134
    %v5137 = vmul.f32 %v5121, %v5135
    %v5139 = vlaneseq
    %v5140 = vshrl.u32 %v5139, 7
    %v5141 = vsub.s32 0, %v5140
    %v5142 = vrot.slane %v2852, %v5141
    %v5144 = vmul.f32 %v5136, %v5142
    %v5145 = vmul.f32 %v5137, %v5142
    %v5147 = vlaneseq
    %v5148 = vshrl.u32 %v5147, 7
    %v5149 = vsub.s32 0, %v5148
    %v5150 = vrot.slane %v2854, %v5149
    %v5152 = vadd.f32 %v5144, %v5150
    %v5153 = vadd.f32 %v5145, %v5150
    %v5155 = vlaneseq
    %v5156 = vshrl.u32 %v5155, 7
    %v5157 = vsub.s32 0, %v5156
    %v5158 = vrot.slane %v2861, %v5157
    %v5161 = vsel %vm310, %v5152, 0
    %v5164 = vsel %vm310, %v5153, 0
    %5166 = vmatprep.subr.mxu0 0.0
    %5167 = vmatpush1.msra.mxu0 %v2856
    %5168 = vmatprep.subr.mxu0 0.0
    %5169 = vmatpush1.msra.mxu0 %v2857
    %5170 = vmatprep.subr.mxu0 0.0
    %5171 = vmatpush1.msra.mxu0 %v2858
    %5172 = vmatprep.subr.mxu0 0.0
    %5173 = vmatpush1.msra.mxu0 %v2859
    %5174 = vmatprep.subr.mxu0 0.0
    %5175 = vmatpush1.msra.mxu0 0.0
    %5176 = vmatprep.subr.mxu0 0.0
    %5177 = vmatpush1.msra.mxu0 0.0
    %5178 = vmatprep.subr.mxu0 0.0
    %5179 = vmatpush1.msra.mxu0 0.0
    %5180 = vmatprep.subr.mxu0 0.0
    %5181 = vmatpush1.msra.mxu0 0.0
    %5182 = vmatprep.subr.mxu0 0.0
    %5183 = vmatpush1.msra.mxu0 0.0
    %5184 = vmatprep.subr.mxu0 0.0
    %5185 = vmatpush1.msra.mxu0 0.0
    %5186 = vmatprep.subr.mxu0 0.0
    %5187 = vmatpush1.msra.mxu0 0.0
    %5188 = vmatprep.subr.mxu0 0.0
    %5189 = vmatpush1.msra.mxu0 0.0
    %5190 = vmatprep.subr.mxu0 0.0
    %5191 = vmatpush1.msra.mxu0 0.0
    %5192 = vmatprep.subr.mxu0 0.0
    %5193 = vmatpush1.msra.mxu0 0.0
    %5194 = vmatprep.subr.mxu0 0.0
    %5195 = vmatpush1.msra.mxu0 0.0
    %5196 = vmatprep.subr.mxu0 0.0
    %5197 = vmatpush1.msra.mxu0 0.0
    %5198 = vmatprep.subr.mxu0 0.0
    %5199 = vmatpush1.msra.mxu0 0.0
    %5200 = vmatprep.subr.mxu0 0.0
    %5201 = vmatpush1.msra.mxu0 0.0
    %5202 = vmatprep.subr.mxu0 0.0
    %5203 = vmatpush1.msra.mxu0 0.0
    %5204 = vmatprep.subr.mxu0 0.0
    %5205 = vmatpush1.msra.mxu0 0.0
    %5206 = vmatprep.subr.mxu0 0.0
    %5207 = vmatpush1.msra.mxu0 0.0
    %5208 = vmatprep.subr.mxu0 0.0
    %5209 = vmatpush1.msra.mxu0 0.0
    %5210 = vmatprep.subr.mxu0 0.0
    %5211 = vmatpush1.msra.mxu0 0.0
    %5212 = vmatprep.subr.mxu0 0.0
    %5213 = vmatpush1.msra.mxu0 0.0
    %5214 = vmatprep.subr.mxu0 0.0
    %5215 = vmatpush1.msra.mxu0 0.0
    %5216 = vmatprep.subr.mxu0 0.0
    %5217 = vmatpush1.msra.mxu0 0.0
    %5218 = vmatprep.subr.mxu0 0.0
    %5219 = vmatpush1.msra.mxu0 0.0
    %5220 = vmatprep.subr.mxu0 0.0
    %5221 = vmatpush1.msra.mxu0 0.0
    %5222 = vmatprep.subr.mxu0 0.0
    %5223 = vmatpush1.msra.mxu0 0.0
    %5224 = vmatprep.subr.mxu0 0.0
    %5225 = vmatpush1.msra.mxu0 0.0
    %5226 = vmatprep.subr.mxu0 0.0
    %5227 = vmatpush1.msra.mxu0 0.0
    %5228 = vmatprep.subr.mxu0 0.0
    %5229 = vmatpush1.msra.mxu0 0.0
    %5230 = vmatprep.mubr.f32.mxu0 0.0
    %5231 = vmatmul.mubr.f32.gmra.mrb[0].mxu0 %v5161
    %v5232 = vpop.f32.mrb[0].mxu0
    %v5233 = vadd.f32 %v5158, %v5232
    %v5234 = vpop.f32.mrb[0].mxu0
    %5235 = vmatprep.mubr.f32.mxu0 0.0
    %5236 = vmatmul.mubr.f32.gmra.mrb[0].mxu0 %v5164
    %v5237 = vpop.f32.mrb[0].mxu0
    %v5238 = vadd.f32 %v5158, %v5237
    %v5239 = vpop.f32.mrb[0].mxu0
    %5240 = vdwg.mxu0
    %v5241 = vmul.f32 %v5233, 0.5
    %v5242 = vmul.f32 %v5238, 0.5
    %v5243 = vmul.f32 %v5233, 0.044715
    %v5244 = vmul.f32 %v5238, 0.044715
    %v5245 = vmul.f32 %v5243, %v5233
    %v5246 = vmul.f32 %v5244, %v5238
    %v5247 = vmul.f32 %v5245, %v5233
    %v5248 = vmul.f32 %v5246, %v5238
    %v5249 = vadd.f32 %v5233, %v5247
    %v5250 = vadd.f32 %v5238, %v5248
    %v5251 = vmul.f32 %v5249, 0.7978846
    %v5252 = vmul.f32 %v5250, 0.7978846
    %v5253 = vtanh.pop %v5251
    %v5254 = vtanh.pop %v5252
    %v5255 = vadd.f32 %v5253, 1.0
    %v5256 = vadd.f32 %v5254, 1.0
    %v5257 = vmul.f32 %v5241, %v5255
    %v5258 = vmul.f32 %v5242, %v5256
    %v5260 = vlaneseq
    %v5261 = vshrl.u32 %v5260, 7
    %v5262 = vsub.s32 0, %v5261
    %v5263 = vrot.slane %v2880, %v5262
    %5265 = vmatprep.subr.mxu0 0.0
    %5266 = vmatpush1.msra.mxu0 %v2863
    %5267 = vmatprep.subr.mxu0 0.0
    %5268 = vmatpush1.msra.mxu0 %v2864
    %5269 = vmatprep.subr.mxu0 0.0
    %5270 = vmatpush1.msra.mxu0 %v2865
    %5271 = vmatprep.subr.mxu0 0.0
    %5272 = vmatpush1.msra.mxu0 %v2866
    %5273 = vmatprep.subr.mxu0 0.0
    %5274 = vmatpush1.msra.mxu0 %v2867
    %5275 = vmatprep.subr.mxu0 0.0
    %5276 = vmatpush1.msra.mxu0 %v2868
    %5277 = vmatprep.subr.mxu0 0.0
    %5278 = vmatpush1.msra.mxu0 %v2869
    %5279 = vmatprep.subr.mxu0 0.0
    %5280 = vmatpush1.msra.mxu0 %v2870
    %5281 = vmatprep.subr.mxu0 0.0
    %5282 = vmatpush1.msra.mxu0 %v2871
    %5283 = vmatprep.subr.mxu0 0.0
    %5284 = vmatpush1.msra.mxu0 %v2872
    %5285 = vmatprep.subr.mxu0 0.0
    %5286 = vmatpush1.msra.mxu0 %v2873
    %5287 = vmatprep.subr.mxu0 0.0
    %5288 = vmatpush1.msra.mxu0 %v2874
    %5289 = vmatprep.subr.mxu0 0.0
    %5290 = vmatpush1.msra.mxu0 %v2875
    %5291 = vmatprep.subr.mxu0 0.0
    %5292 = vmatpush1.msra.mxu0 %v2876
    %5293 = vmatprep.subr.mxu0 0.0
    %5294 = vmatpush1.msra.mxu0 %v2877
    %5295 = vmatprep.subr.mxu0 0.0
    %5296 = vmatpush1.msra.mxu0 %v2878
    %5297 = vmatprep.subr.mxu0 0.0
    %5298 = vmatpush1.msra.mxu0 0.0
    %5299 = vmatprep.subr.mxu0 0.0
    %5300 = vmatpush1.msra.mxu0 0.0
    %5301 = vmatprep.subr.mxu0 0.0
    %5302 = vmatpush1.msra.mxu0 0.0
    %5303 = vmatprep.subr.mxu0 0.0
    %5304 = vmatpush1.msra.mxu0 0.0
    %5305 = vmatprep.subr.mxu0 0.0
    %5306 = vmatpush1.msra.mxu0 0.0
    %5307 = vmatprep.subr.mxu0 0.0
    %5308 = vmatpush1.msra.mxu0 0.0
    %5309 = vmatprep.subr.mxu0 0.0
    %5310 = vmatpush1.msra.mxu0 0.0
    %5311 = vmatprep.subr.mxu0 0.0
    %5312 = vmatpush1.msra.mxu0 0.0
    %5313 = vmatprep.subr.mxu0 0.0
    %5314 = vmatpush1.msra.mxu0 0.0
    %5315 = vmatprep.subr.mxu0 0.0
    %5316 = vmatpush1.msra.mxu0 0.0
    %5317 = vmatprep.subr.mxu0 0.0
    %5318 = vmatpush1.msra.mxu0 0.0
    %5319 = vmatprep.subr.mxu0 0.0
    %5320 = vmatpush1.msra.mxu0 0.0
    %5321 = vmatprep.subr.mxu0 0.0
    %5322 = vmatpush1.msra.mxu0 0.0
    %5323 = vmatprep.subr.mxu0 0.0
    %5324 = vmatpush1.msra.mxu0 0.0
    %5325 = vmatprep.subr.mxu0 0.0
    %5326 = vmatpush1.msra.mxu0 0.0
    %5327 = vmatprep.subr.mxu0 0.0
    %5328 = vmatpush1.msra.mxu0 0.0
    %5329 = vmatprep.mubr.f32.mxu0 0.0
    %5330 = vmatmul.mubr.f32.gmra.mrb[0].mxu0 %v5257
    %v5331 = vpop.f32.mrb[0].mxu0
    %v5332 = vadd.f32 %v5263, %v5331
    %v5333 = vpop.f32.mrb[0].mxu0
    %5334 = vmatprep.mubr.f32.mxu0 0.0
    %5335 = vmatmul.mubr.f32.gmra.mrb[0].mxu0 %v5258
    %v5336 = vpop.f32.mrb[0].mxu0
    %v5337 = vadd.f32 %v5263, %v5336
    %v5338 = vpop.f32.mrb[0].mxu0
    %5339 = vdwg.mxu0
    %v5340 = vadd.f32 %v5152, %v5332
    %v5341 = vadd.f32 %v5153, %v5337
    %v5342 = vsel %vm310, %v5340, 0.0
    %5343 = vadd.xlane.f32.xlu0 %v5342
    %v5344 = vpop.xlane.xlu0 %5343
    %v5345 = vsel %vm310, %v5341, 0.0
    %5346 = vadd.xlane.f32.xlu0 %v5345
    %v5347 = vpop.xlane.xlu0 %5346
    %v5348 = vmul.f32 %v5344, %v1366
    %v5349 = vmul.f32 %v5347, %v1366
    %v5350 = vsub.f32 %v5340, %v5348
    %v5351 = vsub.f32 %v5341, %v5349
    %v5352 = vmul.f32 %v5350, %v5350
    %v5353 = vmul.f32 %v5351, %v5351
    %v5354 = vsel %vm310, %v5352, 0.0
    %5355 = vadd.xlane.f32.xlu0 %v5354
    %v5356 = vpop.xlane.xlu0 %5355
    %v5357 = vsel %vm310, %v5353, 0.0
    %5358 = vadd.xlane.f32.xlu0 %v5357
    %v5359 = vpop.xlane.xlu0 %5358
    %v5360 = vmul.f32 %v5356, %v1366
    %v5361 = vmul.f32 %v5359, %v1366
    %v5362 = vadd.f32 %v5360, 1e-06
    %v5363 = vadd.f32 %v5361, 1e-06
    %v5364 = vrsqrt.pop %v5362
    %v5365 = vrsqrt.pop %v5363
    %v5366 = vmul.f32 %v5350, %v5364
    %v5367 = vmul.f32 %v5351, %v5365
    %v5369 = vlaneseq
    %v5370 = vshrl.u32 %v5369, 7
    %v5371 = vsub.s32 0, %v5370
    %v5372 = vrot.slane %v2882, %v5371
    %v5374 = vmul.f32 %v5366, %v5372
    %v5375 = vmul.f32 %v5367, %v5372
    %v5377 = vlaneseq
    %v5378 = vshrl.u32 %v5377, 7
    %v5379 = vsub.s32 0, %v5378
    %v5380 = vrot.slane %v2884, %v5379
    %v5382 = vadd.f32 %v5374, %v5380
    %v5383 = vadd.f32 %v5375, %v5380
    %5384 = vst.msk [vmem:[#allocation8] sm:$0xff] %vm310, %v5382
    %5385 = vst.msk [vmem:[#allocation8 + $0x8] sm:$0xff] %vm310, %v5383
    // Predicated region
    $region118: #{tpu_custom_call.1} parent=1 // pred_check
      _
    $region119: #{tpu_custom_call.1} parent=1 // pred_check_branch
      %5387 = sbr.rel (0) target = $region121
    $region120: #{tpu_custom_call.1} parent=1 // pred_region
      %s5389 = ssub.s32 256, 256
      %5390 = vsyncadd [#allocation4], %s5389
      %s5391 = sshll.u32 [#allocation8], 4
      %s5392 = int_to_ptr.vmem [resolvable:$true] %s5391
      %5397 = dma.vmem_to_hbm [thread:$0]  %s5392, 256, %s26, [#allocation4], 128, 128, 8
    $region121: #{tpu_custom_call.1} parent=1 // pred_fallthru
      _
    // Predicated region
    $region122: #{tpu_custom_call.1} parent=1 // pred_check
      _
    $region123: #{tpu_custom_call.1} parent=1 // pred_check_branch
      %5399 = sbr.rel (0) target = $region125
    $region124: #{tpu_custom_call.1} parent=1 // pred_region
      %s5401 = ssub.s32 2048, 2048
      %5402 = vsyncadd [#allocation10], %s5401
      %s5403 = sshll.u32 [#allocation9], 4
      %s5404 = int_to_ptr.vmem [resolvable:$true] %s5403
      %5409 = dma.vmem_to_hbm [thread:$0]  %s5404, 2048, %s27, [#allocation10], 128, 128, 8
    $region125: #{tpu_custom_call.1} parent=1 // pred_fallthru
      _
    // Predicated region
    $region126: #{tpu_custom_call.1} parent=1 // pred_check
      _
    $region127: #{tpu_custom_call.1} parent=1 // pred_check_branch
      %5411 = sbr.rel (0) target = $region129
    $region128: #{tpu_custom_call.1} parent=1 // pred_region
      %s5413 = ssub.s32 2048, 2048
      %5414 = vsyncadd [#allocation10], %s5413
      %s5415 = sshll.u32 [#allocation11], 4
      %s5416 = int_to_ptr.vmem [resolvable:$true] %s5415
      %5421 = dma.vmem_to_hbm [thread:$0]  %s5416, 2048, %s28, [#allocation10], 128, 128, 8
    $region129: #{tpu_custom_call.1} parent=1 // pred_fallthru
      _
    // Predicated region
    $region130: #{tpu_custom_call.1} parent=1 // pred_check
      _
    $region131: #{tpu_custom_call.1} parent=1 // pred_check_branch
      %5423 = sbr.rel (0) target = $region133
    $region132: #{tpu_custom_call.1} parent=1 // pred_region
      %5424 = dma.done [#allocation4], 256
    $region133: #{tpu_custom_call.1} parent=1 // pred_fallthru
      _
    // Predicated region
    $region134: #{tpu_custom_call.1} parent=1 // pred_check
      _
    $region135: #{tpu_custom_call.1} parent=1 // pred_check_branch
      %5426 = sbr.rel (0) target = $region137
    $region136: #{tpu_custom_call.1} parent=1 // pred_region
      %5427 = dma.done [#allocation10], 2048
    $region137: #{tpu_custom_call.1} parent=1 // pred_fallthru
      _
    // Predicated region
    $region138: #{tpu_custom_call.1} parent=1 // pred_check
      _
    $region139: #{tpu_custom_call.1} parent=1 // pred_check_branch
      %5429 = sbr.rel (0) target = $region141
    $region140: #{tpu_custom_call.1} parent=1 // pred_region
      %5430 = dma.done [#allocation10], 2048
    $region141: #{tpu_custom_call.1} parent=1 // pred_fallthru
      _
    %5431 = vsyncpa [#allocation3], 1
    %5432 = vsyncpa [#allocation6], 1
    %5433 = vsyncpa [#allocation4], 1
    %5434 = vsyncpa [#allocation10], 1

</llo_original>
